<compile_context>
chip_gen: v6e
topology: v6e:2x2x1
jax: 0.10.0
libtpu: 0.0.40
codegen_flags: <defaults>
</compile_context>

<pallas_src>
import math

import jax
import jax.numpy as jnp
from jax.experimental import pallas as pl
from jax.experimental.pallas import tpu as pltpu

# Fixed hyper-parameters from shared_layer.__init__
HIDDEN = 256
HEADS = 2
D_K = HIDDEN // HEADS          # 128 == exactly one lane width per head
D_FF = HIDDEN * 4
N_LAYERS = 2
CONV_K = 5
CONV_PAD = 2
CONV_KP = 8                    # conv taps zero-padded to a sublane-aligned K
DECONV_K = 4
LN_EPS = 1e-9
_GELU_C = math.sqrt(2.0 / math.pi)


# ----------------------------- shared math helpers -----------------------------
def _layer_norm(x, w, b):
    # Matches the custom LayerNorm: unbiased std (N-1), eps added to std.
    mean = jnp.mean(x, axis=-1, keepdims=True)
    var = jnp.sum((x - mean) ** 2, axis=-1, keepdims=True) / (x.shape[-1] - 1)
    return w * (x - mean) / (jnp.sqrt(var) + LN_EPS) + b


def _gelu(x):
    # GELU tanh approximation, exactly as the PyTorch module writes it.
    return 0.5 * x * (1.0 + jnp.tanh(_GELU_C * (x + 0.044715 * x * x * x)))


def _mm(x3, w, b=None):
    # (TB, S, Fin) @ (Fin, Fout) via a 2-D MXU matmul (merge leading dims only).
    tb, s, fin = x3.shape
    y = jnp.dot(x3.reshape(tb * s, fin), w, preferred_element_type=jnp.float32)
    y = y.reshape(tb, s, w.shape[1])
    return y if b is None else y + b


# ----------------------------------- kernel ------------------------------------
def shared_layer_kernel(xwin_ref, conv_w_ref, conv_b_ref, pe_ref,
                        ln0w_ref, ln0b_ref, *rest):
    out_ref = rest[-1]
    dconv_b_ref = rest[-2]
    dconv_w_ref = rest[-3]
    block_refs = rest[:-3]          # 12 refs per transformer block

    tb, l, _ = xwin_ref.shape       # l = window_size
    s = l // 2                      # latent_len

    # --- Conv1d(1 -> H, k=5, stride=1, replicate padding done in the wrapper) ---
    # im2col windows (TB, L, 8) -> one small matmul against the (8, H) taps.
    xw = xwin_ref[...].reshape(tb * l, CONV_KP)
    conv = jnp.dot(xw, conv_w_ref[...], preferred_element_type=jnp.float32)
    conv = conv.reshape(tb, l, HIDDEN) + conv_b_ref[...]            # (tb, l, H)

    # --- LPPool1d(norm_type=2, kernel=2, stride=2) along the length axis ---
    sq = (conv * conv).reshape(tb, s, 2, HIDDEN)
    x = jnp.sqrt(sq[:, :, 0, :] + sq[:, :, 1, :])                   # (tb, s, H)

    # --- positional embedding + LayerNorm (dropout == identity in eval) ---
    x = x + pe_ref[...]
    x = _layer_norm(x, ln0w_ref[...], ln0b_ref[...])

    # --- transformer blocks ---
    for layer in range(N_LAYERS):
        (wqkv_r, bqkv_r, wo_r, bo_r, ln1w_r, ln1b_r,
         w1_r, b1_r, w2_r, b2_r, ln2w_r, ln2b_r) = \
            block_refs[layer * 12:(layer + 1) * 12]

        # Multi-headed self-attention (mask=None), fused QKV projection.
        qkv = _mm(x, wqkv_r[...], bqkv_r[...])                      # (tb, s, 3H)
        scale = 1.0 / math.sqrt(D_K)
        ctx_heads = []
        for h in range(HEADS):
            qh = qkv[:, :, h * D_K:(h + 1) * D_K]
            kh = qkv[:, :, HIDDEN + h * D_K:HIDDEN + (h + 1) * D_K]
            vh = qkv[:, :, 2 * HIDDEN + h * D_K:2 * HIDDEN + (h + 1) * D_K]
            sc = jnp.einsum('bqd,bkd->bqk', qh, kh,
                            preferred_element_type=jnp.float32) * scale
            sc = sc - jnp.max(sc, axis=-1, keepdims=True)
            p = jnp.exp(sc)
            p = p / jnp.sum(p, axis=-1, keepdims=True)
            ctx_heads.append(jnp.einsum('bqk,bkd->bqd', p, vh,
                                        preferred_element_type=jnp.float32))
        ctx = jnp.concatenate(ctx_heads, axis=-1)                   # (tb, s, H)
        attn = _mm(ctx, wo_r[...], bo_r[...])
        x = _layer_norm(x + attn, ln1w_r[...], ln1b_r[...])

        # Position-wise feed-forward with tanh-GELU.
        h1 = _gelu(_mm(x, w1_r[...], b1_r[...]))
        ff = _mm(h1, w2_r[...], b2_r[...])
        x = _layer_norm(x + ff, ln2w_r[...], ln2b_r[...])

    # --- ConvTranspose1d(H -> H, k=4, stride=2, padding=1) along the token axis ---
    # out[2m]   = x[m] @ W[...,1] + x[m-1] @ W[...,3] + b
    # out[2m+1] = x[m] @ W[...,2] + x[m+1] @ W[...,0] + b
    taps = [_mm(x, dconv_w_ref[k]) for k in range(DECONV_K)]        # (tb, s, H) each
    zero = jnp.zeros((tb, 1, HIDDEN), jnp.float32)
    prev = jnp.concatenate([zero, taps[3][:, :-1, :]], axis=1)      # x[m-1] term
    nxt = jnp.concatenate([taps[0][:, 1:, :], zero], axis=1)        # x[m+1] term
    db = dconv_b_ref[...]
    out_even = taps[1] + prev + db
    out_odd = taps[2] + nxt + db
    out_ref[:, 0, :, :] = out_even.astype(out_ref.dtype)
    out_ref[:, 1, :, :] = out_odd.astype(out_ref.dtype)


# ---------------------------------- wrapper -------------------------------------
def shared_layer_forward(sequence, params, *, batch_tile=8):
    """sequence: (B, window_size) f32.  Returns (B, HIDDEN, window_size) f32."""
    B, L = sequence.shape
    assert L % 2 == 0, "window_size must be even"
    S = L // 2
    H = HIDDEN

    # Replicate padding + im2col for the k=5 conv (cheap layout plumbing in XLA).
    left = jnp.repeat(sequence[:, :1], CONV_PAD, axis=1)
    right = jnp.repeat(sequence[:, -1:], CONV_PAD, axis=1)
    seq_pad = jnp.concatenate([left, sequence, right], axis=1)      # (B, L+4)
    xwin = jnp.stack([seq_pad[:, k:k + L] for k in range(CONV_K)], axis=-1)
    xwin = jnp.pad(xwin, ((0, 0), (0, 0), (0, CONV_KP - CONV_K)))   # (B, L, 8)

    # Batch tiling (pad B to a multiple of the tile; padded rows discarded later).
    tb = max(1, min(batch_tile, B))
    bp = ((B + tb - 1) // tb) * tb
    if bp != B:
        xwin = jnp.pad(xwin, ((0, bp - B), (0, 0), (0, 0)))

    def as2d(v):
        return v.reshape(1, -1)

    conv_w = jnp.pad(params['conv_w'], ((0, CONV_KP - CONV_K), (0, 0)))  # (8, H)
    weight_inputs = [conv_w, as2d(params['conv_b']), params['pe'],
                     as2d(params['ln0_w']), as2d(params['ln0_b'])]
    for blk in params['blocks']:
        weight_inputs += [
            blk['wqkv'], as2d(blk['bqkv']), blk['wo'], as2d(blk['bo']),
            as2d(blk['ln1_w']), as2d(blk['ln1_b']),
            blk['w1'], as2d(blk['b1']), blk['w2'], as2d(blk['b2']),
            as2d(blk['ln2_w']), as2d(blk['ln2_b']),
        ]
    weight_inputs += [params['dconv_w'], as2d(params['dconv_b'])]

    # BlockSpecs: only the sequence windows are tiled over batch; every weight uses
    # a constant index_map so it stays VMEM-resident across grid iterations.
    in_specs = [pl.BlockSpec((tb, L, CONV_KP), lambda i: (i, 0, 0))]
    for w in weight_inputs:
        in_specs.append(pl.BlockSpec(w.shape, lambda i, _nd=w.ndim: (0,) * _nd))

    # Advisory cost estimate so XLA can schedule around the kernel.
    tokens = bp * S
    per_layer = 2 * H * 3 * H + 4 * S * H + 2 * H * H + 4 * H * D_FF
    flops = tokens * (N_LAYERS * per_layer + DECONV_K * 2 * H * H) \
        + bp * L * 2 * CONV_KP * H
    transcendentals = tokens * N_LAYERS * (HEADS * S + D_FF)
    bytes_accessed = 4 * (int(xwin.size)
                          + sum(int(w.size) for w in weight_inputs)
                          + bp * 2 * S * H)

    out = pl.pallas_call(
        shared_layer_kernel,
        out_shape=jax.ShapeDtypeStruct((bp, 2, S, H), jnp.float32),
        grid=(bp // tb,),
        in_specs=in_specs,
        out_specs=pl.BlockSpec((tb, 2, S, H), lambda i: (i, 0, 0, 0)),
        compiler_params=pltpu.CompilerParams(
            dimension_semantics=("parallel",),          # batch axis -> both TCs on v7x
            vmem_limit_bytes=48 * 1024 * 1024),         # explicit, < 64 MiB (v7x)
        cost_estimate=pl.CostEstimate(
            flops=flops, transcendentals=transcendentals,
            bytes_accessed=bytes_accessed),
    )(xwin, *weight_inputs)

    out = out[:B]                                       # (B, 2, S, H)
    out = out.transpose(0, 2, 1, 3).reshape(B, 2 * S, H)   # interleave even/odd positions
    return out.transpose(0, 2, 1)                       # (B, HIDDEN, window_size)


# -------------------------- pure-JAX reference (independent) --------------------
def shared_layer_reference(sequence, params):
    B, L = sequence.shape
    S = L // 2
    H = HIDDEN
    with jax.default_matmul_precision("highest"):
        left = jnp.repeat(sequence[:, :1], CONV_PAD, axis=1)
        right = jnp.repeat(sequence[:, -1:], CONV_PAD, axis=1)
        seq_pad = jnp.concatenate([left, sequence, right], axis=1)

        # Conv1d via explicit taps (different formulation from the kernel).
        conv = jnp.zeros((B, L, H), jnp.float32)
        for k in range(CONV_K):
            conv = conv + seq_pad[:, k:k + L, None] * params['conv_w'][k][None, None, :]
        conv = conv + params['conv_b']

        # LPPool1d (p=2, k=2, s=2) via strided slicing.
        sq = conv * conv
        x = jnp.sqrt(sq[:, 0::2, :] + sq[:, 1::2, :])

        x = x + params['pe'][None]
        x = _layer_norm(x, params['ln0_w'], params['ln0_b'])

        for blk in params['blocks']:
            qkv = x @ blk['wqkv'] + blk['bqkv']
            q, k, v = jnp.split(qkv, 3, axis=-1)

            def heads(t):
                return t.reshape(B, S, HEADS, D_K).transpose(0, 2, 1, 3)

            q, k, v = heads(q), heads(k), heads(v)
            sc = jnp.einsum('bhqd,bhkd->bhqk', q, k) / math.sqrt(D_K)
            p = jax.nn.softmax(sc, axis=-1)
            ctx = jnp.einsum('bhqk,bhkd->bhqd', p, v)
            ctx = ctx.transpose(0, 2, 1, 3).reshape(B, S, H)
            attn = ctx @ blk['wo'] + blk['bo']
            x = _layer_norm(x + attn, blk['ln1_w'], blk['ln1_b'])
            h1 = _gelu(x @ blk['w1'] + blk['b1'])
            ff = h1 @ blk['w2'] + blk['b2']
            x = _layer_norm(x + ff, blk['ln2_w'], blk['ln2_b'])

        # ConvTranspose1d(k=4, stride=2, padding=1), scatter formulation.
        Lout = 2 * S
        out = jnp.zeros((B, Lout, H), jnp.float32)
        for o in range(Lout):
            acc = jnp.zeros((B, H), jnp.float32)
            for k in range(DECONV_K):
                num = o + 1 - k
                if num % 2 == 0 and 0 <= num // 2 < S:
                    acc = acc + x[:, num // 2, :] @ params['dconv_w'][k]
            out = out.at[:, o, :].set(acc + params['dconv_b'])
        return out.transpose(0, 2, 1)                   # (B, HIDDEN, window_size)


# ------------------------------------ test --------------------------------------
if __name__ == "__main__":
    key = jax.random.PRNGKey(0)
    B = 2
    window = 16                       # args.window_size (latent_len = 8)
    S = window // 2
    H = HIDDEN

    keys = iter(jax.random.split(key, 64))

    def rnd(shape, scale=0.02):
        return jax.random.normal(next(keys), shape, dtype=jnp.float32) * scale

    params = {
        'conv_w': rnd((CONV_K, H)),
        'conv_b': rnd((H,)),
        'pe': rnd((S, H)),
        'ln0_w': jnp.ones((H,), jnp.float32),
        'ln0_b': jnp.zeros((H,), jnp.float32),
        'blocks': [],
        'dconv_w': rnd((DECONV_K, H, H)),
        'dconv_b': rnd((H,)),
    }
    for _ in range(N_LAYERS):
        params['blocks'].append({
            'wqkv': rnd((H, 3 * H)), 'bqkv': rnd((3 * H,)),
            'wo': rnd((H, H)), 'bo': rnd((H,)),
            'ln1_w': jnp.ones((H,), jnp.float32), 'ln1_b': jnp.zeros((H,), jnp.float32),
            'w1': rnd((H, D_FF)), 'b1': rnd((D_FF,)),
            'w2': rnd((D_FF, H)), 'b2': rnd((H,)),
            'ln2_w': jnp.ones((H,), jnp.float32), 'ln2_b': jnp.zeros((H,), jnp.float32),
        })

    sequence = jax.random.normal(next(keys), (B, window), dtype=jnp.float32)

    out = shared_layer_forward(sequence, params)
    out = jax.block_until_ready(out)

    ref = shared_layer_reference(sequence, params)
    assert out.shape == (B, H, window), out.shape
    max_err = float(jnp.max(jnp.abs(out - ref)))
    assert jnp.allclose(out, ref, atol=5e-3, rtol=5e-3), f"max abs err = {max_err}"

    print("KERNEL_OK")
</pallas_src>

<mosaic_0001>
module attributes {stable_mosaic.version = 11 : i64} {
  func.func @shared_layer_kernel(%arg0: i32, %arg1: memref<2x16x8xf32, #tpu.memory_space<vmem>>, %arg2: memref<8x256xf32, #tpu.memory_space<vmem>>, %arg3: memref<1x256xf32, #tpu.memory_space<vmem>>, %arg4: memref<8x256xf32, #tpu.memory_space<vmem>>, %arg5: memref<1x256xf32, #tpu.memory_space<vmem>>, %arg6: memref<1x256xf32, #tpu.memory_space<vmem>>, %arg7: memref<256x768xf32, #tpu.memory_space<vmem>>, %arg8: memref<1x768xf32, #tpu.memory_space<vmem>>, %arg9: memref<256x256xf32, #tpu.memory_space<vmem>>, %arg10: memref<1x256xf32, #tpu.memory_space<vmem>>, %arg11: memref<1x256xf32, #tpu.memory_space<vmem>>, %arg12: memref<1x256xf32, #tpu.memory_space<vmem>>, %arg13: memref<256x1024xf32, #tpu.memory_space<vmem>>, %arg14: memref<1x1024xf32, #tpu.memory_space<vmem>>, %arg15: memref<1024x256xf32, #tpu.memory_space<vmem>>, %arg16: memref<1x256xf32, #tpu.memory_space<vmem>>, %arg17: memref<1x256xf32, #tpu.memory_space<vmem>>, %arg18: memref<1x256xf32, #tpu.memory_space<vmem>>, %arg19: memref<256x768xf32, #tpu.memory_space<vmem>>, %arg20: memref<1x768xf32, #tpu.memory_space<vmem>>, %arg21: memref<256x256xf32, #tpu.memory_space<vmem>>, %arg22: memref<1x256xf32, #tpu.memory_space<vmem>>, %arg23: memref<1x256xf32, #tpu.memory_space<vmem>>, %arg24: memref<1x256xf32, #tpu.memory_space<vmem>>, %arg25: memref<256x1024xf32, #tpu.memory_space<vmem>>, %arg26: memref<1x1024xf32, #tpu.memory_space<vmem>>, %arg27: memref<1024x256xf32, #tpu.memory_space<vmem>>, %arg28: memref<1x256xf32, #tpu.memory_space<vmem>>, %arg29: memref<1x256xf32, #tpu.memory_space<vmem>>, %arg30: memref<1x256xf32, #tpu.memory_space<vmem>>, %arg31: memref<4x256x256xf32, #tpu.memory_space<vmem>>, %arg32: memref<1x256xf32, #tpu.memory_space<vmem>>, %arg33: memref<2x2x8x256xf32, #tpu.memory_space<vmem>>) attributes {dimension_semantics = [#tpu.dimension_semantics<parallel>], iteration_bounds = array<i64: 1>, scalar_prefetch = 0 : i64, scratch_operands = 0 : i64, tpu.core_type = #tpu.core_type<tc>, window_params = [{transform_indices = @transform_0, window_bounds = array<i64: 2, 16, 8>}, {pipeline_mode = #tpu.pipeline_mode<synchronous>, transform_indices = @transform_1, window_bounds = array<i64: 8, 256>}, {pipeline_mode = #tpu.pipeline_mode<synchronous>, transform_indices = @transform_2, window_bounds = array<i64: 1, 256>}, {pipeline_mode = #tpu.pipeline_mode<synchronous>, transform_indices = @transform_3, window_bounds = array<i64: 8, 256>}, {pipeline_mode = #tpu.pipeline_mode<synchronous>, transform_indices = @transform_4, window_bounds = array<i64: 1, 256>}, {pipeline_mode = #tpu.pipeline_mode<synchronous>, transform_indices = @transform_5, window_bounds = array<i64: 1, 256>}, {pipeline_mode = #tpu.pipeline_mode<synchronous>, transform_indices = @transform_6, window_bounds = array<i64: 256, 768>}, {pipeline_mode = #tpu.pipeline_mode<synchronous>, transform_indices = @transform_7, window_bounds = array<i64: 1, 768>}, {pipeline_mode = #tpu.pipeline_mode<synchronous>, transform_indices = @transform_8, window_bounds = array<i64: 256, 256>}, {pipeline_mode = #tpu.pipeline_mode<synchronous>, transform_indices = @transform_9, window_bounds = array<i64: 1, 256>}, {pipeline_mode = #tpu.pipeline_mode<synchronous>, transform_indices = @transform_10, window_bounds = array<i64: 1, 256>}, {pipeline_mode = #tpu.pipeline_mode<synchronous>, transform_indices = @transform_11, window_bounds = array<i64: 1, 256>}, {pipeline_mode = #tpu.pipeline_mode<synchronous>, transform_indices = @transform_12, window_bounds = array<i64: 256, 1024>}, {pipeline_mode = #tpu.pipeline_mode<synchronous>, transform_indices = @transform_13, window_bounds = array<i64: 1, 1024>}, {pipeline_mode = #tpu.pipeline_mode<synchronous>, transform_indices = @transform_14, window_bounds = array<i64: 1024, 256>}, {pipeline_mode = #tpu.pipeline_mode<synchronous>, transform_indices = @transform_15, window_bounds = array<i64: 1, 256>}, {pipeline_mode = #tpu.pipeline_mode<synchronous>, transform_indices = @transform_16, window_bounds = array<i64: 1, 256>}, {pipeline_mode = #tpu.pipeline_mode<synchronous>, transform_indices = @transform_17, window_bounds = array<i64: 1, 256>}, {pipeline_mode = #tpu.pipeline_mode<synchronous>, transform_indices = @transform_18, window_bounds = array<i64: 256, 768>}, {pipeline_mode = #tpu.pipeline_mode<synchronous>, transform_indices = @transform_19, window_bounds = array<i64: 1, 768>}, {pipeline_mode = #tpu.pipeline_mode<synchronous>, transform_indices = @transform_20, window_bounds = array<i64: 256, 256>}, {pipeline_mode = #tpu.pipeline_mode<synchronous>, transform_indices = @transform_21, window_bounds = array<i64: 1, 256>}, {pipeline_mode = #tpu.pipeline_mode<synchronous>, transform_indices = @transform_22, window_bounds = array<i64: 1, 256>}, {pipeline_mode = #tpu.pipeline_mode<synchronous>, transform_indices = @transform_23, window_bounds = array<i64: 1, 256>}, {pipeline_mode = #tpu.pipeline_mode<synchronous>, transform_indices = @transform_24, window_bounds = array<i64: 256, 1024>}, {pipeline_mode = #tpu.pipeline_mode<synchronous>, transform_indices = @transform_25, window_bounds = array<i64: 1, 1024>}, {pipeline_mode = #tpu.pipeline_mode<synchronous>, transform_indices = @transform_26, window_bounds = array<i64: 1024, 256>}, {pipeline_mode = #tpu.pipeline_mode<synchronous>, transform_indices = @transform_27, window_bounds = array<i64: 1, 256>}, {pipeline_mode = #tpu.pipeline_mode<synchronous>, transform_indices = @transform_28, window_bounds = array<i64: 1, 256>}, {pipeline_mode = #tpu.pipeline_mode<synchronous>, transform_indices = @transform_29, window_bounds = array<i64: 1, 256>}, {pipeline_mode = #tpu.pipeline_mode<synchronous>, transform_indices = @transform_30, window_bounds = array<i64: 4, 256, 256>}, {pipeline_mode = #tpu.pipeline_mode<synchronous>, transform_indices = @transform_31, window_bounds = array<i64: 1, 256>}, {transform_indices = @transform_32, window_bounds = array<i64: 2, 2, 8, 256>}]} {
    %c0 = arith.constant 0 : index
    %c0_0 = arith.constant 0 : index
    %c0_1 = arith.constant 0 : index
    %0 = vector.load %arg1[%c0, %c0_0, %c0_1] : memref<2x16x8xf32, #tpu.memory_space<vmem>>, vector<2x16x8xf32>
    %1 = vector.shape_cast %0 : vector<2x16x8xf32> to vector<32x8xf32>
    %c0_2 = arith.constant 0 : index
    %c0_3 = arith.constant 0 : index
    %2 = vector.load %arg2[%c0_2, %c0_3] : memref<8x256xf32, #tpu.memory_space<vmem>>, vector<8x256xf32>
    %cst = arith.constant dense<0.000000e+00> : vector<32x256xf32>
    %3 = tpu.matmul %1, %2, %cst {dimension_numbers = #tpu.dot_dimension_numbers<[1], [0], [0], [1], [0, 0, 1, 1], [], []>} : vector<32x8xf32>, vector<8x256xf32>, vector<32x256xf32> -> vector<32x256xf32>
    %4 = vector.shape_cast %3 : vector<32x256xf32> to vector<2x16x256xf32>
    %c0_4 = arith.constant 0 : index
    %c0_5 = arith.constant 0 : index
    %5 = vector.load %arg3[%c0_4, %c0_5] : memref<1x256xf32, #tpu.memory_space<vmem>>, vector<1x256xf32>
    %6 = vector.shape_cast %5 : vector<1x256xf32> to vector<1x1x256xf32>
    %7 = vector.broadcast %6 : vector<1x1x256xf32> to vector<2x16x256xf32>
    %8 = arith.addf %4, %7 : vector<2x16x256xf32>
    %9 = arith.mulf %8, %8 : vector<2x16x256xf32>
    %10 = vector.shape_cast %9 : vector<2x16x256xf32> to vector<2x8x2x256xf32>
    %11 = vector.extract_strided_slice %10 {offsets = [0, 0, 0, 0], sizes = [2, 8, 1, 256], strides = [1, 1, 1, 1]} : vector<2x8x2x256xf32> to vector<2x8x1x256xf32>
    %12 = vector.shape_cast %11 : vector<2x8x1x256xf32> to vector<2x8x256xf32>
    %13 = vector.extract_strided_slice %10 {offsets = [0, 0, 1, 0], sizes = [2, 8, 1, 256], strides = [1, 1, 1, 1]} : vector<2x8x2x256xf32> to vector<2x8x1x256xf32>
    %14 = vector.shape_cast %13 : vector<2x8x1x256xf32> to vector<2x8x256xf32>
    %15 = arith.addf %12, %14 : vector<2x8x256xf32>
    %16 = math.sqrt %15 : vector<2x8x256xf32>
    %c0_6 = arith.constant 0 : index
    %c0_7 = arith.constant 0 : index
    %17 = vector.load %arg4[%c0_6, %c0_7] : memref<8x256xf32, #tpu.memory_space<vmem>>, vector<8x256xf32>
    %18 = vector.shape_cast %17 : vector<8x256xf32> to vector<1x8x256xf32>
    %19 = vector.broadcast %18 : vector<1x8x256xf32> to vector<2x8x256xf32>
    %20 = arith.addf %16, %19 : vector<2x8x256xf32>
    %c0_8 = arith.constant 0 : index
    %c0_9 = arith.constant 0 : index
    %21 = vector.load %arg5[%c0_8, %c0_9] : memref<1x256xf32, #tpu.memory_space<vmem>>, vector<1x256xf32>
    %c0_10 = arith.constant 0 : index
    %c0_11 = arith.constant 0 : index
    %22 = vector.load %arg6[%c0_10, %c0_11] : memref<1x256xf32, #tpu.memory_space<vmem>>, vector<1x256xf32>
    %cst_12 = arith.constant dense<0.000000e+00> : vector<2x8xf32>
    %23 = vector.multi_reduction <add>, %20, %cst_12 [2] : vector<2x8x256xf32> to vector<2x8xf32>
    %24 = vector.shape_cast %23 : vector<2x8xf32> to vector<2x8x1xf32>
    %cst_13 = arith.constant 2.560000e+02 : f32
    %25 = vector.broadcast %cst_13 : f32 to vector<2x8x1xf32>
    %26 = arith.divf %24, %25 : vector<2x8x1xf32>
    %27 = vector.broadcast %26 : vector<2x8x1xf32> to vector<2x8x256xf32>
    %28 = arith.subf %20, %27 : vector<2x8x256xf32>
    %29 = arith.mulf %28, %28 : vector<2x8x256xf32>
    %cst_14 = arith.constant dense<0.000000e+00> : vector<2x8xf32>
    %30 = vector.multi_reduction <add>, %29, %cst_14 [2] : vector<2x8x256xf32> to vector<2x8xf32>
    %31 = vector.shape_cast %30 : vector<2x8xf32> to vector<2x8x1xf32>
    %cst_15 = arith.constant 2.550000e+02 : f32
    %32 = vector.broadcast %cst_15 : f32 to vector<2x8x1xf32>
    %33 = arith.divf %31, %32 : vector<2x8x1xf32>
    %34 = vector.broadcast %26 : vector<2x8x1xf32> to vector<2x8x256xf32>
    %35 = arith.subf %20, %34 : vector<2x8x256xf32>
    %36 = vector.shape_cast %21 : vector<1x256xf32> to vector<1x1x256xf32>
    %37 = vector.broadcast %36 : vector<1x1x256xf32> to vector<2x8x256xf32>
    %38 = arith.mulf %37, %35 : vector<2x8x256xf32>
    %39 = math.sqrt %33 : vector<2x8x1xf32>
    %cst_16 = arith.constant 9.99999971E-10 : f32
    %40 = vector.broadcast %cst_16 : f32 to vector<2x8x1xf32>
    %41 = arith.addf %39, %40 : vector<2x8x1xf32>
    %42 = vector.broadcast %41 : vector<2x8x1xf32> to vector<2x8x256xf32>
    %43 = arith.divf %38, %42 : vector<2x8x256xf32>
    %44 = vector.shape_cast %22 : vector<1x256xf32> to vector<1x1x256xf32>
    %45 = vector.broadcast %44 : vector<1x1x256xf32> to vector<2x8x256xf32>
    %46 = arith.addf %43, %45 : vector<2x8x256xf32>
    %c0_17 = arith.constant 0 : index
    %c0_18 = arith.constant 0 : index
    %47 = vector.load %arg7[%c0_17, %c0_18] : memref<256x768xf32, #tpu.memory_space<vmem>>, vector<256x768xf32>
    %c0_19 = arith.constant 0 : index
    %c0_20 = arith.constant 0 : index
    %48 = vector.load %arg8[%c0_19, %c0_20] : memref<1x768xf32, #tpu.memory_space<vmem>>, vector<1x768xf32>
    %49 = vector.shape_cast %46 : vector<2x8x256xf32> to vector<16x256xf32>
    %cst_21 = arith.constant dense<0.000000e+00> : vector<16x768xf32>
    %50 = tpu.matmul %49, %47, %cst_21 {dimension_numbers = #tpu.dot_dimension_numbers<[1], [0], [0], [1], [0, 0, 1, 1], [], []>} : vector<16x256xf32>, vector<256x768xf32>, vector<16x768xf32> -> vector<16x768xf32>
    %51 = vector.shape_cast %50 : vector<16x768xf32> to vector<2x8x768xf32>
    %52 = vector.shape_cast %48 : vector<1x768xf32> to vector<1x1x768xf32>
    %53 = vector.broadcast %52 : vector<1x1x768xf32> to vector<2x8x768xf32>
    %54 = arith.addf %51, %53 : vector<2x8x768xf32>
    %55 = vector.extract_strided_slice %54 {offsets = [0, 0, 0], sizes = [2, 8, 128], strides = [1, 1, 1]} : vector<2x8x768xf32> to vector<2x8x128xf32>
    %56 = vector.extract_strided_slice %54 {offsets = [0, 0, 256], sizes = [2, 8, 128], strides = [1, 1, 1]} : vector<2x8x768xf32> to vector<2x8x128xf32>
    %57 = vector.extract_strided_slice %54 {offsets = [0, 0, 512], sizes = [2, 8, 128], strides = [1, 1, 1]} : vector<2x8x768xf32> to vector<2x8x128xf32>
    "tpu.trace_start"() <{level = 10 : i32, message = "bqd,bkd->bqk"}> : () -> ()
    %cst_22 = arith.constant dense<0.000000e+00> : vector<2x8x8xf32>
    %58 = tpu.matmul %55, %56, %cst_22 {dimension_numbers = #tpu.dot_dimension_numbers<[2], [2], [1], [1], [0, 0, 0, 1, 1, 1], [0], [0]>} : vector<2x8x128xf32>, vector<2x8x128xf32>, vector<2x8x8xf32> -> vector<2x8x8xf32>
    "tpu.trace_stop"() : () -> ()
    %cst_23 = arith.constant 0.0883883461 : f32
    %59 = vector.broadcast %cst_23 : f32 to vector<2x8x8xf32>
    %60 = arith.mulf %58, %59 : vector<2x8x8xf32>
    %cst_24 = arith.constant dense<0xFF800000> : vector<2x8xf32>
    %61 = vector.multi_reduction <maximumf>, %60, %cst_24 [2] : vector<2x8x8xf32> to vector<2x8xf32>
    %62 = vector.shape_cast %61 : vector<2x8xf32> to vector<2x8x1xf32>
    %63 = vector.broadcast %62 : vector<2x8x1xf32> to vector<2x8x8xf32>
    %64 = arith.subf %60, %63 : vector<2x8x8xf32>
    %65 = math.exp %64 : vector<2x8x8xf32>
    %cst_25 = arith.constant dense<0.000000e+00> : vector<2x8xf32>
    %66 = vector.multi_reduction <add>, %65, %cst_25 [2] : vector<2x8x8xf32> to vector<2x8xf32>
    %67 = vector.shape_cast %66 : vector<2x8xf32> to vector<2x8x1xf32>
    %68 = vector.broadcast %67 : vector<2x8x1xf32> to vector<2x8x8xf32>
    %69 = arith.divf %65, %68 : vector<2x8x8xf32>
    "tpu.trace_start"() <{level = 10 : i32, message = "bqk,bkd->bqd"}> : () -> ()
    %cst_26 = arith.constant dense<0.000000e+00> : vector<2x8x128xf32>
    %70 = tpu.matmul %69, %57, %cst_26 {dimension_numbers = #tpu.dot_dimension_numbers<[2], [1], [1], [2], [0, 0, 0, 1, 1, 2], [0], [0]>} : vector<2x8x8xf32>, vector<2x8x128xf32>, vector<2x8x128xf32> -> vector<2x8x128xf32>
    "tpu.trace_stop"() : () -> ()
    %71 = vector.extract_strided_slice %54 {offsets = [0, 0, 128], sizes = [2, 8, 128], strides = [1, 1, 1]} : vector<2x8x768xf32> to vector<2x8x128xf32>
    %72 = vector.extract_strided_slice %54 {offsets = [0, 0, 384], sizes = [2, 8, 128], strides = [1, 1, 1]} : vector<2x8x768xf32> to vector<2x8x128xf32>
    %73 = vector.extract_strided_slice %54 {offsets = [0, 0, 640], sizes = [2, 8, 128], strides = [1, 1, 1]} : vector<2x8x768xf32> to vector<2x8x128xf32>
    "tpu.trace_start"() <{level = 10 : i32, message = "bqd,bkd->bqk"}> : () -> ()
    %cst_27 = arith.constant dense<0.000000e+00> : vector<2x8x8xf32>
    %74 = tpu.matmul %71, %72, %cst_27 {dimension_numbers = #tpu.dot_dimension_numbers<[2], [2], [1], [1], [0, 0, 0, 1, 1, 1], [0], [0]>} : vector<2x8x128xf32>, vector<2x8x128xf32>, vector<2x8x8xf32> -> vector<2x8x8xf32>
    "tpu.trace_stop"() : () -> ()
    %cst_28 = arith.constant 0.0883883461 : f32
    %75 = vector.broadcast %cst_28 : f32 to vector<2x8x8xf32>
    %76 = arith.mulf %74, %75 : vector<2x8x8xf32>
    %cst_29 = arith.constant dense<0xFF800000> : vector<2x8xf32>
    %77 = vector.multi_reduction <maximumf>, %76, %cst_29 [2] : vector<2x8x8xf32> to vector<2x8xf32>
    %78 = vector.shape_cast %77 : vector<2x8xf32> to vector<2x8x1xf32>
    %79 = vector.broadcast %78 : vector<2x8x1xf32> to vector<2x8x8xf32>
    %80 = arith.subf %76, %79 : vector<2x8x8xf32>
    %81 = math.exp %80 : vector<2x8x8xf32>
    %cst_30 = arith.constant dense<0.000000e+00> : vector<2x8xf32>
    %82 = vector.multi_reduction <add>, %81, %cst_30 [2] : vector<2x8x8xf32> to vector<2x8xf32>
    %83 = vector.shape_cast %82 : vector<2x8xf32> to vector<2x8x1xf32>
    %84 = vector.broadcast %83 : vector<2x8x1xf32> to vector<2x8x8xf32>
    %85 = arith.divf %81, %84 : vector<2x8x8xf32>
    "tpu.trace_start"() <{level = 10 : i32, message = "bqk,bkd->bqd"}> : () -> ()
    %cst_31 = arith.constant dense<0.000000e+00> : vector<2x8x128xf32>
    %86 = tpu.matmul %85, %73, %cst_31 {dimension_numbers = #tpu.dot_dimension_numbers<[2], [1], [1], [2], [0, 0, 0, 1, 1, 2], [0], [0]>} : vector<2x8x8xf32>, vector<2x8x128xf32>, vector<2x8x128xf32> -> vector<2x8x128xf32>
    "tpu.trace_stop"() : () -> ()
    %87 = tpu.concatenate %70, %86 in 2 : vector<2x8x128xf32>, vector<2x8x128xf32> -> vector<2x8x256xf32>
    %c0_32 = arith.constant 0 : index
    %c0_33 = arith.constant 0 : index
    %88 = vector.load %arg9[%c0_32, %c0_33] : memref<256x256xf32, #tpu.memory_space<vmem>>, vector<256x256xf32>
    %c0_34 = arith.constant 0 : index
    %c0_35 = arith.constant 0 : index
    %89 = vector.load %arg10[%c0_34, %c0_35] : memref<1x256xf32, #tpu.memory_space<vmem>>, vector<1x256xf32>
    %90 = vector.shape_cast %87 : vector<2x8x256xf32> to vector<16x256xf32>
    %cst_36 = arith.constant dense<0.000000e+00> : vector<16x256xf32>
    %91 = tpu.matmul %90, %88, %cst_36 {dimension_numbers = #tpu.dot_dimension_numbers<[1], [0], [0], [1], [0, 0, 1, 1], [], []>} : vector<16x256xf32>, vector<256x256xf32>, vector<16x256xf32> -> vector<16x256xf32>
    %92 = vector.shape_cast %91 : vector<16x256xf32> to vector<2x8x256xf32>
    %93 = vector.shape_cast %89 : vector<1x256xf32> to vector<1x1x256xf32>
    %94 = vector.broadcast %93 : vector<1x1x256xf32> to vector<2x8x256xf32>
    %95 = arith.addf %92, %94 : vector<2x8x256xf32>
    %96 = arith.addf %46, %95 : vector<2x8x256xf32>
    %c0_37 = arith.constant 0 : index
    %c0_38 = arith.constant 0 : index
    %97 = vector.load %arg11[%c0_37, %c0_38] : memref<1x256xf32, #tpu.memory_space<vmem>>, vector<1x256xf32>
    %c0_39 = arith.constant 0 : index
    %c0_40 = arith.constant 0 : index
    %98 = vector.load %arg12[%c0_39, %c0_40] : memref<1x256xf32, #tpu.memory_space<vmem>>, vector<1x256xf32>
    %cst_41 = arith.constant dense<0.000000e+00> : vector<2x8xf32>
    %99 = vector.multi_reduction <add>, %96, %cst_41 [2] : vector<2x8x256xf32> to vector<2x8xf32>
    %100 = vector.shape_cast %99 : vector<2x8xf32> to vector<2x8x1xf32>
    %cst_42 = arith.constant 2.560000e+02 : f32
    %101 = vector.broadcast %cst_42 : f32 to vector<2x8x1xf32>
    %102 = arith.divf %100, %101 : vector<2x8x1xf32>
    %103 = vector.broadcast %102 : vector<2x8x1xf32> to vector<2x8x256xf32>
    %104 = arith.subf %96, %103 : vector<2x8x256xf32>
    %105 = arith.mulf %104, %104 : vector<2x8x256xf32>
    %cst_43 = arith.constant dense<0.000000e+00> : vector<2x8xf32>
    %106 = vector.multi_reduction <add>, %105, %cst_43 [2] : vector<2x8x256xf32> to vector<2x8xf32>
    %107 = vector.shape_cast %106 : vector<2x8xf32> to vector<2x8x1xf32>
    %cst_44 = arith.constant 2.550000e+02 : f32
    %108 = vector.broadcast %cst_44 : f32 to vector<2x8x1xf32>
    %109 = arith.divf %107, %108 : vector<2x8x1xf32>
    %110 = vector.broadcast %102 : vector<2x8x1xf32> to vector<2x8x256xf32>
    %111 = arith.subf %96, %110 : vector<2x8x256xf32>
    %112 = vector.shape_cast %97 : vector<1x256xf32> to vector<1x1x256xf32>
    %113 = vector.broadcast %112 : vector<1x1x256xf32> to vector<2x8x256xf32>
    %114 = arith.mulf %113, %111 : vector<2x8x256xf32>
    %115 = math.sqrt %109 : vector<2x8x1xf32>
    %cst_45 = arith.constant 9.99999971E-10 : f32
    %116 = vector.broadcast %cst_45 : f32 to vector<2x8x1xf32>
    %117 = arith.addf %115, %116 : vector<2x8x1xf32>
    %118 = vector.broadcast %117 : vector<2x8x1xf32> to vector<2x8x256xf32>
    %119 = arith.divf %114, %118 : vector<2x8x256xf32>
    %120 = vector.shape_cast %98 : vector<1x256xf32> to vector<1x1x256xf32>
    %121 = vector.broadcast %120 : vector<1x1x256xf32> to vector<2x8x256xf32>
    %122 = arith.addf %119, %121 : vector<2x8x256xf32>
    %c0_46 = arith.constant 0 : index
    %c0_47 = arith.constant 0 : index
    %123 = vector.load %arg13[%c0_46, %c0_47] : memref<256x1024xf32, #tpu.memory_space<vmem>>, vector<256x1024xf32>
    %c0_48 = arith.constant 0 : index
    %c0_49 = arith.constant 0 : index
    %124 = vector.load %arg14[%c0_48, %c0_49] : memref<1x1024xf32, #tpu.memory_space<vmem>>, vector<1x1024xf32>
    %125 = vector.shape_cast %122 : vector<2x8x256xf32> to vector<16x256xf32>
    %cst_50 = arith.constant dense<0.000000e+00> : vector<16x1024xf32>
    %126 = tpu.matmul %125, %123, %cst_50 {dimension_numbers = #tpu.dot_dimension_numbers<[1], [0], [0], [1], [0, 0, 1, 1], [], []>} : vector<16x256xf32>, vector<256x1024xf32>, vector<16x1024xf32> -> vector<16x1024xf32>
    %127 = vector.shape_cast %126 : vector<16x1024xf32> to vector<2x8x1024xf32>
    %128 = vector.shape_cast %124 : vector<1x1024xf32> to vector<1x1x1024xf32>
    %129 = vector.broadcast %128 : vector<1x1x1024xf32> to vector<2x8x1024xf32>
    %130 = arith.addf %127, %129 : vector<2x8x1024xf32>
    %cst_51 = arith.constant 5.000000e-01 : f32
    %131 = vector.broadcast %cst_51 : f32 to vector<2x8x1024xf32>
    %132 = arith.mulf %131, %130 : vector<2x8x1024xf32>
    %cst_52 = arith.constant 4.471500e-02 : f32
    %133 = vector.broadcast %cst_52 : f32 to vector<2x8x1024xf32>
    %134 = arith.mulf %133, %130 : vector<2x8x1024xf32>
    %135 = arith.mulf %134, %130 : vector<2x8x1024xf32>
    %136 = arith.mulf %135, %130 : vector<2x8x1024xf32>
    %137 = arith.addf %130, %136 : vector<2x8x1024xf32>
    %cst_53 = arith.constant 0.797884583 : f32
    %138 = vector.broadcast %cst_53 : f32 to vector<2x8x1024xf32>
    %139 = arith.mulf %138, %137 : vector<2x8x1024xf32>
    %140 = math.tanh %139 : vector<2x8x1024xf32>
    %cst_54 = arith.constant 1.000000e+00 : f32
    %141 = vector.broadcast %cst_54 : f32 to vector<2x8x1024xf32>
    %142 = arith.addf %141, %140 : vector<2x8x1024xf32>
    %143 = arith.mulf %132, %142 : vector<2x8x1024xf32>
    %c0_55 = arith.constant 0 : index
    %c0_56 = arith.constant 0 : index
    %144 = vector.load %arg15[%c0_55, %c0_56] : memref<1024x256xf32, #tpu.memory_space<vmem>>, vector<1024x256xf32>
    %c0_57 = arith.constant 0 : index
    %c0_58 = arith.constant 0 : index
    %145 = vector.load %arg16[%c0_57, %c0_58] : memref<1x256xf32, #tpu.memory_space<vmem>>, vector<1x256xf32>
    %146 = vector.shape_cast %143 : vector<2x8x1024xf32> to vector<16x1024xf32>
    %cst_59 = arith.constant dense<0.000000e+00> : vector<16x256xf32>
    %147 = tpu.matmul %146, %144, %cst_59 {dimension_numbers = #tpu.dot_dimension_numbers<[1], [0], [0], [1], [0, 0, 1, 1], [], []>} : vector<16x1024xf32>, vector<1024x256xf32>, vector<16x256xf32> -> vector<16x256xf32>
    %148 = vector.shape_cast %147 : vector<16x256xf32> to vector<2x8x256xf32>
    %149 = vector.shape_cast %145 : vector<1x256xf32> to vector<1x1x256xf32>
    %150 = vector.broadcast %149 : vector<1x1x256xf32> to vector<2x8x256xf32>
    %151 = arith.addf %148, %150 : vector<2x8x256xf32>
    %152 = arith.addf %122, %151 : vector<2x8x256xf32>
    %c0_60 = arith.constant 0 : index
    %c0_61 = arith.constant 0 : index
    %153 = vector.load %arg17[%c0_60, %c0_61] : memref<1x256xf32, #tpu.memory_space<vmem>>, vector<1x256xf32>
    %c0_62 = arith.constant 0 : index
    %c0_63 = arith.constant 0 : index
    %154 = vector.load %arg18[%c0_62, %c0_63] : memref<1x256xf32, #tpu.memory_space<vmem>>, vector<1x256xf32>
    %cst_64 = arith.constant dense<0.000000e+00> : vector<2x8xf32>
    %155 = vector.multi_reduction <add>, %152, %cst_64 [2] : vector<2x8x256xf32> to vector<2x8xf32>
    %156 = vector.shape_cast %155 : vector<2x8xf32> to vector<2x8x1xf32>
    %cst_65 = arith.constant 2.560000e+02 : f32
    %157 = vector.broadcast %cst_65 : f32 to vector<2x8x1xf32>
    %158 = arith.divf %156, %157 : vector<2x8x1xf32>
    %159 = vector.broadcast %158 : vector<2x8x1xf32> to vector<2x8x256xf32>
    %160 = arith.subf %152, %159 : vector<2x8x256xf32>
    %161 = arith.mulf %160, %160 : vector<2x8x256xf32>
    %cst_66 = arith.constant dense<0.000000e+00> : vector<2x8xf32>
    %162 = vector.multi_reduction <add>, %161, %cst_66 [2] : vector<2x8x256xf32> to vector<2x8xf32>
    %163 = vector.shape_cast %162 : vector<2x8xf32> to vector<2x8x1xf32>
    %cst_67 = arith.constant 2.550000e+02 : f32
    %164 = vector.broadcast %cst_67 : f32 to vector<2x8x1xf32>
    %165 = arith.divf %163, %164 : vector<2x8x1xf32>
    %166 = vector.broadcast %158 : vector<2x8x1xf32> to vector<2x8x256xf32>
    %167 = arith.subf %152, %166 : vector<2x8x256xf32>
    %168 = vector.shape_cast %153 : vector<1x256xf32> to vector<1x1x256xf32>
    %169 = vector.broadcast %168 : vector<1x1x256xf32> to vector<2x8x256xf32>
    %170 = arith.mulf %169, %167 : vector<2x8x256xf32>
    %171 = math.sqrt %165 : vector<2x8x1xf32>
    %cst_68 = arith.constant 9.99999971E-10 : f32
    %172 = vector.broadcast %cst_68 : f32 to vector<2x8x1xf32>
    %173 = arith.addf %171, %172 : vector<2x8x1xf32>
    %174 = vector.broadcast %173 : vector<2x8x1xf32> to vector<2x8x256xf32>
    %175 = arith.divf %170, %174 : vector<2x8x256xf32>
    %176 = vector.shape_cast %154 : vector<1x256xf32> to vector<1x1x256xf32>
    %177 = vector.broadcast %176 : vector<1x1x256xf32> to vector<2x8x256xf32>
    %178 = arith.addf %175, %177 : vector<2x8x256xf32>
    %c0_69 = arith.constant 0 : index
    %c0_70 = arith.constant 0 : index
    %179 = vector.load %arg19[%c0_69, %c0_70] : memref<256x768xf32, #tpu.memory_space<vmem>>, vector<256x768xf32>
    %c0_71 = arith.constant 0 : index
    %c0_72 = arith.constant 0 : index
    %180 = vector.load %arg20[%c0_71, %c0_72] : memref<1x768xf32, #tpu.memory_space<vmem>>, vector<1x768xf32>
    %181 = vector.shape_cast %178 : vector<2x8x256xf32> to vector<16x256xf32>
    %cst_73 = arith.constant dense<0.000000e+00> : vector<16x768xf32>
    %182 = tpu.matmul %181, %179, %cst_73 {dimension_numbers = #tpu.dot_dimension_numbers<[1], [0], [0], [1], [0, 0, 1, 1], [], []>} : vector<16x256xf32>, vector<256x768xf32>, vector<16x768xf32> -> vector<16x768xf32>
    %183 = vector.shape_cast %182 : vector<16x768xf32> to vector<2x8x768xf32>
    %184 = vector.shape_cast %180 : vector<1x768xf32> to vector<1x1x768xf32>
    %185 = vector.broadcast %184 : vector<1x1x768xf32> to vector<2x8x768xf32>
    %186 = arith.addf %183, %185 : vector<2x8x768xf32>
    %187 = vector.extract_strided_slice %186 {offsets = [0, 0, 0], sizes = [2, 8, 128], strides = [1, 1, 1]} : vector<2x8x768xf32> to vector<2x8x128xf32>
    %188 = vector.extract_strided_slice %186 {offsets = [0, 0, 256], sizes = [2, 8, 128], strides = [1, 1, 1]} : vector<2x8x768xf32> to vector<2x8x128xf32>
    %189 = vector.extract_strided_slice %186 {offsets = [0, 0, 512], sizes = [2, 8, 128], strides = [1, 1, 1]} : vector<2x8x768xf32> to vector<2x8x128xf32>
    "tpu.trace_start"() <{level = 10 : i32, message = "bqd,bkd->bqk"}> : () -> ()
    %cst_74 = arith.constant dense<0.000000e+00> : vector<2x8x8xf32>
    %190 = tpu.matmul %187, %188, %cst_74 {dimension_numbers = #tpu.dot_dimension_numbers<[2], [2], [1], [1], [0, 0, 0, 1, 1, 1], [0], [0]>} : vector<2x8x128xf32>, vector<2x8x128xf32>, vector<2x8x8xf32> -> vector<2x8x8xf32>
    "tpu.trace_stop"() : () -> ()
    %cst_75 = arith.constant 0.0883883461 : f32
    %191 = vector.broadcast %cst_75 : f32 to vector<2x8x8xf32>
    %192 = arith.mulf %190, %191 : vector<2x8x8xf32>
    %cst_76 = arith.constant dense<0xFF800000> : vector<2x8xf32>
    %193 = vector.multi_reduction <maximumf>, %192, %cst_76 [2] : vector<2x8x8xf32> to vector<2x8xf32>
    %194 = vector.shape_cast %193 : vector<2x8xf32> to vector<2x8x1xf32>
    %195 = vector.broadcast %194 : vector<2x8x1xf32> to vector<2x8x8xf32>
    %196 = arith.subf %192, %195 : vector<2x8x8xf32>
    %197 = math.exp %196 : vector<2x8x8xf32>
    %cst_77 = arith.constant dense<0.000000e+00> : vector<2x8xf32>
    %198 = vector.multi_reduction <add>, %197, %cst_77 [2] : vector<2x8x8xf32> to vector<2x8xf32>
    %199 = vector.shape_cast %198 : vector<2x8xf32> to vector<2x8x1xf32>
    %200 = vector.broadcast %199 : vector<2x8x1xf32> to vector<2x8x8xf32>
    %201 = arith.divf %197, %200 : vector<2x8x8xf32>
    "tpu.trace_start"() <{level = 10 : i32, message = "bqk,bkd->bqd"}> : () -> ()
    %cst_78 = arith.constant dense<0.000000e+00> : vector<2x8x128xf32>
    %202 = tpu.matmul %201, %189, %cst_78 {dimension_numbers = #tpu.dot_dimension_numbers<[2], [1], [1], [2], [0, 0, 0, 1, 1, 2], [0], [0]>} : vector<2x8x8xf32>, vector<2x8x128xf32>, vector<2x8x128xf32> -> vector<2x8x128xf32>
    "tpu.trace_stop"() : () -> ()
    %203 = vector.extract_strided_slice %186 {offsets = [0, 0, 128], sizes = [2, 8, 128], strides = [1, 1, 1]} : vector<2x8x768xf32> to vector<2x8x128xf32>
    %204 = vector.extract_strided_slice %186 {offsets = [0, 0, 384], sizes = [2, 8, 128], strides = [1, 1, 1]} : vector<2x8x768xf32> to vector<2x8x128xf32>
    %205 = vector.extract_strided_slice %186 {offsets = [0, 0, 640], sizes = [2, 8, 128], strides = [1, 1, 1]} : vector<2x8x768xf32> to vector<2x8x128xf32>
    "tpu.trace_start"() <{level = 10 : i32, message = "bqd,bkd->bqk"}> : () -> ()
    %cst_79 = arith.constant dense<0.000000e+00> : vector<2x8x8xf32>
    %206 = tpu.matmul %203, %204, %cst_79 {dimension_numbers = #tpu.dot_dimension_numbers<[2], [2], [1], [1], [0, 0, 0, 1, 1, 1], [0], [0]>} : vector<2x8x128xf32>, vector<2x8x128xf32>, vector<2x8x8xf32> -> vector<2x8x8xf32>
    "tpu.trace_stop"() : () -> ()
    %cst_80 = arith.constant 0.0883883461 : f32
    %207 = vector.broadcast %cst_80 : f32 to vector<2x8x8xf32>
    %208 = arith.mulf %206, %207 : vector<2x8x8xf32>
    %cst_81 = arith.constant dense<0xFF800000> : vector<2x8xf32>
    %209 = vector.multi_reduction <maximumf>, %208, %cst_81 [2] : vector<2x8x8xf32> to vector<2x8xf32>
    %210 = vector.shape_cast %209 : vector<2x8xf32> to vector<2x8x1xf32>
    %211 = vector.broadcast %210 : vector<2x8x1xf32> to vector<2x8x8xf32>
    %212 = arith.subf %208, %211 : vector<2x8x8xf32>
    %213 = math.exp %212 : vector<2x8x8xf32>
    %cst_82 = arith.constant dense<0.000000e+00> : vector<2x8xf32>
    %214 = vector.multi_reduction <add>, %213, %cst_82 [2] : vector<2x8x8xf32> to vector<2x8xf32>
    %215 = vector.shape_cast %214 : vector<2x8xf32> to vector<2x8x1xf32>
    %216 = vector.broadcast %215 : vector<2x8x1xf32> to vector<2x8x8xf32>
    %217 = arith.divf %213, %216 : vector<2x8x8xf32>
    "tpu.trace_start"() <{level = 10 : i32, message = "bqk,bkd->bqd"}> : () -> ()
    %cst_83 = arith.constant dense<0.000000e+00> : vector<2x8x128xf32>
    %218 = tpu.matmul %217, %205, %cst_83 {dimension_numbers = #tpu.dot_dimension_numbers<[2], [1], [1], [2], [0, 0, 0, 1, 1, 2], [0], [0]>} : vector<2x8x8xf32>, vector<2x8x128xf32>, vector<2x8x128xf32> -> vector<2x8x128xf32>
    "tpu.trace_stop"() : () -> ()
    %219 = tpu.concatenate %202, %218 in 2 : vector<2x8x128xf32>, vector<2x8x128xf32> -> vector<2x8x256xf32>
    %c0_84 = arith.constant 0 : index
    %c0_85 = arith.constant 0 : index
    %220 = vector.load %arg21[%c0_84, %c0_85] : memref<256x256xf32, #tpu.memory_space<vmem>>, vector<256x256xf32>
    %c0_86 = arith.constant 0 : index
    %c0_87 = arith.constant 0 : index
    %221 = vector.load %arg22[%c0_86, %c0_87] : memref<1x256xf32, #tpu.memory_space<vmem>>, vector<1x256xf32>
    %222 = vector.shape_cast %219 : vector<2x8x256xf32> to vector<16x256xf32>
    %cst_88 = arith.constant dense<0.000000e+00> : vector<16x256xf32>
    %223 = tpu.matmul %222, %220, %cst_88 {dimension_numbers = #tpu.dot_dimension_numbers<[1], [0], [0], [1], [0, 0, 1, 1], [], []>} : vector<16x256xf32>, vector<256x256xf32>, vector<16x256xf32> -> vector<16x256xf32>
    %224 = vector.shape_cast %223 : vector<16x256xf32> to vector<2x8x256xf32>
    %225 = vector.shape_cast %221 : vector<1x256xf32> to vector<1x1x256xf32>
    %226 = vector.broadcast %225 : vector<1x1x256xf32> to vector<2x8x256xf32>
    %227 = arith.addf %224, %226 : vector<2x8x256xf32>
    %228 = arith.addf %178, %227 : vector<2x8x256xf32>
    %c0_89 = arith.constant 0 : index
    %c0_90 = arith.constant 0 : index
    %229 = vector.load %arg23[%c0_89, %c0_90] : memref<1x256xf32, #tpu.memory_space<vmem>>, vector<1x256xf32>
    %c0_91 = arith.constant 0 : index
    %c0_92 = arith.constant 0 : index
    %230 = vector.load %arg24[%c0_91, %c0_92] : memref<1x256xf32, #tpu.memory_space<vmem>>, vector<1x256xf32>
    %cst_93 = arith.constant dense<0.000000e+00> : vector<2x8xf32>
    %231 = vector.multi_reduction <add>, %228, %cst_93 [2] : vector<2x8x256xf32> to vector<2x8xf32>
    %232 = vector.shape_cast %231 : vector<2x8xf32> to vector<2x8x1xf32>
    %cst_94 = arith.constant 2.560000e+02 : f32
    %233 = vector.broadcast %cst_94 : f32 to vector<2x8x1xf32>
    %234 = arith.divf %232, %233 : vector<2x8x1xf32>
    %235 = vector.broadcast %234 : vector<2x8x1xf32> to vector<2x8x256xf32>
    %236 = arith.subf %228, %235 : vector<2x8x256xf32>
    %237 = arith.mulf %236, %236 : vector<2x8x256xf32>
    %cst_95 = arith.constant dense<0.000000e+00> : vector<2x8xf32>
    %238 = vector.multi_reduction <add>, %237, %cst_95 [2] : vector<2x8x256xf32> to vector<2x8xf32>
    %239 = vector.shape_cast %238 : vector<2x8xf32> to vector<2x8x1xf32>
    %cst_96 = arith.constant 2.550000e+02 : f32
    %240 = vector.broadcast %cst_96 : f32 to vector<2x8x1xf32>
    %241 = arith.divf %239, %240 : vector<2x8x1xf32>
    %242 = vector.broadcast %234 : vector<2x8x1xf32> to vector<2x8x256xf32>
    %243 = arith.subf %228, %242 : vector<2x8x256xf32>
    %244 = vector.shape_cast %229 : vector<1x256xf32> to vector<1x1x256xf32>
    %245 = vector.broadcast %244 : vector<1x1x256xf32> to vector<2x8x256xf32>
    %246 = arith.mulf %245, %243 : vector<2x8x256xf32>
    %247 = math.sqrt %241 : vector<2x8x1xf32>
    %cst_97 = arith.constant 9.99999971E-10 : f32
    %248 = vector.broadcast %cst_97 : f32 to vector<2x8x1xf32>
    %249 = arith.addf %247, %248 : vector<2x8x1xf32>
    %250 = vector.broadcast %249 : vector<2x8x1xf32> to vector<2x8x256xf32>
    %251 = arith.divf %246, %250 : vector<2x8x256xf32>
    %252 = vector.shape_cast %230 : vector<1x256xf32> to vector<1x1x256xf32>
    %253 = vector.broadcast %252 : vector<1x1x256xf32> to vector<2x8x256xf32>
    %254 = arith.addf %251, %253 : vector<2x8x256xf32>
    %c0_98 = arith.constant 0 : index
    %c0_99 = arith.constant 0 : index
    %255 = vector.load %arg25[%c0_98, %c0_99] : memref<256x1024xf32, #tpu.memory_space<vmem>>, vector<256x1024xf32>
    %c0_100 = arith.constant 0 : index
    %c0_101 = arith.constant 0 : index
    %256 = vector.load %arg26[%c0_100, %c0_101] : memref<1x1024xf32, #tpu.memory_space<vmem>>, vector<1x1024xf32>
    %257 = vector.shape_cast %254 : vector<2x8x256xf32> to vector<16x256xf32>
    %cst_102 = arith.constant dense<0.000000e+00> : vector<16x1024xf32>
    %258 = tpu.matmul %257, %255, %cst_102 {dimension_numbers = #tpu.dot_dimension_numbers<[1], [0], [0], [1], [0, 0, 1, 1], [], []>} : vector<16x256xf32>, vector<256x1024xf32>, vector<16x1024xf32> -> vector<16x1024xf32>
    %259 = vector.shape_cast %258 : vector<16x1024xf32> to vector<2x8x1024xf32>
    %260 = vector.shape_cast %256 : vector<1x1024xf32> to vector<1x1x1024xf32>
    %261 = vector.broadcast %260 : vector<1x1x1024xf32> to vector<2x8x1024xf32>
    %262 = arith.addf %259, %261 : vector<2x8x1024xf32>
    %cst_103 = arith.constant 5.000000e-01 : f32
    %263 = vector.broadcast %cst_103 : f32 to vector<2x8x1024xf32>
    %264 = arith.mulf %263, %262 : vector<2x8x1024xf32>
    %cst_104 = arith.constant 4.471500e-02 : f32
    %265 = vector.broadcast %cst_104 : f32 to vector<2x8x1024xf32>
    %266 = arith.mulf %265, %262 : vector<2x8x1024xf32>
    %267 = arith.mulf %266, %262 : vector<2x8x1024xf32>
    %268 = arith.mulf %267, %262 : vector<2x8x1024xf32>
    %269 = arith.addf %262, %268 : vector<2x8x1024xf32>
    %cst_105 = arith.constant 0.797884583 : f32
    %270 = vector.broadcast %cst_105 : f32 to vector<2x8x1024xf32>
    %271 = arith.mulf %270, %269 : vector<2x8x1024xf32>
    %272 = math.tanh %271 : vector<2x8x1024xf32>
    %cst_106 = arith.constant 1.000000e+00 : f32
    %273 = vector.broadcast %cst_106 : f32 to vector<2x8x1024xf32>
    %274 = arith.addf %273, %272 : vector<2x8x1024xf32>
    %275 = arith.mulf %264, %274 : vector<2x8x1024xf32>
    %c0_107 = arith.constant 0 : index
    %c0_108 = arith.constant 0 : index
    %276 = vector.load %arg27[%c0_107, %c0_108] : memref<1024x256xf32, #tpu.memory_space<vmem>>, vector<1024x256xf32>
    %c0_109 = arith.constant 0 : index
    %c0_110 = arith.constant 0 : index
    %277 = vector.load %arg28[%c0_109, %c0_110] : memref<1x256xf32, #tpu.memory_space<vmem>>, vector<1x256xf32>
    %278 = vector.shape_cast %275 : vector<2x8x1024xf32> to vector<16x1024xf32>
    %cst_111 = arith.constant dense<0.000000e+00> : vector<16x256xf32>
    %279 = tpu.matmul %278, %276, %cst_111 {dimension_numbers = #tpu.dot_dimension_numbers<[1], [0], [0], [1], [0, 0, 1, 1], [], []>} : vector<16x1024xf32>, vector<1024x256xf32>, vector<16x256xf32> -> vector<16x256xf32>
    %280 = vector.shape_cast %279 : vector<16x256xf32> to vector<2x8x256xf32>
    %281 = vector.shape_cast %277 : vector<1x256xf32> to vector<1x1x256xf32>
    %282 = vector.broadcast %281 : vector<1x1x256xf32> to vector<2x8x256xf32>
    %283 = arith.addf %280, %282 : vector<2x8x256xf32>
    %284 = arith.addf %254, %283 : vector<2x8x256xf32>
    %c0_112 = arith.constant 0 : index
    %c0_113 = arith.constant 0 : index
    %285 = vector.load %arg29[%c0_112, %c0_113] : memref<1x256xf32, #tpu.memory_space<vmem>>, vector<1x256xf32>
    %c0_114 = arith.constant 0 : index
    %c0_115 = arith.constant 0 : index
    %286 = vector.load %arg30[%c0_114, %c0_115] : memref<1x256xf32, #tpu.memory_space<vmem>>, vector<1x256xf32>
    %cst_116 = arith.constant dense<0.000000e+00> : vector<2x8xf32>
    %287 = vector.multi_reduction <add>, %284, %cst_116 [2] : vector<2x8x256xf32> to vector<2x8xf32>
    %288 = vector.shape_cast %287 : vector<2x8xf32> to vector<2x8x1xf32>
    %cst_117 = arith.constant 2.560000e+02 : f32
    %289 = vector.broadcast %cst_117 : f32 to vector<2x8x1xf32>
    %290 = arith.divf %288, %289 : vector<2x8x1xf32>
    %291 = vector.broadcast %290 : vector<2x8x1xf32> to vector<2x8x256xf32>
    %292 = arith.subf %284, %291 : vector<2x8x256xf32>
    %293 = arith.mulf %292, %292 : vector<2x8x256xf32>
    %cst_118 = arith.constant dense<0.000000e+00> : vector<2x8xf32>
    %294 = vector.multi_reduction <add>, %293, %cst_118 [2] : vector<2x8x256xf32> to vector<2x8xf32>
    %295 = vector.shape_cast %294 : vector<2x8xf32> to vector<2x8x1xf32>
    %cst_119 = arith.constant 2.550000e+02 : f32
    %296 = vector.broadcast %cst_119 : f32 to vector<2x8x1xf32>
    %297 = arith.divf %295, %296 : vector<2x8x1xf32>
    %298 = vector.broadcast %290 : vector<2x8x1xf32> to vector<2x8x256xf32>
    %299 = arith.subf %284, %298 : vector<2x8x256xf32>
    %300 = vector.shape_cast %285 : vector<1x256xf32> to vector<1x1x256xf32>
    %301 = vector.broadcast %300 : vector<1x1x256xf32> to vector<2x8x256xf32>
    %302 = arith.mulf %301, %299 : vector<2x8x256xf32>
    %303 = math.sqrt %297 : vector<2x8x1xf32>
    %cst_120 = arith.constant 9.99999971E-10 : f32
    %304 = vector.broadcast %cst_120 : f32 to vector<2x8x1xf32>
    %305 = arith.addf %303, %304 : vector<2x8x1xf32>
    %306 = vector.broadcast %305 : vector<2x8x1xf32> to vector<2x8x256xf32>
    %307 = arith.divf %302, %306 : vector<2x8x256xf32>
    %308 = vector.shape_cast %286 : vector<1x256xf32> to vector<1x1x256xf32>
    %309 = vector.broadcast %308 : vector<1x1x256xf32> to vector<2x8x256xf32>
    %310 = arith.addf %307, %309 : vector<2x8x256xf32>
    %c0_121 = arith.constant 0 : index
    %c0_122 = arith.constant 0 : index
    %c0_123 = arith.constant 0 : index
    %311 = vector.load %arg31[%c0_121, %c0_122, %c0_123] : memref<4x256x256xf32, #tpu.memory_space<vmem>>, vector<1x256x256xf32>
    %312 = vector.shape_cast %311 : vector<1x256x256xf32> to vector<256x256xf32>
    %313 = vector.shape_cast %310 : vector<2x8x256xf32> to vector<16x256xf32>
    %cst_124 = arith.constant dense<0.000000e+00> : vector<16x256xf32>
    %314 = tpu.matmul %313, %312, %cst_124 {dimension_numbers = #tpu.dot_dimension_numbers<[1], [0], [0], [1], [0, 0, 1, 1], [], []>} : vector<16x256xf32>, vector<256x256xf32>, vector<16x256xf32> -> vector<16x256xf32>
    %315 = vector.shape_cast %314 : vector<16x256xf32> to vector<2x8x256xf32>
    %c1 = arith.constant 1 : index
    %c0_125 = arith.constant 0 : index
    %c0_126 = arith.constant 0 : index
    %316 = vector.load %arg31[%c1, %c0_125, %c0_126] : memref<4x256x256xf32, #tpu.memory_space<vmem>>, vector<1x256x256xf32>
    %317 = vector.shape_cast %316 : vector<1x256x256xf32> to vector<256x256xf32>
    %318 = vector.shape_cast %310 : vector<2x8x256xf32> to vector<16x256xf32>
    %cst_127 = arith.constant dense<0.000000e+00> : vector<16x256xf32>
    %319 = tpu.matmul %318, %317, %cst_127 {dimension_numbers = #tpu.dot_dimension_numbers<[1], [0], [0], [1], [0, 0, 1, 1], [], []>} : vector<16x256xf32>, vector<256x256xf32>, vector<16x256xf32> -> vector<16x256xf32>
    %320 = vector.shape_cast %319 : vector<16x256xf32> to vector<2x8x256xf32>
    %c2 = arith.constant 2 : index
    %c0_128 = arith.constant 0 : index
    %c0_129 = arith.constant 0 : index
    %321 = vector.load %arg31[%c2, %c0_128, %c0_129] : memref<4x256x256xf32, #tpu.memory_space<vmem>>, vector<1x256x256xf32>
    %322 = vector.shape_cast %321 : vector<1x256x256xf32> to vector<256x256xf32>
    %323 = vector.shape_cast %310 : vector<2x8x256xf32> to vector<16x256xf32>
    %cst_130 = arith.constant dense<0.000000e+00> : vector<16x256xf32>
    %324 = tpu.matmul %323, %322, %cst_130 {dimension_numbers = #tpu.dot_dimension_numbers<[1], [0], [0], [1], [0, 0, 1, 1], [], []>} : vector<16x256xf32>, vector<256x256xf32>, vector<16x256xf32> -> vector<16x256xf32>
    %325 = vector.shape_cast %324 : vector<16x256xf32> to vector<2x8x256xf32>
    %c3 = arith.constant 3 : index
    %c0_131 = arith.constant 0 : index
    %c0_132 = arith.constant 0 : index
    %326 = vector.load %arg31[%c3, %c0_131, %c0_132] : memref<4x256x256xf32, #tpu.memory_space<vmem>>, vector<1x256x256xf32>
    %327 = vector.shape_cast %326 : vector<1x256x256xf32> to vector<256x256xf32>
    %328 = vector.shape_cast %310 : vector<2x8x256xf32> to vector<16x256xf32>
    %cst_133 = arith.constant dense<0.000000e+00> : vector<16x256xf32>
    %329 = tpu.matmul %328, %327, %cst_133 {dimension_numbers = #tpu.dot_dimension_numbers<[1], [0], [0], [1], [0, 0, 1, 1], [], []>} : vector<16x256xf32>, vector<256x256xf32>, vector<16x256xf32> -> vector<16x256xf32>
    %330 = vector.shape_cast %329 : vector<16x256xf32> to vector<2x8x256xf32>
    %cst_134 = arith.constant 0.000000e+00 : f32
    %331 = vector.broadcast %cst_134 : f32 to vector<2x1x256xf32>
    %332 = vector.extract_strided_slice %330 {offsets = [0, 0, 0], sizes = [2, 7, 256], strides = [1, 1, 1]} : vector<2x8x256xf32> to vector<2x7x256xf32>
    %333 = tpu.concatenate %331, %332 in 1 : vector<2x1x256xf32>, vector<2x7x256xf32> -> vector<2x8x256xf32>
    %334 = vector.extract_strided_slice %315 {offsets = [0, 1, 0], sizes = [2, 7, 256], strides = [1, 1, 1]} : vector<2x8x256xf32> to vector<2x7x256xf32>
    %335 = tpu.concatenate %334, %331 in 1 : vector<2x7x256xf32>, vector<2x1x256xf32> -> vector<2x8x256xf32>
    %c0_135 = arith.constant 0 : index
    %c0_136 = arith.constant 0 : index
    %336 = vector.load %arg32[%c0_135, %c0_136] : memref<1x256xf32, #tpu.memory_space<vmem>>, vector<1x256xf32>
    %337 = arith.addf %320, %333 : vector<2x8x256xf32>
    %338 = vector.shape_cast %336 : vector<1x256xf32> to vector<1x1x256xf32>
    %339 = vector.broadcast %338 : vector<1x1x256xf32> to vector<2x8x256xf32>
    %340 = arith.addf %337, %339 : vector<2x8x256xf32>
    %341 = arith.addf %325, %335 : vector<2x8x256xf32>
    %342 = vector.shape_cast %336 : vector<1x256xf32> to vector<1x1x256xf32>
    %343 = vector.broadcast %342 : vector<1x1x256xf32> to vector<2x8x256xf32>
    %344 = arith.addf %341, %343 : vector<2x8x256xf32>
    %c0_137 = arith.constant 0 : index
    %c0_138 = arith.constant 0 : index
    %c0_139 = arith.constant 0 : index
    %c0_140 = arith.constant 0 : index
    %345 = vector.load %arg33[%c0_137, %c0_138, %c0_139, %c0_140] : memref<2x2x8x256xf32, #tpu.memory_space<vmem>>, vector<2x1x8x256xf32>
    %346 = vector.shape_cast %345 : vector<2x1x8x256xf32> to vector<2x8x256xf32>
    %347 = vector.shape_cast %340 : vector<2x8x256xf32> to vector<2x1x8x256xf32>
    tpu.vector_store %arg33[%c0_137, %c0_138, %c0_139, %c0_140], %347 {strides = array<i32>} : memref<2x2x8x256xf32, #tpu.memory_space<vmem>>, vector<2x1x8x256xf32>,
    %c0_141 = arith.constant 0 : index
    %c1_142 = arith.constant 1 : index
    %c0_143 = arith.constant 0 : index
    %c0_144 = arith.constant 0 : index
    %348 = vector.load %arg33[%c0_141, %c1_142, %c0_143, %c0_144] : memref<2x2x8x256xf32, #tpu.memory_space<vmem>>, vector<2x1x8x256xf32>
    %349 = vector.shape_cast %348 : vector<2x1x8x256xf32> to vector<2x8x256xf32>
    %350 = vector.shape_cast %344 : vector<2x8x256xf32> to vector<2x1x8x256xf32>
    tpu.vector_store %arg33[%c0_141, %c1_142, %c0_143, %c0_144], %350 {strides = array<i32>} : memref<2x2x8x256xf32, #tpu.memory_space<vmem>>, vector<2x1x8x256xf32>,
    return
  }
  func.func @transform_0(%arg0: i32) -> (i32, i32, i32) {
    %c0_i32 = arith.constant 0 : i32
    %c0_i32_0 = arith.constant 0 : i32
    %c0_i32_1 = arith.constant 0 : i32
    return %arg0, %c0_i32, %c0_i32_0 : i32, i32, i32
  }
  func.func @transform_1(%arg0: i32) -> (i32, i32) {
    %c0_i32 = arith.constant 0 : i32
    %c0_i32_0 = arith.constant 0 : i32
    %c0_i32_1 = arith.constant 0 : i32
    return %c0_i32, %c0_i32_0 : i32, i32
  }
  func.func @transform_2(%arg0: i32) -> (i32, i32) {
    %c0_i32 = arith.constant 0 : i32
    %c0_i32_0 = arith.constant 0 : i32
    %c0_i32_1 = arith.constant 0 : i32
    return %c0_i32, %c0_i32_0 : i32, i32
  }
  func.func @transform_3(%arg0: i32) -> (i32, i32) {
    %c0_i32 = arith.constant 0 : i32
    %c0_i32_0 = arith.constant 0 : i32
    %c0_i32_1 = arith.constant 0 : i32
    return %c0_i32, %c0_i32_0 : i32, i32
  }
  func.func @transform_4(%arg0: i32) -> (i32, i32) {
    %c0_i32 = arith.constant 0 : i32
    %c0_i32_0 = arith.constant 0 : i32
    %c0_i32_1 = arith.constant 0 : i32
    return %c0_i32, %c0_i32_0 : i32, i32
  }
  func.func @transform_5(%arg0: i32) -> (i32, i32) {
    %c0_i32 = arith.constant 0 : i32
    %c0_i32_0 = arith.constant 0 : i32
    %c0_i32_1 = arith.constant 0 : i32
    return %c0_i32, %c0_i32_0 : i32, i32
  }
  func.func @transform_6(%arg0: i32) -> (i32, i32) {
    %c0_i32 = arith.constant 0 : i32
    %c0_i32_0 = arith.constant 0 : i32
    %c0_i32_1 = arith.constant 0 : i32
    return %c0_i32, %c0_i32_0 : i32, i32
  }
  func.func @transform_7(%arg0: i32) -> (i32, i32) {
    %c0_i32 = arith.constant 0 : i32
    %c0_i32_0 = arith.constant 0 : i32
    %c0_i32_1 = arith.constant 0 : i32
    return %c0_i32, %c0_i32_0 : i32, i32
  }
  func.func @transform_8(%arg0: i32) -> (i32, i32) {
    %c0_i32 = arith.constant 0 : i32
    %c0_i32_0 = arith.constant 0 : i32
    %c0_i32_1 = arith.constant 0 : i32
    return %c0_i32, %c0_i32_0 : i32, i32
  }
  func.func @transform_9(%arg0: i32) -> (i32, i32) {
    %c0_i32 = arith.constant 0 : i32
    %c0_i32_0 = arith.constant 0 : i32
    %c0_i32_1 = arith.constant 0 : i32
    return %c0_i32, %c0_i32_0 : i32, i32
  }
  func.func @transform_10(%arg0: i32) -> (i32, i32) {
    %c0_i32 = arith.constant 0 : i32
    %c0_i32_0 = arith.constant 0 : i32
    %c0_i32_1 = arith.constant 0 : i32
    return %c0_i32, %c0_i32_0 : i32, i32
  }
  func.func @transform_11(%arg0: i32) -> (i32, i32) {
    %c0_i32 = arith.constant 0 : i32
    %c0_i32_0 = arith.constant 0 : i32
    %c0_i32_1 = arith.constant 0 : i32
    return %c0_i32, %c0_i32_0 : i32, i32
  }
  func.func @transform_12(%arg0: i32) -> (i32, i32) {
    %c0_i32 = arith.constant 0 : i32
    %c0_i32_0 = arith.constant 0 : i32
    %c0_i32_1 = arith.constant 0 : i32
    return %c0_i32, %c0_i32_0 : i32, i32
  }
  func.func @transform_13(%arg0: i32) -> (i32, i32) {
    %c0_i32 = arith.constant 0 : i32
    %c0_i32_0 = arith.constant 0 : i32
    %c0_i32_1 = arith.constant 0 : i32
    return %c0_i32, %c0_i32_0 : i32, i32
  }
  func.func @transform_14(%arg0: i32) -> (i32, i32) {
    %c0_i32 = arith.constant 0 : i32
    %c0_i32_0 = arith.constant 0 : i32
    %c0_i32_1 = arith.constant 0 : i32
    return %c0_i32, %c0_i32_0 : i32, i32
  }
  func.func @transform_15(%arg0: i32) -> (i32, i32) {
    %c0_i32 = arith.constant 0 : i32
    %c0_i32_0 = arith.constant 0 : i32
    %c0_i32_1 = arith.constant 0 : i32
    return %c0_i32, %c0_i32_0 : i32, i32
  }
  func.func @transform_16(%arg0: i32) -> (i32, i32) {
    %c0_i32 = arith.constant 0 : i32
    %c0_i32_0 = arith.constant 0 : i32
    %c0_i32_1 = arith.constant 0 : i32
    return %c0_i32, %c0_i32_0 : i32, i32
  }
  func.func @transform_17(%arg0: i32) -> (i32, i32) {
    %c0_i32 = arith.constant 0 : i32
    %c0_i32_0 = arith.constant 0 : i32
    %c0_i32_1 = arith.constant 0 : i32
    return %c0_i32, %c0_i32_0 : i32, i32
  }
  func.func @transform_18(%arg0: i32) -> (i32, i32) {
    %c0_i32 = arith.constant 0 : i32
    %c0_i32_0 = arith.constant 0 : i32
    %c0_i32_1 = arith.constant 0 : i32
    return %c0_i32, %c0_i32_0 : i32, i32
  }
  func.func @transform_19(%arg0: i32) -> (i32, i32) {
    %c0_i32 = arith.constant 0 : i32
    %c0_i32_0 = arith.constant 0 : i32
    %c0_i32_1 = arith.constant 0 : i32
    return %c0_i32, %c0_i32_0 : i32, i32
  }
  func.func @transform_20(%arg0: i32) -> (i32, i32) {
    %c0_i32 = arith.constant 0 : i32
    %c0_i32_0 = arith.constant 0 : i32
    %c0_i32_1 = arith.constant 0 : i32
    return %c0_i32, %c0_i32_0 : i32, i32
  }
  func.func @transform_21(%arg0: i32) -> (i32, i32) {
    %c0_i32 = arith.constant 0 : i32
    %c0_i32_0 = arith.constant 0 : i32
    %c0_i32_1 = arith.constant 0 : i32
    return %c0_i32, %c0_i32_0 : i32, i32
  }
  func.func @transform_22(%arg0: i32) -> (i32, i32) {
    %c0_i32 = arith.constant 0 : i32
    %c0_i32_0 = arith.constant 0 : i32
    %c0_i32_1 = arith.constant 0 : i32
    return %c0_i32, %c0_i32_0 : i32, i32
  }
  func.func @transform_23(%arg0: i32) -> (i32, i32) {
    %c0_i32 = arith.constant 0 : i32
    %c0_i32_0 = arith.constant 0 : i32
    %c0_i32_1 = arith.constant 0 : i32
    return %c0_i32, %c0_i32_0 : i32, i32
  }
  func.func @transform_24(%arg0: i32) -> (i32, i32) {
    %c0_i32 = arith.constant 0 : i32
    %c0_i32_0 = arith.constant 0 : i32
    %c0_i32_1 = arith.constant 0 : i32
    return %c0_i32, %c0_i32_0 : i32, i32
  }
  func.func @transform_25(%arg0: i32) -> (i32, i32) {
    %c0_i32 = arith.constant 0 : i32
    %c0_i32_0 = arith.constant 0 : i32
    %c0_i32_1 = arith.constant 0 : i32
    return %c0_i32, %c0_i32_0 : i32, i32
  }
  func.func @transform_26(%arg0: i32) -> (i32, i32) {
    %c0_i32 = arith.constant 0 : i32
    %c0_i32_0 = arith.constant 0 : i32
    %c0_i32_1 = arith.constant 0 : i32
    return %c0_i32, %c0_i32_0 : i32, i32
  }
  func.func @transform_27(%arg0: i32) -> (i32, i32) {
    %c0_i32 = arith.constant 0 : i32
    %c0_i32_0 = arith.constant 0 : i32
    %c0_i32_1 = arith.constant 0 : i32
    return %c0_i32, %c0_i32_0 : i32, i32
  }
  func.func @transform_28(%arg0: i32) -> (i32, i32) {
    %c0_i32 = arith.constant 0 : i32
    %c0_i32_0 = arith.constant 0 : i32
    %c0_i32_1 = arith.constant 0 : i32
    return %c0_i32, %c0_i32_0 : i32, i32
  }
  func.func @transform_29(%arg0: i32) -> (i32, i32) {
    %c0_i32 = arith.constant 0 : i32
    %c0_i32_0 = arith.constant 0 : i32
    %c0_i32_1 = arith.constant 0 : i32
    return %c0_i32, %c0_i32_0 : i32, i32
  }
  func.func @transform_30(%arg0: i32) -> (i32, i32, i32) {
    %c0_i32 = arith.constant 0 : i32
    %c0_i32_0 = arith.constant 0 : i32
    %c0_i32_1 = arith.constant 0 : i32
    %c0_i32_2 = arith.constant 0 : i32
    return %c0_i32, %c0_i32_0, %c0_i32_1 : i32, i32, i32
  }
  func.func @transform_31(%arg0: i32) -> (i32, i32) {
    %c0_i32 = arith.constant 0 : i32
    %c0_i32_0 = arith.constant 0 : i32
    %c0_i32_1 = arith.constant 0 : i32
    return %c0_i32, %c0_i32_0 : i32, i32
  }
  func.func @transform_32(%arg0: i32) -> (i32, i32, i32, i32) {
    %c0_i32 = arith.constant 0 : i32
    %c0_i32_0 = arith.constant 0 : i32
    %c0_i32_1 = arith.constant 0 : i32
    %c0_i32_2 = arith.constant 0 : i32
    return %arg0, %c0_i32, %c0_i32_0, %c0_i32_1 : i32, i32, i32, i32
  }
}

</mosaic_0001>

<llo_original>
// kernel: tpu_custom_call.1
$region0: #{tpu_custom_call.1}
  #allocation0 [shape = 'u32[]', space=smem, size = 0x4, offset = 0x4, fixed_abs, tag = 'smem constant byte address 0x4 - core index']
  #allocation1 [shape = 'u32[144,128]{1,0:T(1,128)}', space=vmem, size = 0x12000, scoped, tag = 'internal scratch']
  %s0 = inlined_call_operand.smem [shape: u32[33], index: -1, kind: input, shape index: {}]
  %s1 = sld [smem:[%s0]]
  %s2 = scalar_lea.smem %s0, 1
  %s3 = sld [smem:[%s2]]
  %s4 = scalar_lea.smem %s0, 2
  %s5 = sld [smem:[%s4]]
  %s6 = scalar_lea.smem %s0, 3
  %s7 = sld [smem:[%s6]]
  %s8 = scalar_lea.smem %s0, 4
  %s9 = sld [smem:[%s8]]
  %s10 = scalar_lea.smem %s0, 5
  %s11 = sld [smem:[%s10]]
  %s12 = scalar_lea.smem %s0, 6
  %s13 = sld [smem:[%s12]]
  %s14 = scalar_lea.smem %s0, 7
  %s15 = sld [smem:[%s14]]
  %s16 = scalar_lea.smem %s0, 8
  %s17 = sld [smem:[%s16]]
  %s18 = scalar_lea.smem %s0, 9
  %s19 = sld [smem:[%s18]]
  %s20 = scalar_lea.smem %s0, 10
  %s21 = sld [smem:[%s20]]
  %s22 = scalar_lea.smem %s0, 11
  %s23 = sld [smem:[%s22]]
  %s24 = scalar_lea.smem %s0, 12
  %s25 = sld [smem:[%s24]]
  %s26 = scalar_lea.smem %s0, 13
  %s27 = sld [smem:[%s26]]
  %s28 = scalar_lea.smem %s0, 14
  %s29 = sld [smem:[%s28]]
  %s30 = scalar_lea.smem %s0, 15
  %s31 = sld [smem:[%s30]]
  %s32 = scalar_lea.smem %s0, 16
  %s33 = sld [smem:[%s32]]
  %s34 = scalar_lea.smem %s0, 17
  %s35 = sld [smem:[%s34]]
  %s36 = scalar_lea.smem %s0, 18
  %s37 = sld [smem:[%s36]]
  %s38 = scalar_lea.smem %s0, 19
  %s39 = sld [smem:[%s38]]
  %s40 = scalar_lea.smem %s0, 20
  %s41 = sld [smem:[%s40]]
  %s42 = scalar_lea.smem %s0, 21
  %s43 = sld [smem:[%s42]]
  %s44 = scalar_lea.smem %s0, 22
  %s45 = sld [smem:[%s44]]
  %s46 = scalar_lea.smem %s0, 23
  %s47 = sld [smem:[%s46]]
  %s48 = scalar_lea.smem %s0, 24
  %s49 = sld [smem:[%s48]]
  %s50 = scalar_lea.smem %s0, 25
  %s51 = sld [smem:[%s50]]
  %s52 = scalar_lea.smem %s0, 26
  %s53 = sld [smem:[%s52]]
  %s54 = scalar_lea.smem %s0, 27
  %s55 = sld [smem:[%s54]]
  %s56 = scalar_lea.smem %s0, 28
  %s57 = sld [smem:[%s56]]
  %s58 = scalar_lea.smem %s0, 29
  %s59 = sld [smem:[%s58]]
  %s60 = scalar_lea.smem %s0, 30
  %s61 = sld [smem:[%s60]]
  %s62 = scalar_lea.smem %s0, 31
  %s63 = sld [smem:[%s62]]
  %s64 = scalar_lea.smem %s0, 32
  %s65 = sld [smem:[%s64]]
  %s66 = sld [smem:[#allocation0]]
  $region186: #{tpu_custom_call.1} parent=0
    _
  %s68 = ssub.s32 1, %s66
  %s69 = scalar_select 0, %s68, %s66
  $region1: #{tpu_custom_call.1} parent=0
    #allocation2 [shape = 'u8[1024]{0}', space=vmem, size = 0x400, scoped, tag = 'input window, operand 2, single buffered']
    #allocation3 [shape = 's32[1]{0}', space=sflag, size = 0x4, scoped, tag = 'scoped memory for tpu_custom_call.1']
    #allocation4 [shape = 's32[1]{0}', space=sflag, size = 0x4, scoped, tag = 'scoped memory for tpu_custom_call.1']
    #allocation5 [shape = 'u8[1024]{0}', space=vmem, size = 0x400, scoped, tag = 'input window, operand 4, single buffered']
    #allocation6 [shape = 's32[1]{0}', space=sflag, size = 0x4, scoped, tag = 'scoped memory for tpu_custom_call.1']
    #allocation7 [shape = 'u8[1024]{0}', space=vmem, size = 0x400, scoped, tag = 'input window, operand 5, single buffered']
    #allocation8 [shape = 'u8[786432]{0}', space=vmem, size = 0xc0000, scoped, tag = 'input window, operand 6, single buffered']
    #allocation9 [shape = 's32[1]{0}', space=sflag, size = 0x4, scoped, tag = 'scoped memory for tpu_custom_call.1']
    #allocation10 [shape = 'u8[262144]{0}', space=vmem, size = 0x40000, scoped, tag = 'input window, operand 8, single buffered']
    #allocation11 [shape = 'u8[1048576]{0}', space=vmem, size = 0x100000, scoped, tag = 'input window, operand 12, single buffered']
    #allocation12 [shape = 's32[1]{0}', space=sflag, size = 0x4, scoped, tag = 'scoped memory for tpu_custom_call.1']
    #allocation13 [shape = 'u8[1048576]{0}', space=vmem, size = 0x100000, scoped, tag = 'input window, operand 14, single buffered']
    #allocation14 [shape = 'u8[786432]{0}', space=vmem, size = 0xc0000, scoped, tag = 'input window, operand 18, single buffered']
    #allocation15 [shape = 's32[1]{0}', space=sflag, size = 0x4, scoped, tag = 'scoped memory for tpu_custom_call.1']
    #allocation16 [shape = 'u8[262144]{0}', space=vmem, size = 0x40000, scoped, tag = 'input window, operand 20, single buffered']
    #allocation17 [shape = 'u8[1048576]{0}', space=vmem, size = 0x100000, scoped, tag = 'input window, operand 24, single buffered']
    #allocation18 [shape = 's32[1]{0}', space=sflag, size = 0x4, scoped, tag = 'scoped memory for tpu_custom_call.1']
    #allocation19 [shape = 'u8[1048576]{0}', space=vmem, size = 0x100000, scoped, tag = 'input window, operand 26, single buffered']
    #allocation20 [shape = 'u8[1048576]{0}', space=vmem, size = 0x100000, scoped, tag = 'input window, operand 30, single buffered']
    #allocation21 [shape = 's32[1]{0}', space=sflag, size = 0x4, scoped, tag = 'scoped memory for tpu_custom_call.1']
    #allocation22 [shape = 'u8[32768]{0}', space=vmem, size = 0x8000, scoped, tag = 'output window, operand 0, single buffered']
    %70 = vsyncpa [#allocation3], 0
    %71 = vsyncpa [#allocation6], 0
    %72 = vsyncpa [#allocation9], 0
    %73 = vsyncpa [#allocation12], 0
    %74 = vsyncpa [#allocation15], 0
    %75 = vsyncpa [#allocation18], 0
    %76 = vsyncpa [#allocation21], 0
    %77 = vsyncpa [#allocation4], 0
    // Predicated region
    $region2: #{tpu_custom_call.1} parent=1 // pred_check
      _
    $region3: #{tpu_custom_call.1} parent=1 // pred_check_branch
      %79 = sbr.rel (0) target = $region5
    $region4: #{tpu_custom_call.1} parent=1 // pred_region
      _
    $region5: #{tpu_custom_call.1} parent=1 // pred_fallthru
      _
    // Predicated region
    $region6: #{tpu_custom_call.1} parent=1 // pred_check
      _
    $region7: #{tpu_custom_call.1} parent=1 // pred_check_branch
      %81 = sbr.rel (0) target = $region9
    $region8: #{tpu_custom_call.1} parent=1 // pred_region
      _
    $region9: #{tpu_custom_call.1} parent=1 // pred_fallthru
      _
    // Predicated region
    $region10: #{tpu_custom_call.1} parent=1 // pred_check
      _
    $region11: #{tpu_custom_call.1} parent=1 // pred_check_branch
      %83 = sbr.rel (0) target = $region13
    $region12: #{tpu_custom_call.1} parent=1 // pred_region
      %s85 = ssub.s32 32, 32
      %86 = vsyncadd [#allocation3], %s85
      %s88 = sshll.u32 [#allocation2], 4
      %s89 = int_to_ptr.vmem [resolvable:$true] %s88
      %91 = dma.hbm_to_vmem [thread:$0]  %s5, 32, %s89, [#allocation3]
    $region13: #{tpu_custom_call.1} parent=1 // pred_fallthru
      _
    // Predicated region
    $region14: #{tpu_custom_call.1} parent=1 // pred_check
      _
    $region15: #{tpu_custom_call.1} parent=1 // pred_check_branch
      %93 = sbr.rel (0) target = $region17
    $region16: #{tpu_custom_call.1} parent=1 // pred_region
      _
    $region17: #{tpu_custom_call.1} parent=1 // pred_fallthru
      _
    // Predicated region
    $region18: #{tpu_custom_call.1} parent=1 // pred_check
      _
    $region19: #{tpu_custom_call.1} parent=1 // pred_check_branch
      %95 = sbr.rel (0) target = $region21
    $region20: #{tpu_custom_call.1} parent=1 // pred_region
      %s97 = ssub.s32 32, 32
      %98 = vsyncadd [#allocation6], %s97
      %s100 = sshll.u32 [#allocation5], 4
      %s101 = int_to_ptr.vmem [resolvable:$true] %s100
      %103 = dma.hbm_to_vmem [thread:$0]  %s9, 32, %s101, [#allocation6]
    $region21: #{tpu_custom_call.1} parent=1 // pred_fallthru
      _
    // Predicated region
    $region22: #{tpu_custom_call.1} parent=1 // pred_check
      _
    $region23: #{tpu_custom_call.1} parent=1 // pred_check_branch
      %105 = sbr.rel (0) target = $region25
    $region24: #{tpu_custom_call.1} parent=1 // pred_region
      %s107 = ssub.s32 32, 32
      %108 = vsyncadd [#allocation6], %s107
      %s110 = sshll.u32 [#allocation7], 4
      %s111 = int_to_ptr.vmem [resolvable:$true] %s110
      %113 = dma.hbm_to_vmem [thread:$0]  %s11, 32, %s111, [#allocation6]
    $region25: #{tpu_custom_call.1} parent=1 // pred_fallthru
      _
    // Predicated region
    $region26: #{tpu_custom_call.1} parent=1 // pred_check
      _
    $region27: #{tpu_custom_call.1} parent=1 // pred_check_branch
      %115 = sbr.rel (0) target = $region29
    $region28: #{tpu_custom_call.1} parent=1 // pred_region
      %s117 = ssub.s32 24576, 24576
      %118 = vsyncadd [#allocation9], %s117
      %s119 = sshll.u32 [#allocation8], 4
      %s120 = int_to_ptr.vmem [resolvable:$true] %s119
      %125 = dma.hbm_to_vmem [thread:$0]  %s13, 24576, %s120, [#allocation9], 768, 768, 48
    $region29: #{tpu_custom_call.1} parent=1 // pred_fallthru
      _
    // Predicated region
    $region30: #{tpu_custom_call.1} parent=1 // pred_check
      _
    $region31: #{tpu_custom_call.1} parent=1 // pred_check_branch
      %127 = sbr.rel (0) target = $region33
    $region32: #{tpu_custom_call.1} parent=1 // pred_region
      _
    $region33: #{tpu_custom_call.1} parent=1 // pred_fallthru
      _
    // Predicated region
    $region34: #{tpu_custom_call.1} parent=1 // pred_check
      _
    $region35: #{tpu_custom_call.1} parent=1 // pred_check_branch
      %129 = sbr.rel (0) target = $region37
    $region36: #{tpu_custom_call.1} parent=1 // pred_region
      %s131 = ssub.s32 8192, 8192
      %132 = vsyncadd [#allocation9], %s131
      %s133 = sshll.u32 [#allocation10], 4
      %s134 = int_to_ptr.vmem [resolvable:$true] %s133
      %139 = dma.hbm_to_vmem [thread:$0]  %s17, 8192, %s134, [#allocation9], 256, 256, 16
    $region37: #{tpu_custom_call.1} parent=1 // pred_fallthru
      _
    // Predicated region
    $region38: #{tpu_custom_call.1} parent=1 // pred_check
      _
    $region39: #{tpu_custom_call.1} parent=1 // pred_check_branch
      %141 = sbr.rel (0) target = $region41
    $region40: #{tpu_custom_call.1} parent=1 // pred_region
      _
    $region41: #{tpu_custom_call.1} parent=1 // pred_fallthru
      _
    // Predicated region
    $region42: #{tpu_custom_call.1} parent=1 // pred_check
      _
    $region43: #{tpu_custom_call.1} parent=1 // pred_check_branch
      %143 = sbr.rel (0) target = $region45
    $region44: #{tpu_custom_call.1} parent=1 // pred_region
      _
    $region45: #{tpu_custom_call.1} parent=1 // pred_fallthru
      _
    // Predicated region
    $region46: #{tpu_custom_call.1} parent=1 // pred_check
      _
    $region47: #{tpu_custom_call.1} parent=1 // pred_check_branch
      %145 = sbr.rel (0) target = $region49
    $region48: #{tpu_custom_call.1} parent=1 // pred_region
      _
    $region49: #{tpu_custom_call.1} parent=1 // pred_fallthru
      _
    // Predicated region
    $region50: #{tpu_custom_call.1} parent=1 // pred_check
      _
    $region51: #{tpu_custom_call.1} parent=1 // pred_check_branch
      %147 = sbr.rel (0) target = $region53
    $region52: #{tpu_custom_call.1} parent=1 // pred_region
      %s149 = ssub.s32 32768, 32768
      %150 = vsyncadd [#allocation12], %s149
      %s151 = sshll.u32 [#allocation11], 4
      %s152 = int_to_ptr.vmem [resolvable:$true] %s151
      %157 = dma.hbm_to_vmem [thread:$0]  %s25, 32768, %s152, [#allocation12], 1024, 1024, 64
    $region53: #{tpu_custom_call.1} parent=1 // pred_fallthru
      _
    // Predicated region
    $region54: #{tpu_custom_call.1} parent=1 // pred_check
      _
    $region55: #{tpu_custom_call.1} parent=1 // pred_check_branch
      %159 = sbr.rel (0) target = $region57
    $region56: #{tpu_custom_call.1} parent=1 // pred_region
      _
    $region57: #{tpu_custom_call.1} parent=1 // pred_fallthru
      _
    // Predicated region
    $region58: #{tpu_custom_call.1} parent=1 // pred_check
      _
    $region59: #{tpu_custom_call.1} parent=1 // pred_check_branch
      %161 = sbr.rel (0) target = $region61
    $region60: #{tpu_custom_call.1} parent=1 // pred_region
      %s163 = ssub.s32 32768, 32768
      %164 = vsyncadd [#allocation12], %s163
      %s165 = sshll.u32 [#allocation13], 4
      %s166 = int_to_ptr.vmem [resolvable:$true] %s165
      %171 = dma.hbm_to_vmem [thread:$0]  %s29, 32768, %s166, [#allocation12], 256, 256, 16
    $region61: #{tpu_custom_call.1} parent=1 // pred_fallthru
      _
    // Predicated region
    $region62: #{tpu_custom_call.1} parent=1 // pred_check
      _
    $region63: #{tpu_custom_call.1} parent=1 // pred_check_branch
      %173 = sbr.rel (0) target = $region65
    $region64: #{tpu_custom_call.1} parent=1 // pred_region
      _
    $region65: #{tpu_custom_call.1} parent=1 // pred_fallthru
      _
    // Predicated region
    $region66: #{tpu_custom_call.1} parent=1 // pred_check
      _
    $region67: #{tpu_custom_call.1} parent=1 // pred_check_branch
      %175 = sbr.rel (0) target = $region69
    $region68: #{tpu_custom_call.1} parent=1 // pred_region
      _
    $region69: #{tpu_custom_call.1} parent=1 // pred_fallthru
      _
    // Predicated region
    $region70: #{tpu_custom_call.1} parent=1 // pred_check
      _
    $region71: #{tpu_custom_call.1} parent=1 // pred_check_branch
      %177 = sbr.rel (0) target = $region73
    $region72: #{tpu_custom_call.1} parent=1 // pred_region
      _
    $region73: #{tpu_custom_call.1} parent=1 // pred_fallthru
      _
    // Predicated region
    $region74: #{tpu_custom_call.1} parent=1 // pred_check
      _
    $region75: #{tpu_custom_call.1} parent=1 // pred_check_branch
      %179 = sbr.rel (0) target = $region77
    $region76: #{tpu_custom_call.1} parent=1 // pred_region
      %s181 = ssub.s32 24576, 24576
      %182 = vsyncadd [#allocation15], %s181
      %s183 = sshll.u32 [#allocation14], 4
      %s184 = int_to_ptr.vmem [resolvable:$true] %s183
      %189 = dma.hbm_to_vmem [thread:$0]  %s37, 24576, %s184, [#allocation15], 768, 768, 48
    $region77: #{tpu_custom_call.1} parent=1 // pred_fallthru
      _
    // Predicated region
    $region78: #{tpu_custom_call.1} parent=1 // pred_check
      _
    $region79: #{tpu_custom_call.1} parent=1 // pred_check_branch
      %191 = sbr.rel (0) target = $region81
    $region80: #{tpu_custom_call.1} parent=1 // pred_region
      _
    $region81: #{tpu_custom_call.1} parent=1 // pred_fallthru
      _
    // Predicated region
    $region82: #{tpu_custom_call.1} parent=1 // pred_check
      _
    $region83: #{tpu_custom_call.1} parent=1 // pred_check_branch
      %193 = sbr.rel (0) target = $region85
    $region84: #{tpu_custom_call.1} parent=1 // pred_region
      %s195 = ssub.s32 8192, 8192
      %196 = vsyncadd [#allocation15], %s195
      %s197 = sshll.u32 [#allocation16], 4
      %s198 = int_to_ptr.vmem [resolvable:$true] %s197
      %203 = dma.hbm_to_vmem [thread:$0]  %s41, 8192, %s198, [#allocation15], 256, 256, 16
    $region85: #{tpu_custom_call.1} parent=1 // pred_fallthru
      _
    // Predicated region
    $region86: #{tpu_custom_call.1} parent=1 // pred_check
      _
    $region87: #{tpu_custom_call.1} parent=1 // pred_check_branch
      %205 = sbr.rel (0) target = $region89
    $region88: #{tpu_custom_call.1} parent=1 // pred_region
      _
    $region89: #{tpu_custom_call.1} parent=1 // pred_fallthru
      _
    // Predicated region
    $region90: #{tpu_custom_call.1} parent=1 // pred_check
      _
    $region91: #{tpu_custom_call.1} parent=1 // pred_check_branch
      %207 = sbr.rel (0) target = $region93
    $region92: #{tpu_custom_call.1} parent=1 // pred_region
      _
    $region93: #{tpu_custom_call.1} parent=1 // pred_fallthru
      _
    // Predicated region
    $region94: #{tpu_custom_call.1} parent=1 // pred_check
      _
    $region95: #{tpu_custom_call.1} parent=1 // pred_check_branch
      %209 = sbr.rel (0) target = $region97
    $region96: #{tpu_custom_call.1} parent=1 // pred_region
      _
    $region97: #{tpu_custom_call.1} parent=1 // pred_fallthru
      _
    // Predicated region
    $region98: #{tpu_custom_call.1} parent=1 // pred_check
      _
    $region99: #{tpu_custom_call.1} parent=1 // pred_check_branch
      %211 = sbr.rel (0) target = $region101
    $region100: #{tpu_custom_call.1} parent=1 // pred_region
      %s213 = ssub.s32 32768, 32768
      %214 = vsyncadd [#allocation18], %s213
      %s215 = sshll.u32 [#allocation17], 4
      %s216 = int_to_ptr.vmem [resolvable:$true] %s215
      %221 = dma.hbm_to_vmem [thread:$0]  %s49, 32768, %s216, [#allocation18], 1024, 1024, 64
    $region101: #{tpu_custom_call.1} parent=1 // pred_fallthru
      _
    // Predicated region
    $region102: #{tpu_custom_call.1} parent=1 // pred_check
      _
    $region103: #{tpu_custom_call.1} parent=1 // pred_check_branch
      %223 = sbr.rel (0) target = $region105
    $region104: #{tpu_custom_call.1} parent=1 // pred_region
      _
    $region105: #{tpu_custom_call.1} parent=1 // pred_fallthru
      _
    // Predicated region
    $region106: #{tpu_custom_call.1} parent=1 // pred_check
      _
    $region107: #{tpu_custom_call.1} parent=1 // pred_check_branch
      %225 = sbr.rel (0) target = $region109
    $region108: #{tpu_custom_call.1} parent=1 // pred_region
      %s227 = ssub.s32 32768, 32768
      %228 = vsyncadd [#allocation18], %s227
      %s229 = sshll.u32 [#allocation19], 4
      %s230 = int_to_ptr.vmem [resolvable:$true] %s229
      %235 = dma.hbm_to_vmem [thread:$0]  %s53, 32768, %s230, [#allocation18], 256, 256, 16
    $region109: #{tpu_custom_call.1} parent=1 // pred_fallthru
      _
    // Predicated region
    $region110: #{tpu_custom_call.1} parent=1 // pred_check
      _
    $region111: #{tpu_custom_call.1} parent=1 // pred_check_branch
      %237 = sbr.rel (0) target = $region113
    $region112: #{tpu_custom_call.1} parent=1 // pred_region
      _
    $region113: #{tpu_custom_call.1} parent=1 // pred_fallthru
      _
    // Predicated region
    $region114: #{tpu_custom_call.1} parent=1 // pred_check
      _
    $region115: #{tpu_custom_call.1} parent=1 // pred_check_branch
      %239 = sbr.rel (0) target = $region117
    $region116: #{tpu_custom_call.1} parent=1 // pred_region
      _
    $region117: #{tpu_custom_call.1} parent=1 // pred_fallthru
      _
    // Predicated region
    $region118: #{tpu_custom_call.1} parent=1 // pred_check
      _
    $region119: #{tpu_custom_call.1} parent=1 // pred_check_branch
      %241 = sbr.rel (0) target = $region121
    $region120: #{tpu_custom_call.1} parent=1 // pred_region
      _
    $region121: #{tpu_custom_call.1} parent=1 // pred_fallthru
      _
    // Predicated region
    $region122: #{tpu_custom_call.1} parent=1 // pred_check
      _
    $region123: #{tpu_custom_call.1} parent=1 // pred_check_branch
      %243 = sbr.rel (0) target = $region125
    $region124: #{tpu_custom_call.1} parent=1 // pred_region
      %s245 = ssub.s32 32768, 32768
      %246 = vsyncadd [#allocation21], %s245
      %s247 = sshll.u32 [#allocation20], 4
      %s248 = int_to_ptr.vmem [resolvable:$true] %s247
      %253 = dma.hbm_to_vmem [thread:$0]  %s61, 32768, %s248, [#allocation21], 256, 256, 16
    $region125: #{tpu_custom_call.1} parent=1 // pred_fallthru
      _
    // Predicated region
    $region126: #{tpu_custom_call.1} parent=1 // pred_check
      _
    $region127: #{tpu_custom_call.1} parent=1 // pred_check_branch
      %255 = sbr.rel (0) target = $region129
    $region128: #{tpu_custom_call.1} parent=1 // pred_region
      _
    $region129: #{tpu_custom_call.1} parent=1 // pred_fallthru
      _
    // Predicated region
    $region130: #{tpu_custom_call.1} parent=1 // pred_check
      _
    $region131: #{tpu_custom_call.1} parent=1 // pred_check_branch
      %257 = sbr.rel (0) target = $region133
    $region132: #{tpu_custom_call.1} parent=1 // pred_region
      %258 = dma.done [#allocation3], 32
    $region133: #{tpu_custom_call.1} parent=1 // pred_fallthru
      _
    // Predicated region
    $region134: #{tpu_custom_call.1} parent=1 // pred_check
      _
    $region135: #{tpu_custom_call.1} parent=1 // pred_check_branch
      %260 = sbr.rel (0) target = $region137
    $region136: #{tpu_custom_call.1} parent=1 // pred_region
      %261 = dma.done [#allocation6], 32
    $region137: #{tpu_custom_call.1} parent=1 // pred_fallthru
      _
    // Predicated region
    $region138: #{tpu_custom_call.1} parent=1 // pred_check
      _
    $region139: #{tpu_custom_call.1} parent=1 // pred_check_branch
      %263 = sbr.rel (0) target = $region141
    $region140: #{tpu_custom_call.1} parent=1 // pred_region
      %264 = dma.done [#allocation6], 32
    $region141: #{tpu_custom_call.1} parent=1 // pred_fallthru
      _
    // Predicated region
    $region142: #{tpu_custom_call.1} parent=1 // pred_check
      _
    $region143: #{tpu_custom_call.1} parent=1 // pred_check_branch
      %266 = sbr.rel (0) target = $region145
    $region144: #{tpu_custom_call.1} parent=1 // pred_region
      %267 = dma.done [#allocation9], 24576
    $region145: #{tpu_custom_call.1} parent=1 // pred_fallthru
      _
    // Predicated region
    $region146: #{tpu_custom_call.1} parent=1 // pred_check
      _
    $region147: #{tpu_custom_call.1} parent=1 // pred_check_branch
      %269 = sbr.rel (0) target = $region149
    $region148: #{tpu_custom_call.1} parent=1 // pred_region
      %270 = dma.done [#allocation9], 8192
    $region149: #{tpu_custom_call.1} parent=1 // pred_fallthru
      _
    // Predicated region
    $region150: #{tpu_custom_call.1} parent=1 // pred_check
      _
    $region151: #{tpu_custom_call.1} parent=1 // pred_check_branch
      %272 = sbr.rel (0) target = $region153
    $region152: #{tpu_custom_call.1} parent=1 // pred_region
      %273 = dma.done [#allocation12], 32768
    $region153: #{tpu_custom_call.1} parent=1 // pred_fallthru
      _
    // Predicated region
    $region154: #{tpu_custom_call.1} parent=1 // pred_check
      _
    $region155: #{tpu_custom_call.1} parent=1 // pred_check_branch
      %275 = sbr.rel (0) target = $region157
    $region156: #{tpu_custom_call.1} parent=1 // pred_region
      %276 = dma.done [#allocation12], 32768
    $region157: #{tpu_custom_call.1} parent=1 // pred_fallthru
      _
    // Predicated region
    $region158: #{tpu_custom_call.1} parent=1 // pred_check
      _
    $region159: #{tpu_custom_call.1} parent=1 // pred_check_branch
      %278 = sbr.rel (0) target = $region161
    $region160: #{tpu_custom_call.1} parent=1 // pred_region
      %279 = dma.done [#allocation15], 24576
    $region161: #{tpu_custom_call.1} parent=1 // pred_fallthru
      _
    // Predicated region
    $region162: #{tpu_custom_call.1} parent=1 // pred_check
      _
    $region163: #{tpu_custom_call.1} parent=1 // pred_check_branch
      %281 = sbr.rel (0) target = $region165
    $region164: #{tpu_custom_call.1} parent=1 // pred_region
      %282 = dma.done [#allocation15], 8192
    $region165: #{tpu_custom_call.1} parent=1 // pred_fallthru
      _
    // Predicated region
    $region166: #{tpu_custom_call.1} parent=1 // pred_check
      _
    $region167: #{tpu_custom_call.1} parent=1 // pred_check_branch
      %284 = sbr.rel (0) target = $region169
    $region168: #{tpu_custom_call.1} parent=1 // pred_region
      %285 = dma.done [#allocation18], 32768
    $region169: #{tpu_custom_call.1} parent=1 // pred_fallthru
      _
    // Predicated region
    $region170: #{tpu_custom_call.1} parent=1 // pred_check
      _
    $region171: #{tpu_custom_call.1} parent=1 // pred_check_branch
      %287 = sbr.rel (0) target = $region173
    $region172: #{tpu_custom_call.1} parent=1 // pred_region
      %288 = dma.done [#allocation18], 32768
    $region173: #{tpu_custom_call.1} parent=1 // pred_fallthru
      _
    // Predicated region
    $region174: #{tpu_custom_call.1} parent=1 // pred_check
      _
    $region175: #{tpu_custom_call.1} parent=1 // pred_check_branch
      %290 = sbr.rel (0) target = $region177
    $region176: #{tpu_custom_call.1} parent=1 // pred_region
      %291 = dma.done [#allocation21], 32768
    $region177: #{tpu_custom_call.1} parent=1 // pred_fallthru
      _
    %v292 = vld [vmem:[%s1] sm:$0xff]
    %v293 = vld [vmem:[%s1 + $0x8] sm:$0xff]
    %v294 = vld [vmem:[%s1 + $0x10] sm:$0xff]
    %v295 = vld [vmem:[%s1 + $0x18] sm:$0xff]
    %v296 = vld [vmem:[%s3] sm:$0xff]
    %v297 = vld [vmem:[%s3 + $0x8] sm:$0xff]
    %vm298 = vcmask 64512
    %v300 = vsel %vm298, %v292, 0
    %v303 = vsel %vm298, %v293, 0
    %v306 = vsel %vm298, %v294, 0
    %v309 = vsel %vm298, %v295, 0
    %311 = vmatprep.subr.mxu0 0.0
    %312 = vmatpush1.msra.mxu0 0.0
    %313 = vmatprep.subr.mxu0 0.0
    %314 = vmatpush1.msra.mxu0 0.0
    %315 = vmatprep.subr.mxu0 0.0
    %316 = vmatpush1.msra.mxu0 0.0
    %317 = vmatprep.subr.mxu0 0.0
    %318 = vmatpush1.msra.mxu0 0.0
    %319 = vmatprep.subr.mxu0 0.0
    %320 = vmatpush1.msra.mxu0 0.0
    %321 = vmatprep.subr.mxu0 0.0
    %322 = vmatpush1.msra.mxu0 0.0
    %323 = vmatprep.subr.mxu0 0.0
    %324 = vmatpush1.msra.mxu0 0.0
    %325 = vmatprep.subr.mxu0 0.0
    %326 = vmatpush1.msra.mxu0 0.0
    %327 = vmatprep.subr.mxu0 0.0
    %328 = vmatpush1.msra.mxu0 0.0
    %329 = vmatprep.subr.mxu0 0.0
    %330 = vmatpush1.msra.mxu0 0.0
    %331 = vmatprep.subr.mxu0 0.0
    %332 = vmatpush1.msra.mxu0 0.0
    %333 = vmatprep.subr.mxu0 0.0
    %334 = vmatpush1.msra.mxu0 0.0
    %335 = vmatprep.subr.mxu0 0.0
    %336 = vmatpush1.msra.mxu0 0.0
    %337 = vmatprep.subr.mxu0 0.0
    %338 = vmatpush1.msra.mxu0 0.0
    %339 = vmatprep.subr.mxu0 0.0
    %340 = vmatpush1.msra.mxu0 0.0
    %341 = vmatprep.subr.mxu0 %v297
    %342 = vmatpush1.msra.mxu0 %v296
    %343 = vmatprep.subr.mxu0 0.0
    %344 = vmatpush2.msra.mxu0 0.0
    %345 = vmatprep.subr.mxu0 0.0
    %346 = vmatpush2.msra.mxu0 0.0
    %347 = vmatprep.subr.mxu0 0.0
    %348 = vmatpush2.msra.mxu0 0.0
    %349 = vmatprep.subr.mxu0 0.0
    %350 = vmatpush2.msra.mxu0 0.0
    %351 = vmatprep.subr.mxu0 0.0
    %352 = vmatpush2.msra.mxu0 0.0
    %353 = vmatprep.subr.mxu0 0.0
    %354 = vmatpush2.msra.mxu0 0.0
    %355 = vmatprep.subr.mxu0 0.0
    %356 = vmatpush2.msra.mxu0 0.0
    %357 = vmatprep.subr.mxu0 0.0
    %358 = vmatpush2.msra.mxu0 0.0
    %359 = vmatprep.subr.mxu0 0.0
    %360 = vmatpush2.msra.mxu0 0.0
    %361 = vmatprep.subr.mxu0 0.0
    %362 = vmatpush2.msra.mxu0 0.0
    %363 = vmatprep.subr.mxu0 0.0
    %364 = vmatpush2.msra.mxu0 0.0
    %365 = vmatprep.subr.mxu0 0.0
    %366 = vmatpush2.msra.mxu0 0.0
    %367 = vmatprep.subr.mxu0 0.0
    %368 = vmatpush2.msra.mxu0 0.0
    %369 = vmatprep.subr.mxu0 0.0
    %370 = vmatpush2.msra.mxu0 0.0
    %371 = vmatprep.subr.mxu0 0.0
    %372 = vmatpush2.msra.mxu0 0.0
    %373 = vmatprep.subr.mxu0 0.0
    %374 = vmatpush2.msra.mxu0 0.0
    %375 = vmatprep.mubr.f32.mxu0 0.0
    %376 = vmatmul.mubr.f32.gmra.mxu0 %v300
    %v377 = vpop.f32.mrf.mxu0
    %v378 = vadd.f32 0.0, %v377
    %v379 = vpop.f32.mrf.mxu0
    %v380 = vadd.f32 0.0, %v379
    %381 = vmatprep.mubr.f32.mxu0 0.0
    %382 = vmatmul.mubr.f32.gmra.mxu0 %v303
    %v383 = vpop.f32.mrf.mxu0
    %v384 = vadd.f32 0.0, %v383
    %v385 = vpop.f32.mrf.mxu0
    %v386 = vadd.f32 0.0, %v385
    %387 = vmatprep.mubr.f32.mxu0 0.0
    %388 = vmatmul.mubr.f32.gmra.mxu0 %v306
    %v389 = vpop.f32.mrf.mxu0
    %v390 = vadd.f32 0.0, %v389
    %v391 = vpop.f32.mrf.mxu0
    %v392 = vadd.f32 0.0, %v391
    %393 = vmatprep.mubr.f32.mxu0 0.0
    %394 = vmatmul.mubr.f32.gmra.mxu0 %v309
    %v395 = vpop.f32.mrf.mxu0
    %v396 = vadd.f32 0.0, %v395
    %v397 = vpop.f32.mrf.mxu0
    %v398 = vadd.f32 0.0, %v397
    %399 = vdwg.mxu0
    %v400 = vld [vmem:[#allocation2] sm:$0x3]
    %v402 = vlaneseq
    %v403 = vshrl.u32 %v402, 7
    %v404 = vsub.s32 0, %v403
    %v405 = vrot.slane %v400, %v404
    %v406 = vlaneseq
    %v407 = vshrl.u32 %v406, 7
    %v408 = vsub.s32 1, %v407
    %v409 = vrot.slane %v400, %v408
    %v412 = vadd.f32 %v378, %v405
    %v413 = vadd.f32 %v380, %v409
    %v414 = vadd.f32 %v384, %v405
    %v415 = vadd.f32 %v386, %v409
    %v416 = vadd.f32 %v390, %v405
    %v417 = vadd.f32 %v392, %v409
    %v418 = vadd.f32 %v396, %v405
    %v419 = vadd.f32 %v398, %v409
    %v420 = vmul.f32 %v412, %v412
    %v421 = vmul.f32 %v413, %v413
    %v422 = vmul.f32 %v414, %v414
    %v423 = vmul.f32 %v415, %v415
    %v424 = vmul.f32 %v416, %v416
    %v425 = vmul.f32 %v417, %v417
    %v426 = vmul.f32 %v418, %v418
    %v427 = vmul.f32 %v419, %v419
    %v436 = vcombine.low %v420, %v421
    %v437 = vcombine.high %v420, %v421
    %v439 = vunpack.c.l.s4 1983009808
    %v440 = vunpack.c.0.s8 %v439
    %v441 = vlaneseq
    %v442 = vshrl.u32 %v441, 7
    %v443 = vsub.s32 %v440, %v442
    %v444 = vrot.slane %v436, %v443
    %v446 = vunpack.c.l.s4 1983009808
    %v447 = vunpack.c.0.s8 %v446
    %v448 = vlaneseq
    %v449 = vshrl.u32 %v448, 7
    %v450 = vsub.s32 %v447, %v449
    %v451 = vrot.slane %v437, %v450
    %v452 = vcombine.high %v444, %v444
    %v453 = vcombine.high %v451, %v451
    %v454 = vcombine.low %v422, %v423
    %v455 = vcombine.high %v422, %v423
    %v457 = vunpack.c.l.s4 1983009808
    %v458 = vunpack.c.0.s8 %v457
    %v459 = vlaneseq
    %v460 = vshrl.u32 %v459, 7
    %v461 = vsub.s32 %v458, %v460
    %v462 = vrot.slane %v454, %v461
    %v464 = vunpack.c.l.s4 1983009808
    %v465 = vunpack.c.0.s8 %v464
    %v466 = vlaneseq
    %v467 = vshrl.u32 %v466, 7
    %v468 = vsub.s32 %v465, %v467
    %v469 = vrot.slane %v455, %v468
    %v470 = vcombine.high %v462, %v462
    %v471 = vcombine.high %v469, %v469
    %v472 = vcombine.low %v424, %v425
    %v473 = vcombine.high %v424, %v425
    %v475 = vunpack.c.l.s4 1983009808
    %v476 = vunpack.c.0.s8 %v475
    %v477 = vlaneseq
    %v478 = vshrl.u32 %v477, 7
    %v479 = vsub.s32 %v476, %v478
    %v480 = vrot.slane %v472, %v479
    %v482 = vunpack.c.l.s4 1983009808
    %v483 = vunpack.c.0.s8 %v482
    %v484 = vlaneseq
    %v485 = vshrl.u32 %v484, 7
    %v486 = vsub.s32 %v483, %v485
    %v487 = vrot.slane %v473, %v486
    %v488 = vcombine.high %v480, %v480
    %v489 = vcombine.high %v487, %v487
    %v490 = vcombine.low %v426, %v427
    %v491 = vcombine.high %v426, %v427
    %v493 = vunpack.c.l.s4 1983009808
    %v494 = vunpack.c.0.s8 %v493
    %v495 = vlaneseq
    %v496 = vshrl.u32 %v495, 7
    %v497 = vsub.s32 %v494, %v496
    %v498 = vrot.slane %v490, %v497
    %v500 = vunpack.c.l.s4 1983009808
    %v501 = vunpack.c.0.s8 %v500
    %v502 = vlaneseq
    %v503 = vshrl.u32 %v502, 7
    %v504 = vsub.s32 %v501, %v503
    %v505 = vrot.slane %v491, %v504
    %v506 = vcombine.high %v498, %v498
    %v507 = vcombine.high %v505, %v505
    %v524 = vrot.slane %v444, 7
    %v525 = vrot.slane %v524, 2
    %v526 = vrot.slane %v452, 7
    %v527 = vrot.slane %v526, 2
    %v528 = vrot.slane %v451, 7
    %v529 = vrot.slane %v528, 2
    %v530 = vrot.slane %v453, 7
    %v531 = vrot.slane %v530, 2
    %v532 = vrot.slane %v462, 7
    %v533 = vrot.slane %v532, 2
    %v534 = vrot.slane %v470, 7
    %v535 = vrot.slane %v534, 2
    %v536 = vrot.slane %v469, 7
    %v537 = vrot.slane %v536, 2
    %v538 = vrot.slane %v471, 7
    %v539 = vrot.slane %v538, 2
    %v540 = vrot.slane %v480, 7
    %v541 = vrot.slane %v540, 2
    %v542 = vrot.slane %v488, 7
    %v543 = vrot.slane %v542, 2
    %v544 = vrot.slane %v487, 7
    %v545 = vrot.slane %v544, 2
    %v546 = vrot.slane %v489, 7
    %v547 = vrot.slane %v546, 2
    %v548 = vrot.slane %v498, 7
    %v549 = vrot.slane %v548, 2
    %v550 = vrot.slane %v506, 7
    %v551 = vrot.slane %v550, 2
    %v552 = vrot.slane %v505, 7
    %v553 = vrot.slane %v552, 2
    %v554 = vrot.slane %v507, 7
    %v555 = vrot.slane %v554, 2
    %v572 = vadd.f32 %v444, %v525
    %v573 = vadd.f32 %v452, %v527
    %v574 = vadd.f32 %v451, %v529
    %v575 = vadd.f32 %v453, %v531
    %v576 = vadd.f32 %v462, %v533
    %v577 = vadd.f32 %v470, %v535
    %v578 = vadd.f32 %v469, %v537
    %v579 = vadd.f32 %v471, %v539
    %v580 = vadd.f32 %v480, %v541
    %v581 = vadd.f32 %v488, %v543
    %v582 = vadd.f32 %v487, %v545
    %v583 = vadd.f32 %v489, %v547
    %v584 = vadd.f32 %v498, %v549
    %v585 = vadd.f32 %v506, %v551
    %v586 = vadd.f32 %v505, %v553
    %v587 = vadd.f32 %v507, %v555
    %v588 = vrsqrt.pop %v572
    %v589 = vmul.f32 %v572, %v588
    %vm590 = vcmp.eq.f32.partialorder %v572, inf
    %v591 = vsel %vm590, %v572, %v589
    %vm592 = vcmp.eq.f32.partialorder %v572, 0.0
    %v593 = vand.u32 %v572, 2147483648
    %v594 = vsel %vm592, %v593, %v591
    %v595 = vrsqrt.pop %v573
    %v596 = vmul.f32 %v573, %v595
    %vm597 = vcmp.eq.f32.partialorder %v573, inf
    %v598 = vsel %vm597, %v573, %v596
    %vm599 = vcmp.eq.f32.partialorder %v573, 0.0
    %v600 = vand.u32 %v573, 2147483648
    %v601 = vsel %vm599, %v600, %v598
    %v602 = vrsqrt.pop %v574
    %v603 = vmul.f32 %v574, %v602
    %vm604 = vcmp.eq.f32.partialorder %v574, inf
    %v605 = vsel %vm604, %v574, %v603
    %vm606 = vcmp.eq.f32.partialorder %v574, 0.0
    %v607 = vand.u32 %v574, 2147483648
    %v608 = vsel %vm606, %v607, %v605
    %v609 = vrsqrt.pop %v575
    %v610 = vmul.f32 %v575, %v609
    %vm611 = vcmp.eq.f32.partialorder %v575, inf
    %v612 = vsel %vm611, %v575, %v610
    %vm613 = vcmp.eq.f32.partialorder %v575, 0.0
    %v614 = vand.u32 %v575, 2147483648
    %v615 = vsel %vm613, %v614, %v612
    %v616 = vrsqrt.pop %v576
    %v617 = vmul.f32 %v576, %v616
    %vm618 = vcmp.eq.f32.partialorder %v576, inf
    %v619 = vsel %vm618, %v576, %v617
    %vm620 = vcmp.eq.f32.partialorder %v576, 0.0
    %v621 = vand.u32 %v576, 2147483648
    %v622 = vsel %vm620, %v621, %v619
    %v623 = vrsqrt.pop %v577
    %v624 = vmul.f32 %v577, %v623
    %vm625 = vcmp.eq.f32.partialorder %v577, inf
    %v626 = vsel %vm625, %v577, %v624
    %vm627 = vcmp.eq.f32.partialorder %v577, 0.0
    %v628 = vand.u32 %v577, 2147483648
    %v629 = vsel %vm627, %v628, %v626
    %v630 = vrsqrt.pop %v578
    %v631 = vmul.f32 %v578, %v630
    %vm632 = vcmp.eq.f32.partialorder %v578, inf
    %v633 = vsel %vm632, %v578, %v631
    %vm634 = vcmp.eq.f32.partialorder %v578, 0.0
    %v635 = vand.u32 %v578, 2147483648
    %v636 = vsel %vm634, %v635, %v633
    %v637 = vrsqrt.pop %v579
    %v638 = vmul.f32 %v579, %v637
    %vm639 = vcmp.eq.f32.partialorder %v579, inf
    %v640 = vsel %vm639, %v579, %v638
    %vm641 = vcmp.eq.f32.partialorder %v579, 0.0
    %v642 = vand.u32 %v579, 2147483648
    %v643 = vsel %vm641, %v642, %v640
    %v644 = vrsqrt.pop %v580
    %v645 = vmul.f32 %v580, %v644
    %vm646 = vcmp.eq.f32.partialorder %v580, inf
    %v647 = vsel %vm646, %v580, %v645
    %vm648 = vcmp.eq.f32.partialorder %v580, 0.0
    %v649 = vand.u32 %v580, 2147483648
    %v650 = vsel %vm648, %v649, %v647
    %v651 = vrsqrt.pop %v581
    %v652 = vmul.f32 %v581, %v651
    %vm653 = vcmp.eq.f32.partialorder %v581, inf
    %v654 = vsel %vm653, %v581, %v652
    %vm655 = vcmp.eq.f32.partialorder %v581, 0.0
    %v656 = vand.u32 %v581, 2147483648
    %v657 = vsel %vm655, %v656, %v654
    %v658 = vrsqrt.pop %v582
    %v659 = vmul.f32 %v582, %v658
    %vm660 = vcmp.eq.f32.partialorder %v582, inf
    %v661 = vsel %vm660, %v582, %v659
    %vm662 = vcmp.eq.f32.partialorder %v582, 0.0
    %v663 = vand.u32 %v582, 2147483648
    %v664 = vsel %vm662, %v663, %v661
    %v665 = vrsqrt.pop %v583
    %v666 = vmul.f32 %v583, %v665
    %vm667 = vcmp.eq.f32.partialorder %v583, inf
    %v668 = vsel %vm667, %v583, %v666
    %vm669 = vcmp.eq.f32.partialorder %v583, 0.0
    %v670 = vand.u32 %v583, 2147483648
    %v671 = vsel %vm669, %v670, %v668
    %v672 = vrsqrt.pop %v584
    %v673 = vmul.f32 %v584, %v672
    %vm674 = vcmp.eq.f32.partialorder %v584, inf
    %v675 = vsel %vm674, %v584, %v673
    %vm676 = vcmp.eq.f32.partialorder %v584, 0.0
    %v677 = vand.u32 %v584, 2147483648
    %v678 = vsel %vm676, %v677, %v675
    %v679 = vrsqrt.pop %v585
    %v680 = vmul.f32 %v585, %v679
    %vm681 = vcmp.eq.f32.partialorder %v585, inf
    %v682 = vsel %vm681, %v585, %v680
    %vm683 = vcmp.eq.f32.partialorder %v585, 0.0
    %v684 = vand.u32 %v585, 2147483648
    %v685 = vsel %vm683, %v684, %v682
    %v686 = vrsqrt.pop %v586
    %v687 = vmul.f32 %v586, %v686
    %vm688 = vcmp.eq.f32.partialorder %v586, inf
    %v689 = vsel %vm688, %v586, %v687
    %vm690 = vcmp.eq.f32.partialorder %v586, 0.0
    %v691 = vand.u32 %v586, 2147483648
    %v692 = vsel %vm690, %v691, %v689
    %v693 = vrsqrt.pop %v587
    %v694 = vmul.f32 %v587, %v693
    %vm695 = vcmp.eq.f32.partialorder %v587, inf
    %v696 = vsel %vm695, %v587, %v694
    %vm697 = vcmp.eq.f32.partialorder %v587, 0.0
    %v698 = vand.u32 %v587, 2147483648
    %v699 = vsel %vm697, %v698, %v696
    %v700 = vld [vmem:[%s7] sm:$0xff]
    %v701 = vld [vmem:[%s7 + $0x8] sm:$0xff]
    %v704 = vcombine.low %v700, %v701
    %v705 = vcombine.high %v700, %v701
    %v707 = vunpack.c.l.s4 1983009808
    %v708 = vunpack.c.0.s8 %v707
    %v709 = vlaneseq
    %v710 = vshrl.u32 %v709, 7
    %v711 = vsub.s32 %v708, %v710
    %v712 = vrot.slane %v704, %v711
    %v714 = vunpack.c.l.s4 1983009808
    %v715 = vunpack.c.0.s8 %v714
    %v716 = vlaneseq
    %v717 = vshrl.u32 %v716, 7
    %v718 = vsub.s32 %v715, %v717
    %v719 = vrot.slane %v705, %v718
    %v720 = vcombine.high %v712, %v712
    %v721 = vcombine.high %v719, %v719
    %v722 = vrot.slane %v712, 1
    %v723 = vrot.slane %v720, 1
    %v724 = vrot.slane %v719, 1
    %v725 = vrot.slane %v721, 1
    %v734 = vadd.f32 %v594, %v712
    %v735 = vadd.f32 %v601, %v722
    %v736 = vadd.f32 %v608, %v720
    %v737 = vadd.f32 %v615, %v723
    %v738 = vadd.f32 %v622, %v719
    %v739 = vadd.f32 %v629, %v724
    %v740 = vadd.f32 %v636, %v721
    %v741 = vadd.f32 %v643, %v725
    %v742 = vadd.f32 %v650, %v712
    %v743 = vadd.f32 %v657, %v722
    %v744 = vadd.f32 %v664, %v720
    %v745 = vadd.f32 %v671, %v723
    %v746 = vadd.f32 %v678, %v719
    %v747 = vadd.f32 %v685, %v724
    %v748 = vadd.f32 %v692, %v721
    %v749 = vadd.f32 %v699, %v725
    %v750 = vld [vmem:[#allocation5] sm:$0x3]
    %v751 = vld [vmem:[#allocation7] sm:$0x3]
    %v768 = vlaneseq
    %v769 = vshrl.u32 %v768, 7
    %v770 = vsub.s32 0, %v769
    %v771 = vrot.slane %v734, %v770
    %v772 = vlaneseq
    %v773 = vshrl.u32 %v772, 7
    %v774 = vsub.s32 2, %v773
    %v775 = vrot.slane %v734, %v774
    %v776 = vlaneseq
    %v777 = vshrl.u32 %v776, 7
    %v778 = vsub.s32 0, %v777
    %v779 = vrot.slane %v735, %v778
    %v780 = vlaneseq
    %v781 = vshrl.u32 %v780, 7
    %v782 = vsub.s32 2, %v781
    %v783 = vrot.slane %v735, %v782
    %v784 = vlaneseq
    %v785 = vshrl.u32 %v784, 7
    %v786 = vsub.s32 0, %v785
    %v787 = vrot.slane %v736, %v786
    %v788 = vlaneseq
    %v789 = vshrl.u32 %v788, 7
    %v790 = vsub.s32 2, %v789
    %v791 = vrot.slane %v736, %v790
    %v792 = vlaneseq
    %v793 = vshrl.u32 %v792, 7
    %v794 = vsub.s32 0, %v793
    %v795 = vrot.slane %v737, %v794
    %v796 = vlaneseq
    %v797 = vshrl.u32 %v796, 7
    %v798 = vsub.s32 2, %v797
    %v799 = vrot.slane %v737, %v798
    %v800 = vlaneseq
    %v801 = vshrl.u32 %v800, 7
    %v802 = vsub.s32 0, %v801
    %v803 = vrot.slane %v738, %v802
    %v804 = vlaneseq
    %v805 = vshrl.u32 %v804, 7
    %v806 = vsub.s32 2, %v805
    %v807 = vrot.slane %v738, %v806
    %v808 = vlaneseq
    %v809 = vshrl.u32 %v808, 7
    %v810 = vsub.s32 0, %v809
    %v811 = vrot.slane %v739, %v810
    %v812 = vlaneseq
    %v813 = vshrl.u32 %v812, 7
    %v814 = vsub.s32 2, %v813
    %v815 = vrot.slane %v739, %v814
    %v816 = vlaneseq
    %v817 = vshrl.u32 %v816, 7
    %v818 = vsub.s32 0, %v817
    %v819 = vrot.slane %v740, %v818
    %v820 = vlaneseq
    %v821 = vshrl.u32 %v820, 7
    %v822 = vsub.s32 2, %v821
    %v823 = vrot.slane %v740, %v822
    %v824 = vlaneseq
    %v825 = vshrl.u32 %v824, 7
    %v826 = vsub.s32 0, %v825
    %v827 = vrot.slane %v741, %v826
    %v828 = vlaneseq
    %v829 = vshrl.u32 %v828, 7
    %v830 = vsub.s32 2, %v829
    %v831 = vrot.slane %v741, %v830
    %v832 = vlaneseq
    %v833 = vshrl.u32 %v832, 7
    %v834 = vsub.s32 0, %v833
    %v835 = vrot.slane %v742, %v834
    %v836 = vlaneseq
    %v837 = vshrl.u32 %v836, 7
    %v838 = vsub.s32 2, %v837
    %v839 = vrot.slane %v742, %v838
    %v840 = vlaneseq
    %v841 = vshrl.u32 %v840, 7
    %v842 = vsub.s32 0, %v841
    %v843 = vrot.slane %v743, %v842
    %v844 = vlaneseq
    %v845 = vshrl.u32 %v844, 7
    %v846 = vsub.s32 2, %v845
    %v847 = vrot.slane %v743, %v846
    %v848 = vlaneseq
    %v849 = vshrl.u32 %v848, 7
    %v850 = vsub.s32 0, %v849
    %v851 = vrot.slane %v744, %v850
    %v852 = vlaneseq
    %v853 = vshrl.u32 %v852, 7
    %v854 = vsub.s32 2, %v853
    %v855 = vrot.slane %v744, %v854
    %v856 = vlaneseq
    %v857 = vshrl.u32 %v856, 7
    %v858 = vsub.s32 0, %v857
    %v859 = vrot.slane %v745, %v858
    %v860 = vlaneseq
    %v861 = vshrl.u32 %v860, 7
    %v862 = vsub.s32 2, %v861
    %v863 = vrot.slane %v745, %v862
    %v864 = vlaneseq
    %v865 = vshrl.u32 %v864, 7
    %v866 = vsub.s32 0, %v865
    %v867 = vrot.slane %v746, %v866
    %v868 = vlaneseq
    %v869 = vshrl.u32 %v868, 7
    %v870 = vsub.s32 2, %v869
    %v871 = vrot.slane %v746, %v870
    %v872 = vlaneseq
    %v873 = vshrl.u32 %v872, 7
    %v874 = vsub.s32 0, %v873
    %v875 = vrot.slane %v747, %v874
    %v876 = vlaneseq
    %v877 = vshrl.u32 %v876, 7
    %v878 = vsub.s32 2, %v877
    %v879 = vrot.slane %v747, %v878
    %v880 = vlaneseq
    %v881 = vshrl.u32 %v880, 7
    %v882 = vsub.s32 0, %v881
    %v883 = vrot.slane %v748, %v882
    %v884 = vlaneseq
    %v885 = vshrl.u32 %v884, 7
    %v886 = vsub.s32 2, %v885
    %v887 = vrot.slane %v748, %v886
    %v888 = vlaneseq
    %v889 = vshrl.u32 %v888, 7
    %v890 = vsub.s32 0, %v889
    %v891 = vrot.slane %v749, %v890
    %v892 = vlaneseq
    %v893 = vshrl.u32 %v892, 7
    %v894 = vsub.s32 2, %v893
    %v895 = vrot.slane %v749, %v894
    %vm896 = vcmask 1041409
    %v897 = vsel %vm896, %v779, %v771
    %vm898 = vcmask 1042434
    %v899 = vsel %vm898, %v787, %v897
    %vm900 = vcmask 1043459
    %v901 = vsel %vm900, %v795, %v899
    %vm902 = vcmask 1044484
    %v903 = vsel %vm902, %v803, %v901
    %vm904 = vcmask 1045509
    %v905 = vsel %vm904, %v811, %v903
    %vm906 = vcmask 1046534
    %v907 = vsel %vm906, %v819, %v905
    %vm908 = vcmask 1047559
    %v909 = vsel %vm908, %v827, %v907
    %v910 = vsel %vm896, %v783, %v775
    %v911 = vsel %vm898, %v791, %v910
    %v912 = vsel %vm900, %v799, %v911
    %v913 = vsel %vm902, %v807, %v912
    %v914 = vsel %vm904, %v815, %v913
    %v915 = vsel %vm906, %v823, %v914
    %v916 = vsel %vm908, %v831, %v915
    %v917 = vsel %vm896, %v843, %v835
    %v918 = vsel %vm898, %v851, %v917
    %v919 = vsel %vm900, %v859, %v918
    %v920 = vsel %vm902, %v867, %v919
    %v921 = vsel %vm904, %v875, %v920
    %v922 = vsel %vm906, %v883, %v921
    %v923 = vsel %vm908, %v891, %v922
    %v924 = vsel %vm896, %v847, %v839
    %v925 = vsel %vm898, %v855, %v924
    %v926 = vsel %vm900, %v863, %v925
    %v927 = vsel %vm902, %v871, %v926
    %v928 = vsel %vm904, %v879, %v927
    %v929 = vsel %vm906, %v887, %v928
    %v930 = vsel %vm908, %v895, %v929
    %v935 = vadd.f32 %v909, %v916
    %936 = vadd.xlane.f32.xlu0 %v935
    %v937 = vpop.xlane.xlu0 %936
    %v938 = vadd.f32 %v923, %v930
    %939 = vadd.xlane.f32.xlu0 %v938
    %v940 = vpop.xlane.xlu0 %939
    %v941 = vrcp.pop 256.0
    %v942 = vmul.f32 %v937, %v941
    %v943 = vmul.f32 %v940, %v941
    %v947 = vunpack.c.l.s4 269488144
    %v948 = vunpack.c.0.s8 %v947
    %v949 = vlaneseq
    %v950 = vshrl.u32 %v949, 7
    %v951 = vsub.s32 %v948, %v950
    %v952 = vrot.slane %v942, %v951
    %v954 = vunpack.c.l.s4 842150450
    %v955 = vunpack.c.0.s8 %v954
    %v956 = vlaneseq
    %v957 = vshrl.u32 %v956, 7
    %v958 = vsub.s32 %v955, %v957
    %v959 = vrot.slane %v942, %v958
    %v961 = vunpack.c.l.s4 1414812756
    %v962 = vunpack.c.0.s8 %v961
    %v963 = vlaneseq
    %v964 = vshrl.u32 %v963, 7
    %v965 = vsub.s32 %v962, %v964
    %v966 = vrot.slane %v942, %v965
    %v968 = vunpack.c.l.s4 1987475062
    %v969 = vunpack.c.0.s8 %v968
    %v970 = vlaneseq
    %v971 = vshrl.u32 %v970, 7
    %v972 = vsub.s32 %v969, %v971
    %v973 = vrot.slane %v942, %v972
    %v975 = vunpack.c.l.s4 269488144
    %v976 = vunpack.c.0.s8 %v975
    %v977 = vlaneseq
    %v978 = vshrl.u32 %v977, 7
    %v979 = vsub.s32 %v976, %v978
    %v980 = vrot.slane %v943, %v979
    %v982 = vunpack.c.l.s4 842150450
    %v983 = vunpack.c.0.s8 %v982
    %v984 = vlaneseq
    %v985 = vshrl.u32 %v984, 7
    %v986 = vsub.s32 %v983, %v985
    %v987 = vrot.slane %v943, %v986
    %v989 = vunpack.c.l.s4 1414812756
    %v990 = vunpack.c.0.s8 %v989
    %v991 = vlaneseq
    %v992 = vshrl.u32 %v991, 7
    %v993 = vsub.s32 %v990, %v992
    %v994 = vrot.slane %v943, %v993
    %v996 = vunpack.c.l.s4 1987475062
    %v997 = vunpack.c.0.s8 %v996
    %v998 = vlaneseq
    %v999 = vshrl.u32 %v998, 7
    %v1000 = vsub.s32 %v997, %v999
    %v1001 = vrot.slane %v943, %v1000
    %v1002 = vrot.slane %v952, 1
    %v1003 = vrot.slane %v959, 1
    %v1004 = vrot.slane %v966, 1
    %v1005 = vrot.slane %v973, 1
    %v1006 = vrot.slane %v980, 1
    %v1007 = vrot.slane %v987, 1
    %v1008 = vrot.slane %v994, 1
    %v1009 = vrot.slane %v1001, 1
    %v1026 = vsub.f32 %v734, %v952
    %v1027 = vsub.f32 %v735, %v1002
    %v1028 = vsub.f32 %v736, %v959
    %v1029 = vsub.f32 %v737, %v1003
    %v1030 = vsub.f32 %v738, %v966
    %v1031 = vsub.f32 %v739, %v1004
    %v1032 = vsub.f32 %v740, %v973
    %v1033 = vsub.f32 %v741, %v1005
    %v1034 = vsub.f32 %v742, %v980
    %v1035 = vsub.f32 %v743, %v1006
    %v1036 = vsub.f32 %v744, %v987
    %v1037 = vsub.f32 %v745, %v1007
    %v1038 = vsub.f32 %v746, %v994
    %v1039 = vsub.f32 %v747, %v1008
    %v1040 = vsub.f32 %v748, %v1001
    %v1041 = vsub.f32 %v749, %v1009
    %v1042 = vmul.f32 %v1026, %v1026
    %v1043 = vmul.f32 %v1027, %v1027
    %v1044 = vmul.f32 %v1028, %v1028
    %v1045 = vmul.f32 %v1029, %v1029
    %v1046 = vmul.f32 %v1030, %v1030
    %v1047 = vmul.f32 %v1031, %v1031
    %v1048 = vmul.f32 %v1032, %v1032
    %v1049 = vmul.f32 %v1033, %v1033
    %v1050 = vmul.f32 %v1034, %v1034
    %v1051 = vmul.f32 %v1035, %v1035
    %v1052 = vmul.f32 %v1036, %v1036
    %v1053 = vmul.f32 %v1037, %v1037
    %v1054 = vmul.f32 %v1038, %v1038
    %v1055 = vmul.f32 %v1039, %v1039
    %v1056 = vmul.f32 %v1040, %v1040
    %v1057 = vmul.f32 %v1041, %v1041
    %v1074 = vlaneseq
    %v1075 = vshrl.u32 %v1074, 7
    %v1076 = vsub.s32 0, %v1075
    %v1077 = vrot.slane %v1042, %v1076
    %v1078 = vlaneseq
    %v1079 = vshrl.u32 %v1078, 7
    %v1080 = vsub.s32 2, %v1079
    %v1081 = vrot.slane %v1042, %v1080
    %v1082 = vlaneseq
    %v1083 = vshrl.u32 %v1082, 7
    %v1084 = vsub.s32 0, %v1083
    %v1085 = vrot.slane %v1043, %v1084
    %v1086 = vlaneseq
    %v1087 = vshrl.u32 %v1086, 7
    %v1088 = vsub.s32 2, %v1087
    %v1089 = vrot.slane %v1043, %v1088
    %v1090 = vlaneseq
    %v1091 = vshrl.u32 %v1090, 7
    %v1092 = vsub.s32 0, %v1091
    %v1093 = vrot.slane %v1044, %v1092
    %v1094 = vlaneseq
    %v1095 = vshrl.u32 %v1094, 7
    %v1096 = vsub.s32 2, %v1095
    %v1097 = vrot.slane %v1044, %v1096
    %v1098 = vlaneseq
    %v1099 = vshrl.u32 %v1098, 7
    %v1100 = vsub.s32 0, %v1099
    %v1101 = vrot.slane %v1045, %v1100
    %v1102 = vlaneseq
    %v1103 = vshrl.u32 %v1102, 7
    %v1104 = vsub.s32 2, %v1103
    %v1105 = vrot.slane %v1045, %v1104
    %v1106 = vlaneseq
    %v1107 = vshrl.u32 %v1106, 7
    %v1108 = vsub.s32 0, %v1107
    %v1109 = vrot.slane %v1046, %v1108
    %v1110 = vlaneseq
    %v1111 = vshrl.u32 %v1110, 7
    %v1112 = vsub.s32 2, %v1111
    %v1113 = vrot.slane %v1046, %v1112
    %v1114 = vlaneseq
    %v1115 = vshrl.u32 %v1114, 7
    %v1116 = vsub.s32 0, %v1115
    %v1117 = vrot.slane %v1047, %v1116
    %v1118 = vlaneseq
    %v1119 = vshrl.u32 %v1118, 7
    %v1120 = vsub.s32 2, %v1119
    %v1121 = vrot.slane %v1047, %v1120
    %v1122 = vlaneseq
    %v1123 = vshrl.u32 %v1122, 7
    %v1124 = vsub.s32 0, %v1123
    %v1125 = vrot.slane %v1048, %v1124
    %v1126 = vlaneseq
    %v1127 = vshrl.u32 %v1126, 7
    %v1128 = vsub.s32 2, %v1127
    %v1129 = vrot.slane %v1048, %v1128
    %v1130 = vlaneseq
    %v1131 = vshrl.u32 %v1130, 7
    %v1132 = vsub.s32 0, %v1131
    %v1133 = vrot.slane %v1049, %v1132
    %v1134 = vlaneseq
    %v1135 = vshrl.u32 %v1134, 7
    %v1136 = vsub.s32 2, %v1135
    %v1137 = vrot.slane %v1049, %v1136
    %v1138 = vlaneseq
    %v1139 = vshrl.u32 %v1138, 7
    %v1140 = vsub.s32 0, %v1139
    %v1141 = vrot.slane %v1050, %v1140
    %v1142 = vlaneseq
    %v1143 = vshrl.u32 %v1142, 7
    %v1144 = vsub.s32 2, %v1143
    %v1145 = vrot.slane %v1050, %v1144
    %v1146 = vlaneseq
    %v1147 = vshrl.u32 %v1146, 7
    %v1148 = vsub.s32 0, %v1147
    %v1149 = vrot.slane %v1051, %v1148
    %v1150 = vlaneseq
    %v1151 = vshrl.u32 %v1150, 7
    %v1152 = vsub.s32 2, %v1151
    %v1153 = vrot.slane %v1051, %v1152
    %v1154 = vlaneseq
    %v1155 = vshrl.u32 %v1154, 7
    %v1156 = vsub.s32 0, %v1155
    %v1157 = vrot.slane %v1052, %v1156
    %v1158 = vlaneseq
    %v1159 = vshrl.u32 %v1158, 7
    %v1160 = vsub.s32 2, %v1159
    %v1161 = vrot.slane %v1052, %v1160
    %v1162 = vlaneseq
    %v1163 = vshrl.u32 %v1162, 7
    %v1164 = vsub.s32 0, %v1163
    %v1165 = vrot.slane %v1053, %v1164
    %v1166 = vlaneseq
    %v1167 = vshrl.u32 %v1166, 7
    %v1168 = vsub.s32 2, %v1167
    %v1169 = vrot.slane %v1053, %v1168
    %v1170 = vlaneseq
    %v1171 = vshrl.u32 %v1170, 7
    %v1172 = vsub.s32 0, %v1171
    %v1173 = vrot.slane %v1054, %v1172
    %v1174 = vlaneseq
    %v1175 = vshrl.u32 %v1174, 7
    %v1176 = vsub.s32 2, %v1175
    %v1177 = vrot.slane %v1054, %v1176
    %v1178 = vlaneseq
    %v1179 = vshrl.u32 %v1178, 7
    %v1180 = vsub.s32 0, %v1179
    %v1181 = vrot.slane %v1055, %v1180
    %v1182 = vlaneseq
    %v1183 = vshrl.u32 %v1182, 7
    %v1184 = vsub.s32 2, %v1183
    %v1185 = vrot.slane %v1055, %v1184
    %v1186 = vlaneseq
    %v1187 = vshrl.u32 %v1186, 7
    %v1188 = vsub.s32 0, %v1187
    %v1189 = vrot.slane %v1056, %v1188
    %v1190 = vlaneseq
    %v1191 = vshrl.u32 %v1190, 7
    %v1192 = vsub.s32 2, %v1191
    %v1193 = vrot.slane %v1056, %v1192
    %v1194 = vlaneseq
    %v1195 = vshrl.u32 %v1194, 7
    %v1196 = vsub.s32 0, %v1195
    %v1197 = vrot.slane %v1057, %v1196
    %v1198 = vlaneseq
    %v1199 = vshrl.u32 %v1198, 7
    %v1200 = vsub.s32 2, %v1199
    %v1201 = vrot.slane %v1057, %v1200
    %v1202 = vsel %vm896, %v1085, %v1077
    %v1203 = vsel %vm898, %v1093, %v1202
    %v1204 = vsel %vm900, %v1101, %v1203
    %v1205 = vsel %vm902, %v1109, %v1204
    %v1206 = vsel %vm904, %v1117, %v1205
    %v1207 = vsel %vm906, %v1125, %v1206
    %v1208 = vsel %vm908, %v1133, %v1207
    %v1209 = vsel %vm896, %v1089, %v1081
    %v1210 = vsel %vm898, %v1097, %v1209
    %v1211 = vsel %vm900, %v1105, %v1210
    %v1212 = vsel %vm902, %v1113, %v1211
    %v1213 = vsel %vm904, %v1121, %v1212
    %v1214 = vsel %vm906, %v1129, %v1213
    %v1215 = vsel %vm908, %v1137, %v1214
    %v1216 = vsel %vm896, %v1149, %v1141
    %v1217 = vsel %vm898, %v1157, %v1216
    %v1218 = vsel %vm900, %v1165, %v1217
    %v1219 = vsel %vm902, %v1173, %v1218
    %v1220 = vsel %vm904, %v1181, %v1219
    %v1221 = vsel %vm906, %v1189, %v1220
    %v1222 = vsel %vm908, %v1197, %v1221
    %v1223 = vsel %vm896, %v1153, %v1145
    %v1224 = vsel %vm898, %v1161, %v1223
    %v1225 = vsel %vm900, %v1169, %v1224
    %v1226 = vsel %vm902, %v1177, %v1225
    %v1227 = vsel %vm904, %v1185, %v1226
    %v1228 = vsel %vm906, %v1193, %v1227
    %v1229 = vsel %vm908, %v1201, %v1228
    %v1234 = vadd.f32 %v1208, %v1215
    %1235 = vadd.xlane.f32.xlu0 %v1234
    %v1236 = vpop.xlane.xlu0 %1235
    %v1237 = vadd.f32 %v1222, %v1229
    %1238 = vadd.xlane.f32.xlu0 %v1237
    %v1239 = vpop.xlane.xlu0 %1238
    %v1240 = vrcp.pop 255.0
    %v1241 = vmul.f32 %v1236, %v1240
    %v1242 = vmul.f32 %v1239, %v1240
    %v1244 = vlaneseq
    %v1245 = vshrl.u32 %v1244, 7
    %v1246 = vsub.s32 0, %v1245
    %v1247 = vrot.slane %v750, %v1246
    %v1248 = vlaneseq
    %v1249 = vshrl.u32 %v1248, 7
    %v1250 = vsub.s32 1, %v1249
    %v1251 = vrot.slane %v750, %v1250
    %v1270 = vlaneseq
    %v1271 = vshrl.u32 %v1270, 7
    %v1272 = vsub.s32 0, %v1271
    %v1273 = vrot.slane %v1026, %v1272
    %v1274 = vlaneseq
    %v1275 = vshrl.u32 %v1274, 7
    %v1276 = vsub.s32 2, %v1275
    %v1277 = vrot.slane %v1026, %v1276
    %v1278 = vlaneseq
    %v1279 = vshrl.u32 %v1278, 7
    %v1280 = vsub.s32 0, %v1279
    %v1281 = vrot.slane %v1027, %v1280
    %v1282 = vlaneseq
    %v1283 = vshrl.u32 %v1282, 7
    %v1284 = vsub.s32 2, %v1283
    %v1285 = vrot.slane %v1027, %v1284
    %v1286 = vlaneseq
    %v1287 = vshrl.u32 %v1286, 7
    %v1288 = vsub.s32 0, %v1287
    %v1289 = vrot.slane %v1028, %v1288
    %v1290 = vlaneseq
    %v1291 = vshrl.u32 %v1290, 7
    %v1292 = vsub.s32 2, %v1291
    %v1293 = vrot.slane %v1028, %v1292
    %v1294 = vlaneseq
    %v1295 = vshrl.u32 %v1294, 7
    %v1296 = vsub.s32 0, %v1295
    %v1297 = vrot.slane %v1029, %v1296
    %v1298 = vlaneseq
    %v1299 = vshrl.u32 %v1298, 7
    %v1300 = vsub.s32 2, %v1299
    %v1301 = vrot.slane %v1029, %v1300
    %v1302 = vlaneseq
    %v1303 = vshrl.u32 %v1302, 7
    %v1304 = vsub.s32 0, %v1303
    %v1305 = vrot.slane %v1030, %v1304
    %v1306 = vlaneseq
    %v1307 = vshrl.u32 %v1306, 7
    %v1308 = vsub.s32 2, %v1307
    %v1309 = vrot.slane %v1030, %v1308
    %v1310 = vlaneseq
    %v1311 = vshrl.u32 %v1310, 7
    %v1312 = vsub.s32 0, %v1311
    %v1313 = vrot.slane %v1031, %v1312
    %v1314 = vlaneseq
    %v1315 = vshrl.u32 %v1314, 7
    %v1316 = vsub.s32 2, %v1315
    %v1317 = vrot.slane %v1031, %v1316
    %v1318 = vlaneseq
    %v1319 = vshrl.u32 %v1318, 7
    %v1320 = vsub.s32 0, %v1319
    %v1321 = vrot.slane %v1032, %v1320
    %v1322 = vlaneseq
    %v1323 = vshrl.u32 %v1322, 7
    %v1324 = vsub.s32 2, %v1323
    %v1325 = vrot.slane %v1032, %v1324
    %v1326 = vlaneseq
    %v1327 = vshrl.u32 %v1326, 7
    %v1328 = vsub.s32 0, %v1327
    %v1329 = vrot.slane %v1033, %v1328
    %v1330 = vlaneseq
    %v1331 = vshrl.u32 %v1330, 7
    %v1332 = vsub.s32 2, %v1331
    %v1333 = vrot.slane %v1033, %v1332
    %v1334 = vlaneseq
    %v1335 = vshrl.u32 %v1334, 7
    %v1336 = vsub.s32 0, %v1335
    %v1337 = vrot.slane %v1034, %v1336
    %v1338 = vlaneseq
    %v1339 = vshrl.u32 %v1338, 7
    %v1340 = vsub.s32 2, %v1339
    %v1341 = vrot.slane %v1034, %v1340
    %v1342 = vlaneseq
    %v1343 = vshrl.u32 %v1342, 7
    %v1344 = vsub.s32 0, %v1343
    %v1345 = vrot.slane %v1035, %v1344
    %v1346 = vlaneseq
    %v1347 = vshrl.u32 %v1346, 7
    %v1348 = vsub.s32 2, %v1347
    %v1349 = vrot.slane %v1035, %v1348
    %v1350 = vlaneseq
    %v1351 = vshrl.u32 %v1350, 7
    %v1352 = vsub.s32 0, %v1351
    %v1353 = vrot.slane %v1036, %v1352
    %v1354 = vlaneseq
    %v1355 = vshrl.u32 %v1354, 7
    %v1356 = vsub.s32 2, %v1355
    %v1357 = vrot.slane %v1036, %v1356
    %v1358 = vlaneseq
    %v1359 = vshrl.u32 %v1358, 7
    %v1360 = vsub.s32 0, %v1359
    %v1361 = vrot.slane %v1037, %v1360
    %v1362 = vlaneseq
    %v1363 = vshrl.u32 %v1362, 7
    %v1364 = vsub.s32 2, %v1363
    %v1365 = vrot.slane %v1037, %v1364
    %v1366 = vlaneseq
    %v1367 = vshrl.u32 %v1366, 7
    %v1368 = vsub.s32 0, %v1367
    %v1369 = vrot.slane %v1038, %v1368
    %v1370 = vlaneseq
    %v1371 = vshrl.u32 %v1370, 7
    %v1372 = vsub.s32 2, %v1371
    %v1373 = vrot.slane %v1038, %v1372
    %v1374 = vlaneseq
    %v1375 = vshrl.u32 %v1374, 7
    %v1376 = vsub.s32 0, %v1375
    %v1377 = vrot.slane %v1039, %v1376
    %v1378 = vlaneseq
    %v1379 = vshrl.u32 %v1378, 7
    %v1380 = vsub.s32 2, %v1379
    %v1381 = vrot.slane %v1039, %v1380
    %v1382 = vlaneseq
    %v1383 = vshrl.u32 %v1382, 7
    %v1384 = vsub.s32 0, %v1383
    %v1385 = vrot.slane %v1040, %v1384
    %v1386 = vlaneseq
    %v1387 = vshrl.u32 %v1386, 7
    %v1388 = vsub.s32 2, %v1387
    %v1389 = vrot.slane %v1040, %v1388
    %v1390 = vlaneseq
    %v1391 = vshrl.u32 %v1390, 7
    %v1392 = vsub.s32 0, %v1391
    %v1393 = vrot.slane %v1041, %v1392
    %v1394 = vlaneseq
    %v1395 = vshrl.u32 %v1394, 7
    %v1396 = vsub.s32 2, %v1395
    %v1397 = vrot.slane %v1041, %v1396
    %v1398 = vsel %vm896, %v1281, %v1273
    %v1399 = vsel %vm898, %v1289, %v1398
    %v1400 = vsel %vm900, %v1297, %v1399
    %v1401 = vsel %vm902, %v1305, %v1400
    %v1402 = vsel %vm904, %v1313, %v1401
    %v1403 = vsel %vm906, %v1321, %v1402
    %v1404 = vsel %vm908, %v1329, %v1403
    %v1405 = vsel %vm896, %v1285, %v1277
    %v1406 = vsel %vm898, %v1293, %v1405
    %v1407 = vsel %vm900, %v1301, %v1406
    %v1408 = vsel %vm902, %v1309, %v1407
    %v1409 = vsel %vm904, %v1317, %v1408
    %v1410 = vsel %vm906, %v1325, %v1409
    %v1411 = vsel %vm908, %v1333, %v1410
    %v1412 = vsel %vm896, %v1345, %v1337
    %v1413 = vsel %vm898, %v1353, %v1412
    %v1414 = vsel %vm900, %v1361, %v1413
    %v1415 = vsel %vm902, %v1369, %v1414
    %v1416 = vsel %vm904, %v1377, %v1415
    %v1417 = vsel %vm906, %v1385, %v1416
    %v1418 = vsel %vm908, %v1393, %v1417
    %v1419 = vsel %vm896, %v1349, %v1341
    %v1420 = vsel %vm898, %v1357, %v1419
    %v1421 = vsel %vm900, %v1365, %v1420
    %v1422 = vsel %vm902, %v1373, %v1421
    %v1423 = vsel %vm904, %v1381, %v1422
    %v1424 = vsel %vm906, %v1389, %v1423
    %v1425 = vsel %vm908, %v1397, %v1424
    %v1430 = vmul.f32 %v1247, %v1404
    %v1431 = vmul.f32 %v1251, %v1411
    %v1432 = vmul.f32 %v1247, %v1418
    %v1433 = vmul.f32 %v1251, %v1425
    %v1434 = vrsqrt.pop %v1241
    %v1435 = vmul.f32 %v1241, %v1434
    %vm1436 = vcmp.eq.f32.partialorder %v1241, inf
    %v1437 = vsel %vm1436, %v1241, %v1435
    %vm1438 = vcmp.eq.f32.partialorder %v1241, 0.0
    %v1439 = vand.u32 %v1241, 2147483648
    %v1440 = vsel %vm1438, %v1439, %v1437
    %v1441 = vrsqrt.pop %v1242
    %v1442 = vmul.f32 %v1242, %v1441
    %vm1443 = vcmp.eq.f32.partialorder %v1242, inf
    %v1444 = vsel %vm1443, %v1242, %v1442
    %vm1445 = vcmp.eq.f32.partialorder %v1242, 0.0
    %v1446 = vand.u32 %v1242, 2147483648
    %v1447 = vsel %vm1445, %v1446, %v1444
    %v1448 = vadd.f32 %v1440, 1e-09
    %v1449 = vadd.f32 %v1447, 1e-09
    %v1450 = vrcp.pop %v1448
    %v1451 = vmul.f32 %v1430, %v1450
    %v1452 = vmul.f32 %v1431, %v1450
    %v1453 = vrcp.pop %v1449
    %v1454 = vmul.f32 %v1432, %v1453
    %v1455 = vmul.f32 %v1433, %v1453
    %v1457 = vlaneseq
    %v1458 = vshrl.u32 %v1457, 7
    %v1459 = vsub.s32 0, %v1458
    %v1460 = vrot.slane %v751, %v1459
    %v1461 = vlaneseq
    %v1462 = vshrl.u32 %v1461, 7
    %v1463 = vsub.s32 1, %v1462
    %v1464 = vrot.slane %v751, %v1463
    %v1467 = vadd.f32 %v1451, %v1460
    %v1468 = vadd.f32 %v1452, %v1464
    %v1469 = vadd.f32 %v1454, %v1460
    %v1470 = vadd.f32 %v1455, %v1464
    %v1471 = vld [vmem:[#allocation8] sm:$0xff]
    %v1472 = vld [vmem:[#allocation8 + $0x8] sm:$0xff]
    %v1473 = vld [vmem:[#allocation8 + $0x10] sm:$0xff]
    %v1474 = vld [vmem:[#allocation8 + $0x18] sm:$0xff]
    %v1475 = vld [vmem:[#allocation8 + $0x20] sm:$0xff]
    %v1476 = vld [vmem:[#allocation8 + $0x28] sm:$0xff]
    %v1477 = vld [vmem:[#allocation8 + $0x30] sm:$0xff]
    %v1478 = vld [vmem:[#allocation8 + $0x38] sm:$0xff]
    %v1479 = vld [vmem:[#allocation8 + $0x40] sm:$0xff]
    %v1480 = vld [vmem:[#allocation8 + $0x48] sm:$0xff]
    %v1481 = vld [vmem:[#allocation8 + $0x50] sm:$0xff]
    %v1482 = vld [vmem:[#allocation8 + $0x58] sm:$0xff]
    %v1483 = vld [vmem:[#allocation8 + $0x60] sm:$0xff]
    %v1484 = vld [vmem:[#allocation8 + $0x68] sm:$0xff]
    %v1485 = vld [vmem:[#allocation8 + $0x70] sm:$0xff]
    %v1486 = vld [vmem:[#allocation8 + $0x78] sm:$0xff]
    %v1487 = vld [vmem:[#allocation8 + $0x80] sm:$0xff]
    %v1488 = vld [vmem:[#allocation8 + $0x88] sm:$0xff]
    %v1489 = vld [vmem:[#allocation8 + $0x90] sm:$0xff]
    %v1490 = vld [vmem:[#allocation8 + $0x98] sm:$0xff]
    %v1491 = vld [vmem:[#allocation8 + $0xa0] sm:$0xff]
    %v1492 = vld [vmem:[#allocation8 + $0xa8] sm:$0xff]
    %v1493 = vld [vmem:[#allocation8 + $0xb0] sm:$0xff]
    %v1494 = vld [vmem:[#allocation8 + $0xb8] sm:$0xff]
    %v1495 = vld [vmem:[#allocation8 + $0xc0] sm:$0xff]
    %v1496 = vld [vmem:[#allocation8 + $0xc8] sm:$0xff]
    %v1497 = vld [vmem:[#allocation8 + $0xd0] sm:$0xff]
    %v1498 = vld [vmem:[#allocation8 + $0xd8] sm:$0xff]
    %v1499 = vld [vmem:[#allocation8 + $0xe0] sm:$0xff]
    %v1500 = vld [vmem:[#allocation8 + $0xe8] sm:$0xff]
    %v1501 = vld [vmem:[#allocation8 + $0xf0] sm:$0xff]
    %v1502 = vld [vmem:[#allocation8 + $0xf8] sm:$0xff]
    %v1503 = vld [vmem:[#allocation8 + $0x100] sm:$0xff]
    %v1504 = vld [vmem:[#allocation8 + $0x108] sm:$0xff]
    %v1505 = vld [vmem:[#allocation8 + $0x110] sm:$0xff]
    %v1506 = vld [vmem:[#allocation8 + $0x118] sm:$0xff]
    %v1507 = vld [vmem:[#allocation8 + $0x120] sm:$0xff]
    %v1508 = vld [vmem:[#allocation8 + $0x128] sm:$0xff]
    %v1509 = vld [vmem:[#allocation8 + $0x130] sm:$0xff]
    %v1510 = vld [vmem:[#allocation8 + $0x138] sm:$0xff]
    %v1511 = vld [vmem:[#allocation8 + $0x140] sm:$0xff]
    %v1512 = vld [vmem:[#allocation8 + $0x148] sm:$0xff]
    %v1513 = vld [vmem:[#allocation8 + $0x150] sm:$0xff]
    %v1514 = vld [vmem:[#allocation8 + $0x158] sm:$0xff]
    %v1515 = vld [vmem:[#allocation8 + $0x160] sm:$0xff]
    %v1516 = vld [vmem:[#allocation8 + $0x168] sm:$0xff]
    %v1517 = vld [vmem:[#allocation8 + $0x170] sm:$0xff]
    %v1518 = vld [vmem:[#allocation8 + $0x178] sm:$0xff]
    %v1519 = vld [vmem:[#allocation8 + $0x180] sm:$0xff]
    %v1520 = vld [vmem:[#allocation8 + $0x188] sm:$0xff]
    %v1521 = vld [vmem:[#allocation8 + $0x190] sm:$0xff]
    %v1522 = vld [vmem:[#allocation8 + $0x198] sm:$0xff]
    %v1523 = vld [vmem:[#allocation8 + $0x1a0] sm:$0xff]
    %v1524 = vld [vmem:[#allocation8 + $0x1a8] sm:$0xff]
    %v1525 = vld [vmem:[#allocation8 + $0x1b0] sm:$0xff]
    %v1526 = vld [vmem:[#allocation8 + $0x1b8] sm:$0xff]
    %v1527 = vld [vmem:[#allocation8 + $0x1c0] sm:$0xff]
    %v1528 = vld [vmem:[#allocation8 + $0x1c8] sm:$0xff]
    %v1529 = vld [vmem:[#allocation8 + $0x1d0] sm:$0xff]
    %v1530 = vld [vmem:[#allocation8 + $0x1d8] sm:$0xff]
    %v1531 = vld [vmem:[#allocation8 + $0x1e0] sm:$0xff]
    %v1532 = vld [vmem:[#allocation8 + $0x1e8] sm:$0xff]
    %v1533 = vld [vmem:[#allocation8 + $0x1f0] sm:$0xff]
    %v1534 = vld [vmem:[#allocation8 + $0x1f8] sm:$0xff]
    %v1535 = vld [vmem:[#allocation8 + $0x200] sm:$0xff]
    %v1536 = vld [vmem:[#allocation8 + $0x208] sm:$0xff]
    %v1537 = vld [vmem:[#allocation8 + $0x210] sm:$0xff]
    %v1538 = vld [vmem:[#allocation8 + $0x218] sm:$0xff]
    %v1539 = vld [vmem:[#allocation8 + $0x220] sm:$0xff]
    %v1540 = vld [vmem:[#allocation8 + $0x228] sm:$0xff]
    %v1541 = vld [vmem:[#allocation8 + $0x230] sm:$0xff]
    %v1542 = vld [vmem:[#allocation8 + $0x238] sm:$0xff]
    %v1543 = vld [vmem:[#allocation8 + $0x240] sm:$0xff]
    %v1544 = vld [vmem:[#allocation8 + $0x248] sm:$0xff]
    %v1545 = vld [vmem:[#allocation8 + $0x250] sm:$0xff]
    %v1546 = vld [vmem:[#allocation8 + $0x258] sm:$0xff]
    %v1547 = vld [vmem:[#allocation8 + $0x260] sm:$0xff]
    %v1548 = vld [vmem:[#allocation8 + $0x268] sm:$0xff]
    %v1549 = vld [vmem:[#allocation8 + $0x270] sm:$0xff]
    %v1550 = vld [vmem:[#allocation8 + $0x278] sm:$0xff]
    %v1551 = vld [vmem:[#allocation8 + $0x280] sm:$0xff]
    %v1552 = vld [vmem:[#allocation8 + $0x288] sm:$0xff]
    %v1553 = vld [vmem:[#allocation8 + $0x290] sm:$0xff]
    %v1554 = vld [vmem:[#allocation8 + $0x298] sm:$0xff]
    %v1555 = vld [vmem:[#allocation8 + $0x2a0] sm:$0xff]
    %v1556 = vld [vmem:[#allocation8 + $0x2a8] sm:$0xff]
    %v1557 = vld [vmem:[#allocation8 + $0x2b0] sm:$0xff]
    %v1558 = vld [vmem:[#allocation8 + $0x2b8] sm:$0xff]
    %v1559 = vld [vmem:[#allocation8 + $0x2c0] sm:$0xff]
    %v1560 = vld [vmem:[#allocation8 + $0x2c8] sm:$0xff]
    %v1561 = vld [vmem:[#allocation8 + $0x2d0] sm:$0xff]
    %v1562 = vld [vmem:[#allocation8 + $0x2d8] sm:$0xff]
    %v1563 = vld [vmem:[#allocation8 + $0x2e0] sm:$0xff]
    %v1564 = vld [vmem:[#allocation8 + $0x2e8] sm:$0xff]
    %v1565 = vld [vmem:[#allocation8 + $0x2f0] sm:$0xff]
    %v1566 = vld [vmem:[#allocation8 + $0x2f8] sm:$0xff]
    %v1567 = vld [vmem:[#allocation8 + $0x300] sm:$0xff]
    %v1568 = vld [vmem:[#allocation8 + $0x308] sm:$0xff]
    %v1569 = vld [vmem:[#allocation8 + $0x310] sm:$0xff]
    %v1570 = vld [vmem:[#allocation8 + $0x318] sm:$0xff]
    %v1571 = vld [vmem:[#allocation8 + $0x320] sm:$0xff]
    %v1572 = vld [vmem:[#allocation8 + $0x328] sm:$0xff]
    %v1573 = vld [vmem:[#allocation8 + $0x330] sm:$0xff]
    %v1574 = vld [vmem:[#allocation8 + $0x338] sm:$0xff]
    %v1575 = vld [vmem:[#allocation8 + $0x340] sm:$0xff]
    %v1576 = vld [vmem:[#allocation8 + $0x348] sm:$0xff]
    %v1577 = vld [vmem:[#allocation8 + $0x350] sm:$0xff]
    %v1578 = vld [vmem:[#allocation8 + $0x358] sm:$0xff]
    %v1579 = vld [vmem:[#allocation8 + $0x360] sm:$0xff]
    %v1580 = vld [vmem:[#allocation8 + $0x368] sm:$0xff]
    %v1581 = vld [vmem:[#allocation8 + $0x370] sm:$0xff]
    %v1582 = vld [vmem:[#allocation8 + $0x378] sm:$0xff]
    %v1583 = vld [vmem:[#allocation8 + $0x380] sm:$0xff]
    %v1584 = vld [vmem:[#allocation8 + $0x388] sm:$0xff]
    %v1585 = vld [vmem:[#allocation8 + $0x390] sm:$0xff]
    %v1586 = vld [vmem:[#allocation8 + $0x398] sm:$0xff]
    %v1587 = vld [vmem:[#allocation8 + $0x3a0] sm:$0xff]
    %v1588 = vld [vmem:[#allocation8 + $0x3a8] sm:$0xff]
    %v1589 = vld [vmem:[#allocation8 + $0x3b0] sm:$0xff]
    %v1590 = vld [vmem:[#allocation8 + $0x3b8] sm:$0xff]
    %v1591 = vld [vmem:[#allocation8 + $0x3c0] sm:$0xff]
    %v1592 = vld [vmem:[#allocation8 + $0x3c8] sm:$0xff]
    %v1593 = vld [vmem:[#allocation8 + $0x3d0] sm:$0xff]
    %v1594 = vld [vmem:[#allocation8 + $0x3d8] sm:$0xff]
    %v1595 = vld [vmem:[#allocation8 + $0x3e0] sm:$0xff]
    %v1596 = vld [vmem:[#allocation8 + $0x3e8] sm:$0xff]
    %v1597 = vld [vmem:[#allocation8 + $0x3f0] sm:$0xff]
    %v1598 = vld [vmem:[#allocation8 + $0x3f8] sm:$0xff]
    %v1599 = vld [vmem:[#allocation8 + $0x400] sm:$0xff]
    %v1600 = vld [vmem:[#allocation8 + $0x408] sm:$0xff]
    %v1601 = vld [vmem:[#allocation8 + $0x410] sm:$0xff]
    %v1602 = vld [vmem:[#allocation8 + $0x418] sm:$0xff]
    %v1603 = vld [vmem:[#allocation8 + $0x420] sm:$0xff]
    %v1604 = vld [vmem:[#allocation8 + $0x428] sm:$0xff]
    %v1605 = vld [vmem:[#allocation8 + $0x430] sm:$0xff]
    %v1606 = vld [vmem:[#allocation8 + $0x438] sm:$0xff]
    %v1607 = vld [vmem:[#allocation8 + $0x440] sm:$0xff]
    %v1608 = vld [vmem:[#allocation8 + $0x448] sm:$0xff]
    %v1609 = vld [vmem:[#allocation8 + $0x450] sm:$0xff]
    %v1610 = vld [vmem:[#allocation8 + $0x458] sm:$0xff]
    %v1611 = vld [vmem:[#allocation8 + $0x460] sm:$0xff]
    %v1612 = vld [vmem:[#allocation8 + $0x468] sm:$0xff]
    %v1613 = vld [vmem:[#allocation8 + $0x470] sm:$0xff]
    %v1614 = vld [vmem:[#allocation8 + $0x478] sm:$0xff]
    %v1615 = vld [vmem:[#allocation8 + $0x480] sm:$0xff]
    %v1616 = vld [vmem:[#allocation8 + $0x488] sm:$0xff]
    %v1617 = vld [vmem:[#allocation8 + $0x490] sm:$0xff]
    %v1618 = vld [vmem:[#allocation8 + $0x498] sm:$0xff]
    %v1619 = vld [vmem:[#allocation8 + $0x4a0] sm:$0xff]
    %v1620 = vld [vmem:[#allocation8 + $0x4a8] sm:$0xff]
    %v1621 = vld [vmem:[#allocation8 + $0x4b0] sm:$0xff]
    %v1622 = vld [vmem:[#allocation8 + $0x4b8] sm:$0xff]
    %v1623 = vld [vmem:[#allocation8 + $0x4c0] sm:$0xff]
    %v1624 = vld [vmem:[#allocation8 + $0x4c8] sm:$0xff]
    %v1625 = vld [vmem:[#allocation8 + $0x4d0] sm:$0xff]
    %v1626 = vld [vmem:[#allocation8 + $0x4d8] sm:$0xff]
    %v1627 = vld [vmem:[#allocation8 + $0x4e0] sm:$0xff]
    %v1628 = vld [vmem:[#allocation8 + $0x4e8] sm:$0xff]
    %v1629 = vld [vmem:[#allocation8 + $0x4f0] sm:$0xff]
    %v1630 = vld [vmem:[#allocation8 + $0x4f8] sm:$0xff]
    %v1631 = vld [vmem:[#allocation8 + $0x500] sm:$0xff]
    %v1632 = vld [vmem:[#allocation8 + $0x508] sm:$0xff]
    %v1633 = vld [vmem:[#allocation8 + $0x510] sm:$0xff]
    %v1634 = vld [vmem:[#allocation8 + $0x518] sm:$0xff]
    %v1635 = vld [vmem:[#allocation8 + $0x520] sm:$0xff]
    %v1636 = vld [vmem:[#allocation8 + $0x528] sm:$0xff]
    %v1637 = vld [vmem:[#allocation8 + $0x530] sm:$0xff]
    %v1638 = vld [vmem:[#allocation8 + $0x538] sm:$0xff]
    %v1639 = vld [vmem:[#allocation8 + $0x540] sm:$0xff]
    %v1640 = vld [vmem:[#allocation8 + $0x548] sm:$0xff]
    %v1641 = vld [vmem:[#allocation8 + $0x550] sm:$0xff]
    %v1642 = vld [vmem:[#allocation8 + $0x558] sm:$0xff]
    %v1643 = vld [vmem:[#allocation8 + $0x560] sm:$0xff]
    %v1644 = vld [vmem:[#allocation8 + $0x568] sm:$0xff]
    %v1645 = vld [vmem:[#allocation8 + $0x570] sm:$0xff]
    %v1646 = vld [vmem:[#allocation8 + $0x578] sm:$0xff]
    %v1647 = vld [vmem:[#allocation8 + $0x580] sm:$0xff]
    %v1648 = vld [vmem:[#allocation8 + $0x588] sm:$0xff]
    %v1649 = vld [vmem:[#allocation8 + $0x590] sm:$0xff]
    %v1650 = vld [vmem:[#allocation8 + $0x598] sm:$0xff]
    %v1651 = vld [vmem:[#allocation8 + $0x5a0] sm:$0xff]
    %v1652 = vld [vmem:[#allocation8 + $0x5a8] sm:$0xff]
    %v1653 = vld [vmem:[#allocation8 + $0x5b0] sm:$0xff]
    %v1654 = vld [vmem:[#allocation8 + $0x5b8] sm:$0xff]
    %v1655 = vld [vmem:[#allocation8 + $0x5c0] sm:$0xff]
    %v1656 = vld [vmem:[#allocation8 + $0x5c8] sm:$0xff]
    %v1657 = vld [vmem:[#allocation8 + $0x5d0] sm:$0xff]
    %v1658 = vld [vmem:[#allocation8 + $0x5d8] sm:$0xff]
    %v1659 = vld [vmem:[#allocation8 + $0x5e0] sm:$0xff]
    %v1660 = vld [vmem:[#allocation8 + $0x5e8] sm:$0xff]
    %v1661 = vld [vmem:[#allocation8 + $0x5f0] sm:$0xff]
    %v1662 = vld [vmem:[#allocation8 + $0x5f8] sm:$0xff]
    %v1663 = vld [vmem:[%s15] sm:$0x3f]
    %1664 = vmatprep.subr.mxu0 %v1562
    %1665 = vmatpush1.msra.mxu0 %v1561
    %1666 = vmatprep.subr.mxu0 %v1556
    %1667 = vmatpush1.msra.mxu0 %v1555
    %1668 = vmatprep.subr.mxu0 %v1550
    %1669 = vmatpush1.msra.mxu0 %v1549
    %1670 = vmatprep.subr.mxu0 %v1544
    %1671 = vmatpush1.msra.mxu0 %v1543
    %1672 = vmatprep.subr.mxu0 %v1538
    %1673 = vmatpush1.msra.mxu0 %v1537
    %1674 = vmatprep.subr.mxu0 %v1532
    %1675 = vmatpush1.msra.mxu0 %v1531
    %1676 = vmatprep.subr.mxu0 %v1526
    %1677 = vmatpush1.msra.mxu0 %v1525
    %1678 = vmatprep.subr.mxu0 %v1520
    %1679 = vmatpush1.msra.mxu0 %v1519
    %1680 = vmatprep.subr.mxu0 %v1514
    %1681 = vmatpush1.msra.mxu0 %v1513
    %1682 = vmatprep.subr.mxu0 %v1508
    %1683 = vmatpush1.msra.mxu0 %v1507
    %1684 = vmatprep.subr.mxu0 %v1502
    %1685 = vmatpush1.msra.mxu0 %v1501
    %1686 = vmatprep.subr.mxu0 %v1496
    %1687 = vmatpush1.msra.mxu0 %v1495
    %1688 = vmatprep.subr.mxu0 %v1490
    %1689 = vmatpush1.msra.mxu0 %v1489
    %1690 = vmatprep.subr.mxu0 %v1484
    %1691 = vmatpush1.msra.mxu0 %v1483
    %1692 = vmatprep.subr.mxu0 %v1478
    %1693 = vmatpush1.msra.mxu0 %v1477
    %1694 = vmatprep.subr.mxu0 %v1472
    %1695 = vmatpush1.msra.mxu0 %v1471
    %1696 = vmatprep.subr.mxu0 %v1658
    %1697 = vmatpush2.msra.mxu0 %v1657
    %1698 = vmatprep.subr.mxu0 %v1652
    %1699 = vmatpush2.msra.mxu0 %v1651
    %1700 = vmatprep.subr.mxu0 %v1646
    %1701 = vmatpush2.msra.mxu0 %v1645
    %1702 = vmatprep.subr.mxu0 %v1640
    %1703 = vmatpush2.msra.mxu0 %v1639
    %1704 = vmatprep.subr.mxu0 %v1634
    %1705 = vmatpush2.msra.mxu0 %v1633
    %1706 = vmatprep.subr.mxu0 %v1628
    %1707 = vmatpush2.msra.mxu0 %v1627
    %1708 = vmatprep.subr.mxu0 %v1622
    %1709 = vmatpush2.msra.mxu0 %v1621
    %1710 = vmatprep.subr.mxu0 %v1616
    %1711 = vmatpush2.msra.mxu0 %v1615
    %1712 = vmatprep.subr.mxu0 %v1610
    %1713 = vmatpush2.msra.mxu0 %v1609
    %1714 = vmatprep.subr.mxu0 %v1604
    %1715 = vmatpush2.msra.mxu0 %v1603
    %1716 = vmatprep.subr.mxu0 %v1598
    %1717 = vmatpush2.msra.mxu0 %v1597
    %1718 = vmatprep.subr.mxu0 %v1592
    %1719 = vmatpush2.msra.mxu0 %v1591
    %1720 = vmatprep.subr.mxu0 %v1586
    %1721 = vmatpush2.msra.mxu0 %v1585
    %1722 = vmatprep.subr.mxu0 %v1580
    %1723 = vmatpush2.msra.mxu0 %v1579
    %1724 = vmatprep.subr.mxu0 %v1574
    %1725 = vmatpush2.msra.mxu0 %v1573
    %1726 = vmatprep.subr.mxu0 %v1568
    %1727 = vmatpush2.msra.mxu0 %v1567
    %1728 = vmatprep.mubr.f32.mxu0 %v1468
    %1729 = vmatmul.mubr.f32.gmra.mxu0 %v1467
    %v1730 = vpop.f32.mrf.mxu0
    %v1731 = vadd.f32 0.0, %v1730
    %v1732 = vpop.f32.mrf.mxu0
    %v1733 = vadd.f32 0.0, %v1732
    %1734 = vmatprep.mubr.f32.mxu0 %v1470
    %1735 = vmatmul.mubr.f32.gmra.mxu0 %v1469
    %v1736 = vpop.f32.mrf.mxu0
    %v1737 = vadd.f32 0.0, %v1736
    %v1738 = vpop.f32.mrf.mxu0
    %v1739 = vadd.f32 0.0, %v1738
    %1740 = vdwg.mxu0
    %1741 = vmatprep.subr.mxu0 %v1564
    %1742 = vmatpush1.msra.mxu0 %v1563
    %1743 = vmatprep.subr.mxu0 %v1558
    %1744 = vmatpush1.msra.mxu0 %v1557
    %1745 = vmatprep.subr.mxu0 %v1552
    %1746 = vmatpush1.msra.mxu0 %v1551
    %1747 = vmatprep.subr.mxu0 %v1546
    %1748 = vmatpush1.msra.mxu0 %v1545
    %1749 = vmatprep.subr.mxu0 %v1540
    %1750 = vmatpush1.msra.mxu0 %v1539
    %1751 = vmatprep.subr.mxu0 %v1534
    %1752 = vmatpush1.msra.mxu0 %v1533
    %1753 = vmatprep.subr.mxu0 %v1528
    %1754 = vmatpush1.msra.mxu0 %v1527
    %1755 = vmatprep.subr.mxu0 %v1522
    %1756 = vmatpush1.msra.mxu0 %v1521
    %1757 = vmatprep.subr.mxu0 %v1516
    %1758 = vmatpush1.msra.mxu0 %v1515
    %1759 = vmatprep.subr.mxu0 %v1510
    %1760 = vmatpush1.msra.mxu0 %v1509
    %1761 = vmatprep.subr.mxu0 %v1504
    %1762 = vmatpush1.msra.mxu0 %v1503
    %1763 = vmatprep.subr.mxu0 %v1498
    %1764 = vmatpush1.msra.mxu0 %v1497
    %1765 = vmatprep.subr.mxu0 %v1492
    %1766 = vmatpush1.msra.mxu0 %v1491
    %1767 = vmatprep.subr.mxu0 %v1486
    %1768 = vmatpush1.msra.mxu0 %v1485
    %1769 = vmatprep.subr.mxu0 %v1480
    %1770 = vmatpush1.msra.mxu0 %v1479
    %1771 = vmatprep.subr.mxu0 %v1474
    %1772 = vmatpush1.msra.mxu0 %v1473
    %1773 = vmatprep.subr.mxu0 %v1660
    %1774 = vmatpush2.msra.mxu0 %v1659
    %1775 = vmatprep.subr.mxu0 %v1654
    %1776 = vmatpush2.msra.mxu0 %v1653
    %1777 = vmatprep.subr.mxu0 %v1648
    %1778 = vmatpush2.msra.mxu0 %v1647
    %1779 = vmatprep.subr.mxu0 %v1642
    %1780 = vmatpush2.msra.mxu0 %v1641
    %1781 = vmatprep.subr.mxu0 %v1636
    %1782 = vmatpush2.msra.mxu0 %v1635
    %1783 = vmatprep.subr.mxu0 %v1630
    %1784 = vmatpush2.msra.mxu0 %v1629
    %1785 = vmatprep.subr.mxu0 %v1624
    %1786 = vmatpush2.msra.mxu0 %v1623
    %1787 = vmatprep.subr.mxu0 %v1618
    %1788 = vmatpush2.msra.mxu0 %v1617
    %1789 = vmatprep.subr.mxu0 %v1612
    %1790 = vmatpush2.msra.mxu0 %v1611
    %1791 = vmatprep.subr.mxu0 %v1606
    %1792 = vmatpush2.msra.mxu0 %v1605
    %1793 = vmatprep.subr.mxu0 %v1600
    %1794 = vmatpush2.msra.mxu0 %v1599
    %1795 = vmatprep.subr.mxu0 %v1594
    %1796 = vmatpush2.msra.mxu0 %v1593
    %1797 = vmatprep.subr.mxu0 %v1588
    %1798 = vmatpush2.msra.mxu0 %v1587
    %1799 = vmatprep.subr.mxu0 %v1582
    %1800 = vmatpush2.msra.mxu0 %v1581
    %1801 = vmatprep.subr.mxu0 %v1576
    %1802 = vmatpush2.msra.mxu0 %v1575
    %1803 = vmatprep.subr.mxu0 %v1570
    %1804 = vmatpush2.msra.mxu0 %v1569
    %1805 = vmatprep.mubr.f32.mxu0 %v1468
    %1806 = vmatmul.mubr.f32.gmra.mxu0 %v1467
    %v1807 = vpop.f32.mrf.mxu0
    %v1808 = vadd.f32 0.0, %v1807
    %v1809 = vpop.f32.mrf.mxu0
    %v1810 = vadd.f32 0.0, %v1809
    %1811 = vmatprep.mubr.f32.mxu0 %v1470
    %1812 = vmatmul.mubr.f32.gmra.mxu0 %v1469
    %v1813 = vpop.f32.mrf.mxu0
    %v1814 = vadd.f32 0.0, %v1813
    %v1815 = vpop.f32.mrf.mxu0
    %v1816 = vadd.f32 0.0, %v1815
    %1817 = vdwg.mxu0
    %1818 = vmatprep.subr.mxu0 %v1566
    %1819 = vmatpush1.msra.mxu0 %v1565
    %1820 = vmatprep.subr.mxu0 %v1560
    %1821 = vmatpush1.msra.mxu0 %v1559
    %1822 = vmatprep.subr.mxu0 %v1554
    %1823 = vmatpush1.msra.mxu0 %v1553
    %1824 = vmatprep.subr.mxu0 %v1548
    %1825 = vmatpush1.msra.mxu0 %v1547
    %1826 = vmatprep.subr.mxu0 %v1542
    %1827 = vmatpush1.msra.mxu0 %v1541
    %1828 = vmatprep.subr.mxu0 %v1536
    %1829 = vmatpush1.msra.mxu0 %v1535
    %1830 = vmatprep.subr.mxu0 %v1530
    %1831 = vmatpush1.msra.mxu0 %v1529
    %1832 = vmatprep.subr.mxu0 %v1524
    %1833 = vmatpush1.msra.mxu0 %v1523
    %1834 = vmatprep.subr.mxu0 %v1518
    %1835 = vmatpush1.msra.mxu0 %v1517
    %1836 = vmatprep.subr.mxu0 %v1512
    %1837 = vmatpush1.msra.mxu0 %v1511
    %1838 = vmatprep.subr.mxu0 %v1506
    %1839 = vmatpush1.msra.mxu0 %v1505
    %1840 = vmatprep.subr.mxu0 %v1500
    %1841 = vmatpush1.msra.mxu0 %v1499
    %1842 = vmatprep.subr.mxu0 %v1494
    %1843 = vmatpush1.msra.mxu0 %v1493
    %1844 = vmatprep.subr.mxu0 %v1488
    %1845 = vmatpush1.msra.mxu0 %v1487
    %1846 = vmatprep.subr.mxu0 %v1482
    %1847 = vmatpush1.msra.mxu0 %v1481
    %1848 = vmatprep.subr.mxu0 %v1476
    %1849 = vmatpush1.msra.mxu0 %v1475
    %1850 = vmatprep.subr.mxu0 %v1662
    %1851 = vmatpush2.msra.mxu0 %v1661
    %1852 = vmatprep.subr.mxu0 %v1656
    %1853 = vmatpush2.msra.mxu0 %v1655
    %1854 = vmatprep.subr.mxu0 %v1650
    %1855 = vmatpush2.msra.mxu0 %v1649
    %1856 = vmatprep.subr.mxu0 %v1644
    %1857 = vmatpush2.msra.mxu0 %v1643
    %1858 = vmatprep.subr.mxu0 %v1638
    %1859 = vmatpush2.msra.mxu0 %v1637
    %1860 = vmatprep.subr.mxu0 %v1632
    %1861 = vmatpush2.msra.mxu0 %v1631
    %1862 = vmatprep.subr.mxu0 %v1626
    %1863 = vmatpush2.msra.mxu0 %v1625
    %1864 = vmatprep.subr.mxu0 %v1620
    %1865 = vmatpush2.msra.mxu0 %v1619
    %1866 = vmatprep.subr.mxu0 %v1614
    %1867 = vmatpush2.msra.mxu0 %v1613
    %1868 = vmatprep.subr.mxu0 %v1608
    %1869 = vmatpush2.msra.mxu0 %v1607
    %1870 = vmatprep.subr.mxu0 %v1602
    %1871 = vmatpush2.msra.mxu0 %v1601
    %1872 = vmatprep.subr.mxu0 %v1596
    %1873 = vmatpush2.msra.mxu0 %v1595
    %1874 = vmatprep.subr.mxu0 %v1590
    %1875 = vmatpush2.msra.mxu0 %v1589
    %1876 = vmatprep.subr.mxu0 %v1584
    %1877 = vmatpush2.msra.mxu0 %v1583
    %1878 = vmatprep.subr.mxu0 %v1578
    %1879 = vmatpush2.msra.mxu0 %v1577
    %1880 = vmatprep.subr.mxu0 %v1572
    %1881 = vmatpush2.msra.mxu0 %v1571
    %1882 = vmatprep.mubr.f32.mxu0 %v1468
    %1883 = vmatmul.mubr.f32.gmra.mxu0 %v1467
    %v1884 = vpop.f32.mrf.mxu0
    %v1885 = vadd.f32 0.0, %v1884
    %v1886 = vpop.f32.mrf.mxu0
    %v1887 = vadd.f32 0.0, %v1886
    %1888 = vmatprep.mubr.f32.mxu0 %v1470
    %1889 = vmatmul.mubr.f32.gmra.mxu0 %v1469
    %v1890 = vpop.f32.mrf.mxu0
    %v1891 = vadd.f32 0.0, %v1890
    %v1892 = vpop.f32.mrf.mxu0
    %v1893 = vadd.f32 0.0, %v1892
    %1894 = vdwg.mxu0
    %v1896 = vlaneseq
    %v1897 = vshrl.u32 %v1896, 7
    %v1898 = vsub.s32 0, %v1897
    %v1899 = vrot.slane %v1663, %v1898
    %v1900 = vlaneseq
    %v1901 = vshrl.u32 %v1900, 7
    %v1902 = vsub.s32 1, %v1901
    %v1903 = vrot.slane %v1663, %v1902
    %v1904 = vlaneseq
    %v1905 = vshrl.u32 %v1904, 7
    %v1906 = vsub.s32 2, %v1905
    %v1907 = vrot.slane %v1663, %v1906
    %v1908 = vlaneseq
    %v1909 = vshrl.u32 %v1908, 7
    %v1910 = vsub.s32 3, %v1909
    %v1911 = vrot.slane %v1663, %v1910
    %v1912 = vlaneseq
    %v1913 = vshrl.u32 %v1912, 7
    %v1914 = vsub.s32 4, %v1913
    %v1915 = vrot.slane %v1663, %v1914
    %v1916 = vlaneseq
    %v1917 = vshrl.u32 %v1916, 7
    %v1918 = vsub.s32 5, %v1917
    %v1919 = vrot.slane %v1663, %v1918
    %v1926 = vadd.f32 %v1731, %v1899
    %v1927 = vadd.f32 %v1733, %v1903
    %v1928 = vadd.f32 %v1808, %v1907
    %v1929 = vadd.f32 %v1810, %v1911
    %v1930 = vadd.f32 %v1885, %v1915
    %v1931 = vadd.f32 %v1887, %v1919
    %v1932 = vadd.f32 %v1737, %v1899
    %v1933 = vadd.f32 %v1739, %v1903
    %v1934 = vadd.f32 %v1814, %v1907
    %v1935 = vadd.f32 %v1816, %v1911
    %v1936 = vadd.f32 %v1891, %v1915
    %v1937 = vadd.f32 %v1893, %v1919
    %1938 = vmatprep.subr.mxu0 0.0
    %1939 = vmatpush1.xpose.msra.mxu0 0.0
    %1940 = vmatprep.subr.mxu0 0.0
    %1941 = vmatpush1.xpose.msra.mxu0 0.0
    %1942 = vmatprep.subr.mxu0 0.0
    %1943 = vmatpush1.xpose.msra.mxu0 0.0
    %1944 = vmatprep.subr.mxu0 0.0
    %1945 = vmatpush1.xpose.msra.mxu0 0.0
    %1946 = vmatprep.subr.mxu0 0.0
    %1947 = vmatpush1.xpose.msra.mxu0 0.0
    %1948 = vmatprep.subr.mxu0 0.0
    %1949 = vmatpush1.xpose.msra.mxu0 0.0
    %1950 = vmatprep.subr.mxu0 0.0
    %1951 = vmatpush1.xpose.msra.mxu0 0.0
    %1952 = vmatprep.subr.mxu0 0.0
    %1953 = vmatpush1.xpose.msra.mxu0 0.0
    %1954 = vmatprep.subr.mxu0 0.0
    %1955 = vmatpush1.xpose.msra.mxu0 0.0
    %1956 = vmatprep.subr.mxu0 0.0
    %1957 = vmatpush1.xpose.msra.mxu0 0.0
    %1958 = vmatprep.subr.mxu0 0.0
    %1959 = vmatpush1.xpose.msra.mxu0 0.0
    %1960 = vmatprep.subr.mxu0 0.0
    %1961 = vmatpush1.xpose.msra.mxu0 0.0
    %1962 = vmatprep.subr.mxu0 0.0
    %1963 = vmatpush1.xpose.msra.mxu0 0.0
    %1964 = vmatprep.subr.mxu0 0.0
    %1965 = vmatpush1.xpose.msra.mxu0 0.0
    %1966 = vmatprep.subr.mxu0 0.0
    %1967 = vmatpush1.xpose.msra.mxu0 0.0
    %1968 = vmatprep.subr.mxu0 0.0
    %1969 = vmatpush1.xpose.msra.mxu0 %v1928
    %1970 = vmatprep.subr.mxu0 0.0
    %1971 = vmatpush2.xpose.msra.mxu0 0.0
    %1972 = vmatprep.subr.mxu0 0.0
    %1973 = vmatpush2.xpose.msra.mxu0 0.0
    %1974 = vmatprep.subr.mxu0 0.0
    %1975 = vmatpush2.xpose.msra.mxu0 0.0
    %1976 = vmatprep.subr.mxu0 0.0
    %1977 = vmatpush2.xpose.msra.mxu0 0.0
    %1978 = vmatprep.subr.mxu0 0.0
    %1979 = vmatpush2.xpose.msra.mxu0 0.0
    %1980 = vmatprep.subr.mxu0 0.0
    %1981 = vmatpush2.xpose.msra.mxu0 0.0
    %1982 = vmatprep.subr.mxu0 0.0
    %1983 = vmatpush2.xpose.msra.mxu0 0.0
    %1984 = vmatprep.subr.mxu0 0.0
    %1985 = vmatpush2.xpose.msra.mxu0 0.0
    %1986 = vmatprep.subr.mxu0 0.0
    %1987 = vmatpush2.xpose.msra.mxu0 0.0
    %1988 = vmatprep.subr.mxu0 0.0
    %1989 = vmatpush2.xpose.msra.mxu0 0.0
    %1990 = vmatprep.subr.mxu0 0.0
    %1991 = vmatpush2.xpose.msra.mxu0 0.0
    %1992 = vmatprep.subr.mxu0 0.0
    %1993 = vmatpush2.xpose.msra.mxu0 0.0
    %1994 = vmatprep.subr.mxu0 0.0
    %1995 = vmatpush2.xpose.msra.mxu0 0.0
    %1996 = vmatprep.subr.mxu0 0.0
    %1997 = vmatpush2.xpose.msra.mxu0 0.0
    %1998 = vmatprep.subr.mxu0 0.0
    %1999 = vmatpush2.xpose.msra.mxu0 0.0
    %2000 = vmatprep.subr.mxu0 0.0
    %2001 = vmatpush2.xpose.msra.mxu0 0.0
    %2002 = vmatprep.mubr.f32.mxu0 0.0
    %2003 = vmatmul.mubr.f32.gmra.mxu0 %v1926
    %v2004 = vpop.f32.mrf.mxu0
    %v2005 = vadd.f32 0.0, %v2004
    %v2006 = vpop.f32.mrf.mxu0
    %2007 = vdwg.mxu0
    %2008 = vmatprep.subr.mxu0 0.0
    %2009 = vmatpush1.xpose.msra.mxu0 0.0
    %2010 = vmatprep.subr.mxu0 0.0
    %2011 = vmatpush1.xpose.msra.mxu0 0.0
    %2012 = vmatprep.subr.mxu0 0.0
    %2013 = vmatpush1.xpose.msra.mxu0 0.0
    %2014 = vmatprep.subr.mxu0 0.0
    %2015 = vmatpush1.xpose.msra.mxu0 0.0
    %2016 = vmatprep.subr.mxu0 0.0
    %2017 = vmatpush1.xpose.msra.mxu0 0.0
    %2018 = vmatprep.subr.mxu0 0.0
    %2019 = vmatpush1.xpose.msra.mxu0 0.0
    %2020 = vmatprep.subr.mxu0 0.0
    %2021 = vmatpush1.xpose.msra.mxu0 0.0
    %2022 = vmatprep.subr.mxu0 0.0
    %2023 = vmatpush1.xpose.msra.mxu0 0.0
    %2024 = vmatprep.subr.mxu0 0.0
    %2025 = vmatpush1.xpose.msra.mxu0 0.0
    %2026 = vmatprep.subr.mxu0 0.0
    %2027 = vmatpush1.xpose.msra.mxu0 0.0
    %2028 = vmatprep.subr.mxu0 0.0
    %2029 = vmatpush1.xpose.msra.mxu0 0.0
    %2030 = vmatprep.subr.mxu0 0.0
    %2031 = vmatpush1.xpose.msra.mxu0 0.0
    %2032 = vmatprep.subr.mxu0 0.0
    %2033 = vmatpush1.xpose.msra.mxu0 0.0
    %2034 = vmatprep.subr.mxu0 0.0
    %2035 = vmatpush1.xpose.msra.mxu0 0.0
    %2036 = vmatprep.subr.mxu0 0.0
    %2037 = vmatpush1.xpose.msra.mxu0 0.0
    %2038 = vmatprep.subr.mxu0 0.0
    %2039 = vmatpush1.xpose.msra.mxu0 %v1934
    %2040 = vmatprep.subr.mxu0 0.0
    %2041 = vmatpush2.xpose.msra.mxu0 0.0
    %2042 = vmatprep.subr.mxu0 0.0
    %2043 = vmatpush2.xpose.msra.mxu0 0.0
    %2044 = vmatprep.subr.mxu0 0.0
    %2045 = vmatpush2.xpose.msra.mxu0 0.0
    %2046 = vmatprep.subr.mxu0 0.0
    %2047 = vmatpush2.xpose.msra.mxu0 0.0
    %2048 = vmatprep.subr.mxu0 0.0
    %2049 = vmatpush2.xpose.msra.mxu0 0.0
    %2050 = vmatprep.subr.mxu0 0.0
    %2051 = vmatpush2.xpose.msra.mxu0 0.0
    %2052 = vmatprep.subr.mxu0 0.0
    %2053 = vmatpush2.xpose.msra.mxu0 0.0
    %2054 = vmatprep.subr.mxu0 0.0
    %2055 = vmatpush2.xpose.msra.mxu0 0.0
    %2056 = vmatprep.subr.mxu0 0.0
    %2057 = vmatpush2.xpose.msra.mxu0 0.0
    %2058 = vmatprep.subr.mxu0 0.0
    %2059 = vmatpush2.xpose.msra.mxu0 0.0
    %2060 = vmatprep.subr.mxu0 0.0
    %2061 = vmatpush2.xpose.msra.mxu0 0.0
    %2062 = vmatprep.subr.mxu0 0.0
    %2063 = vmatpush2.xpose.msra.mxu0 0.0
    %2064 = vmatprep.subr.mxu0 0.0
    %2065 = vmatpush2.xpose.msra.mxu0 0.0
    %2066 = vmatprep.subr.mxu0 0.0
    %2067 = vmatpush2.xpose.msra.mxu0 0.0
    %2068 = vmatprep.subr.mxu0 0.0
    %2069 = vmatpush2.xpose.msra.mxu0 0.0
    %2070 = vmatprep.subr.mxu0 0.0
    %2071 = vmatpush2.xpose.msra.mxu0 0.0
    %2072 = vmatprep.mubr.f32.mxu0 0.0
    %2073 = vmatmul.mubr.f32.gmra.mxu0 %v1932
    %v2074 = vpop.f32.mrf.mxu0
    %v2075 = vadd.f32 0.0, %v2074
    %v2076 = vpop.f32.mrf.mxu0
    %2077 = vdwg.mxu0
    %v2078 = vmul.f32 %v2005, 0.088388346
    %v2079 = vmul.f32 %v2075, 0.088388346
    %v2080 = vsel %vm298, %v2078, -inf
    %2081 = vmax.xlane.f32.xlu0 %v2080
    %v2082 = vpop.xlane.xlu0 %2081
    %v2083 = vsel %vm298, %v2079, -inf
    %2084 = vmax.xlane.f32.xlu0 %v2083
    %v2085 = vpop.xlane.xlu0 %2084
    %v2086 = vsub.f32 %v2078, %v2082
    %v2087 = vsub.f32 %v2079, %v2085
    %v2088 = vmul.f32 %v2086, 1.442695
    %v2089 = vpow.pop %v2088
    %v2090 = vmul.f32 %v2087, 1.442695
    %v2091 = vpow.pop %v2090
    %v2092 = vsel %vm298, %v2089, 0.0
    %2093 = vadd.xlane.f32.xlu0 %v2092
    %v2094 = vpop.xlane.xlu0 %2093
    %v2095 = vsel %vm298, %v2091, 0.0
    %2096 = vadd.xlane.f32.xlu0 %v2095
    %v2097 = vpop.xlane.xlu0 %2096
    %v2098 = vrcp.pop %v2094
    %v2099 = vmul.f32 %v2089, %v2098
    %v2100 = vrcp.pop %v2097
    %v2101 = vmul.f32 %v2091, %v2100
    %v2103 = vsel %vm298, %v2099, 0
    %2105 = vmatprep.subr.mxu0 0.0
    %2106 = vmatpush1.msra.mxu0 0.0
    %2107 = vmatprep.subr.mxu0 0.0
    %2108 = vmatpush1.msra.mxu0 0.0
    %2109 = vmatprep.subr.mxu0 0.0
    %2110 = vmatpush1.msra.mxu0 0.0
    %2111 = vmatprep.subr.mxu0 0.0
    %2112 = vmatpush1.msra.mxu0 0.0
    %2113 = vmatprep.subr.mxu0 0.0
    %2114 = vmatpush1.msra.mxu0 0.0
    %2115 = vmatprep.subr.mxu0 0.0
    %2116 = vmatpush1.msra.mxu0 0.0
    %2117 = vmatprep.subr.mxu0 0.0
    %2118 = vmatpush1.msra.mxu0 0.0
    %2119 = vmatprep.subr.mxu0 0.0
    %2120 = vmatpush1.msra.mxu0 0.0
    %2121 = vmatprep.subr.mxu0 0.0
    %2122 = vmatpush1.msra.mxu0 0.0
    %2123 = vmatprep.subr.mxu0 0.0
    %2124 = vmatpush1.msra.mxu0 0.0
    %2125 = vmatprep.subr.mxu0 0.0
    %2126 = vmatpush1.msra.mxu0 0.0
    %2127 = vmatprep.subr.mxu0 0.0
    %2128 = vmatpush1.msra.mxu0 0.0
    %2129 = vmatprep.subr.mxu0 0.0
    %2130 = vmatpush1.msra.mxu0 0.0
    %2131 = vmatprep.subr.mxu0 0.0
    %2132 = vmatpush1.msra.mxu0 0.0
    %2133 = vmatprep.subr.mxu0 0.0
    %2134 = vmatpush1.msra.mxu0 0.0
    %2135 = vmatprep.subr.mxu0 0.0
    %2136 = vmatpush1.msra.mxu0 %v1930
    %2137 = vmatprep.subr.mxu0 0.0
    %2138 = vmatpush2.msra.mxu0 0.0
    %2139 = vmatprep.subr.mxu0 0.0
    %2140 = vmatpush2.msra.mxu0 0.0
    %2141 = vmatprep.subr.mxu0 0.0
    %2142 = vmatpush2.msra.mxu0 0.0
    %2143 = vmatprep.subr.mxu0 0.0
    %2144 = vmatpush2.msra.mxu0 0.0
    %2145 = vmatprep.subr.mxu0 0.0
    %2146 = vmatpush2.msra.mxu0 0.0
    %2147 = vmatprep.subr.mxu0 0.0
    %2148 = vmatpush2.msra.mxu0 0.0
    %2149 = vmatprep.subr.mxu0 0.0
    %2150 = vmatpush2.msra.mxu0 0.0
    %2151 = vmatprep.subr.mxu0 0.0
    %2152 = vmatpush2.msra.mxu0 0.0
    %2153 = vmatprep.subr.mxu0 0.0
    %2154 = vmatpush2.msra.mxu0 0.0
    %2155 = vmatprep.subr.mxu0 0.0
    %2156 = vmatpush2.msra.mxu0 0.0
    %2157 = vmatprep.subr.mxu0 0.0
    %2158 = vmatpush2.msra.mxu0 0.0
    %2159 = vmatprep.subr.mxu0 0.0
    %2160 = vmatpush2.msra.mxu0 0.0
    %2161 = vmatprep.subr.mxu0 0.0
    %2162 = vmatpush2.msra.mxu0 0.0
    %2163 = vmatprep.subr.mxu0 0.0
    %2164 = vmatpush2.msra.mxu0 0.0
    %2165 = vmatprep.subr.mxu0 0.0
    %2166 = vmatpush2.msra.mxu0 0.0
    %2167 = vmatprep.subr.mxu0 0.0
    %2168 = vmatpush2.msra.mxu0 0.0
    %2169 = vmatprep.mubr.f32.mxu0 0.0
    %2170 = vmatmul.mubr.f32.gmra.mxu0 %v2103
    %v2171 = vpop.f32.mrf.mxu0
    %v2172 = vadd.f32 0.0, %v2171
    %v2173 = vpop.f32.mrf.mxu0
    %2174 = vdwg.mxu0
    %v2176 = vsel %vm298, %v2101, 0
    %2178 = vmatprep.subr.mxu0 0.0
    %2179 = vmatpush1.msra.mxu0 0.0
    %2180 = vmatprep.subr.mxu0 0.0
    %2181 = vmatpush1.msra.mxu0 0.0
    %2182 = vmatprep.subr.mxu0 0.0
    %2183 = vmatpush1.msra.mxu0 0.0
    %2184 = vmatprep.subr.mxu0 0.0
    %2185 = vmatpush1.msra.mxu0 0.0
    %2186 = vmatprep.subr.mxu0 0.0
    %2187 = vmatpush1.msra.mxu0 0.0
    %2188 = vmatprep.subr.mxu0 0.0
    %2189 = vmatpush1.msra.mxu0 0.0
    %2190 = vmatprep.subr.mxu0 0.0
    %2191 = vmatpush1.msra.mxu0 0.0
    %2192 = vmatprep.subr.mxu0 0.0
    %2193 = vmatpush1.msra.mxu0 0.0
    %2194 = vmatprep.subr.mxu0 0.0
    %2195 = vmatpush1.msra.mxu0 0.0
    %2196 = vmatprep.subr.mxu0 0.0
    %2197 = vmatpush1.msra.mxu0 0.0
    %2198 = vmatprep.subr.mxu0 0.0
    %2199 = vmatpush1.msra.mxu0 0.0
    %2200 = vmatprep.subr.mxu0 0.0
    %2201 = vmatpush1.msra.mxu0 0.0
    %2202 = vmatprep.subr.mxu0 0.0
    %2203 = vmatpush1.msra.mxu0 0.0
    %2204 = vmatprep.subr.mxu0 0.0
    %2205 = vmatpush1.msra.mxu0 0.0
    %2206 = vmatprep.subr.mxu0 0.0
    %2207 = vmatpush1.msra.mxu0 0.0
    %2208 = vmatprep.subr.mxu0 0.0
    %2209 = vmatpush1.msra.mxu0 %v1936
    %2210 = vmatprep.subr.mxu0 0.0
    %2211 = vmatpush2.msra.mxu0 0.0
    %2212 = vmatprep.subr.mxu0 0.0
    %2213 = vmatpush2.msra.mxu0 0.0
    %2214 = vmatprep.subr.mxu0 0.0
    %2215 = vmatpush2.msra.mxu0 0.0
    %2216 = vmatprep.subr.mxu0 0.0
    %2217 = vmatpush2.msra.mxu0 0.0
    %2218 = vmatprep.subr.mxu0 0.0
    %2219 = vmatpush2.msra.mxu0 0.0
    %2220 = vmatprep.subr.mxu0 0.0
    %2221 = vmatpush2.msra.mxu0 0.0
    %2222 = vmatprep.subr.mxu0 0.0
    %2223 = vmatpush2.msra.mxu0 0.0
    %2224 = vmatprep.subr.mxu0 0.0
    %2225 = vmatpush2.msra.mxu0 0.0
    %2226 = vmatprep.subr.mxu0 0.0
    %2227 = vmatpush2.msra.mxu0 0.0
    %2228 = vmatprep.subr.mxu0 0.0
    %2229 = vmatpush2.msra.mxu0 0.0
    %2230 = vmatprep.subr.mxu0 0.0
    %2231 = vmatpush2.msra.mxu0 0.0
    %2232 = vmatprep.subr.mxu0 0.0
    %2233 = vmatpush2.msra.mxu0 0.0
    %2234 = vmatprep.subr.mxu0 0.0
    %2235 = vmatpush2.msra.mxu0 0.0
    %2236 = vmatprep.subr.mxu0 0.0
    %2237 = vmatpush2.msra.mxu0 0.0
    %2238 = vmatprep.subr.mxu0 0.0
    %2239 = vmatpush2.msra.mxu0 0.0
    %2240 = vmatprep.subr.mxu0 0.0
    %2241 = vmatpush2.msra.mxu0 0.0
    %2242 = vmatprep.mubr.f32.mxu0 0.0
    %2243 = vmatmul.mubr.f32.gmra.mxu0 %v2176
    %v2244 = vpop.f32.mrf.mxu0
    %v2245 = vadd.f32 0.0, %v2244
    %v2246 = vpop.f32.mrf.mxu0
    %2247 = vdwg.mxu0
    %2248 = vmatprep.subr.mxu0 0.0
    %2249 = vmatpush1.xpose.msra.mxu0 0.0
    %2250 = vmatprep.subr.mxu0 0.0
    %2251 = vmatpush1.xpose.msra.mxu0 0.0
    %2252 = vmatprep.subr.mxu0 0.0
    %2253 = vmatpush1.xpose.msra.mxu0 0.0
    %2254 = vmatprep.subr.mxu0 0.0
    %2255 = vmatpush1.xpose.msra.mxu0 0.0
    %2256 = vmatprep.subr.mxu0 0.0
    %2257 = vmatpush1.xpose.msra.mxu0 0.0
    %2258 = vmatprep.subr.mxu0 0.0
    %2259 = vmatpush1.xpose.msra.mxu0 0.0
    %2260 = vmatprep.subr.mxu0 0.0
    %2261 = vmatpush1.xpose.msra.mxu0 0.0
    %2262 = vmatprep.subr.mxu0 0.0
    %2263 = vmatpush1.xpose.msra.mxu0 0.0
    %2264 = vmatprep.subr.mxu0 0.0
    %2265 = vmatpush1.xpose.msra.mxu0 0.0
    %2266 = vmatprep.subr.mxu0 0.0
    %2267 = vmatpush1.xpose.msra.mxu0 0.0
    %2268 = vmatprep.subr.mxu0 0.0
    %2269 = vmatpush1.xpose.msra.mxu0 0.0
    %2270 = vmatprep.subr.mxu0 0.0
    %2271 = vmatpush1.xpose.msra.mxu0 0.0
    %2272 = vmatprep.subr.mxu0 0.0
    %2273 = vmatpush1.xpose.msra.mxu0 0.0
    %2274 = vmatprep.subr.mxu0 0.0
    %2275 = vmatpush1.xpose.msra.mxu0 0.0
    %2276 = vmatprep.subr.mxu0 0.0
    %2277 = vmatpush1.xpose.msra.mxu0 0.0
    %2278 = vmatprep.subr.mxu0 0.0
    %2279 = vmatpush1.xpose.msra.mxu0 %v1929
    %2280 = vmatprep.subr.mxu0 0.0
    %2281 = vmatpush2.xpose.msra.mxu0 0.0
    %2282 = vmatprep.subr.mxu0 0.0
    %2283 = vmatpush2.xpose.msra.mxu0 0.0
    %2284 = vmatprep.subr.mxu0 0.0
    %2285 = vmatpush2.xpose.msra.mxu0 0.0
    %2286 = vmatprep.subr.mxu0 0.0
    %2287 = vmatpush2.xpose.msra.mxu0 0.0
    %2288 = vmatprep.subr.mxu0 0.0
    %2289 = vmatpush2.xpose.msra.mxu0 0.0
    %2290 = vmatprep.subr.mxu0 0.0
    %2291 = vmatpush2.xpose.msra.mxu0 0.0
    %2292 = vmatprep.subr.mxu0 0.0
    %2293 = vmatpush2.xpose.msra.mxu0 0.0
    %2294 = vmatprep.subr.mxu0 0.0
    %2295 = vmatpush2.xpose.msra.mxu0 0.0
    %2296 = vmatprep.subr.mxu0 0.0
    %2297 = vmatpush2.xpose.msra.mxu0 0.0
    %2298 = vmatprep.subr.mxu0 0.0
    %2299 = vmatpush2.xpose.msra.mxu0 0.0
    %2300 = vmatprep.subr.mxu0 0.0
    %2301 = vmatpush2.xpose.msra.mxu0 0.0
    %2302 = vmatprep.subr.mxu0 0.0
    %2303 = vmatpush2.xpose.msra.mxu0 0.0
    %2304 = vmatprep.subr.mxu0 0.0
    %2305 = vmatpush2.xpose.msra.mxu0 0.0
    %2306 = vmatprep.subr.mxu0 0.0
    %2307 = vmatpush2.xpose.msra.mxu0 0.0
    %2308 = vmatprep.subr.mxu0 0.0
    %2309 = vmatpush2.xpose.msra.mxu0 0.0
    %2310 = vmatprep.subr.mxu0 0.0
    %2311 = vmatpush2.xpose.msra.mxu0 0.0
    %2312 = vmatprep.mubr.f32.mxu0 0.0
    %2313 = vmatmul.mubr.f32.gmra.mxu0 %v1927
    %v2314 = vpop.f32.mrf.mxu0
    %v2315 = vadd.f32 0.0, %v2314
    %v2316 = vpop.f32.mrf.mxu0
    %2317 = vdwg.mxu0
    %2318 = vmatprep.subr.mxu0 0.0
    %2319 = vmatpush1.xpose.msra.mxu0 0.0
    %2320 = vmatprep.subr.mxu0 0.0
    %2321 = vmatpush1.xpose.msra.mxu0 0.0
    %2322 = vmatprep.subr.mxu0 0.0
    %2323 = vmatpush1.xpose.msra.mxu0 0.0
    %2324 = vmatprep.subr.mxu0 0.0
    %2325 = vmatpush1.xpose.msra.mxu0 0.0
    %2326 = vmatprep.subr.mxu0 0.0
    %2327 = vmatpush1.xpose.msra.mxu0 0.0
    %2328 = vmatprep.subr.mxu0 0.0
    %2329 = vmatpush1.xpose.msra.mxu0 0.0
    %2330 = vmatprep.subr.mxu0 0.0
    %2331 = vmatpush1.xpose.msra.mxu0 0.0
    %2332 = vmatprep.subr.mxu0 0.0
    %2333 = vmatpush1.xpose.msra.mxu0 0.0
    %2334 = vmatprep.subr.mxu0 0.0
    %2335 = vmatpush1.xpose.msra.mxu0 0.0
    %2336 = vmatprep.subr.mxu0 0.0
    %2337 = vmatpush1.xpose.msra.mxu0 0.0
    %2338 = vmatprep.subr.mxu0 0.0
    %2339 = vmatpush1.xpose.msra.mxu0 0.0
    %2340 = vmatprep.subr.mxu0 0.0
    %2341 = vmatpush1.xpose.msra.mxu0 0.0
    %2342 = vmatprep.subr.mxu0 0.0
    %2343 = vmatpush1.xpose.msra.mxu0 0.0
    %2344 = vmatprep.subr.mxu0 0.0
    %2345 = vmatpush1.xpose.msra.mxu0 0.0
    %2346 = vmatprep.subr.mxu0 0.0
    %2347 = vmatpush1.xpose.msra.mxu0 0.0
    %2348 = vmatprep.subr.mxu0 0.0
    %2349 = vmatpush1.xpose.msra.mxu0 %v1935
    %2350 = vmatprep.subr.mxu0 0.0
    %2351 = vmatpush2.xpose.msra.mxu0 0.0
    %2352 = vmatprep.subr.mxu0 0.0
    %2353 = vmatpush2.xpose.msra.mxu0 0.0
    %2354 = vmatprep.subr.mxu0 0.0
    %2355 = vmatpush2.xpose.msra.mxu0 0.0
    %2356 = vmatprep.subr.mxu0 0.0
    %2357 = vmatpush2.xpose.msra.mxu0 0.0
    %2358 = vmatprep.subr.mxu0 0.0
    %2359 = vmatpush2.xpose.msra.mxu0 0.0
    %2360 = vmatprep.subr.mxu0 0.0
    %2361 = vmatpush2.xpose.msra.mxu0 0.0
    %2362 = vmatprep.subr.mxu0 0.0
    %2363 = vmatpush2.xpose.msra.mxu0 0.0
    %2364 = vmatprep.subr.mxu0 0.0
    %2365 = vmatpush2.xpose.msra.mxu0 0.0
    %2366 = vmatprep.subr.mxu0 0.0
    %2367 = vmatpush2.xpose.msra.mxu0 0.0
    %2368 = vmatprep.subr.mxu0 0.0
    %2369 = vmatpush2.xpose.msra.mxu0 0.0
    %2370 = vmatprep.subr.mxu0 0.0
    %2371 = vmatpush2.xpose.msra.mxu0 0.0
    %2372 = vmatprep.subr.mxu0 0.0
    %2373 = vmatpush2.xpose.msra.mxu0 0.0
    %2374 = vmatprep.subr.mxu0 0.0
    %2375 = vmatpush2.xpose.msra.mxu0 0.0
    %2376 = vmatprep.subr.mxu0 0.0
    %2377 = vmatpush2.xpose.msra.mxu0 0.0
    %2378 = vmatprep.subr.mxu0 0.0
    %2379 = vmatpush2.xpose.msra.mxu0 0.0
    %2380 = vmatprep.subr.mxu0 0.0
    %2381 = vmatpush2.xpose.msra.mxu0 0.0
    %2382 = vmatprep.mubr.f32.mxu0 0.0
    %2383 = vmatmul.mubr.f32.gmra.mxu0 %v1933
    %v2384 = vpop.f32.mrf.mxu0
    %v2385 = vadd.f32 0.0, %v2384
    %v2386 = vpop.f32.mrf.mxu0
    %2387 = vdwg.mxu0
    %v2388 = vmul.f32 %v2315, 0.088388346
    %v2389 = vmul.f32 %v2385, 0.088388346
    %v2390 = vsel %vm298, %v2388, -inf
    %2391 = vmax.xlane.f32.xlu0 %v2390
    %v2392 = vpop.xlane.xlu0 %2391
    %v2393 = vsel %vm298, %v2389, -inf
    %2394 = vmax.xlane.f32.xlu0 %v2393
    %v2395 = vpop.xlane.xlu0 %2394
    %v2396 = vsub.f32 %v2388, %v2392
    %v2397 = vsub.f32 %v2389, %v2395
    %v2398 = vmul.f32 %v2396, 1.442695
    %v2399 = vpow.pop %v2398
    %v2400 = vmul.f32 %v2397, 1.442695
    %v2401 = vpow.pop %v2400
    %v2402 = vsel %vm298, %v2399, 0.0
    %2403 = vadd.xlane.f32.xlu0 %v2402
    %v2404 = vpop.xlane.xlu0 %2403
    %v2405 = vsel %vm298, %v2401, 0.0
    %2406 = vadd.xlane.f32.xlu0 %v2405
    %v2407 = vpop.xlane.xlu0 %2406
    %v2408 = vrcp.pop %v2404
    %v2409 = vmul.f32 %v2399, %v2408
    %v2410 = vrcp.pop %v2407
    %v2411 = vmul.f32 %v2401, %v2410
    %v2413 = vsel %vm298, %v2409, 0
    %2415 = vmatprep.subr.mxu0 0.0
    %2416 = vmatpush1.msra.mxu0 0.0
    %2417 = vmatprep.subr.mxu0 0.0
    %2418 = vmatpush1.msra.mxu0 0.0
    %2419 = vmatprep.subr.mxu0 0.0
    %2420 = vmatpush1.msra.mxu0 0.0
    %2421 = vmatprep.subr.mxu0 0.0
    %2422 = vmatpush1.msra.mxu0 0.0
    %2423 = vmatprep.subr.mxu0 0.0
    %2424 = vmatpush1.msra.mxu0 0.0
    %2425 = vmatprep.subr.mxu0 0.0
    %2426 = vmatpush1.msra.mxu0 0.0
    %2427 = vmatprep.subr.mxu0 0.0
    %2428 = vmatpush1.msra.mxu0 0.0
    %2429 = vmatprep.subr.mxu0 0.0
    %2430 = vmatpush1.msra.mxu0 0.0
    %2431 = vmatprep.subr.mxu0 0.0
    %2432 = vmatpush1.msra.mxu0 0.0
    %2433 = vmatprep.subr.mxu0 0.0
    %2434 = vmatpush1.msra.mxu0 0.0
    %2435 = vmatprep.subr.mxu0 0.0
    %2436 = vmatpush1.msra.mxu0 0.0
    %2437 = vmatprep.subr.mxu0 0.0
    %2438 = vmatpush1.msra.mxu0 0.0
    %2439 = vmatprep.subr.mxu0 0.0
    %2440 = vmatpush1.msra.mxu0 0.0
    %2441 = vmatprep.subr.mxu0 0.0
    %2442 = vmatpush1.msra.mxu0 0.0
    %2443 = vmatprep.subr.mxu0 0.0
    %2444 = vmatpush1.msra.mxu0 0.0
    %2445 = vmatprep.subr.mxu0 0.0
    %2446 = vmatpush1.msra.mxu0 %v1931
    %2447 = vmatprep.subr.mxu0 0.0
    %2448 = vmatpush2.msra.mxu0 0.0
    %2449 = vmatprep.subr.mxu0 0.0
    %2450 = vmatpush2.msra.mxu0 0.0
    %2451 = vmatprep.subr.mxu0 0.0
    %2452 = vmatpush2.msra.mxu0 0.0
    %2453 = vmatprep.subr.mxu0 0.0
    %2454 = vmatpush2.msra.mxu0 0.0
    %2455 = vmatprep.subr.mxu0 0.0
    %2456 = vmatpush2.msra.mxu0 0.0
    %2457 = vmatprep.subr.mxu0 0.0
    %2458 = vmatpush2.msra.mxu0 0.0
    %2459 = vmatprep.subr.mxu0 0.0
    %2460 = vmatpush2.msra.mxu0 0.0
    %2461 = vmatprep.subr.mxu0 0.0
    %2462 = vmatpush2.msra.mxu0 0.0
    %2463 = vmatprep.subr.mxu0 0.0
    %2464 = vmatpush2.msra.mxu0 0.0
    %2465 = vmatprep.subr.mxu0 0.0
    %2466 = vmatpush2.msra.mxu0 0.0
    %2467 = vmatprep.subr.mxu0 0.0
    %2468 = vmatpush2.msra.mxu0 0.0
    %2469 = vmatprep.subr.mxu0 0.0
    %2470 = vmatpush2.msra.mxu0 0.0
    %2471 = vmatprep.subr.mxu0 0.0
    %2472 = vmatpush2.msra.mxu0 0.0
    %2473 = vmatprep.subr.mxu0 0.0
    %2474 = vmatpush2.msra.mxu0 0.0
    %2475 = vmatprep.subr.mxu0 0.0
    %2476 = vmatpush2.msra.mxu0 0.0
    %2477 = vmatprep.subr.mxu0 0.0
    %2478 = vmatpush2.msra.mxu0 0.0
    %2479 = vmatprep.mubr.f32.mxu0 0.0
    %2480 = vmatmul.mubr.f32.gmra.mxu0 %v2413
    %v2481 = vpop.f32.mrf.mxu0
    %v2482 = vadd.f32 0.0, %v2481
    %v2483 = vpop.f32.mrf.mxu0
    %2484 = vdwg.mxu0
    %v2486 = vsel %vm298, %v2411, 0
    %2488 = vmatprep.subr.mxu0 0.0
    %2489 = vmatpush1.msra.mxu0 0.0
    %2490 = vmatprep.subr.mxu0 0.0
    %2491 = vmatpush1.msra.mxu0 0.0
    %2492 = vmatprep.subr.mxu0 0.0
    %2493 = vmatpush1.msra.mxu0 0.0
    %2494 = vmatprep.subr.mxu0 0.0
    %2495 = vmatpush1.msra.mxu0 0.0
    %2496 = vmatprep.subr.mxu0 0.0
    %2497 = vmatpush1.msra.mxu0 0.0
    %2498 = vmatprep.subr.mxu0 0.0
    %2499 = vmatpush1.msra.mxu0 0.0
    %2500 = vmatprep.subr.mxu0 0.0
    %2501 = vmatpush1.msra.mxu0 0.0
    %2502 = vmatprep.subr.mxu0 0.0
    %2503 = vmatpush1.msra.mxu0 0.0
    %2504 = vmatprep.subr.mxu0 0.0
    %2505 = vmatpush1.msra.mxu0 0.0
    %2506 = vmatprep.subr.mxu0 0.0
    %2507 = vmatpush1.msra.mxu0 0.0
    %2508 = vmatprep.subr.mxu0 0.0
    %2509 = vmatpush1.msra.mxu0 0.0
    %2510 = vmatprep.subr.mxu0 0.0
    %2511 = vmatpush1.msra.mxu0 0.0
    %2512 = vmatprep.subr.mxu0 0.0
    %2513 = vmatpush1.msra.mxu0 0.0
    %2514 = vmatprep.subr.mxu0 0.0
    %2515 = vmatpush1.msra.mxu0 0.0
    %2516 = vmatprep.subr.mxu0 0.0
    %2517 = vmatpush1.msra.mxu0 0.0
    %2518 = vmatprep.subr.mxu0 0.0
    %2519 = vmatpush1.msra.mxu0 %v1937
    %2520 = vmatprep.subr.mxu0 0.0
    %2521 = vmatpush2.msra.mxu0 0.0
    %2522 = vmatprep.subr.mxu0 0.0
    %2523 = vmatpush2.msra.mxu0 0.0
    %2524 = vmatprep.subr.mxu0 0.0
    %2525 = vmatpush2.msra.mxu0 0.0
    %2526 = vmatprep.subr.mxu0 0.0
    %2527 = vmatpush2.msra.mxu0 0.0
    %2528 = vmatprep.subr.mxu0 0.0
    %2529 = vmatpush2.msra.mxu0 0.0
    %2530 = vmatprep.subr.mxu0 0.0
    %2531 = vmatpush2.msra.mxu0 0.0
    %2532 = vmatprep.subr.mxu0 0.0
    %2533 = vmatpush2.msra.mxu0 0.0
    %2534 = vmatprep.subr.mxu0 0.0
    %2535 = vmatpush2.msra.mxu0 0.0
    %2536 = vmatprep.subr.mxu0 0.0
    %2537 = vmatpush2.msra.mxu0 0.0
    %2538 = vmatprep.subr.mxu0 0.0
    %2539 = vmatpush2.msra.mxu0 0.0
    %2540 = vmatprep.subr.mxu0 0.0
    %2541 = vmatpush2.msra.mxu0 0.0
    %2542 = vmatprep.subr.mxu0 0.0
    %2543 = vmatpush2.msra.mxu0 0.0
    %2544 = vmatprep.subr.mxu0 0.0
    %2545 = vmatpush2.msra.mxu0 0.0
    %2546 = vmatprep.subr.mxu0 0.0
    %2547 = vmatpush2.msra.mxu0 0.0
    %2548 = vmatprep.subr.mxu0 0.0
    %2549 = vmatpush2.msra.mxu0 0.0
    %2550 = vmatprep.subr.mxu0 0.0
    %2551 = vmatpush2.msra.mxu0 0.0
    %2552 = vmatprep.mubr.f32.mxu0 0.0
    %2553 = vmatmul.mubr.f32.gmra.mxu0 %v2486
    %v2554 = vpop.f32.mrf.mxu0
    %v2555 = vadd.f32 0.0, %v2554
    %v2556 = vpop.f32.mrf.mxu0
    %2557 = vdwg.mxu0
    %v2558 = vld [vmem:[#allocation10] sm:$0xff]
    %v2559 = vld [vmem:[#allocation10 + $0x8] sm:$0xff]
    %v2560 = vld [vmem:[#allocation10 + $0x10] sm:$0xff]
    %v2561 = vld [vmem:[#allocation10 + $0x18] sm:$0xff]
    %v2562 = vld [vmem:[#allocation10 + $0x20] sm:$0xff]
    %v2563 = vld [vmem:[#allocation10 + $0x28] sm:$0xff]
    %v2564 = vld [vmem:[#allocation10 + $0x30] sm:$0xff]
    %v2565 = vld [vmem:[#allocation10 + $0x38] sm:$0xff]
    %v2566 = vld [vmem:[#allocation10 + $0x40] sm:$0xff]
    %v2567 = vld [vmem:[#allocation10 + $0x48] sm:$0xff]
    %v2568 = vld [vmem:[#allocation10 + $0x50] sm:$0xff]
    %v2569 = vld [vmem:[#allocation10 + $0x58] sm:$0xff]
    %v2570 = vld [vmem:[#allocation10 + $0x60] sm:$0xff]
    %v2571 = vld [vmem:[#allocation10 + $0x68] sm:$0xff]
    %v2572 = vld [vmem:[#allocation10 + $0x70] sm:$0xff]
    %v2573 = vld [vmem:[#allocation10 + $0x78] sm:$0xff]
    %v2574 = vld [vmem:[#allocation10 + $0x80] sm:$0xff]
    %v2575 = vld [vmem:[#allocation10 + $0x88] sm:$0xff]
    %v2576 = vld [vmem:[#allocation10 + $0x90] sm:$0xff]
    %v2577 = vld [vmem:[#allocation10 + $0x98] sm:$0xff]
    %v2578 = vld [vmem:[#allocation10 + $0xa0] sm:$0xff]
    %v2579 = vld [vmem:[#allocation10 + $0xa8] sm:$0xff]
    %v2580 = vld [vmem:[#allocation10 + $0xb0] sm:$0xff]
    %v2581 = vld [vmem:[#allocation10 + $0xb8] sm:$0xff]
    %v2582 = vld [vmem:[#allocation10 + $0xc0] sm:$0xff]
    %v2583 = vld [vmem:[#allocation10 + $0xc8] sm:$0xff]
    %v2584 = vld [vmem:[#allocation10 + $0xd0] sm:$0xff]
    %v2585 = vld [vmem:[#allocation10 + $0xd8] sm:$0xff]
    %v2586 = vld [vmem:[#allocation10 + $0xe0] sm:$0xff]
    %v2587 = vld [vmem:[#allocation10 + $0xe8] sm:$0xff]
    %v2588 = vld [vmem:[#allocation10 + $0xf0] sm:$0xff]
    %v2589 = vld [vmem:[#allocation10 + $0xf8] sm:$0xff]
    %v2590 = vld [vmem:[#allocation10 + $0x100] sm:$0xff]
    %v2591 = vld [vmem:[#allocation10 + $0x108] sm:$0xff]
    %v2592 = vld [vmem:[#allocation10 + $0x110] sm:$0xff]
    %v2593 = vld [vmem:[#allocation10 + $0x118] sm:$0xff]
    %v2594 = vld [vmem:[#allocation10 + $0x120] sm:$0xff]
    %v2595 = vld [vmem:[#allocation10 + $0x128] sm:$0xff]
    %v2596 = vld [vmem:[#allocation10 + $0x130] sm:$0xff]
    %v2597 = vld [vmem:[#allocation10 + $0x138] sm:$0xff]
    %v2598 = vld [vmem:[#allocation10 + $0x140] sm:$0xff]
    %v2599 = vld [vmem:[#allocation10 + $0x148] sm:$0xff]
    %v2600 = vld [vmem:[#allocation10 + $0x150] sm:$0xff]
    %v2601 = vld [vmem:[#allocation10 + $0x158] sm:$0xff]
    %v2602 = vld [vmem:[#allocation10 + $0x160] sm:$0xff]
    %v2603 = vld [vmem:[#allocation10 + $0x168] sm:$0xff]
    %v2604 = vld [vmem:[#allocation10 + $0x170] sm:$0xff]
    %v2605 = vld [vmem:[#allocation10 + $0x178] sm:$0xff]
    %v2606 = vld [vmem:[#allocation10 + $0x180] sm:$0xff]
    %v2607 = vld [vmem:[#allocation10 + $0x188] sm:$0xff]
    %v2608 = vld [vmem:[#allocation10 + $0x190] sm:$0xff]
    %v2609 = vld [vmem:[#allocation10 + $0x198] sm:$0xff]
    %v2610 = vld [vmem:[#allocation10 + $0x1a0] sm:$0xff]
    %v2611 = vld [vmem:[#allocation10 + $0x1a8] sm:$0xff]
    %v2612 = vld [vmem:[#allocation10 + $0x1b0] sm:$0xff]
    %v2613 = vld [vmem:[#allocation10 + $0x1b8] sm:$0xff]
    %v2614 = vld [vmem:[#allocation10 + $0x1c0] sm:$0xff]
    %v2615 = vld [vmem:[#allocation10 + $0x1c8] sm:$0xff]
    %v2616 = vld [vmem:[#allocation10 + $0x1d0] sm:$0xff]
    %v2617 = vld [vmem:[#allocation10 + $0x1d8] sm:$0xff]
    %v2618 = vld [vmem:[#allocation10 + $0x1e0] sm:$0xff]
    %v2619 = vld [vmem:[#allocation10 + $0x1e8] sm:$0xff]
    %v2620 = vld [vmem:[#allocation10 + $0x1f0] sm:$0xff]
    %v2621 = vld [vmem:[#allocation10 + $0x1f8] sm:$0xff]
    %v2622 = vld [vmem:[%s19] sm:$0x3]
    %2623 = vmatprep.subr.mxu0 %v2589
    %2624 = vmatpush1.msra.mxu0 %v2588
    %2625 = vmatprep.subr.mxu0 %v2587
    %2626 = vmatpush1.msra.mxu0 %v2586
    %2627 = vmatprep.subr.mxu0 %v2585
    %2628 = vmatpush1.msra.mxu0 %v2584
    %2629 = vmatprep.subr.mxu0 %v2583
    %2630 = vmatpush1.msra.mxu0 %v2582
    %2631 = vmatprep.subr.mxu0 %v2581
    %2632 = vmatpush1.msra.mxu0 %v2580
    %2633 = vmatprep.subr.mxu0 %v2579
    %2634 = vmatpush1.msra.mxu0 %v2578
    %2635 = vmatprep.subr.mxu0 %v2577
    %2636 = vmatpush1.msra.mxu0 %v2576
    %2637 = vmatprep.subr.mxu0 %v2575
    %2638 = vmatpush1.msra.mxu0 %v2574
    %2639 = vmatprep.subr.mxu0 %v2573
    %2640 = vmatpush1.msra.mxu0 %v2572
    %2641 = vmatprep.subr.mxu0 %v2571
    %2642 = vmatpush1.msra.mxu0 %v2570
    %2643 = vmatprep.subr.mxu0 %v2569
    %2644 = vmatpush1.msra.mxu0 %v2568
    %2645 = vmatprep.subr.mxu0 %v2567
    %2646 = vmatpush1.msra.mxu0 %v2566
    %2647 = vmatprep.subr.mxu0 %v2565
    %2648 = vmatpush1.msra.mxu0 %v2564
    %2649 = vmatprep.subr.mxu0 %v2563
    %2650 = vmatpush1.msra.mxu0 %v2562
    %2651 = vmatprep.subr.mxu0 %v2561
    %2652 = vmatpush1.msra.mxu0 %v2560
    %2653 = vmatprep.subr.mxu0 %v2559
    %2654 = vmatpush1.msra.mxu0 %v2558
    %2655 = vmatprep.subr.mxu0 %v2621
    %2656 = vmatpush2.msra.mxu0 %v2620
    %2657 = vmatprep.subr.mxu0 %v2619
    %2658 = vmatpush2.msra.mxu0 %v2618
    %2659 = vmatprep.subr.mxu0 %v2617
    %2660 = vmatpush2.msra.mxu0 %v2616
    %2661 = vmatprep.subr.mxu0 %v2615
    %2662 = vmatpush2.msra.mxu0 %v2614
    %2663 = vmatprep.subr.mxu0 %v2613
    %2664 = vmatpush2.msra.mxu0 %v2612
    %2665 = vmatprep.subr.mxu0 %v2611
    %2666 = vmatpush2.msra.mxu0 %v2610
    %2667 = vmatprep.subr.mxu0 %v2609
    %2668 = vmatpush2.msra.mxu0 %v2608
    %2669 = vmatprep.subr.mxu0 %v2607
    %2670 = vmatpush2.msra.mxu0 %v2606
    %2671 = vmatprep.subr.mxu0 %v2605
    %2672 = vmatpush2.msra.mxu0 %v2604
    %2673 = vmatprep.subr.mxu0 %v2603
    %2674 = vmatpush2.msra.mxu0 %v2602
    %2675 = vmatprep.subr.mxu0 %v2601
    %2676 = vmatpush2.msra.mxu0 %v2600
    %2677 = vmatprep.subr.mxu0 %v2599
    %2678 = vmatpush2.msra.mxu0 %v2598
    %2679 = vmatprep.subr.mxu0 %v2597
    %2680 = vmatpush2.msra.mxu0 %v2596
    %2681 = vmatprep.subr.mxu0 %v2595
    %2682 = vmatpush2.msra.mxu0 %v2594
    %2683 = vmatprep.subr.mxu0 %v2593
    %2684 = vmatpush2.msra.mxu0 %v2592
    %2685 = vmatprep.subr.mxu0 %v2591
    %2686 = vmatpush2.msra.mxu0 %v2590
    %2687 = vmatprep.mubr.f32.mxu0 %v2482
    %2688 = vmatmul.mubr.f32.gmra.mxu0 %v2172
    %v2689 = vpop.f32.mrf.mxu0
    %v2690 = vadd.f32 0.0, %v2689
    %v2691 = vpop.f32.mrf.mxu0
    %v2692 = vadd.f32 0.0, %v2691
    %2693 = vmatprep.mubr.f32.mxu0 %v2555
    %2694 = vmatmul.mubr.f32.gmra.mxu0 %v2245
    %v2695 = vpop.f32.mrf.mxu0
    %v2696 = vadd.f32 0.0, %v2695
    %v2697 = vpop.f32.mrf.mxu0
    %v2698 = vadd.f32 0.0, %v2697
    %2699 = vdwg.mxu0
    %v2701 = vlaneseq
    %v2702 = vshrl.u32 %v2701, 7
    %v2703 = vsub.s32 0, %v2702
    %v2704 = vrot.slane %v2622, %v2703
    %v2705 = vlaneseq
    %v2706 = vshrl.u32 %v2705, 7
    %v2707 = vsub.s32 1, %v2706
    %v2708 = vrot.slane %v2622, %v2707
    %v2711 = vadd.f32 %v2690, %v2704
    %v2712 = vadd.f32 %v2692, %v2708
    %v2713 = vadd.f32 %v2696, %v2704
    %v2714 = vadd.f32 %v2698, %v2708
    %v2715 = vadd.f32 %v1467, %v2711
    %v2716 = vadd.f32 %v1468, %v2712
    %v2717 = vadd.f32 %v1469, %v2713
    %v2718 = vadd.f32 %v1470, %v2714
    %v2719 = vld [vmem:[%s21] sm:$0x3]
    %v2720 = vld [vmem:[%s23] sm:$0x3]
    %v2721 = vadd.f32 %v2715, %v2716
    %2722 = vadd.xlane.f32.xlu0 %v2721
    %v2723 = vpop.xlane.xlu0 %2722
    %v2724 = vadd.f32 %v2717, %v2718
    %2725 = vadd.xlane.f32.xlu0 %v2724
    %v2726 = vpop.xlane.xlu0 %2725
    %v2727 = vmul.f32 %v2723, %v941
    %v2728 = vmul.f32 %v2726, %v941
    %v2729 = vsub.f32 %v2715, %v2727
    %v2730 = vsub.f32 %v2716, %v2727
    %v2731 = vsub.f32 %v2717, %v2728
    %v2732 = vsub.f32 %v2718, %v2728
    %v2733 = vmul.f32 %v2729, %v2729
    %v2734 = vmul.f32 %v2730, %v2730
    %v2735 = vmul.f32 %v2731, %v2731
    %v2736 = vmul.f32 %v2732, %v2732
    %v2737 = vadd.f32 %v2733, %v2734
    %2738 = vadd.xlane.f32.xlu0 %v2737
    %v2739 = vpop.xlane.xlu0 %2738
    %v2740 = vadd.f32 %v2735, %v2736
    %2741 = vadd.xlane.f32.xlu0 %v2740
    %v2742 = vpop.xlane.xlu0 %2741
    %v2743 = vmul.f32 %v2739, %v1240
    %v2744 = vmul.f32 %v2742, %v1240
    %v2746 = vlaneseq
    %v2747 = vshrl.u32 %v2746, 7
    %v2748 = vsub.s32 0, %v2747
    %v2749 = vrot.slane %v2719, %v2748
    %v2750 = vlaneseq
    %v2751 = vshrl.u32 %v2750, 7
    %v2752 = vsub.s32 1, %v2751
    %v2753 = vrot.slane %v2719, %v2752
    %v2756 = vmul.f32 %v2749, %v2729
    %v2757 = vmul.f32 %v2753, %v2730
    %v2758 = vmul.f32 %v2749, %v2731
    %v2759 = vmul.f32 %v2753, %v2732
    %v2760 = vrsqrt.pop %v2743
    %v2761 = vmul.f32 %v2743, %v2760
    %vm2762 = vcmp.eq.f32.partialorder %v2743, inf
    %v2763 = vsel %vm2762, %v2743, %v2761
    %vm2764 = vcmp.eq.f32.partialorder %v2743, 0.0
    %v2765 = vand.u32 %v2743, 2147483648
    %v2766 = vsel %vm2764, %v2765, %v2763
    %v2767 = vrsqrt.pop %v2744
    %v2768 = vmul.f32 %v2744, %v2767
    %vm2769 = vcmp.eq.f32.partialorder %v2744, inf
    %v2770 = vsel %vm2769, %v2744, %v2768
    %vm2771 = vcmp.eq.f32.partialorder %v2744, 0.0
    %v2772 = vand.u32 %v2744, 2147483648
    %v2773 = vsel %vm2771, %v2772, %v2770
    %v2774 = vadd.f32 %v2766, 1e-09
    %v2775 = vadd.f32 %v2773, 1e-09
    %v2776 = vrcp.pop %v2774
    %v2777 = vmul.f32 %v2756, %v2776
    %v2778 = vmul.f32 %v2757, %v2776
    %v2779 = vrcp.pop %v2775
    %v2780 = vmul.f32 %v2758, %v2779
    %v2781 = vmul.f32 %v2759, %v2779
    %v2783 = vlaneseq
    %v2784 = vshrl.u32 %v2783, 7
    %v2785 = vsub.s32 0, %v2784
    %v2786 = vrot.slane %v2720, %v2785
    %v2787 = vlaneseq
    %v2788 = vshrl.u32 %v2787, 7
    %v2789 = vsub.s32 1, %v2788
    %v2790 = vrot.slane %v2720, %v2789
    %v2793 = vadd.f32 %v2777, %v2786
    %v2794 = vadd.f32 %v2778, %v2790
    %v2795 = vadd.f32 %v2780, %v2786
    %v2796 = vadd.f32 %v2781, %v2790
    %v2797 = vld [vmem:[#allocation11] sm:$0xff]
    %v2798 = vld [vmem:[#allocation11 + $0x8] sm:$0xff]
    %v2799 = vld [vmem:[#allocation11 + $0x10] sm:$0xff]
    %v2800 = vld [vmem:[#allocation11 + $0x18] sm:$0xff]
    %v2801 = vld [vmem:[#allocation11 + $0x20] sm:$0xff]
    %v2802 = vld [vmem:[#allocation11 + $0x28] sm:$0xff]
    %v2803 = vld [vmem:[#allocation11 + $0x30] sm:$0xff]
    %v2804 = vld [vmem:[#allocation11 + $0x38] sm:$0xff]
    %v2805 = vld [vmem:[#allocation11 + $0x40] sm:$0xff]
    %v2806 = vld [vmem:[#allocation11 + $0x48] sm:$0xff]
    %v2807 = vld [vmem:[#allocation11 + $0x50] sm:$0xff]
    %v2808 = vld [vmem:[#allocation11 + $0x58] sm:$0xff]
    %v2809 = vld [vmem:[#allocation11 + $0x60] sm:$0xff]
    %v2810 = vld [vmem:[#allocation11 + $0x68] sm:$0xff]
    %v2811 = vld [vmem:[#allocation11 + $0x70] sm:$0xff]
    %v2812 = vld [vmem:[#allocation11 + $0x78] sm:$0xff]
    %v2813 = vld [vmem:[#allocation11 + $0x80] sm:$0xff]
    %v2814 = vld [vmem:[#allocation11 + $0x88] sm:$0xff]
    %v2815 = vld [vmem:[#allocation11 + $0x90] sm:$0xff]
    %v2816 = vld [vmem:[#allocation11 + $0x98] sm:$0xff]
    %v2817 = vld [vmem:[#allocation11 + $0xa0] sm:$0xff]
    %v2818 = vld [vmem:[#allocation11 + $0xa8] sm:$0xff]
    %v2819 = vld [vmem:[#allocation11 + $0xb0] sm:$0xff]
    %v2820 = vld [vmem:[#allocation11 + $0xb8] sm:$0xff]
    %v2821 = vld [vmem:[#allocation11 + $0xc0] sm:$0xff]
    %v2822 = vld [vmem:[#allocation11 + $0xc8] sm:$0xff]
    %v2823 = vld [vmem:[#allocation11 + $0xd0] sm:$0xff]
    %v2824 = vld [vmem:[#allocation11 + $0xd8] sm:$0xff]
    %v2825 = vld [vmem:[#allocation11 + $0xe0] sm:$0xff]
    %v2826 = vld [vmem:[#allocation11 + $0xe8] sm:$0xff]
    %v2827 = vld [vmem:[#allocation11 + $0xf0] sm:$0xff]
    %v2828 = vld [vmem:[#allocation11 + $0xf8] sm:$0xff]
    %v2829 = vld [vmem:[#allocation11 + $0x100] sm:$0xff]
    %v2830 = vld [vmem:[#allocation11 + $0x108] sm:$0xff]
    %v2831 = vld [vmem:[#allocation11 + $0x110] sm:$0xff]
    %v2832 = vld [vmem:[#allocation11 + $0x118] sm:$0xff]
    %v2833 = vld [vmem:[#allocation11 + $0x120] sm:$0xff]
    %v2834 = vld [vmem:[#allocation11 + $0x128] sm:$0xff]
    %v2835 = vld [vmem:[#allocation11 + $0x130] sm:$0xff]
    %v2836 = vld [vmem:[#allocation11 + $0x138] sm:$0xff]
    %v2837 = vld [vmem:[#allocation11 + $0x140] sm:$0xff]
    %v2838 = vld [vmem:[#allocation11 + $0x148] sm:$0xff]
    %v2839 = vld [vmem:[#allocation11 + $0x150] sm:$0xff]
    %v2840 = vld [vmem:[#allocation11 + $0x158] sm:$0xff]
    %v2841 = vld [vmem:[#allocation11 + $0x160] sm:$0xff]
    %v2842 = vld [vmem:[#allocation11 + $0x168] sm:$0xff]
    %v2843 = vld [vmem:[#allocation11 + $0x170] sm:$0xff]
    %v2844 = vld [vmem:[#allocation11 + $0x178] sm:$0xff]
    %v2845 = vld [vmem:[#allocation11 + $0x180] sm:$0xff]
    %v2846 = vld [vmem:[#allocation11 + $0x188] sm:$0xff]
    %v2847 = vld [vmem:[#allocation11 + $0x190] sm:$0xff]
    %v2848 = vld [vmem:[#allocation11 + $0x198] sm:$0xff]
    %v2849 = vld [vmem:[#allocation11 + $0x1a0] sm:$0xff]
    %v2850 = vld [vmem:[#allocation11 + $0x1a8] sm:$0xff]
    %v2851 = vld [vmem:[#allocation11 + $0x1b0] sm:$0xff]
    %v2852 = vld [vmem:[#allocation11 + $0x1b8] sm:$0xff]
    %v2853 = vld [vmem:[#allocation11 + $0x1c0] sm:$0xff]
    %v2854 = vld [vmem:[#allocation11 + $0x1c8] sm:$0xff]
    %v2855 = vld [vmem:[#allocation11 + $0x1d0] sm:$0xff]
    %v2856 = vld [vmem:[#allocation11 + $0x1d8] sm:$0xff]
    %v2857 = vld [vmem:[#allocation11 + $0x1e0] sm:$0xff]
    %v2858 = vld [vmem:[#allocation11 + $0x1e8] sm:$0xff]
    %v2859 = vld [vmem:[#allocation11 + $0x1f0] sm:$0xff]
    %v2860 = vld [vmem:[#allocation11 + $0x1f8] sm:$0xff]
    %v2861 = vld [vmem:[#allocation11 + $0x200] sm:$0xff]
    %v2862 = vld [vmem:[#allocation11 + $0x208] sm:$0xff]
    %v2863 = vld [vmem:[#allocation11 + $0x210] sm:$0xff]
    %v2864 = vld [vmem:[#allocation11 + $0x218] sm:$0xff]
    %v2865 = vld [vmem:[#allocation11 + $0x220] sm:$0xff]
    %v2866 = vld [vmem:[#allocation11 + $0x228] sm:$0xff]
    %v2867 = vld [vmem:[#allocation11 + $0x230] sm:$0xff]
    %v2868 = vld [vmem:[#allocation11 + $0x238] sm:$0xff]
    %v2869 = vld [vmem:[#allocation11 + $0x240] sm:$0xff]
    %v2870 = vld [vmem:[#allocation11 + $0x248] sm:$0xff]
    %v2871 = vld [vmem:[#allocation11 + $0x250] sm:$0xff]
    %v2872 = vld [vmem:[#allocation11 + $0x258] sm:$0xff]
    %v2873 = vld [vmem:[#allocation11 + $0x260] sm:$0xff]
    %v2874 = vld [vmem:[#allocation11 + $0x268] sm:$0xff]
    %v2875 = vld [vmem:[#allocation11 + $0x270] sm:$0xff]
    %v2876 = vld [vmem:[#allocation11 + $0x278] sm:$0xff]
    %v2877 = vld [vmem:[#allocation11 + $0x280] sm:$0xff]
    %v2878 = vld [vmem:[#allocation11 + $0x288] sm:$0xff]
    %v2879 = vld [vmem:[#allocation11 + $0x290] sm:$0xff]
    %v2880 = vld [vmem:[#allocation11 + $0x298] sm:$0xff]
    %v2881 = vld [vmem:[#allocation11 + $0x2a0] sm:$0xff]
    %v2882 = vld [vmem:[#allocation11 + $0x2a8] sm:$0xff]
    %v2883 = vld [vmem:[#allocation11 + $0x2b0] sm:$0xff]
    %v2884 = vld [vmem:[#allocation11 + $0x2b8] sm:$0xff]
    %v2885 = vld [vmem:[#allocation11 + $0x2c0] sm:$0xff]
    %v2886 = vld [vmem:[#allocation11 + $0x2c8] sm:$0xff]
    %v2887 = vld [vmem:[#allocation11 + $0x2d0] sm:$0xff]
    %v2888 = vld [vmem:[#allocation11 + $0x2d8] sm:$0xff]
    %v2889 = vld [vmem:[#allocation11 + $0x2e0] sm:$0xff]
    %v2890 = vld [vmem:[#allocation11 + $0x2e8] sm:$0xff]
    %v2891 = vld [vmem:[#allocation11 + $0x2f0] sm:$0xff]
    %v2892 = vld [vmem:[#allocation11 + $0x2f8] sm:$0xff]
    %v2893 = vld [vmem:[#allocation11 + $0x300] sm:$0xff]
    %v2894 = vld [vmem:[#allocation11 + $0x308] sm:$0xff]
    %v2895 = vld [vmem:[#allocation11 + $0x310] sm:$0xff]
    %v2896 = vld [vmem:[#allocation11 + $0x318] sm:$0xff]
    %v2897 = vld [vmem:[#allocation11 + $0x320] sm:$0xff]
    %v2898 = vld [vmem:[#allocation11 + $0x328] sm:$0xff]
    %v2899 = vld [vmem:[#allocation11 + $0x330] sm:$0xff]
    %v2900 = vld [vmem:[#allocation11 + $0x338] sm:$0xff]
    %v2901 = vld [vmem:[#allocation11 + $0x340] sm:$0xff]
    %v2902 = vld [vmem:[#allocation11 + $0x348] sm:$0xff]
    %v2903 = vld [vmem:[#allocation11 + $0x350] sm:$0xff]
    %v2904 = vld [vmem:[#allocation11 + $0x358] sm:$0xff]
    %v2905 = vld [vmem:[#allocation11 + $0x360] sm:$0xff]
    %v2906 = vld [vmem:[#allocation11 + $0x368] sm:$0xff]
    %v2907 = vld [vmem:[#allocation11 + $0x370] sm:$0xff]
    %v2908 = vld [vmem:[#allocation11 + $0x378] sm:$0xff]
    %v2909 = vld [vmem:[#allocation11 + $0x380] sm:$0xff]
    %v2910 = vld [vmem:[#allocation11 + $0x388] sm:$0xff]
    %v2911 = vld [vmem:[#allocation11 + $0x390] sm:$0xff]
    %v2912 = vld [vmem:[#allocation11 + $0x398] sm:$0xff]
    %v2913 = vld [vmem:[#allocation11 + $0x3a0] sm:$0xff]
    %v2914 = vld [vmem:[#allocation11 + $0x3a8] sm:$0xff]
    %v2915 = vld [vmem:[#allocation11 + $0x3b0] sm:$0xff]
    %v2916 = vld [vmem:[#allocation11 + $0x3b8] sm:$0xff]
    %v2917 = vld [vmem:[#allocation11 + $0x3c0] sm:$0xff]
    %v2918 = vld [vmem:[#allocation11 + $0x3c8] sm:$0xff]
    %v2919 = vld [vmem:[#allocation11 + $0x3d0] sm:$0xff]
    %v2920 = vld [vmem:[#allocation11 + $0x3d8] sm:$0xff]
    %v2921 = vld [vmem:[#allocation11 + $0x3e0] sm:$0xff]
    %v2922 = vld [vmem:[#allocation11 + $0x3e8] sm:$0xff]
    %v2923 = vld [vmem:[#allocation11 + $0x3f0] sm:$0xff]
    %v2924 = vld [vmem:[#allocation11 + $0x3f8] sm:$0xff]
    %v2925 = vld [vmem:[#allocation11 + $0x400] sm:$0xff]
    %v2926 = vld [vmem:[#allocation11 + $0x408] sm:$0xff]
    %v2927 = vld [vmem:[#allocation11 + $0x410] sm:$0xff]
    %v2928 = vld [vmem:[#allocation11 + $0x418] sm:$0xff]
    %v2929 = vld [vmem:[#allocation11 + $0x420] sm:$0xff]
    %v2930 = vld [vmem:[#allocation11 + $0x428] sm:$0xff]
    %v2931 = vld [vmem:[#allocation11 + $0x430] sm:$0xff]
    %v2932 = vld [vmem:[#allocation11 + $0x438] sm:$0xff]
    %v2933 = vld [vmem:[#allocation11 + $0x440] sm:$0xff]
    %v2934 = vld [vmem:[#allocation11 + $0x448] sm:$0xff]
    %v2935 = vld [vmem:[#allocation11 + $0x450] sm:$0xff]
    %v2936 = vld [vmem:[#allocation11 + $0x458] sm:$0xff]
    %v2937 = vld [vmem:[#allocation11 + $0x460] sm:$0xff]
    %v2938 = vld [vmem:[#allocation11 + $0x468] sm:$0xff]
    %v2939 = vld [vmem:[#allocation11 + $0x470] sm:$0xff]
    %v2940 = vld [vmem:[#allocation11 + $0x478] sm:$0xff]
    %v2941 = vld [vmem:[#allocation11 + $0x480] sm:$0xff]
    %v2942 = vld [vmem:[#allocation11 + $0x488] sm:$0xff]
    %v2943 = vld [vmem:[#allocation11 + $0x490] sm:$0xff]
    %v2944 = vld [vmem:[#allocation11 + $0x498] sm:$0xff]
    %v2945 = vld [vmem:[#allocation11 + $0x4a0] sm:$0xff]
    %v2946 = vld [vmem:[#allocation11 + $0x4a8] sm:$0xff]
    %v2947 = vld [vmem:[#allocation11 + $0x4b0] sm:$0xff]
    %v2948 = vld [vmem:[#allocation11 + $0x4b8] sm:$0xff]
    %v2949 = vld [vmem:[#allocation11 + $0x4c0] sm:$0xff]
    %v2950 = vld [vmem:[#allocation11 + $0x4c8] sm:$0xff]
    %v2951 = vld [vmem:[#allocation11 + $0x4d0] sm:$0xff]
    %v2952 = vld [vmem:[#allocation11 + $0x4d8] sm:$0xff]
    %v2953 = vld [vmem:[#allocation11 + $0x4e0] sm:$0xff]
    %v2954 = vld [vmem:[#allocation11 + $0x4e8] sm:$0xff]
    %v2955 = vld [vmem:[#allocation11 + $0x4f0] sm:$0xff]
    %v2956 = vld [vmem:[#allocation11 + $0x4f8] sm:$0xff]
    %v2957 = vld [vmem:[#allocation11 + $0x500] sm:$0xff]
    %v2958 = vld [vmem:[#allocation11 + $0x508] sm:$0xff]
    %v2959 = vld [vmem:[#allocation11 + $0x510] sm:$0xff]
    %v2960 = vld [vmem:[#allocation11 + $0x518] sm:$0xff]
    %v2961 = vld [vmem:[#allocation11 + $0x520] sm:$0xff]
    %v2962 = vld [vmem:[#allocation11 + $0x528] sm:$0xff]
    %v2963 = vld [vmem:[#allocation11 + $0x530] sm:$0xff]
    %v2964 = vld [vmem:[#allocation11 + $0x538] sm:$0xff]
    %v2965 = vld [vmem:[#allocation11 + $0x540] sm:$0xff]
    %v2966 = vld [vmem:[#allocation11 + $0x548] sm:$0xff]
    %v2967 = vld [vmem:[#allocation11 + $0x550] sm:$0xff]
    %v2968 = vld [vmem:[#allocation11 + $0x558] sm:$0xff]
    %v2969 = vld [vmem:[#allocation11 + $0x560] sm:$0xff]
    %v2970 = vld [vmem:[#allocation11 + $0x568] sm:$0xff]
    %v2971 = vld [vmem:[#allocation11 + $0x570] sm:$0xff]
    %v2972 = vld [vmem:[#allocation11 + $0x578] sm:$0xff]
    %v2973 = vld [vmem:[#allocation11 + $0x580] sm:$0xff]
    %v2974 = vld [vmem:[#allocation11 + $0x588] sm:$0xff]
    %v2975 = vld [vmem:[#allocation11 + $0x590] sm:$0xff]
    %v2976 = vld [vmem:[#allocation11 + $0x598] sm:$0xff]
    %v2977 = vld [vmem:[#allocation11 + $0x5a0] sm:$0xff]
    %v2978 = vld [vmem:[#allocation11 + $0x5a8] sm:$0xff]
    %v2979 = vld [vmem:[#allocation11 + $0x5b0] sm:$0xff]
    %v2980 = vld [vmem:[#allocation11 + $0x5b8] sm:$0xff]
    %v2981 = vld [vmem:[#allocation11 + $0x5c0] sm:$0xff]
    %v2982 = vld [vmem:[#allocation11 + $0x5c8] sm:$0xff]
    %v2983 = vld [vmem:[#allocation11 + $0x5d0] sm:$0xff]
    %v2984 = vld [vmem:[#allocation11 + $0x5d8] sm:$0xff]
    %v2985 = vld [vmem:[#allocation11 + $0x5e0] sm:$0xff]
    %v2986 = vld [vmem:[#allocation11 + $0x5e8] sm:$0xff]
    %v2987 = vld [vmem:[#allocation11 + $0x5f0] sm:$0xff]
    %v2988 = vld [vmem:[#allocation11 + $0x5f8] sm:$0xff]
    %v2989 = vld [vmem:[#allocation11 + $0x600] sm:$0xff]
    %v2990 = vld [vmem:[#allocation11 + $0x608] sm:$0xff]
    %v2991 = vld [vmem:[#allocation11 + $0x610] sm:$0xff]
    %v2992 = vld [vmem:[#allocation11 + $0x618] sm:$0xff]
    %v2993 = vld [vmem:[#allocation11 + $0x620] sm:$0xff]
    %v2994 = vld [vmem:[#allocation11 + $0x628] sm:$0xff]
    %v2995 = vld [vmem:[#allocation11 + $0x630] sm:$0xff]
    %v2996 = vld [vmem:[#allocation11 + $0x638] sm:$0xff]
    %v2997 = vld [vmem:[#allocation11 + $0x640] sm:$0xff]
    %v2998 = vld [vmem:[#allocation11 + $0x648] sm:$0xff]
    %v2999 = vld [vmem:[#allocation11 + $0x650] sm:$0xff]
    %v3000 = vld [vmem:[#allocation11 + $0x658] sm:$0xff]
    %v3001 = vld [vmem:[#allocation11 + $0x660] sm:$0xff]
    %v3002 = vld [vmem:[#allocation11 + $0x668] sm:$0xff]
    %v3003 = vld [vmem:[#allocation11 + $0x670] sm:$0xff]
    %v3004 = vld [vmem:[#allocation11 + $0x678] sm:$0xff]
    %v3005 = vld [vmem:[#allocation11 + $0x680] sm:$0xff]
    %v3006 = vld [vmem:[#allocation11 + $0x688] sm:$0xff]
    %v3007 = vld [vmem:[#allocation11 + $0x690] sm:$0xff]
    %v3008 = vld [vmem:[#allocation11 + $0x698] sm:$0xff]
    %v3009 = vld [vmem:[#allocation11 + $0x6a0] sm:$0xff]
    %v3010 = vld [vmem:[#allocation11 + $0x6a8] sm:$0xff]
    %v3011 = vld [vmem:[#allocation11 + $0x6b0] sm:$0xff]
    %v3012 = vld [vmem:[#allocation11 + $0x6b8] sm:$0xff]
    %v3013 = vld [vmem:[#allocation11 + $0x6c0] sm:$0xff]
    %v3014 = vld [vmem:[#allocation11 + $0x6c8] sm:$0xff]
    %v3015 = vld [vmem:[#allocation11 + $0x6d0] sm:$0xff]
    %v3016 = vld [vmem:[#allocation11 + $0x6d8] sm:$0xff]
    %v3017 = vld [vmem:[#allocation11 + $0x6e0] sm:$0xff]
    %v3018 = vld [vmem:[#allocation11 + $0x6e8] sm:$0xff]
    %v3019 = vld [vmem:[#allocation11 + $0x6f0] sm:$0xff]
    %v3020 = vld [vmem:[#allocation11 + $0x6f8] sm:$0xff]
    %v3021 = vld [vmem:[#allocation11 + $0x700] sm:$0xff]
    %v3022 = vld [vmem:[#allocation11 + $0x708] sm:$0xff]
    %v3023 = vld [vmem:[#allocation11 + $0x710] sm:$0xff]
    %v3024 = vld [vmem:[#allocation11 + $0x718] sm:$0xff]
    %v3025 = vld [vmem:[#allocation11 + $0x720] sm:$0xff]
    %v3026 = vld [vmem:[#allocation11 + $0x728] sm:$0xff]
    %v3027 = vld [vmem:[#allocation11 + $0x730] sm:$0xff]
    %v3028 = vld [vmem:[#allocation11 + $0x738] sm:$0xff]
    %v3029 = vld [vmem:[#allocation11 + $0x740] sm:$0xff]
    %v3030 = vld [vmem:[#allocation11 + $0x748] sm:$0xff]
    %v3031 = vld [vmem:[#allocation11 + $0x750] sm:$0xff]
    %v3032 = vld [vmem:[#allocation11 + $0x758] sm:$0xff]
    %v3033 = vld [vmem:[#allocation11 + $0x760] sm:$0xff]
    %v3034 = vld [vmem:[#allocation11 + $0x768] sm:$0xff]
    %v3035 = vld [vmem:[#allocation11 + $0x770] sm:$0xff]
    %v3036 = vld [vmem:[#allocation11 + $0x778] sm:$0xff]
    %v3037 = vld [vmem:[#allocation11 + $0x780] sm:$0xff]
    %v3038 = vld [vmem:[#allocation11 + $0x788] sm:$0xff]
    %v3039 = vld [vmem:[#allocation11 + $0x790] sm:$0xff]
    %v3040 = vld [vmem:[#allocation11 + $0x798] sm:$0xff]
    %v3041 = vld [vmem:[#allocation11 + $0x7a0] sm:$0xff]
    %v3042 = vld [vmem:[#allocation11 + $0x7a8] sm:$0xff]
    %v3043 = vld [vmem:[#allocation11 + $0x7b0] sm:$0xff]
    %v3044 = vld [vmem:[#allocation11 + $0x7b8] sm:$0xff]
    %v3045 = vld [vmem:[#allocation11 + $0x7c0] sm:$0xff]
    %v3046 = vld [vmem:[#allocation11 + $0x7c8] sm:$0xff]
    %v3047 = vld [vmem:[#allocation11 + $0x7d0] sm:$0xff]
    %v3048 = vld [vmem:[#allocation11 + $0x7d8] sm:$0xff]
    %v3049 = vld [vmem:[#allocation11 + $0x7e0] sm:$0xff]
    %v3050 = vld [vmem:[#allocation11 + $0x7e8] sm:$0xff]
    %v3051 = vld [vmem:[#allocation11 + $0x7f0] sm:$0xff]
    %v3052 = vld [vmem:[#allocation11 + $0x7f8] sm:$0xff]
    %v3053 = vld [vmem:[%s27] sm:$0xff]
    %3054 = vmatprep.subr.mxu0 %v2918
    %3055 = vmatpush1.msra.mxu0 %v2917
    %3056 = vmatprep.subr.mxu0 %v2910
    %3057 = vmatpush1.msra.mxu0 %v2909
    %3058 = vmatprep.subr.mxu0 %v2902
    %3059 = vmatpush1.msra.mxu0 %v2901
    %3060 = vmatprep.subr.mxu0 %v2894
    %3061 = vmatpush1.msra.mxu0 %v2893
    %3062 = vmatprep.subr.mxu0 %v2886
    %3063 = vmatpush1.msra.mxu0 %v2885
    %3064 = vmatprep.subr.mxu0 %v2878
    %3065 = vmatpush1.msra.mxu0 %v2877
    %3066 = vmatprep.subr.mxu0 %v2870
    %3067 = vmatpush1.msra.mxu0 %v2869
    %3068 = vmatprep.subr.mxu0 %v2862
    %3069 = vmatpush1.msra.mxu0 %v2861
    %3070 = vmatprep.subr.mxu0 %v2854
    %3071 = vmatpush1.msra.mxu0 %v2853
    %3072 = vmatprep.subr.mxu0 %v2846
    %3073 = vmatpush1.msra.mxu0 %v2845
    %3074 = vmatprep.subr.mxu0 %v2838
    %3075 = vmatpush1.msra.mxu0 %v2837
    %3076 = vmatprep.subr.mxu0 %v2830
    %3077 = vmatpush1.msra.mxu0 %v2829
    %3078 = vmatprep.subr.mxu0 %v2822
    %3079 = vmatpush1.msra.mxu0 %v2821
    %3080 = vmatprep.subr.mxu0 %v2814
    %3081 = vmatpush1.msra.mxu0 %v2813
    %3082 = vmatprep.subr.mxu0 %v2806
    %3083 = vmatpush1.msra.mxu0 %v2805
    %3084 = vmatprep.subr.mxu0 %v2798
    %3085 = vmatpush1.msra.mxu0 %v2797
    %3086 = vmatprep.subr.mxu0 %v3046
    %3087 = vmatpush2.msra.mxu0 %v3045
    %3088 = vmatprep.subr.mxu0 %v3038
    %3089 = vmatpush2.msra.mxu0 %v3037
    %3090 = vmatprep.subr.mxu0 %v3030
    %3091 = vmatpush2.msra.mxu0 %v3029
    %3092 = vmatprep.subr.mxu0 %v3022
    %3093 = vmatpush2.msra.mxu0 %v3021
    %3094 = vmatprep.subr.mxu0 %v3014
    %3095 = vmatpush2.msra.mxu0 %v3013
    %3096 = vmatprep.subr.mxu0 %v3006
    %3097 = vmatpush2.msra.mxu0 %v3005
    %3098 = vmatprep.subr.mxu0 %v2998
    %3099 = vmatpush2.msra.mxu0 %v2997
    %3100 = vmatprep.subr.mxu0 %v2990
    %3101 = vmatpush2.msra.mxu0 %v2989
    %3102 = vmatprep.subr.mxu0 %v2982
    %3103 = vmatpush2.msra.mxu0 %v2981
    %3104 = vmatprep.subr.mxu0 %v2974
    %3105 = vmatpush2.msra.mxu0 %v2973
    %3106 = vmatprep.subr.mxu0 %v2966
    %3107 = vmatpush2.msra.mxu0 %v2965
    %3108 = vmatprep.subr.mxu0 %v2958
    %3109 = vmatpush2.msra.mxu0 %v2957
    %3110 = vmatprep.subr.mxu0 %v2950
    %3111 = vmatpush2.msra.mxu0 %v2949
    %3112 = vmatprep.subr.mxu0 %v2942
    %3113 = vmatpush2.msra.mxu0 %v2941
    %3114 = vmatprep.subr.mxu0 %v2934
    %3115 = vmatpush2.msra.mxu0 %v2933
    %3116 = vmatprep.subr.mxu0 %v2926
    %3117 = vmatpush2.msra.mxu0 %v2925
    %3118 = vmatprep.mubr.f32.mxu0 %v2794
    %3119 = vmatmul.mubr.f32.gmra.mxu0 %v2793
    %v3120 = vpop.f32.mrf.mxu0
    %v3121 = vadd.f32 0.0, %v3120
    %v3122 = vpop.f32.mrf.mxu0
    %v3123 = vadd.f32 0.0, %v3122
    %3124 = vmatprep.mubr.f32.mxu0 %v2796
    %3125 = vmatmul.mubr.f32.gmra.mxu0 %v2795
    %v3126 = vpop.f32.mrf.mxu0
    %v3127 = vadd.f32 0.0, %v3126
    %v3128 = vpop.f32.mrf.mxu0
    %v3129 = vadd.f32 0.0, %v3128
    %3130 = vdwg.mxu0
    %3131 = vmatprep.subr.mxu0 %v2920
    %3132 = vmatpush1.msra.mxu0 %v2919
    %3133 = vmatprep.subr.mxu0 %v2912
    %3134 = vmatpush1.msra.mxu0 %v2911
    %3135 = vmatprep.subr.mxu0 %v2904
    %3136 = vmatpush1.msra.mxu0 %v2903
    %3137 = vmatprep.subr.mxu0 %v2896
    %3138 = vmatpush1.msra.mxu0 %v2895
    %3139 = vmatprep.subr.mxu0 %v2888
    %3140 = vmatpush1.msra.mxu0 %v2887
    %3141 = vmatprep.subr.mxu0 %v2880
    %3142 = vmatpush1.msra.mxu0 %v2879
    %3143 = vmatprep.subr.mxu0 %v2872
    %3144 = vmatpush1.msra.mxu0 %v2871
    %3145 = vmatprep.subr.mxu0 %v2864
    %3146 = vmatpush1.msra.mxu0 %v2863
    %3147 = vmatprep.subr.mxu0 %v2856
    %3148 = vmatpush1.msra.mxu0 %v2855
    %3149 = vmatprep.subr.mxu0 %v2848
    %3150 = vmatpush1.msra.mxu0 %v2847
    %3151 = vmatprep.subr.mxu0 %v2840
    %3152 = vmatpush1.msra.mxu0 %v2839
    %3153 = vmatprep.subr.mxu0 %v2832
    %3154 = vmatpush1.msra.mxu0 %v2831
    %3155 = vmatprep.subr.mxu0 %v2824
    %3156 = vmatpush1.msra.mxu0 %v2823
    %3157 = vmatprep.subr.mxu0 %v2816
    %3158 = vmatpush1.msra.mxu0 %v2815
    %3159 = vmatprep.subr.mxu0 %v2808
    %3160 = vmatpush1.msra.mxu0 %v2807
    %3161 = vmatprep.subr.mxu0 %v2800
    %3162 = vmatpush1.msra.mxu0 %v2799
    %3163 = vmatprep.subr.mxu0 %v3048
    %3164 = vmatpush2.msra.mxu0 %v3047
    %3165 = vmatprep.subr.mxu0 %v3040
    %3166 = vmatpush2.msra.mxu0 %v3039
    %3167 = vmatprep.subr.mxu0 %v3032
    %3168 = vmatpush2.msra.mxu0 %v3031
    %3169 = vmatprep.subr.mxu0 %v3024
    %3170 = vmatpush2.msra.mxu0 %v3023
    %3171 = vmatprep.subr.mxu0 %v3016
    %3172 = vmatpush2.msra.mxu0 %v3015
    %3173 = vmatprep.subr.mxu0 %v3008
    %3174 = vmatpush2.msra.mxu0 %v3007
    %3175 = vmatprep.subr.mxu0 %v3000
    %3176 = vmatpush2.msra.mxu0 %v2999
    %3177 = vmatprep.subr.mxu0 %v2992
    %3178 = vmatpush2.msra.mxu0 %v2991
    %3179 = vmatprep.subr.mxu0 %v2984
    %3180 = vmatpush2.msra.mxu0 %v2983
    %3181 = vmatprep.subr.mxu0 %v2976
    %3182 = vmatpush2.msra.mxu0 %v2975
    %3183 = vmatprep.subr.mxu0 %v2968
    %3184 = vmatpush2.msra.mxu0 %v2967
    %3185 = vmatprep.subr.mxu0 %v2960
    %3186 = vmatpush2.msra.mxu0 %v2959
    %3187 = vmatprep.subr.mxu0 %v2952
    %3188 = vmatpush2.msra.mxu0 %v2951
    %3189 = vmatprep.subr.mxu0 %v2944
    %3190 = vmatpush2.msra.mxu0 %v2943
    %3191 = vmatprep.subr.mxu0 %v2936
    %3192 = vmatpush2.msra.mxu0 %v2935
    %3193 = vmatprep.subr.mxu0 %v2928
    %3194 = vmatpush2.msra.mxu0 %v2927
    %3195 = vmatprep.mubr.f32.mxu0 %v2794
    %3196 = vmatmul.mubr.f32.gmra.mxu0 %v2793
    %v3197 = vpop.f32.mrf.mxu0
    %v3198 = vadd.f32 0.0, %v3197
    %v3199 = vpop.f32.mrf.mxu0
    %v3200 = vadd.f32 0.0, %v3199
    %3201 = vmatprep.mubr.f32.mxu0 %v2796
    %3202 = vmatmul.mubr.f32.gmra.mxu0 %v2795
    %v3203 = vpop.f32.mrf.mxu0
    %v3204 = vadd.f32 0.0, %v3203
    %v3205 = vpop.f32.mrf.mxu0
    %v3206 = vadd.f32 0.0, %v3205
    %3207 = vdwg.mxu0
    %3208 = vmatprep.subr.mxu0 %v2922
    %3209 = vmatpush1.msra.mxu0 %v2921
    %3210 = vmatprep.subr.mxu0 %v2914
    %3211 = vmatpush1.msra.mxu0 %v2913
    %3212 = vmatprep.subr.mxu0 %v2906
    %3213 = vmatpush1.msra.mxu0 %v2905
    %3214 = vmatprep.subr.mxu0 %v2898
    %3215 = vmatpush1.msra.mxu0 %v2897
    %3216 = vmatprep.subr.mxu0 %v2890
    %3217 = vmatpush1.msra.mxu0 %v2889
    %3218 = vmatprep.subr.mxu0 %v2882
    %3219 = vmatpush1.msra.mxu0 %v2881
    %3220 = vmatprep.subr.mxu0 %v2874
    %3221 = vmatpush1.msra.mxu0 %v2873
    %3222 = vmatprep.subr.mxu0 %v2866
    %3223 = vmatpush1.msra.mxu0 %v2865
    %3224 = vmatprep.subr.mxu0 %v2858
    %3225 = vmatpush1.msra.mxu0 %v2857
    %3226 = vmatprep.subr.mxu0 %v2850
    %3227 = vmatpush1.msra.mxu0 %v2849
    %3228 = vmatprep.subr.mxu0 %v2842
    %3229 = vmatpush1.msra.mxu0 %v2841
    %3230 = vmatprep.subr.mxu0 %v2834
    %3231 = vmatpush1.msra.mxu0 %v2833
    %3232 = vmatprep.subr.mxu0 %v2826
    %3233 = vmatpush1.msra.mxu0 %v2825
    %3234 = vmatprep.subr.mxu0 %v2818
    %3235 = vmatpush1.msra.mxu0 %v2817
    %3236 = vmatprep.subr.mxu0 %v2810
    %3237 = vmatpush1.msra.mxu0 %v2809
    %3238 = vmatprep.subr.mxu0 %v2802
    %3239 = vmatpush1.msra.mxu0 %v2801
    %3240 = vmatprep.subr.mxu0 %v3050
    %3241 = vmatpush2.msra.mxu0 %v3049
    %3242 = vmatprep.subr.mxu0 %v3042
    %3243 = vmatpush2.msra.mxu0 %v3041
    %3244 = vmatprep.subr.mxu0 %v3034
    %3245 = vmatpush2.msra.mxu0 %v3033
    %3246 = vmatprep.subr.mxu0 %v3026
    %3247 = vmatpush2.msra.mxu0 %v3025
    %3248 = vmatprep.subr.mxu0 %v3018
    %3249 = vmatpush2.msra.mxu0 %v3017
    %3250 = vmatprep.subr.mxu0 %v3010
    %3251 = vmatpush2.msra.mxu0 %v3009
    %3252 = vmatprep.subr.mxu0 %v3002
    %3253 = vmatpush2.msra.mxu0 %v3001
    %3254 = vmatprep.subr.mxu0 %v2994
    %3255 = vmatpush2.msra.mxu0 %v2993
    %3256 = vmatprep.subr.mxu0 %v2986
    %3257 = vmatpush2.msra.mxu0 %v2985
    %3258 = vmatprep.subr.mxu0 %v2978
    %3259 = vmatpush2.msra.mxu0 %v2977
    %3260 = vmatprep.subr.mxu0 %v2970
    %3261 = vmatpush2.msra.mxu0 %v2969
    %3262 = vmatprep.subr.mxu0 %v2962
    %3263 = vmatpush2.msra.mxu0 %v2961
    %3264 = vmatprep.subr.mxu0 %v2954
    %3265 = vmatpush2.msra.mxu0 %v2953
    %3266 = vmatprep.subr.mxu0 %v2946
    %3267 = vmatpush2.msra.mxu0 %v2945
    %3268 = vmatprep.subr.mxu0 %v2938
    %3269 = vmatpush2.msra.mxu0 %v2937
    %3270 = vmatprep.subr.mxu0 %v2930
    %3271 = vmatpush2.msra.mxu0 %v2929
    %3272 = vmatprep.mubr.f32.mxu0 %v2794
    %3273 = vmatmul.mubr.f32.gmra.mxu0 %v2793
    %v3274 = vpop.f32.mrf.mxu0
    %v3275 = vadd.f32 0.0, %v3274
    %v3276 = vpop.f32.mrf.mxu0
    %v3277 = vadd.f32 0.0, %v3276
    %3278 = vmatprep.mubr.f32.mxu0 %v2796
    %3279 = vmatmul.mubr.f32.gmra.mxu0 %v2795
    %v3280 = vpop.f32.mrf.mxu0
    %v3281 = vadd.f32 0.0, %v3280
    %v3282 = vpop.f32.mrf.mxu0
    %v3283 = vadd.f32 0.0, %v3282
    %3284 = vdwg.mxu0
    %3285 = vmatprep.subr.mxu0 %v2924
    %3286 = vmatpush1.msra.mxu0 %v2923
    %3287 = vmatprep.subr.mxu0 %v2916
    %3288 = vmatpush1.msra.mxu0 %v2915
    %3289 = vmatprep.subr.mxu0 %v2908
    %3290 = vmatpush1.msra.mxu0 %v2907
    %3291 = vmatprep.subr.mxu0 %v2900
    %3292 = vmatpush1.msra.mxu0 %v2899
    %3293 = vmatprep.subr.mxu0 %v2892
    %3294 = vmatpush1.msra.mxu0 %v2891
    %3295 = vmatprep.subr.mxu0 %v2884
    %3296 = vmatpush1.msra.mxu0 %v2883
    %3297 = vmatprep.subr.mxu0 %v2876
    %3298 = vmatpush1.msra.mxu0 %v2875
    %3299 = vmatprep.subr.mxu0 %v2868
    %3300 = vmatpush1.msra.mxu0 %v2867
    %3301 = vmatprep.subr.mxu0 %v2860
    %3302 = vmatpush1.msra.mxu0 %v2859
    %3303 = vmatprep.subr.mxu0 %v2852
    %3304 = vmatpush1.msra.mxu0 %v2851
    %3305 = vmatprep.subr.mxu0 %v2844
    %3306 = vmatpush1.msra.mxu0 %v2843
    %3307 = vmatprep.subr.mxu0 %v2836
    %3308 = vmatpush1.msra.mxu0 %v2835
    %3309 = vmatprep.subr.mxu0 %v2828
    %3310 = vmatpush1.msra.mxu0 %v2827
    %3311 = vmatprep.subr.mxu0 %v2820
    %3312 = vmatpush1.msra.mxu0 %v2819
    %3313 = vmatprep.subr.mxu0 %v2812
    %3314 = vmatpush1.msra.mxu0 %v2811
    %3315 = vmatprep.subr.mxu0 %v2804
    %3316 = vmatpush1.msra.mxu0 %v2803
    %3317 = vmatprep.subr.mxu0 %v3052
    %3318 = vmatpush2.msra.mxu0 %v3051
    %3319 = vmatprep.subr.mxu0 %v3044
    %3320 = vmatpush2.msra.mxu0 %v3043
    %3321 = vmatprep.subr.mxu0 %v3036
    %3322 = vmatpush2.msra.mxu0 %v3035
    %3323 = vmatprep.subr.mxu0 %v3028
    %3324 = vmatpush2.msra.mxu0 %v3027
    %3325 = vmatprep.subr.mxu0 %v3020
    %3326 = vmatpush2.msra.mxu0 %v3019
    %3327 = vmatprep.subr.mxu0 %v3012
    %3328 = vmatpush2.msra.mxu0 %v3011
    %3329 = vmatprep.subr.mxu0 %v3004
    %3330 = vmatpush2.msra.mxu0 %v3003
    %3331 = vmatprep.subr.mxu0 %v2996
    %3332 = vmatpush2.msra.mxu0 %v2995
    %3333 = vmatprep.subr.mxu0 %v2988
    %3334 = vmatpush2.msra.mxu0 %v2987
    %3335 = vmatprep.subr.mxu0 %v2980
    %3336 = vmatpush2.msra.mxu0 %v2979
    %3337 = vmatprep.subr.mxu0 %v2972
    %3338 = vmatpush2.msra.mxu0 %v2971
    %3339 = vmatprep.subr.mxu0 %v2964
    %3340 = vmatpush2.msra.mxu0 %v2963
    %3341 = vmatprep.subr.mxu0 %v2956
    %3342 = vmatpush2.msra.mxu0 %v2955
    %3343 = vmatprep.subr.mxu0 %v2948
    %3344 = vmatpush2.msra.mxu0 %v2947
    %3345 = vmatprep.subr.mxu0 %v2940
    %3346 = vmatpush2.msra.mxu0 %v2939
    %3347 = vmatprep.subr.mxu0 %v2932
    %3348 = vmatpush2.msra.mxu0 %v2931
    %3349 = vmatprep.mubr.f32.mxu0 %v2794
    %3350 = vmatmul.mubr.f32.gmra.mxu0 %v2793
    %v3351 = vpop.f32.mrf.mxu0
    %v3352 = vadd.f32 0.0, %v3351
    %v3353 = vpop.f32.mrf.mxu0
    %v3354 = vadd.f32 0.0, %v3353
    %3355 = vmatprep.mubr.f32.mxu0 %v2796
    %3356 = vmatmul.mubr.f32.gmra.mxu0 %v2795
    %v3357 = vpop.f32.mrf.mxu0
    %v3358 = vadd.f32 0.0, %v3357
    %v3359 = vpop.f32.mrf.mxu0
    %v3360 = vadd.f32 0.0, %v3359
    %3361 = vdwg.mxu0
    %v3363 = vlaneseq
    %v3364 = vshrl.u32 %v3363, 7
    %v3365 = vsub.s32 0, %v3364
    %v3366 = vrot.slane %v3053, %v3365
    %v3367 = vlaneseq
    %v3368 = vshrl.u32 %v3367, 7
    %v3369 = vsub.s32 1, %v3368
    %v3370 = vrot.slane %v3053, %v3369
    %v3371 = vlaneseq
    %v3372 = vshrl.u32 %v3371, 7
    %v3373 = vsub.s32 2, %v3372
    %v3374 = vrot.slane %v3053, %v3373
    %v3375 = vlaneseq
    %v3376 = vshrl.u32 %v3375, 7
    %v3377 = vsub.s32 3, %v3376
    %v3378 = vrot.slane %v3053, %v3377
    %v3379 = vlaneseq
    %v3380 = vshrl.u32 %v3379, 7
    %v3381 = vsub.s32 4, %v3380
    %v3382 = vrot.slane %v3053, %v3381
    %v3383 = vlaneseq
    %v3384 = vshrl.u32 %v3383, 7
    %v3385 = vsub.s32 5, %v3384
    %v3386 = vrot.slane %v3053, %v3385
    %v3387 = vlaneseq
    %v3388 = vshrl.u32 %v3387, 7
    %v3389 = vsub.s32 6, %v3388
    %v3390 = vrot.slane %v3053, %v3389
    %v3391 = vlaneseq
    %v3392 = vshrl.u32 %v3391, 7
    %v3393 = vsub.s32 7, %v3392
    %v3394 = vrot.slane %v3053, %v3393
    %v3403 = vadd.f32 %v3121, %v3366
    %v3404 = vadd.f32 %v3123, %v3370
    %v3405 = vadd.f32 %v3198, %v3374
    %v3406 = vadd.f32 %v3200, %v3378
    %v3407 = vadd.f32 %v3275, %v3382
    %v3408 = vadd.f32 %v3277, %v3386
    %v3409 = vadd.f32 %v3352, %v3390
    %v3410 = vadd.f32 %v3354, %v3394
    %v3411 = vadd.f32 %v3127, %v3366
    %v3412 = vadd.f32 %v3129, %v3370
    %v3413 = vadd.f32 %v3204, %v3374
    %v3414 = vadd.f32 %v3206, %v3378
    %v3415 = vadd.f32 %v3281, %v3382
    %v3416 = vadd.f32 %v3283, %v3386
    %v3417 = vadd.f32 %v3358, %v3390
    %v3418 = vadd.f32 %v3360, %v3394
    %v3419 = vmul.f32 %v3403, 0.5
    %v3420 = vmul.f32 %v3404, 0.5
    %v3421 = vmul.f32 %v3405, 0.5
    %v3422 = vmul.f32 %v3406, 0.5
    %v3423 = vmul.f32 %v3407, 0.5
    %v3424 = vmul.f32 %v3408, 0.5
    %v3425 = vmul.f32 %v3409, 0.5
    %v3426 = vmul.f32 %v3410, 0.5
    %v3427 = vmul.f32 %v3411, 0.5
    %v3428 = vmul.f32 %v3412, 0.5
    %v3429 = vmul.f32 %v3413, 0.5
    %v3430 = vmul.f32 %v3414, 0.5
    %v3431 = vmul.f32 %v3415, 0.5
    %v3432 = vmul.f32 %v3416, 0.5
    %v3433 = vmul.f32 %v3417, 0.5
    %v3434 = vmul.f32 %v3418, 0.5
    %v3435 = vmul.f32 %v3403, 0.044715
    %v3436 = vmul.f32 %v3404, 0.044715
    %v3437 = vmul.f32 %v3405, 0.044715
    %v3438 = vmul.f32 %v3406, 0.044715
    %v3439 = vmul.f32 %v3407, 0.044715
    %v3440 = vmul.f32 %v3408, 0.044715
    %v3441 = vmul.f32 %v3409, 0.044715
    %v3442 = vmul.f32 %v3410, 0.044715
    %v3443 = vmul.f32 %v3411, 0.044715
    %v3444 = vmul.f32 %v3412, 0.044715
    %v3445 = vmul.f32 %v3413, 0.044715
    %v3446 = vmul.f32 %v3414, 0.044715
    %v3447 = vmul.f32 %v3415, 0.044715
    %v3448 = vmul.f32 %v3416, 0.044715
    %v3449 = vmul.f32 %v3417, 0.044715
    %v3450 = vmul.f32 %v3418, 0.044715
    %v3451 = vmul.f32 %v3435, %v3403
    %v3452 = vmul.f32 %v3436, %v3404
    %v3453 = vmul.f32 %v3437, %v3405
    %v3454 = vmul.f32 %v3438, %v3406
    %v3455 = vmul.f32 %v3439, %v3407
    %v3456 = vmul.f32 %v3440, %v3408
    %v3457 = vmul.f32 %v3441, %v3409
    %v3458 = vmul.f32 %v3442, %v3410
    %v3459 = vmul.f32 %v3443, %v3411
    %v3460 = vmul.f32 %v3444, %v3412
    %v3461 = vmul.f32 %v3445, %v3413
    %v3462 = vmul.f32 %v3446, %v3414
    %v3463 = vmul.f32 %v3447, %v3415
    %v3464 = vmul.f32 %v3448, %v3416
    %v3465 = vmul.f32 %v3449, %v3417
    %v3466 = vmul.f32 %v3450, %v3418
    %v3467 = vmul.f32 %v3451, %v3403
    %v3468 = vmul.f32 %v3452, %v3404
    %v3469 = vmul.f32 %v3453, %v3405
    %v3470 = vmul.f32 %v3454, %v3406
    %v3471 = vmul.f32 %v3455, %v3407
    %v3472 = vmul.f32 %v3456, %v3408
    %v3473 = vmul.f32 %v3457, %v3409
    %v3474 = vmul.f32 %v3458, %v3410
    %v3475 = vmul.f32 %v3459, %v3411
    %v3476 = vmul.f32 %v3460, %v3412
    %v3477 = vmul.f32 %v3461, %v3413
    %v3478 = vmul.f32 %v3462, %v3414
    %v3479 = vmul.f32 %v3463, %v3415
    %v3480 = vmul.f32 %v3464, %v3416
    %v3481 = vmul.f32 %v3465, %v3417
    %v3482 = vmul.f32 %v3466, %v3418
    %v3483 = vadd.f32 %v3403, %v3467
    %v3484 = vadd.f32 %v3404, %v3468
    %v3485 = vadd.f32 %v3405, %v3469
    %v3486 = vadd.f32 %v3406, %v3470
    %v3487 = vadd.f32 %v3407, %v3471
    %v3488 = vadd.f32 %v3408, %v3472
    %v3489 = vadd.f32 %v3409, %v3473
    %v3490 = vadd.f32 %v3410, %v3474
    %v3491 = vadd.f32 %v3411, %v3475
    %v3492 = vadd.f32 %v3412, %v3476
    %v3493 = vadd.f32 %v3413, %v3477
    %v3494 = vadd.f32 %v3414, %v3478
    %v3495 = vadd.f32 %v3415, %v3479
    %v3496 = vadd.f32 %v3416, %v3480
    %v3497 = vadd.f32 %v3417, %v3481
    %v3498 = vadd.f32 %v3418, %v3482
    %v3499 = vmul.f32 %v3483, 0.7978846
    %v3500 = vmul.f32 %v3484, 0.7978846
    %v3501 = vmul.f32 %v3485, 0.7978846
    %v3502 = vmul.f32 %v3486, 0.7978846
    %v3503 = vmul.f32 %v3487, 0.7978846
    %v3504 = vmul.f32 %v3488, 0.7978846
    %v3505 = vmul.f32 %v3489, 0.7978846
    %v3506 = vmul.f32 %v3490, 0.7978846
    %v3507 = vmul.f32 %v3491, 0.7978846
    %v3508 = vmul.f32 %v3492, 0.7978846
    %v3509 = vmul.f32 %v3493, 0.7978846
    %v3510 = vmul.f32 %v3494, 0.7978846
    %v3511 = vmul.f32 %v3495, 0.7978846
    %v3512 = vmul.f32 %v3496, 0.7978846
    %v3513 = vmul.f32 %v3497, 0.7978846
    %v3514 = vmul.f32 %v3498, 0.7978846
    %v3515 = vtanh.pop %v3499
    %v3516 = vtanh.pop %v3500
    %v3517 = vtanh.pop %v3501
    %v3518 = vtanh.pop %v3502
    %v3519 = vtanh.pop %v3503
    %v3520 = vtanh.pop %v3504
    %v3521 = vtanh.pop %v3505
    %v3522 = vtanh.pop %v3506
    %v3523 = vtanh.pop %v3507
    %v3524 = vtanh.pop %v3508
    %v3525 = vtanh.pop %v3509
    %v3526 = vtanh.pop %v3510
    %v3527 = vtanh.pop %v3511
    %v3528 = vtanh.pop %v3512
    %v3529 = vtanh.pop %v3513
    %v3530 = vtanh.pop %v3514
    %v3531 = vadd.f32 %v3515, 1.0
    %v3532 = vadd.f32 %v3516, 1.0
    %v3533 = vadd.f32 %v3517, 1.0
    %v3534 = vadd.f32 %v3518, 1.0
    %v3535 = vadd.f32 %v3519, 1.0
    %v3536 = vadd.f32 %v3520, 1.0
    %v3537 = vadd.f32 %v3521, 1.0
    %v3538 = vadd.f32 %v3522, 1.0
    %v3539 = vadd.f32 %v3523, 1.0
    %v3540 = vadd.f32 %v3524, 1.0
    %v3541 = vadd.f32 %v3525, 1.0
    %v3542 = vadd.f32 %v3526, 1.0
    %v3543 = vadd.f32 %v3527, 1.0
    %v3544 = vadd.f32 %v3528, 1.0
    %v3545 = vadd.f32 %v3529, 1.0
    %v3546 = vadd.f32 %v3530, 1.0
    %v3547 = vmul.f32 %v3419, %v3531
    %v3548 = vmul.f32 %v3420, %v3532
    %v3549 = vmul.f32 %v3421, %v3533
    %v3550 = vmul.f32 %v3422, %v3534
    %v3551 = vmul.f32 %v3423, %v3535
    %v3552 = vmul.f32 %v3424, %v3536
    %v3553 = vmul.f32 %v3425, %v3537
    %v3554 = vmul.f32 %v3426, %v3538
    %v3555 = vmul.f32 %v3427, %v3539
    %v3556 = vmul.f32 %v3428, %v3540
    %v3557 = vmul.f32 %v3429, %v3541
    %v3558 = vmul.f32 %v3430, %v3542
    %v3559 = vmul.f32 %v3431, %v3543
    %v3560 = vmul.f32 %v3432, %v3544
    %v3561 = vmul.f32 %v3433, %v3545
    %v3562 = vmul.f32 %v3434, %v3546
    %v3563 = vld [vmem:[#allocation13] sm:$0xff]
    %v3564 = vld [vmem:[#allocation13 + $0x8] sm:$0xff]
    %v3565 = vld [vmem:[#allocation13 + $0x10] sm:$0xff]
    %v3566 = vld [vmem:[#allocation13 + $0x18] sm:$0xff]
    %v3567 = vld [vmem:[#allocation13 + $0x20] sm:$0xff]
    %v3568 = vld [vmem:[#allocation13 + $0x28] sm:$0xff]
    %v3569 = vld [vmem:[#allocation13 + $0x30] sm:$0xff]
    %v3570 = vld [vmem:[#allocation13 + $0x38] sm:$0xff]
    %v3571 = vld [vmem:[#allocation13 + $0x40] sm:$0xff]
    %v3572 = vld [vmem:[#allocation13 + $0x48] sm:$0xff]
    %v3573 = vld [vmem:[#allocation13 + $0x50] sm:$0xff]
    %v3574 = vld [vmem:[#allocation13 + $0x58] sm:$0xff]
    %v3575 = vld [vmem:[#allocation13 + $0x60] sm:$0xff]
    %v3576 = vld [vmem:[#allocation13 + $0x68] sm:$0xff]
    %v3577 = vld [vmem:[#allocation13 + $0x70] sm:$0xff]
    %v3578 = vld [vmem:[#allocation13 + $0x78] sm:$0xff]
    %v3579 = vld [vmem:[#allocation13 + $0x80] sm:$0xff]
    %v3580 = vld [vmem:[#allocation13 + $0x88] sm:$0xff]
    %v3581 = vld [vmem:[#allocation13 + $0x90] sm:$0xff]
    %v3582 = vld [vmem:[#allocation13 + $0x98] sm:$0xff]
    %v3583 = vld [vmem:[#allocation13 + $0xa0] sm:$0xff]
    %v3584 = vld [vmem:[#allocation13 + $0xa8] sm:$0xff]
    %v3585 = vld [vmem:[#allocation13 + $0xb0] sm:$0xff]
    %v3586 = vld [vmem:[#allocation13 + $0xb8] sm:$0xff]
    %v3587 = vld [vmem:[#allocation13 + $0xc0] sm:$0xff]
    %v3588 = vld [vmem:[#allocation13 + $0xc8] sm:$0xff]
    %v3589 = vld [vmem:[#allocation13 + $0xd0] sm:$0xff]
    %v3590 = vld [vmem:[#allocation13 + $0xd8] sm:$0xff]
    %v3591 = vld [vmem:[#allocation13 + $0xe0] sm:$0xff]
    %v3592 = vld [vmem:[#allocation13 + $0xe8] sm:$0xff]
    %v3593 = vld [vmem:[#allocation13 + $0xf0] sm:$0xff]
    %v3594 = vld [vmem:[#allocation13 + $0xf8] sm:$0xff]
    %v3595 = vld [vmem:[#allocation13 + $0x100] sm:$0xff]
    %v3596 = vld [vmem:[#allocation13 + $0x108] sm:$0xff]
    %v3597 = vld [vmem:[#allocation13 + $0x110] sm:$0xff]
    %v3598 = vld [vmem:[#allocation13 + $0x118] sm:$0xff]
    %v3599 = vld [vmem:[#allocation13 + $0x120] sm:$0xff]
    %v3600 = vld [vmem:[#allocation13 + $0x128] sm:$0xff]
    %v3601 = vld [vmem:[#allocation13 + $0x130] sm:$0xff]
    %v3602 = vld [vmem:[#allocation13 + $0x138] sm:$0xff]
    %v3603 = vld [vmem:[#allocation13 + $0x140] sm:$0xff]
    %v3604 = vld [vmem:[#allocation13 + $0x148] sm:$0xff]
    %v3605 = vld [vmem:[#allocation13 + $0x150] sm:$0xff]
    %v3606 = vld [vmem:[#allocation13 + $0x158] sm:$0xff]
    %v3607 = vld [vmem:[#allocation13 + $0x160] sm:$0xff]
    %v3608 = vld [vmem:[#allocation13 + $0x168] sm:$0xff]
    %v3609 = vld [vmem:[#allocation13 + $0x170] sm:$0xff]
    %v3610 = vld [vmem:[#allocation13 + $0x178] sm:$0xff]
    %v3611 = vld [vmem:[#allocation13 + $0x180] sm:$0xff]
    %v3612 = vld [vmem:[#allocation13 + $0x188] sm:$0xff]
    %v3613 = vld [vmem:[#allocation13 + $0x190] sm:$0xff]
    %v3614 = vld [vmem:[#allocation13 + $0x198] sm:$0xff]
    %v3615 = vld [vmem:[#allocation13 + $0x1a0] sm:$0xff]
    %v3616 = vld [vmem:[#allocation13 + $0x1a8] sm:$0xff]
    %v3617 = vld [vmem:[#allocation13 + $0x1b0] sm:$0xff]
    %v3618 = vld [vmem:[#allocation13 + $0x1b8] sm:$0xff]
    %v3619 = vld [vmem:[#allocation13 + $0x1c0] sm:$0xff]
    %v3620 = vld [vmem:[#allocation13 + $0x1c8] sm:$0xff]
    %v3621 = vld [vmem:[#allocation13 + $0x1d0] sm:$0xff]
    %v3622 = vld [vmem:[#allocation13 + $0x1d8] sm:$0xff]
    %v3623 = vld [vmem:[#allocation13 + $0x1e0] sm:$0xff]
    %v3624 = vld [vmem:[#allocation13 + $0x1e8] sm:$0xff]
    %v3625 = vld [vmem:[#allocation13 + $0x1f0] sm:$0xff]
    %v3626 = vld [vmem:[#allocation13 + $0x1f8] sm:$0xff]
    %v3627 = vld [vmem:[#allocation13 + $0x200] sm:$0xff]
    %v3628 = vld [vmem:[#allocation13 + $0x208] sm:$0xff]
    %v3629 = vld [vmem:[#allocation13 + $0x210] sm:$0xff]
    %v3630 = vld [vmem:[#allocation13 + $0x218] sm:$0xff]
    %v3631 = vld [vmem:[#allocation13 + $0x220] sm:$0xff]
    %v3632 = vld [vmem:[#allocation13 + $0x228] sm:$0xff]
    %v3633 = vld [vmem:[#allocation13 + $0x230] sm:$0xff]
    %v3634 = vld [vmem:[#allocation13 + $0x238] sm:$0xff]
    %v3635 = vld [vmem:[#allocation13 + $0x240] sm:$0xff]
    %v3636 = vld [vmem:[#allocation13 + $0x248] sm:$0xff]
    %v3637 = vld [vmem:[#allocation13 + $0x250] sm:$0xff]
    %v3638 = vld [vmem:[#allocation13 + $0x258] sm:$0xff]
    %v3639 = vld [vmem:[#allocation13 + $0x260] sm:$0xff]
    %v3640 = vld [vmem:[#allocation13 + $0x268] sm:$0xff]
    %v3641 = vld [vmem:[#allocation13 + $0x270] sm:$0xff]
    %v3642 = vld [vmem:[#allocation13 + $0x278] sm:$0xff]
    %v3643 = vld [vmem:[#allocation13 + $0x280] sm:$0xff]
    %v3644 = vld [vmem:[#allocation13 + $0x288] sm:$0xff]
    %v3645 = vld [vmem:[#allocation13 + $0x290] sm:$0xff]
    %v3646 = vld [vmem:[#allocation13 + $0x298] sm:$0xff]
    %v3647 = vld [vmem:[#allocation13 + $0x2a0] sm:$0xff]
    %v3648 = vld [vmem:[#allocation13 + $0x2a8] sm:$0xff]
    %v3649 = vld [vmem:[#allocation13 + $0x2b0] sm:$0xff]
    %v3650 = vld [vmem:[#allocation13 + $0x2b8] sm:$0xff]
    %v3651 = vld [vmem:[#allocation13 + $0x2c0] sm:$0xff]
    %v3652 = vld [vmem:[#allocation13 + $0x2c8] sm:$0xff]
    %v3653 = vld [vmem:[#allocation13 + $0x2d0] sm:$0xff]
    %v3654 = vld [vmem:[#allocation13 + $0x2d8] sm:$0xff]
    %v3655 = vld [vmem:[#allocation13 + $0x2e0] sm:$0xff]
    %v3656 = vld [vmem:[#allocation13 + $0x2e8] sm:$0xff]
    %v3657 = vld [vmem:[#allocation13 + $0x2f0] sm:$0xff]
    %v3658 = vld [vmem:[#allocation13 + $0x2f8] sm:$0xff]
    %v3659 = vld [vmem:[#allocation13 + $0x300] sm:$0xff]
    %v3660 = vld [vmem:[#allocation13 + $0x308] sm:$0xff]
    %v3661 = vld [vmem:[#allocation13 + $0x310] sm:$0xff]
    %v3662 = vld [vmem:[#allocation13 + $0x318] sm:$0xff]
    %v3663 = vld [vmem:[#allocation13 + $0x320] sm:$0xff]
    %v3664 = vld [vmem:[#allocation13 + $0x328] sm:$0xff]
    %v3665 = vld [vmem:[#allocation13 + $0x330] sm:$0xff]
    %v3666 = vld [vmem:[#allocation13 + $0x338] sm:$0xff]
    %v3667 = vld [vmem:[#allocation13 + $0x340] sm:$0xff]
    %v3668 = vld [vmem:[#allocation13 + $0x348] sm:$0xff]
    %v3669 = vld [vmem:[#allocation13 + $0x350] sm:$0xff]
    %v3670 = vld [vmem:[#allocation13 + $0x358] sm:$0xff]
    %v3671 = vld [vmem:[#allocation13 + $0x360] sm:$0xff]
    %v3672 = vld [vmem:[#allocation13 + $0x368] sm:$0xff]
    %v3673 = vld [vmem:[#allocation13 + $0x370] sm:$0xff]
    %v3674 = vld [vmem:[#allocation13 + $0x378] sm:$0xff]
    %v3675 = vld [vmem:[#allocation13 + $0x380] sm:$0xff]
    %v3676 = vld [vmem:[#allocation13 + $0x388] sm:$0xff]
    %v3677 = vld [vmem:[#allocation13 + $0x390] sm:$0xff]
    %v3678 = vld [vmem:[#allocation13 + $0x398] sm:$0xff]
    %v3679 = vld [vmem:[#allocation13 + $0x3a0] sm:$0xff]
    %v3680 = vld [vmem:[#allocation13 + $0x3a8] sm:$0xff]
    %v3681 = vld [vmem:[#allocation13 + $0x3b0] sm:$0xff]
    %v3682 = vld [vmem:[#allocation13 + $0x3b8] sm:$0xff]
    %v3683 = vld [vmem:[#allocation13 + $0x3c0] sm:$0xff]
    %v3684 = vld [vmem:[#allocation13 + $0x3c8] sm:$0xff]
    %v3685 = vld [vmem:[#allocation13 + $0x3d0] sm:$0xff]
    %v3686 = vld [vmem:[#allocation13 + $0x3d8] sm:$0xff]
    %v3687 = vld [vmem:[#allocation13 + $0x3e0] sm:$0xff]
    %v3688 = vld [vmem:[#allocation13 + $0x3e8] sm:$0xff]
    %v3689 = vld [vmem:[#allocation13 + $0x3f0] sm:$0xff]
    %v3690 = vld [vmem:[#allocation13 + $0x3f8] sm:$0xff]
    %v3691 = vld [vmem:[#allocation13 + $0x400] sm:$0xff]
    %v3692 = vld [vmem:[#allocation13 + $0x408] sm:$0xff]
    %v3693 = vld [vmem:[#allocation13 + $0x410] sm:$0xff]
    %v3694 = vld [vmem:[#allocation13 + $0x418] sm:$0xff]
    %v3695 = vld [vmem:[#allocation13 + $0x420] sm:$0xff]
    %v3696 = vld [vmem:[#allocation13 + $0x428] sm:$0xff]
    %v3697 = vld [vmem:[#allocation13 + $0x430] sm:$0xff]
    %v3698 = vld [vmem:[#allocation13 + $0x438] sm:$0xff]
    %v3699 = vld [vmem:[#allocation13 + $0x440] sm:$0xff]
    %v3700 = vld [vmem:[#allocation13 + $0x448] sm:$0xff]
    %v3701 = vld [vmem:[#allocation13 + $0x450] sm:$0xff]
    %v3702 = vld [vmem:[#allocation13 + $0x458] sm:$0xff]
    %v3703 = vld [vmem:[#allocation13 + $0x460] sm:$0xff]
    %v3704 = vld [vmem:[#allocation13 + $0x468] sm:$0xff]
    %v3705 = vld [vmem:[#allocation13 + $0x470] sm:$0xff]
    %v3706 = vld [vmem:[#allocation13 + $0x478] sm:$0xff]
    %v3707 = vld [vmem:[#allocation13 + $0x480] sm:$0xff]
    %v3708 = vld [vmem:[#allocation13 + $0x488] sm:$0xff]
    %v3709 = vld [vmem:[#allocation13 + $0x490] sm:$0xff]
    %v3710 = vld [vmem:[#allocation13 + $0x498] sm:$0xff]
    %v3711 = vld [vmem:[#allocation13 + $0x4a0] sm:$0xff]
    %v3712 = vld [vmem:[#allocation13 + $0x4a8] sm:$0xff]
    %v3713 = vld [vmem:[#allocation13 + $0x4b0] sm:$0xff]
    %v3714 = vld [vmem:[#allocation13 + $0x4b8] sm:$0xff]
    %v3715 = vld [vmem:[#allocation13 + $0x4c0] sm:$0xff]
    %v3716 = vld [vmem:[#allocation13 + $0x4c8] sm:$0xff]
    %v3717 = vld [vmem:[#allocation13 + $0x4d0] sm:$0xff]
    %v3718 = vld [vmem:[#allocation13 + $0x4d8] sm:$0xff]
    %v3719 = vld [vmem:[#allocation13 + $0x4e0] sm:$0xff]
    %v3720 = vld [vmem:[#allocation13 + $0x4e8] sm:$0xff]
    %v3721 = vld [vmem:[#allocation13 + $0x4f0] sm:$0xff]
    %v3722 = vld [vmem:[#allocation13 + $0x4f8] sm:$0xff]
    %v3723 = vld [vmem:[#allocation13 + $0x500] sm:$0xff]
    %v3724 = vld [vmem:[#allocation13 + $0x508] sm:$0xff]
    %v3725 = vld [vmem:[#allocation13 + $0x510] sm:$0xff]
    %v3726 = vld [vmem:[#allocation13 + $0x518] sm:$0xff]
    %v3727 = vld [vmem:[#allocation13 + $0x520] sm:$0xff]
    %v3728 = vld [vmem:[#allocation13 + $0x528] sm:$0xff]
    %v3729 = vld [vmem:[#allocation13 + $0x530] sm:$0xff]
    %v3730 = vld [vmem:[#allocation13 + $0x538] sm:$0xff]
    %v3731 = vld [vmem:[#allocation13 + $0x540] sm:$0xff]
    %v3732 = vld [vmem:[#allocation13 + $0x548] sm:$0xff]
    %v3733 = vld [vmem:[#allocation13 + $0x550] sm:$0xff]
    %v3734 = vld [vmem:[#allocation13 + $0x558] sm:$0xff]
    %v3735 = vld [vmem:[#allocation13 + $0x560] sm:$0xff]
    %v3736 = vld [vmem:[#allocation13 + $0x568] sm:$0xff]
    %v3737 = vld [vmem:[#allocation13 + $0x570] sm:$0xff]
    %v3738 = vld [vmem:[#allocation13 + $0x578] sm:$0xff]
    %v3739 = vld [vmem:[#allocation13 + $0x580] sm:$0xff]
    %v3740 = vld [vmem:[#allocation13 + $0x588] sm:$0xff]
    %v3741 = vld [vmem:[#allocation13 + $0x590] sm:$0xff]
    %v3742 = vld [vmem:[#allocation13 + $0x598] sm:$0xff]
    %v3743 = vld [vmem:[#allocation13 + $0x5a0] sm:$0xff]
    %v3744 = vld [vmem:[#allocation13 + $0x5a8] sm:$0xff]
    %v3745 = vld [vmem:[#allocation13 + $0x5b0] sm:$0xff]
    %v3746 = vld [vmem:[#allocation13 + $0x5b8] sm:$0xff]
    %v3747 = vld [vmem:[#allocation13 + $0x5c0] sm:$0xff]
    %v3748 = vld [vmem:[#allocation13 + $0x5c8] sm:$0xff]
    %v3749 = vld [vmem:[#allocation13 + $0x5d0] sm:$0xff]
    %v3750 = vld [vmem:[#allocation13 + $0x5d8] sm:$0xff]
    %v3751 = vld [vmem:[#allocation13 + $0x5e0] sm:$0xff]
    %v3752 = vld [vmem:[#allocation13 + $0x5e8] sm:$0xff]
    %v3753 = vld [vmem:[#allocation13 + $0x5f0] sm:$0xff]
    %v3754 = vld [vmem:[#allocation13 + $0x5f8] sm:$0xff]
    %v3755 = vld [vmem:[#allocation13 + $0x600] sm:$0xff]
    %v3756 = vld [vmem:[#allocation13 + $0x608] sm:$0xff]
    %v3757 = vld [vmem:[#allocation13 + $0x610] sm:$0xff]
    %v3758 = vld [vmem:[#allocation13 + $0x618] sm:$0xff]
    %v3759 = vld [vmem:[#allocation13 + $0x620] sm:$0xff]
    %v3760 = vld [vmem:[#allocation13 + $0x628] sm:$0xff]
    %v3761 = vld [vmem:[#allocation13 + $0x630] sm:$0xff]
    %v3762 = vld [vmem:[#allocation13 + $0x638] sm:$0xff]
    %v3763 = vld [vmem:[#allocation13 + $0x640] sm:$0xff]
    %v3764 = vld [vmem:[#allocation13 + $0x648] sm:$0xff]
    %v3765 = vld [vmem:[#allocation13 + $0x650] sm:$0xff]
    %v3766 = vld [vmem:[#allocation13 + $0x658] sm:$0xff]
    %v3767 = vld [vmem:[#allocation13 + $0x660] sm:$0xff]
    %v3768 = vld [vmem:[#allocation13 + $0x668] sm:$0xff]
    %v3769 = vld [vmem:[#allocation13 + $0x670] sm:$0xff]
    %v3770 = vld [vmem:[#allocation13 + $0x678] sm:$0xff]
    %v3771 = vld [vmem:[#allocation13 + $0x680] sm:$0xff]
    %v3772 = vld [vmem:[#allocation13 + $0x688] sm:$0xff]
    %v3773 = vld [vmem:[#allocation13 + $0x690] sm:$0xff]
    %v3774 = vld [vmem:[#allocation13 + $0x698] sm:$0xff]
    %v3775 = vld [vmem:[#allocation13 + $0x6a0] sm:$0xff]
    %v3776 = vld [vmem:[#allocation13 + $0x6a8] sm:$0xff]
    %v3777 = vld [vmem:[#allocation13 + $0x6b0] sm:$0xff]
    %v3778 = vld [vmem:[#allocation13 + $0x6b8] sm:$0xff]
    %v3779 = vld [vmem:[#allocation13 + $0x6c0] sm:$0xff]
    %v3780 = vld [vmem:[#allocation13 + $0x6c8] sm:$0xff]
    %v3781 = vld [vmem:[#allocation13 + $0x6d0] sm:$0xff]
    %v3782 = vld [vmem:[#allocation13 + $0x6d8] sm:$0xff]
    %v3783 = vld [vmem:[#allocation13 + $0x6e0] sm:$0xff]
    %v3784 = vld [vmem:[#allocation13 + $0x6e8] sm:$0xff]
    %v3785 = vld [vmem:[#allocation13 + $0x6f0] sm:$0xff]
    %v3786 = vld [vmem:[#allocation13 + $0x6f8] sm:$0xff]
    %v3787 = vld [vmem:[#allocation13 + $0x700] sm:$0xff]
    %v3788 = vld [vmem:[#allocation13 + $0x708] sm:$0xff]
    %v3789 = vld [vmem:[#allocation13 + $0x710] sm:$0xff]
    %v3790 = vld [vmem:[#allocation13 + $0x718] sm:$0xff]
    %v3791 = vld [vmem:[#allocation13 + $0x720] sm:$0xff]
    %v3792 = vld [vmem:[#allocation13 + $0x728] sm:$0xff]
    %v3793 = vld [vmem:[#allocation13 + $0x730] sm:$0xff]
    %v3794 = vld [vmem:[#allocation13 + $0x738] sm:$0xff]
    %v3795 = vld [vmem:[#allocation13 + $0x740] sm:$0xff]
    %v3796 = vld [vmem:[#allocation13 + $0x748] sm:$0xff]
    %v3797 = vld [vmem:[#allocation13 + $0x750] sm:$0xff]
    %v3798 = vld [vmem:[#allocation13 + $0x758] sm:$0xff]
    %v3799 = vld [vmem:[#allocation13 + $0x760] sm:$0xff]
    %v3800 = vld [vmem:[#allocation13 + $0x768] sm:$0xff]
    %v3801 = vld [vmem:[#allocation13 + $0x770] sm:$0xff]
    %v3802 = vld [vmem:[#allocation13 + $0x778] sm:$0xff]
    %v3803 = vld [vmem:[#allocation13 + $0x780] sm:$0xff]
    %v3804 = vld [vmem:[#allocation13 + $0x788] sm:$0xff]
    %v3805 = vld [vmem:[#allocation13 + $0x790] sm:$0xff]
    %v3806 = vld [vmem:[#allocation13 + $0x798] sm:$0xff]
    %v3807 = vld [vmem:[#allocation13 + $0x7a0] sm:$0xff]
    %v3808 = vld [vmem:[#allocation13 + $0x7a8] sm:$0xff]
    %v3809 = vld [vmem:[#allocation13 + $0x7b0] sm:$0xff]
    %v3810 = vld [vmem:[#allocation13 + $0x7b8] sm:$0xff]
    %v3811 = vld [vmem:[#allocation13 + $0x7c0] sm:$0xff]
    %v3812 = vld [vmem:[#allocation13 + $0x7c8] sm:$0xff]
    %v3813 = vld [vmem:[#allocation13 + $0x7d0] sm:$0xff]
    %v3814 = vld [vmem:[#allocation13 + $0x7d8] sm:$0xff]
    %v3815 = vld [vmem:[#allocation13 + $0x7e0] sm:$0xff]
    %v3816 = vld [vmem:[#allocation13 + $0x7e8] sm:$0xff]
    %v3817 = vld [vmem:[#allocation13 + $0x7f0] sm:$0xff]
    %v3818 = vld [vmem:[#allocation13 + $0x7f8] sm:$0xff]
    %v3819 = vld [vmem:[%s31] sm:$0x3]
    %3820 = vmatprep.subr.mxu0 %v3594
    %3821 = vmatpush1.msra.mxu0 %v3593
    %3822 = vmatprep.subr.mxu0 %v3592
    %3823 = vmatpush1.msra.mxu0 %v3591
    %3824 = vmatprep.subr.mxu0 %v3590
    %3825 = vmatpush1.msra.mxu0 %v3589
    %3826 = vmatprep.subr.mxu0 %v3588
    %3827 = vmatpush1.msra.mxu0 %v3587
    %3828 = vmatprep.subr.mxu0 %v3586
    %3829 = vmatpush1.msra.mxu0 %v3585
    %3830 = vmatprep.subr.mxu0 %v3584
    %3831 = vmatpush1.msra.mxu0 %v3583
    %3832 = vmatprep.subr.mxu0 %v3582
    %3833 = vmatpush1.msra.mxu0 %v3581
    %3834 = vmatprep.subr.mxu0 %v3580
    %3835 = vmatpush1.msra.mxu0 %v3579
    %3836 = vmatprep.subr.mxu0 %v3578
    %3837 = vmatpush1.msra.mxu0 %v3577
    %3838 = vmatprep.subr.mxu0 %v3576
    %3839 = vmatpush1.msra.mxu0 %v3575
    %3840 = vmatprep.subr.mxu0 %v3574
    %3841 = vmatpush1.msra.mxu0 %v3573
    %3842 = vmatprep.subr.mxu0 %v3572
    %3843 = vmatpush1.msra.mxu0 %v3571
    %3844 = vmatprep.subr.mxu0 %v3570
    %3845 = vmatpush1.msra.mxu0 %v3569
    %3846 = vmatprep.subr.mxu0 %v3568
    %3847 = vmatpush1.msra.mxu0 %v3567
    %3848 = vmatprep.subr.mxu0 %v3566
    %3849 = vmatpush1.msra.mxu0 %v3565
    %3850 = vmatprep.subr.mxu0 %v3564
    %3851 = vmatpush1.msra.mxu0 %v3563
    %3852 = vmatprep.subr.mxu0 %v3626
    %3853 = vmatpush2.msra.mxu0 %v3625
    %3854 = vmatprep.subr.mxu0 %v3624
    %3855 = vmatpush2.msra.mxu0 %v3623
    %3856 = vmatprep.subr.mxu0 %v3622
    %3857 = vmatpush2.msra.mxu0 %v3621
    %3858 = vmatprep.subr.mxu0 %v3620
    %3859 = vmatpush2.msra.mxu0 %v3619
    %3860 = vmatprep.subr.mxu0 %v3618
    %3861 = vmatpush2.msra.mxu0 %v3617
    %3862 = vmatprep.subr.mxu0 %v3616
    %3863 = vmatpush2.msra.mxu0 %v3615
    %3864 = vmatprep.subr.mxu0 %v3614
    %3865 = vmatpush2.msra.mxu0 %v3613
    %3866 = vmatprep.subr.mxu0 %v3612
    %3867 = vmatpush2.msra.mxu0 %v3611
    %3868 = vmatprep.subr.mxu0 %v3610
    %3869 = vmatpush2.msra.mxu0 %v3609
    %3870 = vmatprep.subr.mxu0 %v3608
    %3871 = vmatpush2.msra.mxu0 %v3607
    %3872 = vmatprep.subr.mxu0 %v3606
    %3873 = vmatpush2.msra.mxu0 %v3605
    %3874 = vmatprep.subr.mxu0 %v3604
    %3875 = vmatpush2.msra.mxu0 %v3603
    %3876 = vmatprep.subr.mxu0 %v3602
    %3877 = vmatpush2.msra.mxu0 %v3601
    %3878 = vmatprep.subr.mxu0 %v3600
    %3879 = vmatpush2.msra.mxu0 %v3599
    %3880 = vmatprep.subr.mxu0 %v3598
    %3881 = vmatpush2.msra.mxu0 %v3597
    %3882 = vmatprep.subr.mxu0 %v3596
    %3883 = vmatpush2.msra.mxu0 %v3595
    %3884 = vmatprep.mubr.f32.mxu0 %v3548
    %3885 = vmatmul.mubr.f32.gmra.mxu0 %v3547
    %v3886 = vpop.f32.mrf.mxu0
    %v3887 = vadd.f32 0.0, %v3886
    %v3888 = vpop.f32.mrf.mxu0
    %v3889 = vadd.f32 0.0, %v3888
    %3890 = vmatprep.mubr.f32.mxu0 %v3556
    %3891 = vmatmul.mubr.f32.gmra.mxu0 %v3555
    %v3892 = vpop.f32.mrf.mxu0
    %v3893 = vadd.f32 0.0, %v3892
    %v3894 = vpop.f32.mrf.mxu0
    %v3895 = vadd.f32 0.0, %v3894
    %3896 = vdwg.mxu0
    %3897 = vmatprep.subr.mxu0 %v3658
    %3898 = vmatpush1.msra.mxu0 %v3657
    %3899 = vmatprep.subr.mxu0 %v3656
    %3900 = vmatpush1.msra.mxu0 %v3655
    %3901 = vmatprep.subr.mxu0 %v3654
    %3902 = vmatpush1.msra.mxu0 %v3653
    %3903 = vmatprep.subr.mxu0 %v3652
    %3904 = vmatpush1.msra.mxu0 %v3651
    %3905 = vmatprep.subr.mxu0 %v3650
    %3906 = vmatpush1.msra.mxu0 %v3649
    %3907 = vmatprep.subr.mxu0 %v3648
    %3908 = vmatpush1.msra.mxu0 %v3647
    %3909 = vmatprep.subr.mxu0 %v3646
    %3910 = vmatpush1.msra.mxu0 %v3645
    %3911 = vmatprep.subr.mxu0 %v3644
    %3912 = vmatpush1.msra.mxu0 %v3643
    %3913 = vmatprep.subr.mxu0 %v3642
    %3914 = vmatpush1.msra.mxu0 %v3641
    %3915 = vmatprep.subr.mxu0 %v3640
    %3916 = vmatpush1.msra.mxu0 %v3639
    %3917 = vmatprep.subr.mxu0 %v3638
    %3918 = vmatpush1.msra.mxu0 %v3637
    %3919 = vmatprep.subr.mxu0 %v3636
    %3920 = vmatpush1.msra.mxu0 %v3635
    %3921 = vmatprep.subr.mxu0 %v3634
    %3922 = vmatpush1.msra.mxu0 %v3633
    %3923 = vmatprep.subr.mxu0 %v3632
    %3924 = vmatpush1.msra.mxu0 %v3631
    %3925 = vmatprep.subr.mxu0 %v3630
    %3926 = vmatpush1.msra.mxu0 %v3629
    %3927 = vmatprep.subr.mxu0 %v3628
    %3928 = vmatpush1.msra.mxu0 %v3627
    %3929 = vmatprep.subr.mxu0 %v3690
    %3930 = vmatpush2.msra.mxu0 %v3689
    %3931 = vmatprep.subr.mxu0 %v3688
    %3932 = vmatpush2.msra.mxu0 %v3687
    %3933 = vmatprep.subr.mxu0 %v3686
    %3934 = vmatpush2.msra.mxu0 %v3685
    %3935 = vmatprep.subr.mxu0 %v3684
    %3936 = vmatpush2.msra.mxu0 %v3683
    %3937 = vmatprep.subr.mxu0 %v3682
    %3938 = vmatpush2.msra.mxu0 %v3681
    %3939 = vmatprep.subr.mxu0 %v3680
    %3940 = vmatpush2.msra.mxu0 %v3679
    %3941 = vmatprep.subr.mxu0 %v3678
    %3942 = vmatpush2.msra.mxu0 %v3677
    %3943 = vmatprep.subr.mxu0 %v3676
    %3944 = vmatpush2.msra.mxu0 %v3675
    %3945 = vmatprep.subr.mxu0 %v3674
    %3946 = vmatpush2.msra.mxu0 %v3673
    %3947 = vmatprep.subr.mxu0 %v3672
    %3948 = vmatpush2.msra.mxu0 %v3671
    %3949 = vmatprep.subr.mxu0 %v3670
    %3950 = vmatpush2.msra.mxu0 %v3669
    %3951 = vmatprep.subr.mxu0 %v3668
    %3952 = vmatpush2.msra.mxu0 %v3667
    %3953 = vmatprep.subr.mxu0 %v3666
    %3954 = vmatpush2.msra.mxu0 %v3665
    %3955 = vmatprep.subr.mxu0 %v3664
    %3956 = vmatpush2.msra.mxu0 %v3663
    %3957 = vmatprep.subr.mxu0 %v3662
    %3958 = vmatpush2.msra.mxu0 %v3661
    %3959 = vmatprep.subr.mxu0 %v3660
    %3960 = vmatpush2.msra.mxu0 %v3659
    %3961 = vmatprep.mubr.f32.mxu0 %v3550
    %3962 = vmatmul.mubr.f32.gmra.mxu0 %v3549
    %v3963 = vpop.f32.mrf.mxu0
    %v3964 = vadd.f32 %v3887, %v3963
    %v3965 = vpop.f32.mrf.mxu0
    %v3966 = vadd.f32 %v3889, %v3965
    %3967 = vmatprep.mubr.f32.mxu0 %v3558
    %3968 = vmatmul.mubr.f32.gmra.mxu0 %v3557
    %v3969 = vpop.f32.mrf.mxu0
    %v3970 = vadd.f32 %v3893, %v3969
    %v3971 = vpop.f32.mrf.mxu0
    %v3972 = vadd.f32 %v3895, %v3971
    %3973 = vdwg.mxu0
    %3974 = vmatprep.subr.mxu0 %v3722
    %3975 = vmatpush1.msra.mxu0 %v3721
    %3976 = vmatprep.subr.mxu0 %v3720
    %3977 = vmatpush1.msra.mxu0 %v3719
    %3978 = vmatprep.subr.mxu0 %v3718
    %3979 = vmatpush1.msra.mxu0 %v3717
    %3980 = vmatprep.subr.mxu0 %v3716
    %3981 = vmatpush1.msra.mxu0 %v3715
    %3982 = vmatprep.subr.mxu0 %v3714
    %3983 = vmatpush1.msra.mxu0 %v3713
    %3984 = vmatprep.subr.mxu0 %v3712
    %3985 = vmatpush1.msra.mxu0 %v3711
    %3986 = vmatprep.subr.mxu0 %v3710
    %3987 = vmatpush1.msra.mxu0 %v3709
    %3988 = vmatprep.subr.mxu0 %v3708
    %3989 = vmatpush1.msra.mxu0 %v3707
    %3990 = vmatprep.subr.mxu0 %v3706
    %3991 = vmatpush1.msra.mxu0 %v3705
    %3992 = vmatprep.subr.mxu0 %v3704
    %3993 = vmatpush1.msra.mxu0 %v3703
    %3994 = vmatprep.subr.mxu0 %v3702
    %3995 = vmatpush1.msra.mxu0 %v3701
    %3996 = vmatprep.subr.mxu0 %v3700
    %3997 = vmatpush1.msra.mxu0 %v3699
    %3998 = vmatprep.subr.mxu0 %v3698
    %3999 = vmatpush1.msra.mxu0 %v3697
    %4000 = vmatprep.subr.mxu0 %v3696
    %4001 = vmatpush1.msra.mxu0 %v3695
    %4002 = vmatprep.subr.mxu0 %v3694
    %4003 = vmatpush1.msra.mxu0 %v3693
    %4004 = vmatprep.subr.mxu0 %v3692
    %4005 = vmatpush1.msra.mxu0 %v3691
    %4006 = vmatprep.subr.mxu0 %v3754
    %4007 = vmatpush2.msra.mxu0 %v3753
    %4008 = vmatprep.subr.mxu0 %v3752
    %4009 = vmatpush2.msra.mxu0 %v3751
    %4010 = vmatprep.subr.mxu0 %v3750
    %4011 = vmatpush2.msra.mxu0 %v3749
    %4012 = vmatprep.subr.mxu0 %v3748
    %4013 = vmatpush2.msra.mxu0 %v3747
    %4014 = vmatprep.subr.mxu0 %v3746
    %4015 = vmatpush2.msra.mxu0 %v3745
    %4016 = vmatprep.subr.mxu0 %v3744
    %4017 = vmatpush2.msra.mxu0 %v3743
    %4018 = vmatprep.subr.mxu0 %v3742
    %4019 = vmatpush2.msra.mxu0 %v3741
    %4020 = vmatprep.subr.mxu0 %v3740
    %4021 = vmatpush2.msra.mxu0 %v3739
    %4022 = vmatprep.subr.mxu0 %v3738
    %4023 = vmatpush2.msra.mxu0 %v3737
    %4024 = vmatprep.subr.mxu0 %v3736
    %4025 = vmatpush2.msra.mxu0 %v3735
    %4026 = vmatprep.subr.mxu0 %v3734
    %4027 = vmatpush2.msra.mxu0 %v3733
    %4028 = vmatprep.subr.mxu0 %v3732
    %4029 = vmatpush2.msra.mxu0 %v3731
    %4030 = vmatprep.subr.mxu0 %v3730
    %4031 = vmatpush2.msra.mxu0 %v3729
    %4032 = vmatprep.subr.mxu0 %v3728
    %4033 = vmatpush2.msra.mxu0 %v3727
    %4034 = vmatprep.subr.mxu0 %v3726
    %4035 = vmatpush2.msra.mxu0 %v3725
    %4036 = vmatprep.subr.mxu0 %v3724
    %4037 = vmatpush2.msra.mxu0 %v3723
    %4038 = vmatprep.mubr.f32.mxu0 %v3552
    %4039 = vmatmul.mubr.f32.gmra.mxu0 %v3551
    %v4040 = vpop.f32.mrf.mxu0
    %v4041 = vadd.f32 %v3964, %v4040
    %v4042 = vpop.f32.mrf.mxu0
    %v4043 = vadd.f32 %v3966, %v4042
    %4044 = vmatprep.mubr.f32.mxu0 %v3560
    %4045 = vmatmul.mubr.f32.gmra.mxu0 %v3559
    %v4046 = vpop.f32.mrf.mxu0
    %v4047 = vadd.f32 %v3970, %v4046
    %v4048 = vpop.f32.mrf.mxu0
    %v4049 = vadd.f32 %v3972, %v4048
    %4050 = vdwg.mxu0
    %4051 = vmatprep.subr.mxu0 %v3786
    %4052 = vmatpush1.msra.mxu0 %v3785
    %4053 = vmatprep.subr.mxu0 %v3784
    %4054 = vmatpush1.msra.mxu0 %v3783
    %4055 = vmatprep.subr.mxu0 %v3782
    %4056 = vmatpush1.msra.mxu0 %v3781
    %4057 = vmatprep.subr.mxu0 %v3780
    %4058 = vmatpush1.msra.mxu0 %v3779
    %4059 = vmatprep.subr.mxu0 %v3778
    %4060 = vmatpush1.msra.mxu0 %v3777
    %4061 = vmatprep.subr.mxu0 %v3776
    %4062 = vmatpush1.msra.mxu0 %v3775
    %4063 = vmatprep.subr.mxu0 %v3774
    %4064 = vmatpush1.msra.mxu0 %v3773
    %4065 = vmatprep.subr.mxu0 %v3772
    %4066 = vmatpush1.msra.mxu0 %v3771
    %4067 = vmatprep.subr.mxu0 %v3770
    %4068 = vmatpush1.msra.mxu0 %v3769
    %4069 = vmatprep.subr.mxu0 %v3768
    %4070 = vmatpush1.msra.mxu0 %v3767
    %4071 = vmatprep.subr.mxu0 %v3766
    %4072 = vmatpush1.msra.mxu0 %v3765
    %4073 = vmatprep.subr.mxu0 %v3764
    %4074 = vmatpush1.msra.mxu0 %v3763
    %4075 = vmatprep.subr.mxu0 %v3762
    %4076 = vmatpush1.msra.mxu0 %v3761
    %4077 = vmatprep.subr.mxu0 %v3760
    %4078 = vmatpush1.msra.mxu0 %v3759
    %4079 = vmatprep.subr.mxu0 %v3758
    %4080 = vmatpush1.msra.mxu0 %v3757
    %4081 = vmatprep.subr.mxu0 %v3756
    %4082 = vmatpush1.msra.mxu0 %v3755
    %4083 = vmatprep.subr.mxu0 %v3818
    %4084 = vmatpush2.msra.mxu0 %v3817
    %4085 = vmatprep.subr.mxu0 %v3816
    %4086 = vmatpush2.msra.mxu0 %v3815
    %4087 = vmatprep.subr.mxu0 %v3814
    %4088 = vmatpush2.msra.mxu0 %v3813
    %4089 = vmatprep.subr.mxu0 %v3812
    %4090 = vmatpush2.msra.mxu0 %v3811
    %4091 = vmatprep.subr.mxu0 %v3810
    %4092 = vmatpush2.msra.mxu0 %v3809
    %4093 = vmatprep.subr.mxu0 %v3808
    %4094 = vmatpush2.msra.mxu0 %v3807
    %4095 = vmatprep.subr.mxu0 %v3806
    %4096 = vmatpush2.msra.mxu0 %v3805
    %4097 = vmatprep.subr.mxu0 %v3804
    %4098 = vmatpush2.msra.mxu0 %v3803
    %4099 = vmatprep.subr.mxu0 %v3802
    %4100 = vmatpush2.msra.mxu0 %v3801
    %4101 = vmatprep.subr.mxu0 %v3800
    %4102 = vmatpush2.msra.mxu0 %v3799
    %4103 = vmatprep.subr.mxu0 %v3798
    %4104 = vmatpush2.msra.mxu0 %v3797
    %4105 = vmatprep.subr.mxu0 %v3796
    %4106 = vmatpush2.msra.mxu0 %v3795
    %4107 = vmatprep.subr.mxu0 %v3794
    %4108 = vmatpush2.msra.mxu0 %v3793
    %4109 = vmatprep.subr.mxu0 %v3792
    %4110 = vmatpush2.msra.mxu0 %v3791
    %4111 = vmatprep.subr.mxu0 %v3790
    %4112 = vmatpush2.msra.mxu0 %v3789
    %4113 = vmatprep.subr.mxu0 %v3788
    %4114 = vmatpush2.msra.mxu0 %v3787
    %4115 = vmatprep.mubr.f32.mxu0 %v3554
    %4116 = vmatmul.mubr.f32.gmra.mxu0 %v3553
    %v4117 = vpop.f32.mrf.mxu0
    %v4118 = vadd.f32 %v4041, %v4117
    %v4119 = vpop.f32.mrf.mxu0
    %v4120 = vadd.f32 %v4043, %v4119
    %4121 = vmatprep.mubr.f32.mxu0 %v3562
    %4122 = vmatmul.mubr.f32.gmra.mxu0 %v3561
    %v4123 = vpop.f32.mrf.mxu0
    %v4124 = vadd.f32 %v4047, %v4123
    %v4125 = vpop.f32.mrf.mxu0
    %v4126 = vadd.f32 %v4049, %v4125
    %4127 = vdwg.mxu0
    %v4129 = vlaneseq
    %v4130 = vshrl.u32 %v4129, 7
    %v4131 = vsub.s32 0, %v4130
    %v4132 = vrot.slane %v3819, %v4131
    %v4133 = vlaneseq
    %v4134 = vshrl.u32 %v4133, 7
    %v4135 = vsub.s32 1, %v4134
    %v4136 = vrot.slane %v3819, %v4135
    %v4139 = vadd.f32 %v4118, %v4132
    %v4140 = vadd.f32 %v4120, %v4136
    %v4141 = vadd.f32 %v4124, %v4132
    %v4142 = vadd.f32 %v4126, %v4136
    %v4143 = vadd.f32 %v2793, %v4139
    %v4144 = vadd.f32 %v2794, %v4140
    %v4145 = vadd.f32 %v2795, %v4141
    %v4146 = vadd.f32 %v2796, %v4142
    %v4147 = vld [vmem:[%s33] sm:$0x3]
    %v4148 = vld [vmem:[%s35] sm:$0x3]
    %v4149 = vadd.f32 %v4143, %v4144
    %4150 = vadd.xlane.f32.xlu0 %v4149
    %v4151 = vpop.xlane.xlu0 %4150
    %v4152 = vadd.f32 %v4145, %v4146
    %4153 = vadd.xlane.f32.xlu0 %v4152
    %v4154 = vpop.xlane.xlu0 %4153
    %v4155 = vmul.f32 %v4151, %v941
    %v4156 = vmul.f32 %v4154, %v941
    %v4157 = vsub.f32 %v4143, %v4155
    %v4158 = vsub.f32 %v4144, %v4155
    %v4159 = vsub.f32 %v4145, %v4156
    %v4160 = vsub.f32 %v4146, %v4156
    %v4161 = vmul.f32 %v4157, %v4157
    %v4162 = vmul.f32 %v4158, %v4158
    %v4163 = vmul.f32 %v4159, %v4159
    %v4164 = vmul.f32 %v4160, %v4160
    %v4165 = vadd.f32 %v4161, %v4162
    %4166 = vadd.xlane.f32.xlu0 %v4165
    %v4167 = vpop.xlane.xlu0 %4166
    %v4168 = vadd.f32 %v4163, %v4164
    %4169 = vadd.xlane.f32.xlu0 %v4168
    %v4170 = vpop.xlane.xlu0 %4169
    %v4171 = vmul.f32 %v4167, %v1240
    %v4172 = vmul.f32 %v4170, %v1240
    %v4174 = vlaneseq
    %v4175 = vshrl.u32 %v4174, 7
    %v4176 = vsub.s32 0, %v4175
    %v4177 = vrot.slane %v4147, %v4176
    %v4178 = vlaneseq
    %v4179 = vshrl.u32 %v4178, 7
    %v4180 = vsub.s32 1, %v4179
    %v4181 = vrot.slane %v4147, %v4180
    %v4184 = vmul.f32 %v4177, %v4157
    %v4185 = vmul.f32 %v4181, %v4158
    %v4186 = vmul.f32 %v4177, %v4159
    %v4187 = vmul.f32 %v4181, %v4160
    %v4188 = vrsqrt.pop %v4171
    %v4189 = vmul.f32 %v4171, %v4188
    %vm4190 = vcmp.eq.f32.partialorder %v4171, inf
    %v4191 = vsel %vm4190, %v4171, %v4189
    %vm4192 = vcmp.eq.f32.partialorder %v4171, 0.0
    %v4193 = vand.u32 %v4171, 2147483648
    %v4194 = vsel %vm4192, %v4193, %v4191
    %v4195 = vrsqrt.pop %v4172
    %v4196 = vmul.f32 %v4172, %v4195
    %vm4197 = vcmp.eq.f32.partialorder %v4172, inf
    %v4198 = vsel %vm4197, %v4172, %v4196
    %vm4199 = vcmp.eq.f32.partialorder %v4172, 0.0
    %v4200 = vand.u32 %v4172, 2147483648
    %v4201 = vsel %vm4199, %v4200, %v4198
    %v4202 = vadd.f32 %v4194, 1e-09
    %v4203 = vadd.f32 %v4201, 1e-09
    %v4204 = vrcp.pop %v4202
    %v4205 = vmul.f32 %v4184, %v4204
    %v4206 = vmul.f32 %v4185, %v4204
    %v4207 = vrcp.pop %v4203
    %v4208 = vmul.f32 %v4186, %v4207
    %v4209 = vmul.f32 %v4187, %v4207
    %v4211 = vlaneseq
    %v4212 = vshrl.u32 %v4211, 7
    %v4213 = vsub.s32 0, %v4212
    %v4214 = vrot.slane %v4148, %v4213
    %v4215 = vlaneseq
    %v4216 = vshrl.u32 %v4215, 7
    %v4217 = vsub.s32 1, %v4216
    %v4218 = vrot.slane %v4148, %v4217
    %v4221 = vadd.f32 %v4205, %v4214
    %v4222 = vadd.f32 %v4206, %v4218
    %v4223 = vadd.f32 %v4208, %v4214
    %v4224 = vadd.f32 %v4209, %v4218
    %v4225 = vld [vmem:[#allocation14] sm:$0xff]
    %v4226 = vld [vmem:[#allocation14 + $0x8] sm:$0xff]
    %v4227 = vld [vmem:[#allocation14 + $0x10] sm:$0xff]
    %v4228 = vld [vmem:[#allocation14 + $0x18] sm:$0xff]
    %v4229 = vld [vmem:[#allocation14 + $0x20] sm:$0xff]
    %v4230 = vld [vmem:[#allocation14 + $0x28] sm:$0xff]
    %v4231 = vld [vmem:[#allocation14 + $0x30] sm:$0xff]
    %v4232 = vld [vmem:[#allocation14 + $0x38] sm:$0xff]
    %v4233 = vld [vmem:[#allocation14 + $0x40] sm:$0xff]
    %v4234 = vld [vmem:[#allocation14 + $0x48] sm:$0xff]
    %v4235 = vld [vmem:[#allocation14 + $0x50] sm:$0xff]
    %v4236 = vld [vmem:[#allocation14 + $0x58] sm:$0xff]
    %v4237 = vld [vmem:[#allocation14 + $0x60] sm:$0xff]
    %v4238 = vld [vmem:[#allocation14 + $0x68] sm:$0xff]
    %v4239 = vld [vmem:[#allocation14 + $0x70] sm:$0xff]
    %v4240 = vld [vmem:[#allocation14 + $0x78] sm:$0xff]
    %v4241 = vld [vmem:[#allocation14 + $0x80] sm:$0xff]
    %v4242 = vld [vmem:[#allocation14 + $0x88] sm:$0xff]
    %v4243 = vld [vmem:[#allocation14 + $0x90] sm:$0xff]
    %v4244 = vld [vmem:[#allocation14 + $0x98] sm:$0xff]
    %v4245 = vld [vmem:[#allocation14 + $0xa0] sm:$0xff]
    %v4246 = vld [vmem:[#allocation14 + $0xa8] sm:$0xff]
    %v4247 = vld [vmem:[#allocation14 + $0xb0] sm:$0xff]
    %v4248 = vld [vmem:[#allocation14 + $0xb8] sm:$0xff]
    %v4249 = vld [vmem:[#allocation14 + $0xc0] sm:$0xff]
    %v4250 = vld [vmem:[#allocation14 + $0xc8] sm:$0xff]
    %v4251 = vld [vmem:[#allocation14 + $0xd0] sm:$0xff]
    %v4252 = vld [vmem:[#allocation14 + $0xd8] sm:$0xff]
    %v4253 = vld [vmem:[#allocation14 + $0xe0] sm:$0xff]
    %v4254 = vld [vmem:[#allocation14 + $0xe8] sm:$0xff]
    %v4255 = vld [vmem:[#allocation14 + $0xf0] sm:$0xff]
    %v4256 = vld [vmem:[#allocation14 + $0xf8] sm:$0xff]
    %v4257 = vld [vmem:[#allocation14 + $0x100] sm:$0xff]
    %v4258 = vld [vmem:[#allocation14 + $0x108] sm:$0xff]
    %v4259 = vld [vmem:[#allocation14 + $0x110] sm:$0xff]
    %v4260 = vld [vmem:[#allocation14 + $0x118] sm:$0xff]
    %v4261 = vld [vmem:[#allocation14 + $0x120] sm:$0xff]
    %v4262 = vld [vmem:[#allocation14 + $0x128] sm:$0xff]
    %v4263 = vld [vmem:[#allocation14 + $0x130] sm:$0xff]
    %v4264 = vld [vmem:[#allocation14 + $0x138] sm:$0xff]
    %v4265 = vld [vmem:[#allocation14 + $0x140] sm:$0xff]
    %v4266 = vld [vmem:[#allocation14 + $0x148] sm:$0xff]
    %v4267 = vld [vmem:[#allocation14 + $0x150] sm:$0xff]
    %v4268 = vld [vmem:[#allocation14 + $0x158] sm:$0xff]
    %v4269 = vld [vmem:[#allocation14 + $0x160] sm:$0xff]
    %v4270 = vld [vmem:[#allocation14 + $0x168] sm:$0xff]
    %v4271 = vld [vmem:[#allocation14 + $0x170] sm:$0xff]
    %v4272 = vld [vmem:[#allocation14 + $0x178] sm:$0xff]
    %v4273 = vld [vmem:[#allocation14 + $0x180] sm:$0xff]
    %v4274 = vld [vmem:[#allocation14 + $0x188] sm:$0xff]
    %v4275 = vld [vmem:[#allocation14 + $0x190] sm:$0xff]
    %v4276 = vld [vmem:[#allocation14 + $0x198] sm:$0xff]
    %v4277 = vld [vmem:[#allocation14 + $0x1a0] sm:$0xff]
    %v4278 = vld [vmem:[#allocation14 + $0x1a8] sm:$0xff]
    %v4279 = vld [vmem:[#allocation14 + $0x1b0] sm:$0xff]
    %v4280 = vld [vmem:[#allocation14 + $0x1b8] sm:$0xff]
    %v4281 = vld [vmem:[#allocation14 + $0x1c0] sm:$0xff]
    %v4282 = vld [vmem:[#allocation14 + $0x1c8] sm:$0xff]
    %v4283 = vld [vmem:[#allocation14 + $0x1d0] sm:$0xff]
    %v4284 = vld [vmem:[#allocation14 + $0x1d8] sm:$0xff]
    %v4285 = vld [vmem:[#allocation14 + $0x1e0] sm:$0xff]
    %v4286 = vld [vmem:[#allocation14 + $0x1e8] sm:$0xff]
    %v4287 = vld [vmem:[#allocation14 + $0x1f0] sm:$0xff]
    %v4288 = vld [vmem:[#allocation14 + $0x1f8] sm:$0xff]
    %v4289 = vld [vmem:[#allocation14 + $0x200] sm:$0xff]
    %v4290 = vld [vmem:[#allocation14 + $0x208] sm:$0xff]
    %v4291 = vld [vmem:[#allocation14 + $0x210] sm:$0xff]
    %v4292 = vld [vmem:[#allocation14 + $0x218] sm:$0xff]
    %v4293 = vld [vmem:[#allocation14 + $0x220] sm:$0xff]
    %v4294 = vld [vmem:[#allocation14 + $0x228] sm:$0xff]
    %v4295 = vld [vmem:[#allocation14 + $0x230] sm:$0xff]
    %v4296 = vld [vmem:[#allocation14 + $0x238] sm:$0xff]
    %v4297 = vld [vmem:[#allocation14 + $0x240] sm:$0xff]
    %v4298 = vld [vmem:[#allocation14 + $0x248] sm:$0xff]
    %v4299 = vld [vmem:[#allocation14 + $0x250] sm:$0xff]
    %v4300 = vld [vmem:[#allocation14 + $0x258] sm:$0xff]
    %v4301 = vld [vmem:[#allocation14 + $0x260] sm:$0xff]
    %v4302 = vld [vmem:[#allocation14 + $0x268] sm:$0xff]
    %v4303 = vld [vmem:[#allocation14 + $0x270] sm:$0xff]
    %v4304 = vld [vmem:[#allocation14 + $0x278] sm:$0xff]
    %v4305 = vld [vmem:[#allocation14 + $0x280] sm:$0xff]
    %v4306 = vld [vmem:[#allocation14 + $0x288] sm:$0xff]
    %v4307 = vld [vmem:[#allocation14 + $0x290] sm:$0xff]
    %v4308 = vld [vmem:[#allocation14 + $0x298] sm:$0xff]
    %v4309 = vld [vmem:[#allocation14 + $0x2a0] sm:$0xff]
    %v4310 = vld [vmem:[#allocation14 + $0x2a8] sm:$0xff]
    %v4311 = vld [vmem:[#allocation14 + $0x2b0] sm:$0xff]
    %v4312 = vld [vmem:[#allocation14 + $0x2b8] sm:$0xff]
    %v4313 = vld [vmem:[#allocation14 + $0x2c0] sm:$0xff]
    %v4314 = vld [vmem:[#allocation14 + $0x2c8] sm:$0xff]
    %v4315 = vld [vmem:[#allocation14 + $0x2d0] sm:$0xff]
    %v4316 = vld [vmem:[#allocation14 + $0x2d8] sm:$0xff]
    %v4317 = vld [vmem:[#allocation14 + $0x2e0] sm:$0xff]
    %v4318 = vld [vmem:[#allocation14 + $0x2e8] sm:$0xff]
    %v4319 = vld [vmem:[#allocation14 + $0x2f0] sm:$0xff]
    %v4320 = vld [vmem:[#allocation14 + $0x2f8] sm:$0xff]
    %v4321 = vld [vmem:[#allocation14 + $0x300] sm:$0xff]
    %v4322 = vld [vmem:[#allocation14 + $0x308] sm:$0xff]
    %v4323 = vld [vmem:[#allocation14 + $0x310] sm:$0xff]
    %v4324 = vld [vmem:[#allocation14 + $0x318] sm:$0xff]
    %v4325 = vld [vmem:[#allocation14 + $0x320] sm:$0xff]
    %v4326 = vld [vmem:[#allocation14 + $0x328] sm:$0xff]
    %v4327 = vld [vmem:[#allocation14 + $0x330] sm:$0xff]
    %v4328 = vld [vmem:[#allocation14 + $0x338] sm:$0xff]
    %v4329 = vld [vmem:[#allocation14 + $0x340] sm:$0xff]
    %v4330 = vld [vmem:[#allocation14 + $0x348] sm:$0xff]
    %v4331 = vld [vmem:[#allocation14 + $0x350] sm:$0xff]
    %v4332 = vld [vmem:[#allocation14 + $0x358] sm:$0xff]
    %v4333 = vld [vmem:[#allocation14 + $0x360] sm:$0xff]
    %v4334 = vld [vmem:[#allocation14 + $0x368] sm:$0xff]
    %v4335 = vld [vmem:[#allocation14 + $0x370] sm:$0xff]
    %v4336 = vld [vmem:[#allocation14 + $0x378] sm:$0xff]
    %v4337 = vld [vmem:[#allocation14 + $0x380] sm:$0xff]
    %v4338 = vld [vmem:[#allocation14 + $0x388] sm:$0xff]
    %v4339 = vld [vmem:[#allocation14 + $0x390] sm:$0xff]
    %v4340 = vld [vmem:[#allocation14 + $0x398] sm:$0xff]
    %v4341 = vld [vmem:[#allocation14 + $0x3a0] sm:$0xff]
    %v4342 = vld [vmem:[#allocation14 + $0x3a8] sm:$0xff]
    %v4343 = vld [vmem:[#allocation14 + $0x3b0] sm:$0xff]
    %v4344 = vld [vmem:[#allocation14 + $0x3b8] sm:$0xff]
    %v4345 = vld [vmem:[#allocation14 + $0x3c0] sm:$0xff]
    %v4346 = vld [vmem:[#allocation14 + $0x3c8] sm:$0xff]
    %v4347 = vld [vmem:[#allocation14 + $0x3d0] sm:$0xff]
    %v4348 = vld [vmem:[#allocation14 + $0x3d8] sm:$0xff]
    %v4349 = vld [vmem:[#allocation14 + $0x3e0] sm:$0xff]
    %v4350 = vld [vmem:[#allocation14 + $0x3e8] sm:$0xff]
    %v4351 = vld [vmem:[#allocation14 + $0x3f0] sm:$0xff]
    %v4352 = vld [vmem:[#allocation14 + $0x3f8] sm:$0xff]
    %v4353 = vld [vmem:[#allocation14 + $0x400] sm:$0xff]
    %v4354 = vld [vmem:[#allocation14 + $0x408] sm:$0xff]
    %v4355 = vld [vmem:[#allocation14 + $0x410] sm:$0xff]
    %v4356 = vld [vmem:[#allocation14 + $0x418] sm:$0xff]
    %v4357 = vld [vmem:[#allocation14 + $0x420] sm:$0xff]
    %v4358 = vld [vmem:[#allocation14 + $0x428] sm:$0xff]
    %v4359 = vld [vmem:[#allocation14 + $0x430] sm:$0xff]
    %v4360 = vld [vmem:[#allocation14 + $0x438] sm:$0xff]
    %v4361 = vld [vmem:[#allocation14 + $0x440] sm:$0xff]
    %v4362 = vld [vmem:[#allocation14 + $0x448] sm:$0xff]
    %v4363 = vld [vmem:[#allocation14 + $0x450] sm:$0xff]
    %v4364 = vld [vmem:[#allocation14 + $0x458] sm:$0xff]
    %v4365 = vld [vmem:[#allocation14 + $0x460] sm:$0xff]
    %v4366 = vld [vmem:[#allocation14 + $0x468] sm:$0xff]
    %v4367 = vld [vmem:[#allocation14 + $0x470] sm:$0xff]
    %v4368 = vld [vmem:[#allocation14 + $0x478] sm:$0xff]
    %v4369 = vld [vmem:[#allocation14 + $0x480] sm:$0xff]
    %v4370 = vld [vmem:[#allocation14 + $0x488] sm:$0xff]
    %v4371 = vld [vmem:[#allocation14 + $0x490] sm:$0xff]
    %v4372 = vld [vmem:[#allocation14 + $0x498] sm:$0xff]
    %v4373 = vld [vmem:[#allocation14 + $0x4a0] sm:$0xff]
    %v4374 = vld [vmem:[#allocation14 + $0x4a8] sm:$0xff]
    %v4375 = vld [vmem:[#allocation14 + $0x4b0] sm:$0xff]
    %v4376 = vld [vmem:[#allocation14 + $0x4b8] sm:$0xff]
    %v4377 = vld [vmem:[#allocation14 + $0x4c0] sm:$0xff]
    %v4378 = vld [vmem:[#allocation14 + $0x4c8] sm:$0xff]
    %v4379 = vld [vmem:[#allocation14 + $0x4d0] sm:$0xff]
    %v4380 = vld [vmem:[#allocation14 + $0x4d8] sm:$0xff]
    %v4381 = vld [vmem:[#allocation14 + $0x4e0] sm:$0xff]
    %v4382 = vld [vmem:[#allocation14 + $0x4e8] sm:$0xff]
    %v4383 = vld [vmem:[#allocation14 + $0x4f0] sm:$0xff]
    %v4384 = vld [vmem:[#allocation14 + $0x4f8] sm:$0xff]
    %v4385 = vld [vmem:[#allocation14 + $0x500] sm:$0xff]
    %v4386 = vld [vmem:[#allocation14 + $0x508] sm:$0xff]
    %v4387 = vld [vmem:[#allocation14 + $0x510] sm:$0xff]
    %v4388 = vld [vmem:[#allocation14 + $0x518] sm:$0xff]
    %v4389 = vld [vmem:[#allocation14 + $0x520] sm:$0xff]
    %v4390 = vld [vmem:[#allocation14 + $0x528] sm:$0xff]
    %v4391 = vld [vmem:[#allocation14 + $0x530] sm:$0xff]
    %v4392 = vld [vmem:[#allocation14 + $0x538] sm:$0xff]
    %v4393 = vld [vmem:[#allocation14 + $0x540] sm:$0xff]
    %v4394 = vld [vmem:[#allocation14 + $0x548] sm:$0xff]
    %v4395 = vld [vmem:[#allocation14 + $0x550] sm:$0xff]
    %v4396 = vld [vmem:[#allocation14 + $0x558] sm:$0xff]
    %v4397 = vld [vmem:[#allocation14 + $0x560] sm:$0xff]
    %v4398 = vld [vmem:[#allocation14 + $0x568] sm:$0xff]
    %v4399 = vld [vmem:[#allocation14 + $0x570] sm:$0xff]
    %v4400 = vld [vmem:[#allocation14 + $0x578] sm:$0xff]
    %v4401 = vld [vmem:[#allocation14 + $0x580] sm:$0xff]
    %v4402 = vld [vmem:[#allocation14 + $0x588] sm:$0xff]
    %v4403 = vld [vmem:[#allocation14 + $0x590] sm:$0xff]
    %v4404 = vld [vmem:[#allocation14 + $0x598] sm:$0xff]
    %v4405 = vld [vmem:[#allocation14 + $0x5a0] sm:$0xff]
    %v4406 = vld [vmem:[#allocation14 + $0x5a8] sm:$0xff]
    %v4407 = vld [vmem:[#allocation14 + $0x5b0] sm:$0xff]
    %v4408 = vld [vmem:[#allocation14 + $0x5b8] sm:$0xff]
    %v4409 = vld [vmem:[#allocation14 + $0x5c0] sm:$0xff]
    %v4410 = vld [vmem:[#allocation14 + $0x5c8] sm:$0xff]
    %v4411 = vld [vmem:[#allocation14 + $0x5d0] sm:$0xff]
    %v4412 = vld [vmem:[#allocation14 + $0x5d8] sm:$0xff]
    %v4413 = vld [vmem:[#allocation14 + $0x5e0] sm:$0xff]
    %v4414 = vld [vmem:[#allocation14 + $0x5e8] sm:$0xff]
    %v4415 = vld [vmem:[#allocation14 + $0x5f0] sm:$0xff]
    %v4416 = vld [vmem:[#allocation14 + $0x5f8] sm:$0xff]
    %v4417 = vld [vmem:[%s39] sm:$0x3f]
    %4418 = vmatprep.subr.mxu0 %v4316
    %4419 = vmatpush1.msra.mxu0 %v4315
    %4420 = vmatprep.subr.mxu0 %v4310
    %4421 = vmatpush1.msra.mxu0 %v4309
    %4422 = vmatprep.subr.mxu0 %v4304
    %4423 = vmatpush1.msra.mxu0 %v4303
    %4424 = vmatprep.subr.mxu0 %v4298
    %4425 = vmatpush1.msra.mxu0 %v4297
    %4426 = vmatprep.subr.mxu0 %v4292
    %4427 = vmatpush1.msra.mxu0 %v4291
    %4428 = vmatprep.subr.mxu0 %v4286
    %4429 = vmatpush1.msra.mxu0 %v4285
    %4430 = vmatprep.subr.mxu0 %v4280
    %4431 = vmatpush1.msra.mxu0 %v4279
    %4432 = vmatprep.subr.mxu0 %v4274
    %4433 = vmatpush1.msra.mxu0 %v4273
    %4434 = vmatprep.subr.mxu0 %v4268
    %4435 = vmatpush1.msra.mxu0 %v4267
    %4436 = vmatprep.subr.mxu0 %v4262
    %4437 = vmatpush1.msra.mxu0 %v4261
    %4438 = vmatprep.subr.mxu0 %v4256
    %4439 = vmatpush1.msra.mxu0 %v4255
    %4440 = vmatprep.subr.mxu0 %v4250
    %4441 = vmatpush1.msra.mxu0 %v4249
    %4442 = vmatprep.subr.mxu0 %v4244
    %4443 = vmatpush1.msra.mxu0 %v4243
    %4444 = vmatprep.subr.mxu0 %v4238
    %4445 = vmatpush1.msra.mxu0 %v4237
    %4446 = vmatprep.subr.mxu0 %v4232
    %4447 = vmatpush1.msra.mxu0 %v4231
    %4448 = vmatprep.subr.mxu0 %v4226
    %4449 = vmatpush1.msra.mxu0 %v4225
    %4450 = vmatprep.subr.mxu0 %v4412
    %4451 = vmatpush2.msra.mxu0 %v4411
    %4452 = vmatprep.subr.mxu0 %v4406
    %4453 = vmatpush2.msra.mxu0 %v4405
    %4454 = vmatprep.subr.mxu0 %v4400
    %4455 = vmatpush2.msra.mxu0 %v4399
    %4456 = vmatprep.subr.mxu0 %v4394
    %4457 = vmatpush2.msra.mxu0 %v4393
    %4458 = vmatprep.subr.mxu0 %v4388
    %4459 = vmatpush2.msra.mxu0 %v4387
    %4460 = vmatprep.subr.mxu0 %v4382
    %4461 = vmatpush2.msra.mxu0 %v4381
    %4462 = vmatprep.subr.mxu0 %v4376
    %4463 = vmatpush2.msra.mxu0 %v4375
    %4464 = vmatprep.subr.mxu0 %v4370
    %4465 = vmatpush2.msra.mxu0 %v4369
    %4466 = vmatprep.subr.mxu0 %v4364
    %4467 = vmatpush2.msra.mxu0 %v4363
    %4468 = vmatprep.subr.mxu0 %v4358
    %4469 = vmatpush2.msra.mxu0 %v4357
    %4470 = vmatprep.subr.mxu0 %v4352
    %4471 = vmatpush2.msra.mxu0 %v4351
    %4472 = vmatprep.subr.mxu0 %v4346
    %4473 = vmatpush2.msra.mxu0 %v4345
    %4474 = vmatprep.subr.mxu0 %v4340
    %4475 = vmatpush2.msra.mxu0 %v4339
    %4476 = vmatprep.subr.mxu0 %v4334
    %4477 = vmatpush2.msra.mxu0 %v4333
    %4478 = vmatprep.subr.mxu0 %v4328
    %4479 = vmatpush2.msra.mxu0 %v4327
    %4480 = vmatprep.subr.mxu0 %v4322
    %4481 = vmatpush2.msra.mxu0 %v4321
    %4482 = vmatprep.mubr.f32.mxu0 %v4222
    %4483 = vmatmul.mubr.f32.gmra.mxu0 %v4221
    %v4484 = vpop.f32.mrf.mxu0
    %v4485 = vadd.f32 0.0, %v4484
    %v4486 = vpop.f32.mrf.mxu0
    %v4487 = vadd.f32 0.0, %v4486
    %4488 = vmatprep.mubr.f32.mxu0 %v4224
    %4489 = vmatmul.mubr.f32.gmra.mxu0 %v4223
    %v4490 = vpop.f32.mrf.mxu0
    %v4491 = vadd.f32 0.0, %v4490
    %v4492 = vpop.f32.mrf.mxu0
    %v4493 = vadd.f32 0.0, %v4492
    %4494 = vdwg.mxu0
    %4495 = vmatprep.subr.mxu0 %v4318
    %4496 = vmatpush1.msra.mxu0 %v4317
    %4497 = vmatprep.subr.mxu0 %v4312
    %4498 = vmatpush1.msra.mxu0 %v4311
    %4499 = vmatprep.subr.mxu0 %v4306
    %4500 = vmatpush1.msra.mxu0 %v4305
    %4501 = vmatprep.subr.mxu0 %v4300
    %4502 = vmatpush1.msra.mxu0 %v4299
    %4503 = vmatprep.subr.mxu0 %v4294
    %4504 = vmatpush1.msra.mxu0 %v4293
    %4505 = vmatprep.subr.mxu0 %v4288
    %4506 = vmatpush1.msra.mxu0 %v4287
    %4507 = vmatprep.subr.mxu0 %v4282
    %4508 = vmatpush1.msra.mxu0 %v4281
    %4509 = vmatprep.subr.mxu0 %v4276
    %4510 = vmatpush1.msra.mxu0 %v4275
    %4511 = vmatprep.subr.mxu0 %v4270
    %4512 = vmatpush1.msra.mxu0 %v4269
    %4513 = vmatprep.subr.mxu0 %v4264
    %4514 = vmatpush1.msra.mxu0 %v4263
    %4515 = vmatprep.subr.mxu0 %v4258
    %4516 = vmatpush1.msra.mxu0 %v4257
    %4517 = vmatprep.subr.mxu0 %v4252
    %4518 = vmatpush1.msra.mxu0 %v4251
    %4519 = vmatprep.subr.mxu0 %v4246
    %4520 = vmatpush1.msra.mxu0 %v4245
    %4521 = vmatprep.subr.mxu0 %v4240
    %4522 = vmatpush1.msra.mxu0 %v4239
    %4523 = vmatprep.subr.mxu0 %v4234
    %4524 = vmatpush1.msra.mxu0 %v4233
    %4525 = vmatprep.subr.mxu0 %v4228
    %4526 = vmatpush1.msra.mxu0 %v4227
    %4527 = vmatprep.subr.mxu0 %v4414
    %4528 = vmatpush2.msra.mxu0 %v4413
    %4529 = vmatprep.subr.mxu0 %v4408
    %4530 = vmatpush2.msra.mxu0 %v4407
    %4531 = vmatprep.subr.mxu0 %v4402
    %4532 = vmatpush2.msra.mxu0 %v4401
    %4533 = vmatprep.subr.mxu0 %v4396
    %4534 = vmatpush2.msra.mxu0 %v4395
    %4535 = vmatprep.subr.mxu0 %v4390
    %4536 = vmatpush2.msra.mxu0 %v4389
    %4537 = vmatprep.subr.mxu0 %v4384
    %4538 = vmatpush2.msra.mxu0 %v4383
    %4539 = vmatprep.subr.mxu0 %v4378
    %4540 = vmatpush2.msra.mxu0 %v4377
    %4541 = vmatprep.subr.mxu0 %v4372
    %4542 = vmatpush2.msra.mxu0 %v4371
    %4543 = vmatprep.subr.mxu0 %v4366
    %4544 = vmatpush2.msra.mxu0 %v4365
    %4545 = vmatprep.subr.mxu0 %v4360
    %4546 = vmatpush2.msra.mxu0 %v4359
    %4547 = vmatprep.subr.mxu0 %v4354
    %4548 = vmatpush2.msra.mxu0 %v4353
    %4549 = vmatprep.subr.mxu0 %v4348
    %4550 = vmatpush2.msra.mxu0 %v4347
    %4551 = vmatprep.subr.mxu0 %v4342
    %4552 = vmatpush2.msra.mxu0 %v4341
    %4553 = vmatprep.subr.mxu0 %v4336
    %4554 = vmatpush2.msra.mxu0 %v4335
    %4555 = vmatprep.subr.mxu0 %v4330
    %4556 = vmatpush2.msra.mxu0 %v4329
    %4557 = vmatprep.subr.mxu0 %v4324
    %4558 = vmatpush2.msra.mxu0 %v4323
    %4559 = vmatprep.mubr.f32.mxu0 %v4222
    %4560 = vmatmul.mubr.f32.gmra.mxu0 %v4221
    %v4561 = vpop.f32.mrf.mxu0
    %v4562 = vadd.f32 0.0, %v4561
    %v4563 = vpop.f32.mrf.mxu0
    %v4564 = vadd.f32 0.0, %v4563
    %4565 = vmatprep.mubr.f32.mxu0 %v4224
    %4566 = vmatmul.mubr.f32.gmra.mxu0 %v4223
    %v4567 = vpop.f32.mrf.mxu0
    %v4568 = vadd.f32 0.0, %v4567
    %v4569 = vpop.f32.mrf.mxu0
    %v4570 = vadd.f32 0.0, %v4569
    %4571 = vdwg.mxu0
    %4572 = vmatprep.subr.mxu0 %v4320
    %4573 = vmatpush1.msra.mxu0 %v4319
    %4574 = vmatprep.subr.mxu0 %v4314
    %4575 = vmatpush1.msra.mxu0 %v4313
    %4576 = vmatprep.subr.mxu0 %v4308
    %4577 = vmatpush1.msra.mxu0 %v4307
    %4578 = vmatprep.subr.mxu0 %v4302
    %4579 = vmatpush1.msra.mxu0 %v4301
    %4580 = vmatprep.subr.mxu0 %v4296
    %4581 = vmatpush1.msra.mxu0 %v4295
    %4582 = vmatprep.subr.mxu0 %v4290
    %4583 = vmatpush1.msra.mxu0 %v4289
    %4584 = vmatprep.subr.mxu0 %v4284
    %4585 = vmatpush1.msra.mxu0 %v4283
    %4586 = vmatprep.subr.mxu0 %v4278
    %4587 = vmatpush1.msra.mxu0 %v4277
    %4588 = vmatprep.subr.mxu0 %v4272
    %4589 = vmatpush1.msra.mxu0 %v4271
    %4590 = vmatprep.subr.mxu0 %v4266
    %4591 = vmatpush1.msra.mxu0 %v4265
    %4592 = vmatprep.subr.mxu0 %v4260
    %4593 = vmatpush1.msra.mxu0 %v4259
    %4594 = vmatprep.subr.mxu0 %v4254
    %4595 = vmatpush1.msra.mxu0 %v4253
    %4596 = vmatprep.subr.mxu0 %v4248
    %4597 = vmatpush1.msra.mxu0 %v4247
    %4598 = vmatprep.subr.mxu0 %v4242
    %4599 = vmatpush1.msra.mxu0 %v4241
    %4600 = vmatprep.subr.mxu0 %v4236
    %4601 = vmatpush1.msra.mxu0 %v4235
    %4602 = vmatprep.subr.mxu0 %v4230
    %4603 = vmatpush1.msra.mxu0 %v4229
    %4604 = vmatprep.subr.mxu0 %v4416
    %4605 = vmatpush2.msra.mxu0 %v4415
    %4606 = vmatprep.subr.mxu0 %v4410
    %4607 = vmatpush2.msra.mxu0 %v4409
    %4608 = vmatprep.subr.mxu0 %v4404
    %4609 = vmatpush2.msra.mxu0 %v4403
    %4610 = vmatprep.subr.mxu0 %v4398
    %4611 = vmatpush2.msra.mxu0 %v4397
    %4612 = vmatprep.subr.mxu0 %v4392
    %4613 = vmatpush2.msra.mxu0 %v4391
    %4614 = vmatprep.subr.mxu0 %v4386
    %4615 = vmatpush2.msra.mxu0 %v4385
    %4616 = vmatprep.subr.mxu0 %v4380
    %4617 = vmatpush2.msra.mxu0 %v4379
    %4618 = vmatprep.subr.mxu0 %v4374
    %4619 = vmatpush2.msra.mxu0 %v4373
    %4620 = vmatprep.subr.mxu0 %v4368
    %4621 = vmatpush2.msra.mxu0 %v4367
    %4622 = vmatprep.subr.mxu0 %v4362
    %4623 = vmatpush2.msra.mxu0 %v4361
    %4624 = vmatprep.subr.mxu0 %v4356
    %4625 = vmatpush2.msra.mxu0 %v4355
    %4626 = vmatprep.subr.mxu0 %v4350
    %4627 = vmatpush2.msra.mxu0 %v4349
    %4628 = vmatprep.subr.mxu0 %v4344
    %4629 = vmatpush2.msra.mxu0 %v4343
    %4630 = vmatprep.subr.mxu0 %v4338
    %4631 = vmatpush2.msra.mxu0 %v4337
    %4632 = vmatprep.subr.mxu0 %v4332
    %4633 = vmatpush2.msra.mxu0 %v4331
    %4634 = vmatprep.subr.mxu0 %v4326
    %4635 = vmatpush2.msra.mxu0 %v4325
    %4636 = vmatprep.mubr.f32.mxu0 %v4222
    %4637 = vmatmul.mubr.f32.gmra.mxu0 %v4221
    %v4638 = vpop.f32.mrf.mxu0
    %v4639 = vadd.f32 0.0, %v4638
    %v4640 = vpop.f32.mrf.mxu0
    %v4641 = vadd.f32 0.0, %v4640
    %4642 = vmatprep.mubr.f32.mxu0 %v4224
    %4643 = vmatmul.mubr.f32.gmra.mxu0 %v4223
    %v4644 = vpop.f32.mrf.mxu0
    %v4645 = vadd.f32 0.0, %v4644
    %v4646 = vpop.f32.mrf.mxu0
    %v4647 = vadd.f32 0.0, %v4646
    %4648 = vdwg.mxu0
    %v4650 = vlaneseq
    %v4651 = vshrl.u32 %v4650, 7
    %v4652 = vsub.s32 0, %v4651
    %v4653 = vrot.slane %v4417, %v4652
    %v4654 = vlaneseq
    %v4655 = vshrl.u32 %v4654, 7
    %v4656 = vsub.s32 1, %v4655
    %v4657 = vrot.slane %v4417, %v4656
    %v4658 = vlaneseq
    %v4659 = vshrl.u32 %v4658, 7
    %v4660 = vsub.s32 2, %v4659
    %v4661 = vrot.slane %v4417, %v4660
    %v4662 = vlaneseq
    %v4663 = vshrl.u32 %v4662, 7
    %v4664 = vsub.s32 3, %v4663
    %v4665 = vrot.slane %v4417, %v4664
    %v4666 = vlaneseq
    %v4667 = vshrl.u32 %v4666, 7
    %v4668 = vsub.s32 4, %v4667
    %v4669 = vrot.slane %v4417, %v4668
    %v4670 = vlaneseq
    %v4671 = vshrl.u32 %v4670, 7
    %v4672 = vsub.s32 5, %v4671
    %v4673 = vrot.slane %v4417, %v4672
    %v4680 = vadd.f32 %v4485, %v4653
    %v4681 = vadd.f32 %v4487, %v4657
    %v4682 = vadd.f32 %v4562, %v4661
    %v4683 = vadd.f32 %v4564, %v4665
    %v4684 = vadd.f32 %v4639, %v4669
    %v4685 = vadd.f32 %v4641, %v4673
    %v4686 = vadd.f32 %v4491, %v4653
    %v4687 = vadd.f32 %v4493, %v4657
    %v4688 = vadd.f32 %v4568, %v4661
    %v4689 = vadd.f32 %v4570, %v4665
    %v4690 = vadd.f32 %v4645, %v4669
    %v4691 = vadd.f32 %v4647, %v4673
    %4692 = vmatprep.subr.mxu0 0.0
    %4693 = vmatpush1.xpose.msra.mxu0 0.0
    %4694 = vmatprep.subr.mxu0 0.0
    %4695 = vmatpush1.xpose.msra.mxu0 0.0
    %4696 = vmatprep.subr.mxu0 0.0
    %4697 = vmatpush1.xpose.msra.mxu0 0.0
    %4698 = vmatprep.subr.mxu0 0.0
    %4699 = vmatpush1.xpose.msra.mxu0 0.0
    %4700 = vmatprep.subr.mxu0 0.0
    %4701 = vmatpush1.xpose.msra.mxu0 0.0
    %4702 = vmatprep.subr.mxu0 0.0
    %4703 = vmatpush1.xpose.msra.mxu0 0.0
    %4704 = vmatprep.subr.mxu0 0.0
    %4705 = vmatpush1.xpose.msra.mxu0 0.0
    %4706 = vmatprep.subr.mxu0 0.0
    %4707 = vmatpush1.xpose.msra.mxu0 0.0
    %4708 = vmatprep.subr.mxu0 0.0
    %4709 = vmatpush1.xpose.msra.mxu0 0.0
    %4710 = vmatprep.subr.mxu0 0.0
    %4711 = vmatpush1.xpose.msra.mxu0 0.0
    %4712 = vmatprep.subr.mxu0 0.0
    %4713 = vmatpush1.xpose.msra.mxu0 0.0
    %4714 = vmatprep.subr.mxu0 0.0
    %4715 = vmatpush1.xpose.msra.mxu0 0.0
    %4716 = vmatprep.subr.mxu0 0.0
    %4717 = vmatpush1.xpose.msra.mxu0 0.0
    %4718 = vmatprep.subr.mxu0 0.0
    %4719 = vmatpush1.xpose.msra.mxu0 0.0
    %4720 = vmatprep.subr.mxu0 0.0
    %4721 = vmatpush1.xpose.msra.mxu0 0.0
    %4722 = vmatprep.subr.mxu0 0.0
    %4723 = vmatpush1.xpose.msra.mxu0 %v4682
    %4724 = vmatprep.subr.mxu0 0.0
    %4725 = vmatpush2.xpose.msra.mxu0 0.0
    %4726 = vmatprep.subr.mxu0 0.0
    %4727 = vmatpush2.xpose.msra.mxu0 0.0
    %4728 = vmatprep.subr.mxu0 0.0
    %4729 = vmatpush2.xpose.msra.mxu0 0.0
    %4730 = vmatprep.subr.mxu0 0.0
    %4731 = vmatpush2.xpose.msra.mxu0 0.0
    %4732 = vmatprep.subr.mxu0 0.0
    %4733 = vmatpush2.xpose.msra.mxu0 0.0
    %4734 = vmatprep.subr.mxu0 0.0
    %4735 = vmatpush2.xpose.msra.mxu0 0.0
    %4736 = vmatprep.subr.mxu0 0.0
    %4737 = vmatpush2.xpose.msra.mxu0 0.0
    %4738 = vmatprep.subr.mxu0 0.0
    %4739 = vmatpush2.xpose.msra.mxu0 0.0
    %4740 = vmatprep.subr.mxu0 0.0
    %4741 = vmatpush2.xpose.msra.mxu0 0.0
    %4742 = vmatprep.subr.mxu0 0.0
    %4743 = vmatpush2.xpose.msra.mxu0 0.0
    %4744 = vmatprep.subr.mxu0 0.0
    %4745 = vmatpush2.xpose.msra.mxu0 0.0
    %4746 = vmatprep.subr.mxu0 0.0
    %4747 = vmatpush2.xpose.msra.mxu0 0.0
    %4748 = vmatprep.subr.mxu0 0.0
    %4749 = vmatpush2.xpose.msra.mxu0 0.0
    %4750 = vmatprep.subr.mxu0 0.0
    %4751 = vmatpush2.xpose.msra.mxu0 0.0
    %4752 = vmatprep.subr.mxu0 0.0
    %4753 = vmatpush2.xpose.msra.mxu0 0.0
    %4754 = vmatprep.subr.mxu0 0.0
    %4755 = vmatpush2.xpose.msra.mxu0 0.0
    %4756 = vmatprep.mubr.f32.mxu0 0.0
    %4757 = vmatmul.mubr.f32.gmra.mxu0 %v4680
    %v4758 = vpop.f32.mrf.mxu0
    %v4759 = vadd.f32 0.0, %v4758
    %v4760 = vpop.f32.mrf.mxu0
    %4761 = vdwg.mxu0
    %4762 = vmatprep.subr.mxu0 0.0
    %4763 = vmatpush1.xpose.msra.mxu0 0.0
    %4764 = vmatprep.subr.mxu0 0.0
    %4765 = vmatpush1.xpose.msra.mxu0 0.0
    %4766 = vmatprep.subr.mxu0 0.0
    %4767 = vmatpush1.xpose.msra.mxu0 0.0
    %4768 = vmatprep.subr.mxu0 0.0
    %4769 = vmatpush1.xpose.msra.mxu0 0.0
    %4770 = vmatprep.subr.mxu0 0.0
    %4771 = vmatpush1.xpose.msra.mxu0 0.0
    %4772 = vmatprep.subr.mxu0 0.0
    %4773 = vmatpush1.xpose.msra.mxu0 0.0
    %4774 = vmatprep.subr.mxu0 0.0
    %4775 = vmatpush1.xpose.msra.mxu0 0.0
    %4776 = vmatprep.subr.mxu0 0.0
    %4777 = vmatpush1.xpose.msra.mxu0 0.0
    %4778 = vmatprep.subr.mxu0 0.0
    %4779 = vmatpush1.xpose.msra.mxu0 0.0
    %4780 = vmatprep.subr.mxu0 0.0
    %4781 = vmatpush1.xpose.msra.mxu0 0.0
    %4782 = vmatprep.subr.mxu0 0.0
    %4783 = vmatpush1.xpose.msra.mxu0 0.0
    %4784 = vmatprep.subr.mxu0 0.0
    %4785 = vmatpush1.xpose.msra.mxu0 0.0
    %4786 = vmatprep.subr.mxu0 0.0
    %4787 = vmatpush1.xpose.msra.mxu0 0.0
    %4788 = vmatprep.subr.mxu0 0.0
    %4789 = vmatpush1.xpose.msra.mxu0 0.0
    %4790 = vmatprep.subr.mxu0 0.0
    %4791 = vmatpush1.xpose.msra.mxu0 0.0
    %4792 = vmatprep.subr.mxu0 0.0
    %4793 = vmatpush1.xpose.msra.mxu0 %v4688
    %4794 = vmatprep.subr.mxu0 0.0
    %4795 = vmatpush2.xpose.msra.mxu0 0.0
    %4796 = vmatprep.subr.mxu0 0.0
    %4797 = vmatpush2.xpose.msra.mxu0 0.0
    %4798 = vmatprep.subr.mxu0 0.0
    %4799 = vmatpush2.xpose.msra.mxu0 0.0
    %4800 = vmatprep.subr.mxu0 0.0
    %4801 = vmatpush2.xpose.msra.mxu0 0.0
    %4802 = vmatprep.subr.mxu0 0.0
    %4803 = vmatpush2.xpose.msra.mxu0 0.0
    %4804 = vmatprep.subr.mxu0 0.0
    %4805 = vmatpush2.xpose.msra.mxu0 0.0
    %4806 = vmatprep.subr.mxu0 0.0
    %4807 = vmatpush2.xpose.msra.mxu0 0.0
    %4808 = vmatprep.subr.mxu0 0.0
    %4809 = vmatpush2.xpose.msra.mxu0 0.0
    %4810 = vmatprep.subr.mxu0 0.0
    %4811 = vmatpush2.xpose.msra.mxu0 0.0
    %4812 = vmatprep.subr.mxu0 0.0
    %4813 = vmatpush2.xpose.msra.mxu0 0.0
    %4814 = vmatprep.subr.mxu0 0.0
    %4815 = vmatpush2.xpose.msra.mxu0 0.0
    %4816 = vmatprep.subr.mxu0 0.0
    %4817 = vmatpush2.xpose.msra.mxu0 0.0
    %4818 = vmatprep.subr.mxu0 0.0
    %4819 = vmatpush2.xpose.msra.mxu0 0.0
    %4820 = vmatprep.subr.mxu0 0.0
    %4821 = vmatpush2.xpose.msra.mxu0 0.0
    %4822 = vmatprep.subr.mxu0 0.0
    %4823 = vmatpush2.xpose.msra.mxu0 0.0
    %4824 = vmatprep.subr.mxu0 0.0
    %4825 = vmatpush2.xpose.msra.mxu0 0.0
    %4826 = vmatprep.mubr.f32.mxu0 0.0
    %4827 = vmatmul.mubr.f32.gmra.mxu0 %v4686
    %v4828 = vpop.f32.mrf.mxu0
    %v4829 = vadd.f32 0.0, %v4828
    %v4830 = vpop.f32.mrf.mxu0
    %4831 = vdwg.mxu0
    %v4832 = vmul.f32 %v4759, 0.088388346
    %v4833 = vmul.f32 %v4829, 0.088388346
    %v4834 = vsel %vm298, %v4832, -inf
    %4835 = vmax.xlane.f32.xlu0 %v4834
    %v4836 = vpop.xlane.xlu0 %4835
    %v4837 = vsel %vm298, %v4833, -inf
    %4838 = vmax.xlane.f32.xlu0 %v4837
    %v4839 = vpop.xlane.xlu0 %4838
    %v4840 = vsub.f32 %v4832, %v4836
    %v4841 = vsub.f32 %v4833, %v4839
    %v4842 = vmul.f32 %v4840, 1.442695
    %v4843 = vpow.pop %v4842
    %v4844 = vmul.f32 %v4841, 1.442695
    %v4845 = vpow.pop %v4844
    %v4846 = vsel %vm298, %v4843, 0.0
    %4847 = vadd.xlane.f32.xlu0 %v4846
    %v4848 = vpop.xlane.xlu0 %4847
    %v4849 = vsel %vm298, %v4845, 0.0
    %4850 = vadd.xlane.f32.xlu0 %v4849
    %v4851 = vpop.xlane.xlu0 %4850
    %v4852 = vrcp.pop %v4848
    %v4853 = vmul.f32 %v4843, %v4852
    %v4854 = vrcp.pop %v4851
    %v4855 = vmul.f32 %v4845, %v4854
    %v4857 = vsel %vm298, %v4853, 0
    %4859 = vmatprep.subr.mxu0 0.0
    %4860 = vmatpush1.msra.mxu0 0.0
    %4861 = vmatprep.subr.mxu0 0.0
    %4862 = vmatpush1.msra.mxu0 0.0
    %4863 = vmatprep.subr.mxu0 0.0
    %4864 = vmatpush1.msra.mxu0 0.0
    %4865 = vmatprep.subr.mxu0 0.0
    %4866 = vmatpush1.msra.mxu0 0.0
    %4867 = vmatprep.subr.mxu0 0.0
    %4868 = vmatpush1.msra.mxu0 0.0
    %4869 = vmatprep.subr.mxu0 0.0
    %4870 = vmatpush1.msra.mxu0 0.0
    %4871 = vmatprep.subr.mxu0 0.0
    %4872 = vmatpush1.msra.mxu0 0.0
    %4873 = vmatprep.subr.mxu0 0.0
    %4874 = vmatpush1.msra.mxu0 0.0
    %4875 = vmatprep.subr.mxu0 0.0
    %4876 = vmatpush1.msra.mxu0 0.0
    %4877 = vmatprep.subr.mxu0 0.0
    %4878 = vmatpush1.msra.mxu0 0.0
    %4879 = vmatprep.subr.mxu0 0.0
    %4880 = vmatpush1.msra.mxu0 0.0
    %4881 = vmatprep.subr.mxu0 0.0
    %4882 = vmatpush1.msra.mxu0 0.0
    %4883 = vmatprep.subr.mxu0 0.0
    %4884 = vmatpush1.msra.mxu0 0.0
    %4885 = vmatprep.subr.mxu0 0.0
    %4886 = vmatpush1.msra.mxu0 0.0
    %4887 = vmatprep.subr.mxu0 0.0
    %4888 = vmatpush1.msra.mxu0 0.0
    %4889 = vmatprep.subr.mxu0 0.0
    %4890 = vmatpush1.msra.mxu0 %v4684
    %4891 = vmatprep.subr.mxu0 0.0
    %4892 = vmatpush2.msra.mxu0 0.0
    %4893 = vmatprep.subr.mxu0 0.0
    %4894 = vmatpush2.msra.mxu0 0.0
    %4895 = vmatprep.subr.mxu0 0.0
    %4896 = vmatpush2.msra.mxu0 0.0
    %4897 = vmatprep.subr.mxu0 0.0
    %4898 = vmatpush2.msra.mxu0 0.0
    %4899 = vmatprep.subr.mxu0 0.0
    %4900 = vmatpush2.msra.mxu0 0.0
    %4901 = vmatprep.subr.mxu0 0.0
    %4902 = vmatpush2.msra.mxu0 0.0
    %4903 = vmatprep.subr.mxu0 0.0
    %4904 = vmatpush2.msra.mxu0 0.0
    %4905 = vmatprep.subr.mxu0 0.0
    %4906 = vmatpush2.msra.mxu0 0.0
    %4907 = vmatprep.subr.mxu0 0.0
    %4908 = vmatpush2.msra.mxu0 0.0
    %4909 = vmatprep.subr.mxu0 0.0
    %4910 = vmatpush2.msra.mxu0 0.0
    %4911 = vmatprep.subr.mxu0 0.0
    %4912 = vmatpush2.msra.mxu0 0.0
    %4913 = vmatprep.subr.mxu0 0.0
    %4914 = vmatpush2.msra.mxu0 0.0
    %4915 = vmatprep.subr.mxu0 0.0
    %4916 = vmatpush2.msra.mxu0 0.0
    %4917 = vmatprep.subr.mxu0 0.0
    %4918 = vmatpush2.msra.mxu0 0.0
    %4919 = vmatprep.subr.mxu0 0.0
    %4920 = vmatpush2.msra.mxu0 0.0
    %4921 = vmatprep.subr.mxu0 0.0
    %4922 = vmatpush2.msra.mxu0 0.0
    %4923 = vmatprep.mubr.f32.mxu0 0.0
    %4924 = vmatmul.mubr.f32.gmra.mxu0 %v4857
    %v4925 = vpop.f32.mrf.mxu0
    %v4926 = vadd.f32 0.0, %v4925
    %v4927 = vpop.f32.mrf.mxu0
    %4928 = vdwg.mxu0
    %v4930 = vsel %vm298, %v4855, 0
    %4932 = vmatprep.subr.mxu0 0.0
    %4933 = vmatpush1.msra.mxu0 0.0
    %4934 = vmatprep.subr.mxu0 0.0
    %4935 = vmatpush1.msra.mxu0 0.0
    %4936 = vmatprep.subr.mxu0 0.0
    %4937 = vmatpush1.msra.mxu0 0.0
    %4938 = vmatprep.subr.mxu0 0.0
    %4939 = vmatpush1.msra.mxu0 0.0
    %4940 = vmatprep.subr.mxu0 0.0
    %4941 = vmatpush1.msra.mxu0 0.0
    %4942 = vmatprep.subr.mxu0 0.0
    %4943 = vmatpush1.msra.mxu0 0.0
    %4944 = vmatprep.subr.mxu0 0.0
    %4945 = vmatpush1.msra.mxu0 0.0
    %4946 = vmatprep.subr.mxu0 0.0
    %4947 = vmatpush1.msra.mxu0 0.0
    %4948 = vmatprep.subr.mxu0 0.0
    %4949 = vmatpush1.msra.mxu0 0.0
    %4950 = vmatprep.subr.mxu0 0.0
    %4951 = vmatpush1.msra.mxu0 0.0
    %4952 = vmatprep.subr.mxu0 0.0
    %4953 = vmatpush1.msra.mxu0 0.0
    %4954 = vmatprep.subr.mxu0 0.0
    %4955 = vmatpush1.msra.mxu0 0.0
    %4956 = vmatprep.subr.mxu0 0.0
    %4957 = vmatpush1.msra.mxu0 0.0
    %4958 = vmatprep.subr.mxu0 0.0
    %4959 = vmatpush1.msra.mxu0 0.0
    %4960 = vmatprep.subr.mxu0 0.0
    %4961 = vmatpush1.msra.mxu0 0.0
    %4962 = vmatprep.subr.mxu0 0.0
    %4963 = vmatpush1.msra.mxu0 %v4690
    %4964 = vmatprep.subr.mxu0 0.0
    %4965 = vmatpush2.msra.mxu0 0.0
    %4966 = vmatprep.subr.mxu0 0.0
    %4967 = vmatpush2.msra.mxu0 0.0
    %4968 = vmatprep.subr.mxu0 0.0
    %4969 = vmatpush2.msra.mxu0 0.0
    %4970 = vmatprep.subr.mxu0 0.0
    %4971 = vmatpush2.msra.mxu0 0.0
    %4972 = vmatprep.subr.mxu0 0.0
    %4973 = vmatpush2.msra.mxu0 0.0
    %4974 = vmatprep.subr.mxu0 0.0
    %4975 = vmatpush2.msra.mxu0 0.0
    %4976 = vmatprep.subr.mxu0 0.0
    %4977 = vmatpush2.msra.mxu0 0.0
    %4978 = vmatprep.subr.mxu0 0.0
    %4979 = vmatpush2.msra.mxu0 0.0
    %4980 = vmatprep.subr.mxu0 0.0
    %4981 = vmatpush2.msra.mxu0 0.0
    %4982 = vmatprep.subr.mxu0 0.0
    %4983 = vmatpush2.msra.mxu0 0.0
    %4984 = vmatprep.subr.mxu0 0.0
    %4985 = vmatpush2.msra.mxu0 0.0
    %4986 = vmatprep.subr.mxu0 0.0
    %4987 = vmatpush2.msra.mxu0 0.0
    %4988 = vmatprep.subr.mxu0 0.0
    %4989 = vmatpush2.msra.mxu0 0.0
    %4990 = vmatprep.subr.mxu0 0.0
    %4991 = vmatpush2.msra.mxu0 0.0
    %4992 = vmatprep.subr.mxu0 0.0
    %4993 = vmatpush2.msra.mxu0 0.0
    %4994 = vmatprep.subr.mxu0 0.0
    %4995 = vmatpush2.msra.mxu0 0.0
    %4996 = vmatprep.mubr.f32.mxu0 0.0
    %4997 = vmatmul.mubr.f32.gmra.mxu0 %v4930
    %v4998 = vpop.f32.mrf.mxu0
    %v4999 = vadd.f32 0.0, %v4998
    %v5000 = vpop.f32.mrf.mxu0
    %5001 = vdwg.mxu0
    %5002 = vmatprep.subr.mxu0 0.0
    %5003 = vmatpush1.xpose.msra.mxu0 0.0
    %5004 = vmatprep.subr.mxu0 0.0
    %5005 = vmatpush1.xpose.msra.mxu0 0.0
    %5006 = vmatprep.subr.mxu0 0.0
    %5007 = vmatpush1.xpose.msra.mxu0 0.0
    %5008 = vmatprep.subr.mxu0 0.0
    %5009 = vmatpush1.xpose.msra.mxu0 0.0
    %5010 = vmatprep.subr.mxu0 0.0
    %5011 = vmatpush1.xpose.msra.mxu0 0.0
    %5012 = vmatprep.subr.mxu0 0.0
    %5013 = vmatpush1.xpose.msra.mxu0 0.0
    %5014 = vmatprep.subr.mxu0 0.0
    %5015 = vmatpush1.xpose.msra.mxu0 0.0
    %5016 = vmatprep.subr.mxu0 0.0
    %5017 = vmatpush1.xpose.msra.mxu0 0.0
    %5018 = vmatprep.subr.mxu0 0.0
    %5019 = vmatpush1.xpose.msra.mxu0 0.0
    %5020 = vmatprep.subr.mxu0 0.0
    %5021 = vmatpush1.xpose.msra.mxu0 0.0
    %5022 = vmatprep.subr.mxu0 0.0
    %5023 = vmatpush1.xpose.msra.mxu0 0.0
    %5024 = vmatprep.subr.mxu0 0.0
    %5025 = vmatpush1.xpose.msra.mxu0 0.0
    %5026 = vmatprep.subr.mxu0 0.0
    %5027 = vmatpush1.xpose.msra.mxu0 0.0
    %5028 = vmatprep.subr.mxu0 0.0
    %5029 = vmatpush1.xpose.msra.mxu0 0.0
    %5030 = vmatprep.subr.mxu0 0.0
    %5031 = vmatpush1.xpose.msra.mxu0 0.0
    %5032 = vmatprep.subr.mxu0 0.0
    %5033 = vmatpush1.xpose.msra.mxu0 %v4683
    %5034 = vmatprep.subr.mxu0 0.0
    %5035 = vmatpush2.xpose.msra.mxu0 0.0
    %5036 = vmatprep.subr.mxu0 0.0
    %5037 = vmatpush2.xpose.msra.mxu0 0.0
    %5038 = vmatprep.subr.mxu0 0.0
    %5039 = vmatpush2.xpose.msra.mxu0 0.0
    %5040 = vmatprep.subr.mxu0 0.0
    %5041 = vmatpush2.xpose.msra.mxu0 0.0
    %5042 = vmatprep.subr.mxu0 0.0
    %5043 = vmatpush2.xpose.msra.mxu0 0.0
    %5044 = vmatprep.subr.mxu0 0.0
    %5045 = vmatpush2.xpose.msra.mxu0 0.0
    %5046 = vmatprep.subr.mxu0 0.0
    %5047 = vmatpush2.xpose.msra.mxu0 0.0
    %5048 = vmatprep.subr.mxu0 0.0
    %5049 = vmatpush2.xpose.msra.mxu0 0.0
    %5050 = vmatprep.subr.mxu0 0.0
    %5051 = vmatpush2.xpose.msra.mxu0 0.0
    %5052 = vmatprep.subr.mxu0 0.0
    %5053 = vmatpush2.xpose.msra.mxu0 0.0
    %5054 = vmatprep.subr.mxu0 0.0
    %5055 = vmatpush2.xpose.msra.mxu0 0.0
    %5056 = vmatprep.subr.mxu0 0.0
    %5057 = vmatpush2.xpose.msra.mxu0 0.0
    %5058 = vmatprep.subr.mxu0 0.0
    %5059 = vmatpush2.xpose.msra.mxu0 0.0
    %5060 = vmatprep.subr.mxu0 0.0
    %5061 = vmatpush2.xpose.msra.mxu0 0.0
    %5062 = vmatprep.subr.mxu0 0.0
    %5063 = vmatpush2.xpose.msra.mxu0 0.0
    %5064 = vmatprep.subr.mxu0 0.0
    %5065 = vmatpush2.xpose.msra.mxu0 0.0
    %5066 = vmatprep.mubr.f32.mxu0 0.0
    %5067 = vmatmul.mubr.f32.gmra.mxu0 %v4681
    %v5068 = vpop.f32.mrf.mxu0
    %v5069 = vadd.f32 0.0, %v5068
    %v5070 = vpop.f32.mrf.mxu0
    %5071 = vdwg.mxu0
    %5072 = vmatprep.subr.mxu0 0.0
    %5073 = vmatpush1.xpose.msra.mxu0 0.0
    %5074 = vmatprep.subr.mxu0 0.0
    %5075 = vmatpush1.xpose.msra.mxu0 0.0
    %5076 = vmatprep.subr.mxu0 0.0
    %5077 = vmatpush1.xpose.msra.mxu0 0.0
    %5078 = vmatprep.subr.mxu0 0.0
    %5079 = vmatpush1.xpose.msra.mxu0 0.0
    %5080 = vmatprep.subr.mxu0 0.0
    %5081 = vmatpush1.xpose.msra.mxu0 0.0
    %5082 = vmatprep.subr.mxu0 0.0
    %5083 = vmatpush1.xpose.msra.mxu0 0.0
    %5084 = vmatprep.subr.mxu0 0.0
    %5085 = vmatpush1.xpose.msra.mxu0 0.0
    %5086 = vmatprep.subr.mxu0 0.0
    %5087 = vmatpush1.xpose.msra.mxu0 0.0
    %5088 = vmatprep.subr.mxu0 0.0
    %5089 = vmatpush1.xpose.msra.mxu0 0.0
    %5090 = vmatprep.subr.mxu0 0.0
    %5091 = vmatpush1.xpose.msra.mxu0 0.0
    %5092 = vmatprep.subr.mxu0 0.0
    %5093 = vmatpush1.xpose.msra.mxu0 0.0
    %5094 = vmatprep.subr.mxu0 0.0
    %5095 = vmatpush1.xpose.msra.mxu0 0.0
    %5096 = vmatprep.subr.mxu0 0.0
    %5097 = vmatpush1.xpose.msra.mxu0 0.0
    %5098 = vmatprep.subr.mxu0 0.0
    %5099 = vmatpush1.xpose.msra.mxu0 0.0
    %5100 = vmatprep.subr.mxu0 0.0
    %5101 = vmatpush1.xpose.msra.mxu0 0.0
    %5102 = vmatprep.subr.mxu0 0.0
    %5103 = vmatpush1.xpose.msra.mxu0 %v4689
    %5104 = vmatprep.subr.mxu0 0.0
    %5105 = vmatpush2.xpose.msra.mxu0 0.0
    %5106 = vmatprep.subr.mxu0 0.0
    %5107 = vmatpush2.xpose.msra.mxu0 0.0
    %5108 = vmatprep.subr.mxu0 0.0
    %5109 = vmatpush2.xpose.msra.mxu0 0.0
    %5110 = vmatprep.subr.mxu0 0.0
    %5111 = vmatpush2.xpose.msra.mxu0 0.0
    %5112 = vmatprep.subr.mxu0 0.0
    %5113 = vmatpush2.xpose.msra.mxu0 0.0
    %5114 = vmatprep.subr.mxu0 0.0
    %5115 = vmatpush2.xpose.msra.mxu0 0.0
    %5116 = vmatprep.subr.mxu0 0.0
    %5117 = vmatpush2.xpose.msra.mxu0 0.0
    %5118 = vmatprep.subr.mxu0 0.0
    %5119 = vmatpush2.xpose.msra.mxu0 0.0
    %5120 = vmatprep.subr.mxu0 0.0
    %5121 = vmatpush2.xpose.msra.mxu0 0.0
    %5122 = vmatprep.subr.mxu0 0.0
    %5123 = vmatpush2.xpose.msra.mxu0 0.0
    %5124 = vmatprep.subr.mxu0 0.0
    %5125 = vmatpush2.xpose.msra.mxu0 0.0
    %5126 = vmatprep.subr.mxu0 0.0
    %5127 = vmatpush2.xpose.msra.mxu0 0.0
    %5128 = vmatprep.subr.mxu0 0.0
    %5129 = vmatpush2.xpose.msra.mxu0 0.0
    %5130 = vmatprep.subr.mxu0 0.0
    %5131 = vmatpush2.xpose.msra.mxu0 0.0
    %5132 = vmatprep.subr.mxu0 0.0
    %5133 = vmatpush2.xpose.msra.mxu0 0.0
    %5134 = vmatprep.subr.mxu0 0.0
    %5135 = vmatpush2.xpose.msra.mxu0 0.0
    %5136 = vmatprep.mubr.f32.mxu0 0.0
    %5137 = vmatmul.mubr.f32.gmra.mxu0 %v4687
    %v5138 = vpop.f32.mrf.mxu0
    %v5139 = vadd.f32 0.0, %v5138
    %v5140 = vpop.f32.mrf.mxu0
    %5141 = vdwg.mxu0
    %v5142 = vmul.f32 %v5069, 0.088388346
    %v5143 = vmul.f32 %v5139, 0.088388346
    %v5144 = vsel %vm298, %v5142, -inf
    %5145 = vmax.xlane.f32.xlu0 %v5144
    %v5146 = vpop.xlane.xlu0 %5145
    %v5147 = vsel %vm298, %v5143, -inf
    %5148 = vmax.xlane.f32.xlu0 %v5147
    %v5149 = vpop.xlane.xlu0 %5148
    %v5150 = vsub.f32 %v5142, %v5146
    %v5151 = vsub.f32 %v5143, %v5149
    %v5152 = vmul.f32 %v5150, 1.442695
    %v5153 = vpow.pop %v5152
    %v5154 = vmul.f32 %v5151, 1.442695
    %v5155 = vpow.pop %v5154
    %v5156 = vsel %vm298, %v5153, 0.0
    %5157 = vadd.xlane.f32.xlu0 %v5156
    %v5158 = vpop.xlane.xlu0 %5157
    %v5159 = vsel %vm298, %v5155, 0.0
    %5160 = vadd.xlane.f32.xlu0 %v5159
    %v5161 = vpop.xlane.xlu0 %5160
    %v5162 = vrcp.pop %v5158
    %v5163 = vmul.f32 %v5153, %v5162
    %v5164 = vrcp.pop %v5161
    %v5165 = vmul.f32 %v5155, %v5164
    %v5167 = vsel %vm298, %v5163, 0
    %5169 = vmatprep.subr.mxu0 0.0
    %5170 = vmatpush1.msra.mxu0 0.0
    %5171 = vmatprep.subr.mxu0 0.0
    %5172 = vmatpush1.msra.mxu0 0.0
    %5173 = vmatprep.subr.mxu0 0.0
    %5174 = vmatpush1.msra.mxu0 0.0
    %5175 = vmatprep.subr.mxu0 0.0
    %5176 = vmatpush1.msra.mxu0 0.0
    %5177 = vmatprep.subr.mxu0 0.0
    %5178 = vmatpush1.msra.mxu0 0.0
    %5179 = vmatprep.subr.mxu0 0.0
    %5180 = vmatpush1.msra.mxu0 0.0
    %5181 = vmatprep.subr.mxu0 0.0
    %5182 = vmatpush1.msra.mxu0 0.0
    %5183 = vmatprep.subr.mxu0 0.0
    %5184 = vmatpush1.msra.mxu0 0.0
    %5185 = vmatprep.subr.mxu0 0.0
    %5186 = vmatpush1.msra.mxu0 0.0
    %5187 = vmatprep.subr.mxu0 0.0
    %5188 = vmatpush1.msra.mxu0 0.0
    %5189 = vmatprep.subr.mxu0 0.0
    %5190 = vmatpush1.msra.mxu0 0.0
    %5191 = vmatprep.subr.mxu0 0.0
    %5192 = vmatpush1.msra.mxu0 0.0
    %5193 = vmatprep.subr.mxu0 0.0
    %5194 = vmatpush1.msra.mxu0 0.0
    %5195 = vmatprep.subr.mxu0 0.0
    %5196 = vmatpush1.msra.mxu0 0.0
    %5197 = vmatprep.subr.mxu0 0.0
    %5198 = vmatpush1.msra.mxu0 0.0
    %5199 = vmatprep.subr.mxu0 0.0
    %5200 = vmatpush1.msra.mxu0 %v4685
    %5201 = vmatprep.subr.mxu0 0.0
    %5202 = vmatpush2.msra.mxu0 0.0
    %5203 = vmatprep.subr.mxu0 0.0
    %5204 = vmatpush2.msra.mxu0 0.0
    %5205 = vmatprep.subr.mxu0 0.0
    %5206 = vmatpush2.msra.mxu0 0.0
    %5207 = vmatprep.subr.mxu0 0.0
    %5208 = vmatpush2.msra.mxu0 0.0
    %5209 = vmatprep.subr.mxu0 0.0
    %5210 = vmatpush2.msra.mxu0 0.0
    %5211 = vmatprep.subr.mxu0 0.0
    %5212 = vmatpush2.msra.mxu0 0.0
    %5213 = vmatprep.subr.mxu0 0.0
    %5214 = vmatpush2.msra.mxu0 0.0
    %5215 = vmatprep.subr.mxu0 0.0
    %5216 = vmatpush2.msra.mxu0 0.0
    %5217 = vmatprep.subr.mxu0 0.0
    %5218 = vmatpush2.msra.mxu0 0.0
    %5219 = vmatprep.subr.mxu0 0.0
    %5220 = vmatpush2.msra.mxu0 0.0
    %5221 = vmatprep.subr.mxu0 0.0
    %5222 = vmatpush2.msra.mxu0 0.0
    %5223 = vmatprep.subr.mxu0 0.0
    %5224 = vmatpush2.msra.mxu0 0.0
    %5225 = vmatprep.subr.mxu0 0.0
    %5226 = vmatpush2.msra.mxu0 0.0
    %5227 = vmatprep.subr.mxu0 0.0
    %5228 = vmatpush2.msra.mxu0 0.0
    %5229 = vmatprep.subr.mxu0 0.0
    %5230 = vmatpush2.msra.mxu0 0.0
    %5231 = vmatprep.subr.mxu0 0.0
    %5232 = vmatpush2.msra.mxu0 0.0
    %5233 = vmatprep.mubr.f32.mxu0 0.0
    %5234 = vmatmul.mubr.f32.gmra.mxu0 %v5167
    %v5235 = vpop.f32.mrf.mxu0
    %v5236 = vadd.f32 0.0, %v5235
    %v5237 = vpop.f32.mrf.mxu0
    %5238 = vdwg.mxu0
    %v5240 = vsel %vm298, %v5165, 0
    %5242 = vmatprep.subr.mxu0 0.0
    %5243 = vmatpush1.msra.mxu0 0.0
    %5244 = vmatprep.subr.mxu0 0.0
    %5245 = vmatpush1.msra.mxu0 0.0
    %5246 = vmatprep.subr.mxu0 0.0
    %5247 = vmatpush1.msra.mxu0 0.0
    %5248 = vmatprep.subr.mxu0 0.0
    %5249 = vmatpush1.msra.mxu0 0.0
    %5250 = vmatprep.subr.mxu0 0.0
    %5251 = vmatpush1.msra.mxu0 0.0
    %5252 = vmatprep.subr.mxu0 0.0
    %5253 = vmatpush1.msra.mxu0 0.0
    %5254 = vmatprep.subr.mxu0 0.0
    %5255 = vmatpush1.msra.mxu0 0.0
    %5256 = vmatprep.subr.mxu0 0.0
    %5257 = vmatpush1.msra.mxu0 0.0
    %5258 = vmatprep.subr.mxu0 0.0
    %5259 = vmatpush1.msra.mxu0 0.0
    %5260 = vmatprep.subr.mxu0 0.0
    %5261 = vmatpush1.msra.mxu0 0.0
    %5262 = vmatprep.subr.mxu0 0.0
    %5263 = vmatpush1.msra.mxu0 0.0
    %5264 = vmatprep.subr.mxu0 0.0
    %5265 = vmatpush1.msra.mxu0 0.0
    %5266 = vmatprep.subr.mxu0 0.0
    %5267 = vmatpush1.msra.mxu0 0.0
    %5268 = vmatprep.subr.mxu0 0.0
    %5269 = vmatpush1.msra.mxu0 0.0
    %5270 = vmatprep.subr.mxu0 0.0
    %5271 = vmatpush1.msra.mxu0 0.0
    %5272 = vmatprep.subr.mxu0 0.0
    %5273 = vmatpush1.msra.mxu0 %v4691
    %5274 = vmatprep.subr.mxu0 0.0
    %5275 = vmatpush2.msra.mxu0 0.0
    %5276 = vmatprep.subr.mxu0 0.0
    %5277 = vmatpush2.msra.mxu0 0.0
    %5278 = vmatprep.subr.mxu0 0.0
    %5279 = vmatpush2.msra.mxu0 0.0
    %5280 = vmatprep.subr.mxu0 0.0
    %5281 = vmatpush2.msra.mxu0 0.0
    %5282 = vmatprep.subr.mxu0 0.0
    %5283 = vmatpush2.msra.mxu0 0.0
    %5284 = vmatprep.subr.mxu0 0.0
    %5285 = vmatpush2.msra.mxu0 0.0
    %5286 = vmatprep.subr.mxu0 0.0
    %5287 = vmatpush2.msra.mxu0 0.0
    %5288 = vmatprep.subr.mxu0 0.0
    %5289 = vmatpush2.msra.mxu0 0.0
    %5290 = vmatprep.subr.mxu0 0.0
    %5291 = vmatpush2.msra.mxu0 0.0
    %5292 = vmatprep.subr.mxu0 0.0
    %5293 = vmatpush2.msra.mxu0 0.0
    %5294 = vmatprep.subr.mxu0 0.0
    %5295 = vmatpush2.msra.mxu0 0.0
    %5296 = vmatprep.subr.mxu0 0.0
    %5297 = vmatpush2.msra.mxu0 0.0
    %5298 = vmatprep.subr.mxu0 0.0
    %5299 = vmatpush2.msra.mxu0 0.0
    %5300 = vmatprep.subr.mxu0 0.0
    %5301 = vmatpush2.msra.mxu0 0.0
    %5302 = vmatprep.subr.mxu0 0.0
    %5303 = vmatpush2.msra.mxu0 0.0
    %5304 = vmatprep.subr.mxu0 0.0
    %5305 = vmatpush2.msra.mxu0 0.0
    %5306 = vmatprep.mubr.f32.mxu0 0.0
    %5307 = vmatmul.mubr.f32.gmra.mxu0 %v5240
    %v5308 = vpop.f32.mrf.mxu0
    %v5309 = vadd.f32 0.0, %v5308
    %v5310 = vpop.f32.mrf.mxu0
    %5311 = vdwg.mxu0
    %v5312 = vld [vmem:[#allocation16] sm:$0xff]
    %v5313 = vld [vmem:[#allocation16 + $0x8] sm:$0xff]
    %v5314 = vld [vmem:[#allocation16 + $0x10] sm:$0xff]
    %v5315 = vld [vmem:[#allocation16 + $0x18] sm:$0xff]
    %v5316 = vld [vmem:[#allocation16 + $0x20] sm:$0xff]
    %v5317 = vld [vmem:[#allocation16 + $0x28] sm:$0xff]
    %v5318 = vld [vmem:[#allocation16 + $0x30] sm:$0xff]
    %v5319 = vld [vmem:[#allocation16 + $0x38] sm:$0xff]
    %v5320 = vld [vmem:[#allocation16 + $0x40] sm:$0xff]
    %v5321 = vld [vmem:[#allocation16 + $0x48] sm:$0xff]
    %v5322 = vld [vmem:[#allocation16 + $0x50] sm:$0xff]
    %v5323 = vld [vmem:[#allocation16 + $0x58] sm:$0xff]
    %v5324 = vld [vmem:[#allocation16 + $0x60] sm:$0xff]
    %v5325 = vld [vmem:[#allocation16 + $0x68] sm:$0xff]
    %v5326 = vld [vmem:[#allocation16 + $0x70] sm:$0xff]
    %v5327 = vld [vmem:[#allocation16 + $0x78] sm:$0xff]
    %v5328 = vld [vmem:[#allocation16 + $0x80] sm:$0xff]
    %v5329 = vld [vmem:[#allocation16 + $0x88] sm:$0xff]
    %v5330 = vld [vmem:[#allocation16 + $0x90] sm:$0xff]
    %v5331 = vld [vmem:[#allocation16 + $0x98] sm:$0xff]
    %v5332 = vld [vmem:[#allocation16 + $0xa0] sm:$0xff]
    %v5333 = vld [vmem:[#allocation16 + $0xa8] sm:$0xff]
    %v5334 = vld [vmem:[#allocation16 + $0xb0] sm:$0xff]
    %v5335 = vld [vmem:[#allocation16 + $0xb8] sm:$0xff]
    %v5336 = vld [vmem:[#allocation16 + $0xc0] sm:$0xff]
    %v5337 = vld [vmem:[#allocation16 + $0xc8] sm:$0xff]
    %v5338 = vld [vmem:[#allocation16 + $0xd0] sm:$0xff]
    %v5339 = vld [vmem:[#allocation16 + $0xd8] sm:$0xff]
    %v5340 = vld [vmem:[#allocation16 + $0xe0] sm:$0xff]
    %v5341 = vld [vmem:[#allocation16 + $0xe8] sm:$0xff]
    %v5342 = vld [vmem:[#allocation16 + $0xf0] sm:$0xff]
    %v5343 = vld [vmem:[#allocation16 + $0xf8] sm:$0xff]
    %v5344 = vld [vmem:[#allocation16 + $0x100] sm:$0xff]
    %v5345 = vld [vmem:[#allocation16 + $0x108] sm:$0xff]
    %v5346 = vld [vmem:[#allocation16 + $0x110] sm:$0xff]
    %v5347 = vld [vmem:[#allocation16 + $0x118] sm:$0xff]
    %v5348 = vld [vmem:[#allocation16 + $0x120] sm:$0xff]
    %v5349 = vld [vmem:[#allocation16 + $0x128] sm:$0xff]
    %v5350 = vld [vmem:[#allocation16 + $0x130] sm:$0xff]
    %v5351 = vld [vmem:[#allocation16 + $0x138] sm:$0xff]
    %v5352 = vld [vmem:[#allocation16 + $0x140] sm:$0xff]
    %v5353 = vld [vmem:[#allocation16 + $0x148] sm:$0xff]
    %v5354 = vld [vmem:[#allocation16 + $0x150] sm:$0xff]
    %v5355 = vld [vmem:[#allocation16 + $0x158] sm:$0xff]
    %v5356 = vld [vmem:[#allocation16 + $0x160] sm:$0xff]
    %v5357 = vld [vmem:[#allocation16 + $0x168] sm:$0xff]
    %v5358 = vld [vmem:[#allocation16 + $0x170] sm:$0xff]
    %v5359 = vld [vmem:[#allocation16 + $0x178] sm:$0xff]
    %v5360 = vld [vmem:[#allocation16 + $0x180] sm:$0xff]
    %v5361 = vld [vmem:[#allocation16 + $0x188] sm:$0xff]
    %v5362 = vld [vmem:[#allocation16 + $0x190] sm:$0xff]
    %v5363 = vld [vmem:[#allocation16 + $0x198] sm:$0xff]
    %v5364 = vld [vmem:[#allocation16 + $0x1a0] sm:$0xff]
    %v5365 = vld [vmem:[#allocation16 + $0x1a8] sm:$0xff]
    %v5366 = vld [vmem:[#allocation16 + $0x1b0] sm:$0xff]
    %v5367 = vld [vmem:[#allocation16 + $0x1b8] sm:$0xff]
    %v5368 = vld [vmem:[#allocation16 + $0x1c0] sm:$0xff]
    %v5369 = vld [vmem:[#allocation16 + $0x1c8] sm:$0xff]
    %v5370 = vld [vmem:[#allocation16 + $0x1d0] sm:$0xff]
    %v5371 = vld [vmem:[#allocation16 + $0x1d8] sm:$0xff]
    %v5372 = vld [vmem:[#allocation16 + $0x1e0] sm:$0xff]
    %v5373 = vld [vmem:[#allocation16 + $0x1e8] sm:$0xff]
    %v5374 = vld [vmem:[#allocation16 + $0x1f0] sm:$0xff]
    %v5375 = vld [vmem:[#allocation16 + $0x1f8] sm:$0xff]
    %v5376 = vld [vmem:[%s43] sm:$0x3]
    %5377 = vmatprep.subr.mxu0 %v5343
    %5378 = vmatpush1.msra.mxu0 %v5342
    %5379 = vmatprep.subr.mxu0 %v5341
    %5380 = vmatpush1.msra.mxu0 %v5340
    %5381 = vmatprep.subr.mxu0 %v5339
    %5382 = vmatpush1.msra.mxu0 %v5338
    %5383 = vmatprep.subr.mxu0 %v5337
    %5384 = vmatpush1.msra.mxu0 %v5336
    %5385 = vmatprep.subr.mxu0 %v5335
    %5386 = vmatpush1.msra.mxu0 %v5334
    %5387 = vmatprep.subr.mxu0 %v5333
    %5388 = vmatpush1.msra.mxu0 %v5332
    %5389 = vmatprep.subr.mxu0 %v5331
    %5390 = vmatpush1.msra.mxu0 %v5330
    %5391 = vmatprep.subr.mxu0 %v5329
    %5392 = vmatpush1.msra.mxu0 %v5328
    %5393 = vmatprep.subr.mxu0 %v5327
    %5394 = vmatpush1.msra.mxu0 %v5326
    %5395 = vmatprep.subr.mxu0 %v5325
    %5396 = vmatpush1.msra.mxu0 %v5324
    %5397 = vmatprep.subr.mxu0 %v5323
    %5398 = vmatpush1.msra.mxu0 %v5322
    %5399 = vmatprep.subr.mxu0 %v5321
    %5400 = vmatpush1.msra.mxu0 %v5320
    %5401 = vmatprep.subr.mxu0 %v5319
    %5402 = vmatpush1.msra.mxu0 %v5318
    %5403 = vmatprep.subr.mxu0 %v5317
    %5404 = vmatpush1.msra.mxu0 %v5316
    %5405 = vmatprep.subr.mxu0 %v5315
    %5406 = vmatpush1.msra.mxu0 %v5314
    %5407 = vmatprep.subr.mxu0 %v5313
    %5408 = vmatpush1.msra.mxu0 %v5312
    %5409 = vmatprep.subr.mxu0 %v5375
    %5410 = vmatpush2.msra.mxu0 %v5374
    %5411 = vmatprep.subr.mxu0 %v5373
    %5412 = vmatpush2.msra.mxu0 %v5372
    %5413 = vmatprep.subr.mxu0 %v5371
    %5414 = vmatpush2.msra.mxu0 %v5370
    %5415 = vmatprep.subr.mxu0 %v5369
    %5416 = vmatpush2.msra.mxu0 %v5368
    %5417 = vmatprep.subr.mxu0 %v5367
    %5418 = vmatpush2.msra.mxu0 %v5366
    %5419 = vmatprep.subr.mxu0 %v5365
    %5420 = vmatpush2.msra.mxu0 %v5364
    %5421 = vmatprep.subr.mxu0 %v5363
    %5422 = vmatpush2.msra.mxu0 %v5362
    %5423 = vmatprep.subr.mxu0 %v5361
    %5424 = vmatpush2.msra.mxu0 %v5360
    %5425 = vmatprep.subr.mxu0 %v5359
    %5426 = vmatpush2.msra.mxu0 %v5358
    %5427 = vmatprep.subr.mxu0 %v5357
    %5428 = vmatpush2.msra.mxu0 %v5356
    %5429 = vmatprep.subr.mxu0 %v5355
    %5430 = vmatpush2.msra.mxu0 %v5354
    %5431 = vmatprep.subr.mxu0 %v5353
    %5432 = vmatpush2.msra.mxu0 %v5352
    %5433 = vmatprep.subr.mxu0 %v5351
    %5434 = vmatpush2.msra.mxu0 %v5350
    %5435 = vmatprep.subr.mxu0 %v5349
    %5436 = vmatpush2.msra.mxu0 %v5348
    %5437 = vmatprep.subr.mxu0 %v5347
    %5438 = vmatpush2.msra.mxu0 %v5346
    %5439 = vmatprep.subr.mxu0 %v5345
    %5440 = vmatpush2.msra.mxu0 %v5344
    %5441 = vmatprep.mubr.f32.mxu0 %v5236
    %5442 = vmatmul.mubr.f32.gmra.mxu0 %v4926
    %v5443 = vpop.f32.mrf.mxu0
    %v5444 = vadd.f32 0.0, %v5443
    %v5445 = vpop.f32.mrf.mxu0
    %v5446 = vadd.f32 0.0, %v5445
    %5447 = vmatprep.mubr.f32.mxu0 %v5309
    %5448 = vmatmul.mubr.f32.gmra.mxu0 %v4999
    %v5449 = vpop.f32.mrf.mxu0
    %v5450 = vadd.f32 0.0, %v5449
    %v5451 = vpop.f32.mrf.mxu0
    %v5452 = vadd.f32 0.0, %v5451
    %5453 = vdwg.mxu0
    %v5455 = vlaneseq
    %v5456 = vshrl.u32 %v5455, 7
    %v5457 = vsub.s32 0, %v5456
    %v5458 = vrot.slane %v5376, %v5457
    %v5459 = vlaneseq
    %v5460 = vshrl.u32 %v5459, 7
    %v5461 = vsub.s32 1, %v5460
    %v5462 = vrot.slane %v5376, %v5461
    %v5465 = vadd.f32 %v5444, %v5458
    %v5466 = vadd.f32 %v5446, %v5462
    %v5467 = vadd.f32 %v5450, %v5458
    %v5468 = vadd.f32 %v5452, %v5462
    %v5469 = vadd.f32 %v4221, %v5465
    %v5470 = vadd.f32 %v4222, %v5466
    %v5471 = vadd.f32 %v4223, %v5467
    %v5472 = vadd.f32 %v4224, %v5468
    %v5473 = vld [vmem:[%s45] sm:$0x3]
    %v5474 = vld [vmem:[%s47] sm:$0x3]
    %v5475 = vadd.f32 %v5469, %v5470
    %5476 = vadd.xlane.f32.xlu0 %v5475
    %v5477 = vpop.xlane.xlu0 %5476
    %v5478 = vadd.f32 %v5471, %v5472
    %5479 = vadd.xlane.f32.xlu0 %v5478
    %v5480 = vpop.xlane.xlu0 %5479
    %v5481 = vmul.f32 %v5477, %v941
    %v5482 = vmul.f32 %v5480, %v941
    %v5483 = vsub.f32 %v5469, %v5481
    %v5484 = vsub.f32 %v5470, %v5481
    %v5485 = vsub.f32 %v5471, %v5482
    %v5486 = vsub.f32 %v5472, %v5482
    %v5487 = vmul.f32 %v5483, %v5483
    %v5488 = vmul.f32 %v5484, %v5484
    %v5489 = vmul.f32 %v5485, %v5485
    %v5490 = vmul.f32 %v5486, %v5486
    %v5491 = vadd.f32 %v5487, %v5488
    %5492 = vadd.xlane.f32.xlu0 %v5491
    %v5493 = vpop.xlane.xlu0 %5492
    %v5494 = vadd.f32 %v5489, %v5490
    %5495 = vadd.xlane.f32.xlu0 %v5494
    %v5496 = vpop.xlane.xlu0 %5495
    %v5497 = vmul.f32 %v5493, %v1240
    %v5498 = vmul.f32 %v5496, %v1240
    %v5500 = vlaneseq
    %v5501 = vshrl.u32 %v5500, 7
    %v5502 = vsub.s32 0, %v5501
    %v5503 = vrot.slane %v5473, %v5502
    %v5504 = vlaneseq
    %v5505 = vshrl.u32 %v5504, 7
    %v5506 = vsub.s32 1, %v5505
    %v5507 = vrot.slane %v5473, %v5506
    %v5510 = vmul.f32 %v5503, %v5483
    %v5511 = vmul.f32 %v5507, %v5484
    %v5512 = vmul.f32 %v5503, %v5485
    %v5513 = vmul.f32 %v5507, %v5486
    %v5514 = vrsqrt.pop %v5497
    %v5515 = vmul.f32 %v5497, %v5514
    %vm5516 = vcmp.eq.f32.partialorder %v5497, inf
    %v5517 = vsel %vm5516, %v5497, %v5515
    %vm5518 = vcmp.eq.f32.partialorder %v5497, 0.0
    %v5519 = vand.u32 %v5497, 2147483648
    %v5520 = vsel %vm5518, %v5519, %v5517
    %v5521 = vrsqrt.pop %v5498
    %v5522 = vmul.f32 %v5498, %v5521
    %vm5523 = vcmp.eq.f32.partialorder %v5498, inf
    %v5524 = vsel %vm5523, %v5498, %v5522
    %vm5525 = vcmp.eq.f32.partialorder %v5498, 0.0
    %v5526 = vand.u32 %v5498, 2147483648
    %v5527 = vsel %vm5525, %v5526, %v5524
    %v5528 = vadd.f32 %v5520, 1e-09
    %v5529 = vadd.f32 %v5527, 1e-09
    %v5530 = vrcp.pop %v5528
    %v5531 = vmul.f32 %v5510, %v5530
    %v5532 = vmul.f32 %v5511, %v5530
    %v5533 = vrcp.pop %v5529
    %v5534 = vmul.f32 %v5512, %v5533
    %v5535 = vmul.f32 %v5513, %v5533
    %v5537 = vlaneseq
    %v5538 = vshrl.u32 %v5537, 7
    %v5539 = vsub.s32 0, %v5538
    %v5540 = vrot.slane %v5474, %v5539
    %v5541 = vlaneseq
    %v5542 = vshrl.u32 %v5541, 7
    %v5543 = vsub.s32 1, %v5542
    %v5544 = vrot.slane %v5474, %v5543
    %v5547 = vadd.f32 %v5531, %v5540
    %v5548 = vadd.f32 %v5532, %v5544
    %v5549 = vadd.f32 %v5534, %v5540
    %v5550 = vadd.f32 %v5535, %v5544
    %v5551 = vld [vmem:[#allocation17] sm:$0xff]
    %v5552 = vld [vmem:[#allocation17 + $0x8] sm:$0xff]
    %v5553 = vld [vmem:[#allocation17 + $0x10] sm:$0xff]
    %v5554 = vld [vmem:[#allocation17 + $0x18] sm:$0xff]
    %v5555 = vld [vmem:[#allocation17 + $0x20] sm:$0xff]
    %v5556 = vld [vmem:[#allocation17 + $0x28] sm:$0xff]
    %v5557 = vld [vmem:[#allocation17 + $0x30] sm:$0xff]
    %v5558 = vld [vmem:[#allocation17 + $0x38] sm:$0xff]
    %v5559 = vld [vmem:[#allocation17 + $0x40] sm:$0xff]
    %v5560 = vld [vmem:[#allocation17 + $0x48] sm:$0xff]
    %v5561 = vld [vmem:[#allocation17 + $0x50] sm:$0xff]
    %v5562 = vld [vmem:[#allocation17 + $0x58] sm:$0xff]
    %v5563 = vld [vmem:[#allocation17 + $0x60] sm:$0xff]
    %v5564 = vld [vmem:[#allocation17 + $0x68] sm:$0xff]
    %v5565 = vld [vmem:[#allocation17 + $0x70] sm:$0xff]
    %v5566 = vld [vmem:[#allocation17 + $0x78] sm:$0xff]
    %v5567 = vld [vmem:[#allocation17 + $0x80] sm:$0xff]
    %v5568 = vld [vmem:[#allocation17 + $0x88] sm:$0xff]
    %v5569 = vld [vmem:[#allocation17 + $0x90] sm:$0xff]
    %v5570 = vld [vmem:[#allocation17 + $0x98] sm:$0xff]
    %v5571 = vld [vmem:[#allocation17 + $0xa0] sm:$0xff]
    %v5572 = vld [vmem:[#allocation17 + $0xa8] sm:$0xff]
    %v5573 = vld [vmem:[#allocation17 + $0xb0] sm:$0xff]
    %v5574 = vld [vmem:[#allocation17 + $0xb8] sm:$0xff]
    %v5575 = vld [vmem:[#allocation17 + $0xc0] sm:$0xff]
    %v5576 = vld [vmem:[#allocation17 + $0xc8] sm:$0xff]
    %v5577 = vld [vmem:[#allocation17 + $0xd0] sm:$0xff]
    %v5578 = vld [vmem:[#allocation17 + $0xd8] sm:$0xff]
    %v5579 = vld [vmem:[#allocation17 + $0xe0] sm:$0xff]
    %v5580 = vld [vmem:[#allocation17 + $0xe8] sm:$0xff]
    %v5581 = vld [vmem:[#allocation17 + $0xf0] sm:$0xff]
    %v5582 = vld [vmem:[#allocation17 + $0xf8] sm:$0xff]
    %v5583 = vld [vmem:[#allocation17 + $0x100] sm:$0xff]
    %v5584 = vld [vmem:[#allocation17 + $0x108] sm:$0xff]
    %v5585 = vld [vmem:[#allocation17 + $0x110] sm:$0xff]
    %v5586 = vld [vmem:[#allocation17 + $0x118] sm:$0xff]
    %v5587 = vld [vmem:[#allocation17 + $0x120] sm:$0xff]
    %v5588 = vld [vmem:[#allocation17 + $0x128] sm:$0xff]
    %v5589 = vld [vmem:[#allocation17 + $0x130] sm:$0xff]
    %v5590 = vld [vmem:[#allocation17 + $0x138] sm:$0xff]
    %v5591 = vld [vmem:[#allocation17 + $0x140] sm:$0xff]
    %v5592 = vld [vmem:[#allocation17 + $0x148] sm:$0xff]
    %v5593 = vld [vmem:[#allocation17 + $0x150] sm:$0xff]
    %v5594 = vld [vmem:[#allocation17 + $0x158] sm:$0xff]
    %v5595 = vld [vmem:[#allocation17 + $0x160] sm:$0xff]
    %v5596 = vld [vmem:[#allocation17 + $0x168] sm:$0xff]
    %v5597 = vld [vmem:[#allocation17 + $0x170] sm:$0xff]
    %v5598 = vld [vmem:[#allocation17 + $0x178] sm:$0xff]
    %v5599 = vld [vmem:[#allocation17 + $0x180] sm:$0xff]
    %v5600 = vld [vmem:[#allocation17 + $0x188] sm:$0xff]
    %v5601 = vld [vmem:[#allocation17 + $0x190] sm:$0xff]
    %v5602 = vld [vmem:[#allocation17 + $0x198] sm:$0xff]
    %v5603 = vld [vmem:[#allocation17 + $0x1a0] sm:$0xff]
    %v5604 = vld [vmem:[#allocation17 + $0x1a8] sm:$0xff]
    %v5605 = vld [vmem:[#allocation17 + $0x1b0] sm:$0xff]
    %v5606 = vld [vmem:[#allocation17 + $0x1b8] sm:$0xff]
    %v5607 = vld [vmem:[#allocation17 + $0x1c0] sm:$0xff]
    %v5608 = vld [vmem:[#allocation17 + $0x1c8] sm:$0xff]
    %v5609 = vld [vmem:[#allocation17 + $0x1d0] sm:$0xff]
    %v5610 = vld [vmem:[#allocation17 + $0x1d8] sm:$0xff]
    %v5611 = vld [vmem:[#allocation17 + $0x1e0] sm:$0xff]
    %v5612 = vld [vmem:[#allocation17 + $0x1e8] sm:$0xff]
    %v5613 = vld [vmem:[#allocation17 + $0x1f0] sm:$0xff]
    %v5614 = vld [vmem:[#allocation17 + $0x1f8] sm:$0xff]
    %v5615 = vld [vmem:[#allocation17 + $0x200] sm:$0xff]
    %v5616 = vld [vmem:[#allocation17 + $0x208] sm:$0xff]
    %v5617 = vld [vmem:[#allocation17 + $0x210] sm:$0xff]
    %v5618 = vld [vmem:[#allocation17 + $0x218] sm:$0xff]
    %v5619 = vld [vmem:[#allocation17 + $0x220] sm:$0xff]
    %v5620 = vld [vmem:[#allocation17 + $0x228] sm:$0xff]
    %v5621 = vld [vmem:[#allocation17 + $0x230] sm:$0xff]
    %v5622 = vld [vmem:[#allocation17 + $0x238] sm:$0xff]
    %v5623 = vld [vmem:[#allocation17 + $0x240] sm:$0xff]
    %v5624 = vld [vmem:[#allocation17 + $0x248] sm:$0xff]
    %v5625 = vld [vmem:[#allocation17 + $0x250] sm:$0xff]
    %v5626 = vld [vmem:[#allocation17 + $0x258] sm:$0xff]
    %v5627 = vld [vmem:[#allocation17 + $0x260] sm:$0xff]
    %v5628 = vld [vmem:[#allocation17 + $0x268] sm:$0xff]
    %v5629 = vld [vmem:[#allocation17 + $0x270] sm:$0xff]
    %v5630 = vld [vmem:[#allocation17 + $0x278] sm:$0xff]
    %v5631 = vld [vmem:[#allocation17 + $0x280] sm:$0xff]
    %v5632 = vld [vmem:[#allocation17 + $0x288] sm:$0xff]
    %v5633 = vld [vmem:[#allocation17 + $0x290] sm:$0xff]
    %v5634 = vld [vmem:[#allocation17 + $0x298] sm:$0xff]
    %v5635 = vld [vmem:[#allocation17 + $0x2a0] sm:$0xff]
    %v5636 = vld [vmem:[#allocation17 + $0x2a8] sm:$0xff]
    %v5637 = vld [vmem:[#allocation17 + $0x2b0] sm:$0xff]
    %v5638 = vld [vmem:[#allocation17 + $0x2b8] sm:$0xff]
    %v5639 = vld [vmem:[#allocation17 + $0x2c0] sm:$0xff]
    %v5640 = vld [vmem:[#allocation17 + $0x2c8] sm:$0xff]
    %v5641 = vld [vmem:[#allocation17 + $0x2d0] sm:$0xff]
    %v5642 = vld [vmem:[#allocation17 + $0x2d8] sm:$0xff]
    %v5643 = vld [vmem:[#allocation17 + $0x2e0] sm:$0xff]
    %v5644 = vld [vmem:[#allocation17 + $0x2e8] sm:$0xff]
    %v5645 = vld [vmem:[#allocation17 + $0x2f0] sm:$0xff]
    %v5646 = vld [vmem:[#allocation17 + $0x2f8] sm:$0xff]
    %v5647 = vld [vmem:[#allocation17 + $0x300] sm:$0xff]
    %v5648 = vld [vmem:[#allocation17 + $0x308] sm:$0xff]
    %v5649 = vld [vmem:[#allocation17 + $0x310] sm:$0xff]
    %v5650 = vld [vmem:[#allocation17 + $0x318] sm:$0xff]
    %v5651 = vld [vmem:[#allocation17 + $0x320] sm:$0xff]
    %v5652 = vld [vmem:[#allocation17 + $0x328] sm:$0xff]
    %v5653 = vld [vmem:[#allocation17 + $0x330] sm:$0xff]
    %v5654 = vld [vmem:[#allocation17 + $0x338] sm:$0xff]
    %v5655 = vld [vmem:[#allocation17 + $0x340] sm:$0xff]
    %v5656 = vld [vmem:[#allocation17 + $0x348] sm:$0xff]
    %v5657 = vld [vmem:[#allocation17 + $0x350] sm:$0xff]
    %v5658 = vld [vmem:[#allocation17 + $0x358] sm:$0xff]
    %v5659 = vld [vmem:[#allocation17 + $0x360] sm:$0xff]
    %v5660 = vld [vmem:[#allocation17 + $0x368] sm:$0xff]
    %v5661 = vld [vmem:[#allocation17 + $0x370] sm:$0xff]
    %v5662 = vld [vmem:[#allocation17 + $0x378] sm:$0xff]
    %v5663 = vld [vmem:[#allocation17 + $0x380] sm:$0xff]
    %v5664 = vld [vmem:[#allocation17 + $0x388] sm:$0xff]
    %v5665 = vld [vmem:[#allocation17 + $0x390] sm:$0xff]
    %v5666 = vld [vmem:[#allocation17 + $0x398] sm:$0xff]
    %v5667 = vld [vmem:[#allocation17 + $0x3a0] sm:$0xff]
    %v5668 = vld [vmem:[#allocation17 + $0x3a8] sm:$0xff]
    %v5669 = vld [vmem:[#allocation17 + $0x3b0] sm:$0xff]
    %v5670 = vld [vmem:[#allocation17 + $0x3b8] sm:$0xff]
    %v5671 = vld [vmem:[#allocation17 + $0x3c0] sm:$0xff]
    %v5672 = vld [vmem:[#allocation17 + $0x3c8] sm:$0xff]
    %v5673 = vld [vmem:[#allocation17 + $0x3d0] sm:$0xff]
    %v5674 = vld [vmem:[#allocation17 + $0x3d8] sm:$0xff]
    %v5675 = vld [vmem:[#allocation17 + $0x3e0] sm:$0xff]
    %v5676 = vld [vmem:[#allocation17 + $0x3e8] sm:$0xff]
    %v5677 = vld [vmem:[#allocation17 + $0x3f0] sm:$0xff]
    %v5678 = vld [vmem:[#allocation17 + $0x3f8] sm:$0xff]
    %v5679 = vld [vmem:[#allocation17 + $0x400] sm:$0xff]
    %v5680 = vld [vmem:[#allocation17 + $0x408] sm:$0xff]
    %v5681 = vld [vmem:[#allocation17 + $0x410] sm:$0xff]
    %v5682 = vld [vmem:[#allocation17 + $0x418] sm:$0xff]
    %v5683 = vld [vmem:[#allocation17 + $0x420] sm:$0xff]
    %v5684 = vld [vmem:[#allocation17 + $0x428] sm:$0xff]
    %v5685 = vld [vmem:[#allocation17 + $0x430] sm:$0xff]
    %v5686 = vld [vmem:[#allocation17 + $0x438] sm:$0xff]
    %v5687 = vld [vmem:[#allocation17 + $0x440] sm:$0xff]
    %v5688 = vld [vmem:[#allocation17 + $0x448] sm:$0xff]
    %v5689 = vld [vmem:[#allocation17 + $0x450] sm:$0xff]
    %v5690 = vld [vmem:[#allocation17 + $0x458] sm:$0xff]
    %v5691 = vld [vmem:[#allocation17 + $0x460] sm:$0xff]
    %v5692 = vld [vmem:[#allocation17 + $0x468] sm:$0xff]
    %v5693 = vld [vmem:[#allocation17 + $0x470] sm:$0xff]
    %v5694 = vld [vmem:[#allocation17 + $0x478] sm:$0xff]
    %v5695 = vld [vmem:[#allocation17 + $0x480] sm:$0xff]
    %v5696 = vld [vmem:[#allocation17 + $0x488] sm:$0xff]
    %v5697 = vld [vmem:[#allocation17 + $0x490] sm:$0xff]
    %v5698 = vld [vmem:[#allocation17 + $0x498] sm:$0xff]
    %v5699 = vld [vmem:[#allocation17 + $0x4a0] sm:$0xff]
    %v5700 = vld [vmem:[#allocation17 + $0x4a8] sm:$0xff]
    %v5701 = vld [vmem:[#allocation17 + $0x4b0] sm:$0xff]
    %v5702 = vld [vmem:[#allocation17 + $0x4b8] sm:$0xff]
    %v5703 = vld [vmem:[#allocation17 + $0x4c0] sm:$0xff]
    %v5704 = vld [vmem:[#allocation17 + $0x4c8] sm:$0xff]
    %v5705 = vld [vmem:[#allocation17 + $0x4d0] sm:$0xff]
    %v5706 = vld [vmem:[#allocation17 + $0x4d8] sm:$0xff]
    %v5707 = vld [vmem:[#allocation17 + $0x4e0] sm:$0xff]
    %v5708 = vld [vmem:[#allocation17 + $0x4e8] sm:$0xff]
    %v5709 = vld [vmem:[#allocation17 + $0x4f0] sm:$0xff]
    %v5710 = vld [vmem:[#allocation17 + $0x4f8] sm:$0xff]
    %v5711 = vld [vmem:[#allocation17 + $0x500] sm:$0xff]
    %v5712 = vld [vmem:[#allocation17 + $0x508] sm:$0xff]
    %v5713 = vld [vmem:[#allocation17 + $0x510] sm:$0xff]
    %v5714 = vld [vmem:[#allocation17 + $0x518] sm:$0xff]
    %v5715 = vld [vmem:[#allocation17 + $0x520] sm:$0xff]
    %v5716 = vld [vmem:[#allocation17 + $0x528] sm:$0xff]
    %v5717 = vld [vmem:[#allocation17 + $0x530] sm:$0xff]
    %v5718 = vld [vmem:[#allocation17 + $0x538] sm:$0xff]
    %v5719 = vld [vmem:[#allocation17 + $0x540] sm:$0xff]
    %v5720 = vld [vmem:[#allocation17 + $0x548] sm:$0xff]
    %v5721 = vld [vmem:[#allocation17 + $0x550] sm:$0xff]
    %v5722 = vld [vmem:[#allocation17 + $0x558] sm:$0xff]
    %v5723 = vld [vmem:[#allocation17 + $0x560] sm:$0xff]
    %v5724 = vld [vmem:[#allocation17 + $0x568] sm:$0xff]
    %v5725 = vld [vmem:[#allocation17 + $0x570] sm:$0xff]
    %v5726 = vld [vmem:[#allocation17 + $0x578] sm:$0xff]
    %v5727 = vld [vmem:[#allocation17 + $0x580] sm:$0xff]
    %v5728 = vld [vmem:[#allocation17 + $0x588] sm:$0xff]
    %v5729 = vld [vmem:[#allocation17 + $0x590] sm:$0xff]
    %v5730 = vld [vmem:[#allocation17 + $0x598] sm:$0xff]
    %v5731 = vld [vmem:[#allocation17 + $0x5a0] sm:$0xff]
    %v5732 = vld [vmem:[#allocation17 + $0x5a8] sm:$0xff]
    %v5733 = vld [vmem:[#allocation17 + $0x5b0] sm:$0xff]
    %v5734 = vld [vmem:[#allocation17 + $0x5b8] sm:$0xff]
    %v5735 = vld [vmem:[#allocation17 + $0x5c0] sm:$0xff]
    %v5736 = vld [vmem:[#allocation17 + $0x5c8] sm:$0xff]
    %v5737 = vld [vmem:[#allocation17 + $0x5d0] sm:$0xff]
    %v5738 = vld [vmem:[#allocation17 + $0x5d8] sm:$0xff]
    %v5739 = vld [vmem:[#allocation17 + $0x5e0] sm:$0xff]
    %v5740 = vld [vmem:[#allocation17 + $0x5e8] sm:$0xff]
    %v5741 = vld [vmem:[#allocation17 + $0x5f0] sm:$0xff]
    %v5742 = vld [vmem:[#allocation17 + $0x5f8] sm:$0xff]
    %v5743 = vld [vmem:[#allocation17 + $0x600] sm:$0xff]
    %v5744 = vld [vmem:[#allocation17 + $0x608] sm:$0xff]
    %v5745 = vld [vmem:[#allocation17 + $0x610] sm:$0xff]
    %v5746 = vld [vmem:[#allocation17 + $0x618] sm:$0xff]
    %v5747 = vld [vmem:[#allocation17 + $0x620] sm:$0xff]
    %v5748 = vld [vmem:[#allocation17 + $0x628] sm:$0xff]
    %v5749 = vld [vmem:[#allocation17 + $0x630] sm:$0xff]
    %v5750 = vld [vmem:[#allocation17 + $0x638] sm:$0xff]
    %v5751 = vld [vmem:[#allocation17 + $0x640] sm:$0xff]
    %v5752 = vld [vmem:[#allocation17 + $0x648] sm:$0xff]
    %v5753 = vld [vmem:[#allocation17 + $0x650] sm:$0xff]
    %v5754 = vld [vmem:[#allocation17 + $0x658] sm:$0xff]
    %v5755 = vld [vmem:[#allocation17 + $0x660] sm:$0xff]
    %v5756 = vld [vmem:[#allocation17 + $0x668] sm:$0xff]
    %v5757 = vld [vmem:[#allocation17 + $0x670] sm:$0xff]
    %v5758 = vld [vmem:[#allocation17 + $0x678] sm:$0xff]
    %v5759 = vld [vmem:[#allocation17 + $0x680] sm:$0xff]
    %v5760 = vld [vmem:[#allocation17 + $0x688] sm:$0xff]
    %v5761 = vld [vmem:[#allocation17 + $0x690] sm:$0xff]
    %v5762 = vld [vmem:[#allocation17 + $0x698] sm:$0xff]
    %v5763 = vld [vmem:[#allocation17 + $0x6a0] sm:$0xff]
    %v5764 = vld [vmem:[#allocation17 + $0x6a8] sm:$0xff]
    %v5765 = vld [vmem:[#allocation17 + $0x6b0] sm:$0xff]
    %v5766 = vld [vmem:[#allocation17 + $0x6b8] sm:$0xff]
    %v5767 = vld [vmem:[#allocation17 + $0x6c0] sm:$0xff]
    %v5768 = vld [vmem:[#allocation17 + $0x6c8] sm:$0xff]
    %v5769 = vld [vmem:[#allocation17 + $0x6d0] sm:$0xff]
    %v5770 = vld [vmem:[#allocation17 + $0x6d8] sm:$0xff]
    %v5771 = vld [vmem:[#allocation17 + $0x6e0] sm:$0xff]
    %v5772 = vld [vmem:[#allocation17 + $0x6e8] sm:$0xff]
    %v5773 = vld [vmem:[#allocation17 + $0x6f0] sm:$0xff]
    %v5774 = vld [vmem:[#allocation17 + $0x6f8] sm:$0xff]
    %v5775 = vld [vmem:[#allocation17 + $0x700] sm:$0xff]
    %v5776 = vld [vmem:[#allocation17 + $0x708] sm:$0xff]
    %v5777 = vld [vmem:[#allocation17 + $0x710] sm:$0xff]
    %v5778 = vld [vmem:[#allocation17 + $0x718] sm:$0xff]
    %v5779 = vld [vmem:[#allocation17 + $0x720] sm:$0xff]
    %v5780 = vld [vmem:[#allocation17 + $0x728] sm:$0xff]
    %v5781 = vld [vmem:[#allocation17 + $0x730] sm:$0xff]
    %v5782 = vld [vmem:[#allocation17 + $0x738] sm:$0xff]
    %v5783 = vld [vmem:[#allocation17 + $0x740] sm:$0xff]
    %v5784 = vld [vmem:[#allocation17 + $0x748] sm:$0xff]
    %v5785 = vld [vmem:[#allocation17 + $0x750] sm:$0xff]
    %v5786 = vld [vmem:[#allocation17 + $0x758] sm:$0xff]
    %v5787 = vld [vmem:[#allocation17 + $0x760] sm:$0xff]
    %v5788 = vld [vmem:[#allocation17 + $0x768] sm:$0xff]
    %v5789 = vld [vmem:[#allocation17 + $0x770] sm:$0xff]
    %v5790 = vld [vmem:[#allocation17 + $0x778] sm:$0xff]
    %v5791 = vld [vmem:[#allocation17 + $0x780] sm:$0xff]
    %v5792 = vld [vmem:[#allocation17 + $0x788] sm:$0xff]
    %v5793 = vld [vmem:[#allocation17 + $0x790] sm:$0xff]
    %v5794 = vld [vmem:[#allocation17 + $0x798] sm:$0xff]
    %v5795 = vld [vmem:[#allocation17 + $0x7a0] sm:$0xff]
    %v5796 = vld [vmem:[#allocation17 + $0x7a8] sm:$0xff]
    %v5797 = vld [vmem:[#allocation17 + $0x7b0] sm:$0xff]
    %v5798 = vld [vmem:[#allocation17 + $0x7b8] sm:$0xff]
    %v5799 = vld [vmem:[#allocation17 + $0x7c0] sm:$0xff]
    %v5800 = vld [vmem:[#allocation17 + $0x7c8] sm:$0xff]
    %v5801 = vld [vmem:[#allocation17 + $0x7d0] sm:$0xff]
    %v5802 = vld [vmem:[#allocation17 + $0x7d8] sm:$0xff]
    %v5803 = vld [vmem:[#allocation17 + $0x7e0] sm:$0xff]
    %v5804 = vld [vmem:[#allocation17 + $0x7e8] sm:$0xff]
    %v5805 = vld [vmem:[#allocation17 + $0x7f0] sm:$0xff]
    %v5806 = vld [vmem:[#allocation17 + $0x7f8] sm:$0xff]
    %v5807 = vld [vmem:[%s51] sm:$0xff]
    %5808 = vmatprep.subr.mxu0 %v5672
    %5809 = vmatpush1.msra.mxu0 %v5671
    %5810 = vmatprep.subr.mxu0 %v5664
    %5811 = vmatpush1.msra.mxu0 %v5663
    %5812 = vmatprep.subr.mxu0 %v5656
    %5813 = vmatpush1.msra.mxu0 %v5655
    %5814 = vmatprep.subr.mxu0 %v5648
    %5815 = vmatpush1.msra.mxu0 %v5647
    %5816 = vmatprep.subr.mxu0 %v5640
    %5817 = vmatpush1.msra.mxu0 %v5639
    %5818 = vmatprep.subr.mxu0 %v5632
    %5819 = vmatpush1.msra.mxu0 %v5631
    %5820 = vmatprep.subr.mxu0 %v5624
    %5821 = vmatpush1.msra.mxu0 %v5623
    %5822 = vmatprep.subr.mxu0 %v5616
    %5823 = vmatpush1.msra.mxu0 %v5615
    %5824 = vmatprep.subr.mxu0 %v5608
    %5825 = vmatpush1.msra.mxu0 %v5607
    %5826 = vmatprep.subr.mxu0 %v5600
    %5827 = vmatpush1.msra.mxu0 %v5599
    %5828 = vmatprep.subr.mxu0 %v5592
    %5829 = vmatpush1.msra.mxu0 %v5591
    %5830 = vmatprep.subr.mxu0 %v5584
    %5831 = vmatpush1.msra.mxu0 %v5583
    %5832 = vmatprep.subr.mxu0 %v5576
    %5833 = vmatpush1.msra.mxu0 %v5575
    %5834 = vmatprep.subr.mxu0 %v5568
    %5835 = vmatpush1.msra.mxu0 %v5567
    %5836 = vmatprep.subr.mxu0 %v5560
    %5837 = vmatpush1.msra.mxu0 %v5559
    %5838 = vmatprep.subr.mxu0 %v5552
    %5839 = vmatpush1.msra.mxu0 %v5551
    %5840 = vmatprep.subr.mxu0 %v5800
    %5841 = vmatpush2.msra.mxu0 %v5799
    %5842 = vmatprep.subr.mxu0 %v5792
    %5843 = vmatpush2.msra.mxu0 %v5791
    %5844 = vmatprep.subr.mxu0 %v5784
    %5845 = vmatpush2.msra.mxu0 %v5783
    %5846 = vmatprep.subr.mxu0 %v5776
    %5847 = vmatpush2.msra.mxu0 %v5775
    %5848 = vmatprep.subr.mxu0 %v5768
    %5849 = vmatpush2.msra.mxu0 %v5767
    %5850 = vmatprep.subr.mxu0 %v5760
    %5851 = vmatpush2.msra.mxu0 %v5759
    %5852 = vmatprep.subr.mxu0 %v5752
    %5853 = vmatpush2.msra.mxu0 %v5751
    %5854 = vmatprep.subr.mxu0 %v5744
    %5855 = vmatpush2.msra.mxu0 %v5743
    %5856 = vmatprep.subr.mxu0 %v5736
    %5857 = vmatpush2.msra.mxu0 %v5735
    %5858 = vmatprep.subr.mxu0 %v5728
    %5859 = vmatpush2.msra.mxu0 %v5727
    %5860 = vmatprep.subr.mxu0 %v5720
    %5861 = vmatpush2.msra.mxu0 %v5719
    %5862 = vmatprep.subr.mxu0 %v5712
    %5863 = vmatpush2.msra.mxu0 %v5711
    %5864 = vmatprep.subr.mxu0 %v5704
    %5865 = vmatpush2.msra.mxu0 %v5703
    %5866 = vmatprep.subr.mxu0 %v5696
    %5867 = vmatpush2.msra.mxu0 %v5695
    %5868 = vmatprep.subr.mxu0 %v5688
    %5869 = vmatpush2.msra.mxu0 %v5687
    %5870 = vmatprep.subr.mxu0 %v5680
    %5871 = vmatpush2.msra.mxu0 %v5679
    %5872 = vmatprep.mubr.f32.mxu0 %v5548
    %5873 = vmatmul.mubr.f32.gmra.mxu0 %v5547
    %v5874 = vpop.f32.mrf.mxu0
    %v5875 = vadd.f32 0.0, %v5874
    %v5876 = vpop.f32.mrf.mxu0
    %v5877 = vadd.f32 0.0, %v5876
    %5878 = vmatprep.mubr.f32.mxu0 %v5550
    %5879 = vmatmul.mubr.f32.gmra.mxu0 %v5549
    %v5880 = vpop.f32.mrf.mxu0
    %v5881 = vadd.f32 0.0, %v5880
    %v5882 = vpop.f32.mrf.mxu0
    %v5883 = vadd.f32 0.0, %v5882
    %5884 = vdwg.mxu0
    %5885 = vmatprep.subr.mxu0 %v5674
    %5886 = vmatpush1.msra.mxu0 %v5673
    %5887 = vmatprep.subr.mxu0 %v5666
    %5888 = vmatpush1.msra.mxu0 %v5665
    %5889 = vmatprep.subr.mxu0 %v5658
    %5890 = vmatpush1.msra.mxu0 %v5657
    %5891 = vmatprep.subr.mxu0 %v5650
    %5892 = vmatpush1.msra.mxu0 %v5649
    %5893 = vmatprep.subr.mxu0 %v5642
    %5894 = vmatpush1.msra.mxu0 %v5641
    %5895 = vmatprep.subr.mxu0 %v5634
    %5896 = vmatpush1.msra.mxu0 %v5633
    %5897 = vmatprep.subr.mxu0 %v5626
    %5898 = vmatpush1.msra.mxu0 %v5625
    %5899 = vmatprep.subr.mxu0 %v5618
    %5900 = vmatpush1.msra.mxu0 %v5617
    %5901 = vmatprep.subr.mxu0 %v5610
    %5902 = vmatpush1.msra.mxu0 %v5609
    %5903 = vmatprep.subr.mxu0 %v5602
    %5904 = vmatpush1.msra.mxu0 %v5601
    %5905 = vmatprep.subr.mxu0 %v5594
    %5906 = vmatpush1.msra.mxu0 %v5593
    %5907 = vmatprep.subr.mxu0 %v5586
    %5908 = vmatpush1.msra.mxu0 %v5585
    %5909 = vmatprep.subr.mxu0 %v5578
    %5910 = vmatpush1.msra.mxu0 %v5577
    %5911 = vmatprep.subr.mxu0 %v5570
    %5912 = vmatpush1.msra.mxu0 %v5569
    %5913 = vmatprep.subr.mxu0 %v5562
    %5914 = vmatpush1.msra.mxu0 %v5561
    %5915 = vmatprep.subr.mxu0 %v5554
    %5916 = vmatpush1.msra.mxu0 %v5553
    %5917 = vmatprep.subr.mxu0 %v5802
    %5918 = vmatpush2.msra.mxu0 %v5801
    %5919 = vmatprep.subr.mxu0 %v5794
    %5920 = vmatpush2.msra.mxu0 %v5793
    %5921 = vmatprep.subr.mxu0 %v5786
    %5922 = vmatpush2.msra.mxu0 %v5785
    %5923 = vmatprep.subr.mxu0 %v5778
    %5924 = vmatpush2.msra.mxu0 %v5777
    %5925 = vmatprep.subr.mxu0 %v5770
    %5926 = vmatpush2.msra.mxu0 %v5769
    %5927 = vmatprep.subr.mxu0 %v5762
    %5928 = vmatpush2.msra.mxu0 %v5761
    %5929 = vmatprep.subr.mxu0 %v5754
    %5930 = vmatpush2.msra.mxu0 %v5753
    %5931 = vmatprep.subr.mxu0 %v5746
    %5932 = vmatpush2.msra.mxu0 %v5745
    %5933 = vmatprep.subr.mxu0 %v5738
    %5934 = vmatpush2.msra.mxu0 %v5737
    %5935 = vmatprep.subr.mxu0 %v5730
    %5936 = vmatpush2.msra.mxu0 %v5729
    %5937 = vmatprep.subr.mxu0 %v5722
    %5938 = vmatpush2.msra.mxu0 %v5721
    %5939 = vmatprep.subr.mxu0 %v5714
    %5940 = vmatpush2.msra.mxu0 %v5713
    %5941 = vmatprep.subr.mxu0 %v5706
    %5942 = vmatpush2.msra.mxu0 %v5705
    %5943 = vmatprep.subr.mxu0 %v5698
    %5944 = vmatpush2.msra.mxu0 %v5697
    %5945 = vmatprep.subr.mxu0 %v5690
    %5946 = vmatpush2.msra.mxu0 %v5689
    %5947 = vmatprep.subr.mxu0 %v5682
    %5948 = vmatpush2.msra.mxu0 %v5681
    %5949 = vmatprep.mubr.f32.mxu0 %v5548
    %5950 = vmatmul.mubr.f32.gmra.mxu0 %v5547
    %v5951 = vpop.f32.mrf.mxu0
    %v5952 = vadd.f32 0.0, %v5951
    %v5953 = vpop.f32.mrf.mxu0
    %v5954 = vadd.f32 0.0, %v5953
    %5955 = vmatprep.mubr.f32.mxu0 %v5550
    %5956 = vmatmul.mubr.f32.gmra.mxu0 %v5549
    %v5957 = vpop.f32.mrf.mxu0
    %v5958 = vadd.f32 0.0, %v5957
    %v5959 = vpop.f32.mrf.mxu0
    %v5960 = vadd.f32 0.0, %v5959
    %5961 = vdwg.mxu0
    %5962 = vmatprep.subr.mxu0 %v5676
    %5963 = vmatpush1.msra.mxu0 %v5675
    %5964 = vmatprep.subr.mxu0 %v5668
    %5965 = vmatpush1.msra.mxu0 %v5667
    %5966 = vmatprep.subr.mxu0 %v5660
    %5967 = vmatpush1.msra.mxu0 %v5659
    %5968 = vmatprep.subr.mxu0 %v5652
    %5969 = vmatpush1.msra.mxu0 %v5651
    %5970 = vmatprep.subr.mxu0 %v5644
    %5971 = vmatpush1.msra.mxu0 %v5643
    %5972 = vmatprep.subr.mxu0 %v5636
    %5973 = vmatpush1.msra.mxu0 %v5635
    %5974 = vmatprep.subr.mxu0 %v5628
    %5975 = vmatpush1.msra.mxu0 %v5627
    %5976 = vmatprep.subr.mxu0 %v5620
    %5977 = vmatpush1.msra.mxu0 %v5619
    %5978 = vmatprep.subr.mxu0 %v5612
    %5979 = vmatpush1.msra.mxu0 %v5611
    %5980 = vmatprep.subr.mxu0 %v5604
    %5981 = vmatpush1.msra.mxu0 %v5603
    %5982 = vmatprep.subr.mxu0 %v5596
    %5983 = vmatpush1.msra.mxu0 %v5595
    %5984 = vmatprep.subr.mxu0 %v5588
    %5985 = vmatpush1.msra.mxu0 %v5587
    %5986 = vmatprep.subr.mxu0 %v5580
    %5987 = vmatpush1.msra.mxu0 %v5579
    %5988 = vmatprep.subr.mxu0 %v5572
    %5989 = vmatpush1.msra.mxu0 %v5571
    %5990 = vmatprep.subr.mxu0 %v5564
    %5991 = vmatpush1.msra.mxu0 %v5563
    %5992 = vmatprep.subr.mxu0 %v5556
    %5993 = vmatpush1.msra.mxu0 %v5555
    %5994 = vmatprep.subr.mxu0 %v5804
    %5995 = vmatpush2.msra.mxu0 %v5803
    %5996 = vmatprep.subr.mxu0 %v5796
    %5997 = vmatpush2.msra.mxu0 %v5795
    %5998 = vmatprep.subr.mxu0 %v5788
    %5999 = vmatpush2.msra.mxu0 %v5787
    %6000 = vmatprep.subr.mxu0 %v5780
    %6001 = vmatpush2.msra.mxu0 %v5779
    %6002 = vmatprep.subr.mxu0 %v5772
    %6003 = vmatpush2.msra.mxu0 %v5771
    %6004 = vmatprep.subr.mxu0 %v5764
    %6005 = vmatpush2.msra.mxu0 %v5763
    %6006 = vmatprep.subr.mxu0 %v5756
    %6007 = vmatpush2.msra.mxu0 %v5755
    %6008 = vmatprep.subr.mxu0 %v5748
    %6009 = vmatpush2.msra.mxu0 %v5747
    %6010 = vmatprep.subr.mxu0 %v5740
    %6011 = vmatpush2.msra.mxu0 %v5739
    %6012 = vmatprep.subr.mxu0 %v5732
    %6013 = vmatpush2.msra.mxu0 %v5731
    %6014 = vmatprep.subr.mxu0 %v5724
    %6015 = vmatpush2.msra.mxu0 %v5723
    %6016 = vmatprep.subr.mxu0 %v5716
    %6017 = vmatpush2.msra.mxu0 %v5715
    %6018 = vmatprep.subr.mxu0 %v5708
    %6019 = vmatpush2.msra.mxu0 %v5707
    %6020 = vmatprep.subr.mxu0 %v5700
    %6021 = vmatpush2.msra.mxu0 %v5699
    %6022 = vmatprep.subr.mxu0 %v5692
    %6023 = vmatpush2.msra.mxu0 %v5691
    %6024 = vmatprep.subr.mxu0 %v5684
    %6025 = vmatpush2.msra.mxu0 %v5683
    %6026 = vmatprep.mubr.f32.mxu0 %v5548
    %6027 = vmatmul.mubr.f32.gmra.mxu0 %v5547
    %v6028 = vpop.f32.mrf.mxu0
    %v6029 = vadd.f32 0.0, %v6028
    %v6030 = vpop.f32.mrf.mxu0
    %v6031 = vadd.f32 0.0, %v6030
    %6032 = vmatprep.mubr.f32.mxu0 %v5550
    %6033 = vmatmul.mubr.f32.gmra.mxu0 %v5549
    %v6034 = vpop.f32.mrf.mxu0
    %v6035 = vadd.f32 0.0, %v6034
    %v6036 = vpop.f32.mrf.mxu0
    %v6037 = vadd.f32 0.0, %v6036
    %6038 = vdwg.mxu0
    %6039 = vmatprep.subr.mxu0 %v5678
    %6040 = vmatpush1.msra.mxu0 %v5677
    %6041 = vmatprep.subr.mxu0 %v5670
    %6042 = vmatpush1.msra.mxu0 %v5669
    %6043 = vmatprep.subr.mxu0 %v5662
    %6044 = vmatpush1.msra.mxu0 %v5661
    %6045 = vmatprep.subr.mxu0 %v5654
    %6046 = vmatpush1.msra.mxu0 %v5653
    %6047 = vmatprep.subr.mxu0 %v5646
    %6048 = vmatpush1.msra.mxu0 %v5645
    %6049 = vmatprep.subr.mxu0 %v5638
    %6050 = vmatpush1.msra.mxu0 %v5637
    %6051 = vmatprep.subr.mxu0 %v5630
    %6052 = vmatpush1.msra.mxu0 %v5629
    %6053 = vmatprep.subr.mxu0 %v5622
    %6054 = vmatpush1.msra.mxu0 %v5621
    %6055 = vmatprep.subr.mxu0 %v5614
    %6056 = vmatpush1.msra.mxu0 %v5613
    %6057 = vmatprep.subr.mxu0 %v5606
    %6058 = vmatpush1.msra.mxu0 %v5605
    %6059 = vmatprep.subr.mxu0 %v5598
    %6060 = vmatpush1.msra.mxu0 %v5597
    %6061 = vmatprep.subr.mxu0 %v5590
    %6062 = vmatpush1.msra.mxu0 %v5589
    %6063 = vmatprep.subr.mxu0 %v5582
    %6064 = vmatpush1.msra.mxu0 %v5581
    %6065 = vmatprep.subr.mxu0 %v5574
    %6066 = vmatpush1.msra.mxu0 %v5573
    %6067 = vmatprep.subr.mxu0 %v5566
    %6068 = vmatpush1.msra.mxu0 %v5565
    %6069 = vmatprep.subr.mxu0 %v5558
    %6070 = vmatpush1.msra.mxu0 %v5557
    %6071 = vmatprep.subr.mxu0 %v5806
    %6072 = vmatpush2.msra.mxu0 %v5805
    %6073 = vmatprep.subr.mxu0 %v5798
    %6074 = vmatpush2.msra.mxu0 %v5797
    %6075 = vmatprep.subr.mxu0 %v5790
    %6076 = vmatpush2.msra.mxu0 %v5789
    %6077 = vmatprep.subr.mxu0 %v5782
    %6078 = vmatpush2.msra.mxu0 %v5781
    %6079 = vmatprep.subr.mxu0 %v5774
    %6080 = vmatpush2.msra.mxu0 %v5773
    %6081 = vmatprep.subr.mxu0 %v5766
    %6082 = vmatpush2.msra.mxu0 %v5765
    %6083 = vmatprep.subr.mxu0 %v5758
    %6084 = vmatpush2.msra.mxu0 %v5757
    %6085 = vmatprep.subr.mxu0 %v5750
    %6086 = vmatpush2.msra.mxu0 %v5749
    %6087 = vmatprep.subr.mxu0 %v5742
    %6088 = vmatpush2.msra.mxu0 %v5741
    %6089 = vmatprep.subr.mxu0 %v5734
    %6090 = vmatpush2.msra.mxu0 %v5733
    %6091 = vmatprep.subr.mxu0 %v5726
    %6092 = vmatpush2.msra.mxu0 %v5725
    %6093 = vmatprep.subr.mxu0 %v5718
    %6094 = vmatpush2.msra.mxu0 %v5717
    %6095 = vmatprep.subr.mxu0 %v5710
    %6096 = vmatpush2.msra.mxu0 %v5709
    %6097 = vmatprep.subr.mxu0 %v5702
    %6098 = vmatpush2.msra.mxu0 %v5701
    %6099 = vmatprep.subr.mxu0 %v5694
    %6100 = vmatpush2.msra.mxu0 %v5693
    %6101 = vmatprep.subr.mxu0 %v5686
    %6102 = vmatpush2.msra.mxu0 %v5685
    %6103 = vmatprep.mubr.f32.mxu0 %v5548
    %6104 = vmatmul.mubr.f32.gmra.mxu0 %v5547
    %v6105 = vpop.f32.mrf.mxu0
    %v6106 = vadd.f32 0.0, %v6105
    %v6107 = vpop.f32.mrf.mxu0
    %v6108 = vadd.f32 0.0, %v6107
    %6109 = vmatprep.mubr.f32.mxu0 %v5550
    %6110 = vmatmul.mubr.f32.gmra.mxu0 %v5549
    %v6111 = vpop.f32.mrf.mxu0
    %v6112 = vadd.f32 0.0, %v6111
    %v6113 = vpop.f32.mrf.mxu0
    %v6114 = vadd.f32 0.0, %v6113
    %6115 = vdwg.mxu0
    %v6117 = vlaneseq
    %v6118 = vshrl.u32 %v6117, 7
    %v6119 = vsub.s32 0, %v6118
    %v6120 = vrot.slane %v5807, %v6119
    %v6121 = vlaneseq
    %v6122 = vshrl.u32 %v6121, 7
    %v6123 = vsub.s32 1, %v6122
    %v6124 = vrot.slane %v5807, %v6123
    %v6125 = vlaneseq
    %v6126 = vshrl.u32 %v6125, 7
    %v6127 = vsub.s32 2, %v6126
    %v6128 = vrot.slane %v5807, %v6127
    %v6129 = vlaneseq
    %v6130 = vshrl.u32 %v6129, 7
    %v6131 = vsub.s32 3, %v6130
    %v6132 = vrot.slane %v5807, %v6131
    %v6133 = vlaneseq
    %v6134 = vshrl.u32 %v6133, 7
    %v6135 = vsub.s32 4, %v6134
    %v6136 = vrot.slane %v5807, %v6135
    %v6137 = vlaneseq
    %v6138 = vshrl.u32 %v6137, 7
    %v6139 = vsub.s32 5, %v6138
    %v6140 = vrot.slane %v5807, %v6139
    %v6141 = vlaneseq
    %v6142 = vshrl.u32 %v6141, 7
    %v6143 = vsub.s32 6, %v6142
    %v6144 = vrot.slane %v5807, %v6143
    %v6145 = vlaneseq
    %v6146 = vshrl.u32 %v6145, 7
    %v6147 = vsub.s32 7, %v6146
    %v6148 = vrot.slane %v5807, %v6147
    %v6157 = vadd.f32 %v5875, %v6120
    %v6158 = vadd.f32 %v5877, %v6124
    %v6159 = vadd.f32 %v5952, %v6128
    %v6160 = vadd.f32 %v5954, %v6132
    %v6161 = vadd.f32 %v6029, %v6136
    %v6162 = vadd.f32 %v6031, %v6140
    %v6163 = vadd.f32 %v6106, %v6144
    %v6164 = vadd.f32 %v6108, %v6148
    %v6165 = vadd.f32 %v5881, %v6120
    %v6166 = vadd.f32 %v5883, %v6124
    %v6167 = vadd.f32 %v5958, %v6128
    %v6168 = vadd.f32 %v5960, %v6132
    %v6169 = vadd.f32 %v6035, %v6136
    %v6170 = vadd.f32 %v6037, %v6140
    %v6171 = vadd.f32 %v6112, %v6144
    %v6172 = vadd.f32 %v6114, %v6148
    %v6173 = vmul.f32 %v6157, 0.5
    %v6174 = vmul.f32 %v6158, 0.5
    %v6175 = vmul.f32 %v6159, 0.5
    %v6176 = vmul.f32 %v6160, 0.5
    %v6177 = vmul.f32 %v6161, 0.5
    %v6178 = vmul.f32 %v6162, 0.5
    %v6179 = vmul.f32 %v6163, 0.5
    %v6180 = vmul.f32 %v6164, 0.5
    %v6181 = vmul.f32 %v6165, 0.5
    %v6182 = vmul.f32 %v6166, 0.5
    %v6183 = vmul.f32 %v6167, 0.5
    %v6184 = vmul.f32 %v6168, 0.5
    %v6185 = vmul.f32 %v6169, 0.5
    %v6186 = vmul.f32 %v6170, 0.5
    %v6187 = vmul.f32 %v6171, 0.5
    %v6188 = vmul.f32 %v6172, 0.5
    %v6189 = vmul.f32 %v6157, 0.044715
    %v6190 = vmul.f32 %v6158, 0.044715
    %v6191 = vmul.f32 %v6159, 0.044715
    %v6192 = vmul.f32 %v6160, 0.044715
    %v6193 = vmul.f32 %v6161, 0.044715
    %v6194 = vmul.f32 %v6162, 0.044715
    %v6195 = vmul.f32 %v6163, 0.044715
    %v6196 = vmul.f32 %v6164, 0.044715
    %v6197 = vmul.f32 %v6165, 0.044715
    %v6198 = vmul.f32 %v6166, 0.044715
    %v6199 = vmul.f32 %v6167, 0.044715
    %v6200 = vmul.f32 %v6168, 0.044715
    %v6201 = vmul.f32 %v6169, 0.044715
    %v6202 = vmul.f32 %v6170, 0.044715
    %v6203 = vmul.f32 %v6171, 0.044715
    %v6204 = vmul.f32 %v6172, 0.044715
    %v6205 = vmul.f32 %v6189, %v6157
    %v6206 = vmul.f32 %v6190, %v6158
    %v6207 = vmul.f32 %v6191, %v6159
    %v6208 = vmul.f32 %v6192, %v6160
    %v6209 = vmul.f32 %v6193, %v6161
    %v6210 = vmul.f32 %v6194, %v6162
    %v6211 = vmul.f32 %v6195, %v6163
    %v6212 = vmul.f32 %v6196, %v6164
    %v6213 = vmul.f32 %v6197, %v6165
    %v6214 = vmul.f32 %v6198, %v6166
    %v6215 = vmul.f32 %v6199, %v6167
    %v6216 = vmul.f32 %v6200, %v6168
    %v6217 = vmul.f32 %v6201, %v6169
    %v6218 = vmul.f32 %v6202, %v6170
    %v6219 = vmul.f32 %v6203, %v6171
    %v6220 = vmul.f32 %v6204, %v6172
    %v6221 = vmul.f32 %v6205, %v6157
    %v6222 = vmul.f32 %v6206, %v6158
    %v6223 = vmul.f32 %v6207, %v6159
    %v6224 = vmul.f32 %v6208, %v6160
    %v6225 = vmul.f32 %v6209, %v6161
    %v6226 = vmul.f32 %v6210, %v6162
    %v6227 = vmul.f32 %v6211, %v6163
    %v6228 = vmul.f32 %v6212, %v6164
    %v6229 = vmul.f32 %v6213, %v6165
    %v6230 = vmul.f32 %v6214, %v6166
    %v6231 = vmul.f32 %v6215, %v6167
    %v6232 = vmul.f32 %v6216, %v6168
    %v6233 = vmul.f32 %v6217, %v6169
    %v6234 = vmul.f32 %v6218, %v6170
    %v6235 = vmul.f32 %v6219, %v6171
    %v6236 = vmul.f32 %v6220, %v6172
    %v6237 = vadd.f32 %v6157, %v6221
    %v6238 = vadd.f32 %v6158, %v6222
    %v6239 = vadd.f32 %v6159, %v6223
    %v6240 = vadd.f32 %v6160, %v6224
    %v6241 = vadd.f32 %v6161, %v6225
    %v6242 = vadd.f32 %v6162, %v6226
    %v6243 = vadd.f32 %v6163, %v6227
    %v6244 = vadd.f32 %v6164, %v6228
    %v6245 = vadd.f32 %v6165, %v6229
    %v6246 = vadd.f32 %v6166, %v6230
    %v6247 = vadd.f32 %v6167, %v6231
    %v6248 = vadd.f32 %v6168, %v6232
    %v6249 = vadd.f32 %v6169, %v6233
    %v6250 = vadd.f32 %v6170, %v6234
    %v6251 = vadd.f32 %v6171, %v6235
    %v6252 = vadd.f32 %v6172, %v6236
    %v6253 = vmul.f32 %v6237, 0.7978846
    %v6254 = vmul.f32 %v6238, 0.7978846
    %v6255 = vmul.f32 %v6239, 0.7978846
    %v6256 = vmul.f32 %v6240, 0.7978846
    %v6257 = vmul.f32 %v6241, 0.7978846
    %v6258 = vmul.f32 %v6242, 0.7978846
    %v6259 = vmul.f32 %v6243, 0.7978846
    %v6260 = vmul.f32 %v6244, 0.7978846
    %v6261 = vmul.f32 %v6245, 0.7978846
    %v6262 = vmul.f32 %v6246, 0.7978846
    %v6263 = vmul.f32 %v6247, 0.7978846
    %v6264 = vmul.f32 %v6248, 0.7978846
    %v6265 = vmul.f32 %v6249, 0.7978846
    %v6266 = vmul.f32 %v6250, 0.7978846
    %v6267 = vmul.f32 %v6251, 0.7978846
    %v6268 = vmul.f32 %v6252, 0.7978846
    %v6269 = vtanh.pop %v6253
    %v6270 = vtanh.pop %v6254
    %v6271 = vtanh.pop %v6255
    %v6272 = vtanh.pop %v6256
    %v6273 = vtanh.pop %v6257
    %v6274 = vtanh.pop %v6258
    %v6275 = vtanh.pop %v6259
    %v6276 = vtanh.pop %v6260
    %v6277 = vtanh.pop %v6261
    %v6278 = vtanh.pop %v6262
    %v6279 = vtanh.pop %v6263
    %v6280 = vtanh.pop %v6264
    %v6281 = vtanh.pop %v6265
    %v6282 = vtanh.pop %v6266
    %v6283 = vtanh.pop %v6267
    %v6284 = vtanh.pop %v6268
    %v6285 = vadd.f32 %v6269, 1.0
    %v6286 = vadd.f32 %v6270, 1.0
    %v6287 = vadd.f32 %v6271, 1.0
    %v6288 = vadd.f32 %v6272, 1.0
    %v6289 = vadd.f32 %v6273, 1.0
    %v6290 = vadd.f32 %v6274, 1.0
    %v6291 = vadd.f32 %v6275, 1.0
    %v6292 = vadd.f32 %v6276, 1.0
    %v6293 = vadd.f32 %v6277, 1.0
    %v6294 = vadd.f32 %v6278, 1.0
    %v6295 = vadd.f32 %v6279, 1.0
    %v6296 = vadd.f32 %v6280, 1.0
    %v6297 = vadd.f32 %v6281, 1.0
    %v6298 = vadd.f32 %v6282, 1.0
    %v6299 = vadd.f32 %v6283, 1.0
    %v6300 = vadd.f32 %v6284, 1.0
    %v6301 = vmul.f32 %v6173, %v6285
    %v6302 = vmul.f32 %v6174, %v6286
    %v6303 = vmul.f32 %v6175, %v6287
    %v6304 = vmul.f32 %v6176, %v6288
    %v6305 = vmul.f32 %v6177, %v6289
    %v6306 = vmul.f32 %v6178, %v6290
    %v6307 = vmul.f32 %v6179, %v6291
    %v6308 = vmul.f32 %v6180, %v6292
    %v6309 = vmul.f32 %v6181, %v6293
    %v6310 = vmul.f32 %v6182, %v6294
    %v6311 = vmul.f32 %v6183, %v6295
    %v6312 = vmul.f32 %v6184, %v6296
    %v6313 = vmul.f32 %v6185, %v6297
    %v6314 = vmul.f32 %v6186, %v6298
    %v6315 = vmul.f32 %v6187, %v6299
    %v6316 = vmul.f32 %v6188, %v6300
    %v6317 = vld [vmem:[#allocation19] sm:$0xff]
    %v6318 = vld [vmem:[#allocation19 + $0x8] sm:$0xff]
    %v6319 = vld [vmem:[#allocation19 + $0x10] sm:$0xff]
    %v6320 = vld [vmem:[#allocation19 + $0x18] sm:$0xff]
    %v6321 = vld [vmem:[#allocation19 + $0x20] sm:$0xff]
    %v6322 = vld [vmem:[#allocation19 + $0x28] sm:$0xff]
    %v6323 = vld [vmem:[#allocation19 + $0x30] sm:$0xff]
    %v6324 = vld [vmem:[#allocation19 + $0x38] sm:$0xff]
    %v6325 = vld [vmem:[#allocation19 + $0x40] sm:$0xff]
    %v6326 = vld [vmem:[#allocation19 + $0x48] sm:$0xff]
    %v6327 = vld [vmem:[#allocation19 + $0x50] sm:$0xff]
    %v6328 = vld [vmem:[#allocation19 + $0x58] sm:$0xff]
    %v6329 = vld [vmem:[#allocation19 + $0x60] sm:$0xff]
    %v6330 = vld [vmem:[#allocation19 + $0x68] sm:$0xff]
    %v6331 = vld [vmem:[#allocation19 + $0x70] sm:$0xff]
    %v6332 = vld [vmem:[#allocation19 + $0x78] sm:$0xff]
    %v6333 = vld [vmem:[#allocation19 + $0x80] sm:$0xff]
    %v6334 = vld [vmem:[#allocation19 + $0x88] sm:$0xff]
    %v6335 = vld [vmem:[#allocation19 + $0x90] sm:$0xff]
    %v6336 = vld [vmem:[#allocation19 + $0x98] sm:$0xff]
    %v6337 = vld [vmem:[#allocation19 + $0xa0] sm:$0xff]
    %v6338 = vld [vmem:[#allocation19 + $0xa8] sm:$0xff]
    %v6339 = vld [vmem:[#allocation19 + $0xb0] sm:$0xff]
    %v6340 = vld [vmem:[#allocation19 + $0xb8] sm:$0xff]
    %v6341 = vld [vmem:[#allocation19 + $0xc0] sm:$0xff]
    %v6342 = vld [vmem:[#allocation19 + $0xc8] sm:$0xff]
    %v6343 = vld [vmem:[#allocation19 + $0xd0] sm:$0xff]
    %v6344 = vld [vmem:[#allocation19 + $0xd8] sm:$0xff]
    %v6345 = vld [vmem:[#allocation19 + $0xe0] sm:$0xff]
    %v6346 = vld [vmem:[#allocation19 + $0xe8] sm:$0xff]
    %v6347 = vld [vmem:[#allocation19 + $0xf0] sm:$0xff]
    %v6348 = vld [vmem:[#allocation19 + $0xf8] sm:$0xff]
    %v6349 = vld [vmem:[#allocation19 + $0x100] sm:$0xff]
    %v6350 = vld [vmem:[#allocation19 + $0x108] sm:$0xff]
    %v6351 = vld [vmem:[#allocation19 + $0x110] sm:$0xff]
    %v6352 = vld [vmem:[#allocation19 + $0x118] sm:$0xff]
    %v6353 = vld [vmem:[#allocation19 + $0x120] sm:$0xff]
    %v6354 = vld [vmem:[#allocation19 + $0x128] sm:$0xff]
    %v6355 = vld [vmem:[#allocation19 + $0x130] sm:$0xff]
    %v6356 = vld [vmem:[#allocation19 + $0x138] sm:$0xff]
    %v6357 = vld [vmem:[#allocation19 + $0x140] sm:$0xff]
    %v6358 = vld [vmem:[#allocation19 + $0x148] sm:$0xff]
    %v6359 = vld [vmem:[#allocation19 + $0x150] sm:$0xff]
    %v6360 = vld [vmem:[#allocation19 + $0x158] sm:$0xff]
    %v6361 = vld [vmem:[#allocation19 + $0x160] sm:$0xff]
    %v6362 = vld [vmem:[#allocation19 + $0x168] sm:$0xff]
    %v6363 = vld [vmem:[#allocation19 + $0x170] sm:$0xff]
    %v6364 = vld [vmem:[#allocation19 + $0x178] sm:$0xff]
    %v6365 = vld [vmem:[#allocation19 + $0x180] sm:$0xff]
    %v6366 = vld [vmem:[#allocation19 + $0x188] sm:$0xff]
    %v6367 = vld [vmem:[#allocation19 + $0x190] sm:$0xff]
    %v6368 = vld [vmem:[#allocation19 + $0x198] sm:$0xff]
    %v6369 = vld [vmem:[#allocation19 + $0x1a0] sm:$0xff]
    %v6370 = vld [vmem:[#allocation19 + $0x1a8] sm:$0xff]
    %v6371 = vld [vmem:[#allocation19 + $0x1b0] sm:$0xff]
    %v6372 = vld [vmem:[#allocation19 + $0x1b8] sm:$0xff]
    %v6373 = vld [vmem:[#allocation19 + $0x1c0] sm:$0xff]
    %v6374 = vld [vmem:[#allocation19 + $0x1c8] sm:$0xff]
    %v6375 = vld [vmem:[#allocation19 + $0x1d0] sm:$0xff]
    %v6376 = vld [vmem:[#allocation19 + $0x1d8] sm:$0xff]
    %v6377 = vld [vmem:[#allocation19 + $0x1e0] sm:$0xff]
    %v6378 = vld [vmem:[#allocation19 + $0x1e8] sm:$0xff]
    %v6379 = vld [vmem:[#allocation19 + $0x1f0] sm:$0xff]
    %v6380 = vld [vmem:[#allocation19 + $0x1f8] sm:$0xff]
    %v6381 = vld [vmem:[#allocation19 + $0x200] sm:$0xff]
    %v6382 = vld [vmem:[#allocation19 + $0x208] sm:$0xff]
    %v6383 = vld [vmem:[#allocation19 + $0x210] sm:$0xff]
    %v6384 = vld [vmem:[#allocation19 + $0x218] sm:$0xff]
    %v6385 = vld [vmem:[#allocation19 + $0x220] sm:$0xff]
    %v6386 = vld [vmem:[#allocation19 + $0x228] sm:$0xff]
    %v6387 = vld [vmem:[#allocation19 + $0x230] sm:$0xff]
    %v6388 = vld [vmem:[#allocation19 + $0x238] sm:$0xff]
    %v6389 = vld [vmem:[#allocation19 + $0x240] sm:$0xff]
    %v6390 = vld [vmem:[#allocation19 + $0x248] sm:$0xff]
    %v6391 = vld [vmem:[#allocation19 + $0x250] sm:$0xff]
    %v6392 = vld [vmem:[#allocation19 + $0x258] sm:$0xff]
    %v6393 = vld [vmem:[#allocation19 + $0x260] sm:$0xff]
    %v6394 = vld [vmem:[#allocation19 + $0x268] sm:$0xff]
    %v6395 = vld [vmem:[#allocation19 + $0x270] sm:$0xff]
    %v6396 = vld [vmem:[#allocation19 + $0x278] sm:$0xff]
    %v6397 = vld [vmem:[#allocation19 + $0x280] sm:$0xff]
    %v6398 = vld [vmem:[#allocation19 + $0x288] sm:$0xff]
    %v6399 = vld [vmem:[#allocation19 + $0x290] sm:$0xff]
    %v6400 = vld [vmem:[#allocation19 + $0x298] sm:$0xff]
    %v6401 = vld [vmem:[#allocation19 + $0x2a0] sm:$0xff]
    %v6402 = vld [vmem:[#allocation19 + $0x2a8] sm:$0xff]
    %v6403 = vld [vmem:[#allocation19 + $0x2b0] sm:$0xff]
    %v6404 = vld [vmem:[#allocation19 + $0x2b8] sm:$0xff]
    %v6405 = vld [vmem:[#allocation19 + $0x2c0] sm:$0xff]
    %v6406 = vld [vmem:[#allocation19 + $0x2c8] sm:$0xff]
    %v6407 = vld [vmem:[#allocation19 + $0x2d0] sm:$0xff]
    %v6408 = vld [vmem:[#allocation19 + $0x2d8] sm:$0xff]
    %v6409 = vld [vmem:[#allocation19 + $0x2e0] sm:$0xff]
    %v6410 = vld [vmem:[#allocation19 + $0x2e8] sm:$0xff]
    %v6411 = vld [vmem:[#allocation19 + $0x2f0] sm:$0xff]
    %v6412 = vld [vmem:[#allocation19 + $0x2f8] sm:$0xff]
    %v6413 = vld [vmem:[#allocation19 + $0x300] sm:$0xff]
    %v6414 = vld [vmem:[#allocation19 + $0x308] sm:$0xff]
    %v6415 = vld [vmem:[#allocation19 + $0x310] sm:$0xff]
    %v6416 = vld [vmem:[#allocation19 + $0x318] sm:$0xff]
    %v6417 = vld [vmem:[#allocation19 + $0x320] sm:$0xff]
    %v6418 = vld [vmem:[#allocation19 + $0x328] sm:$0xff]
    %v6419 = vld [vmem:[#allocation19 + $0x330] sm:$0xff]
    %v6420 = vld [vmem:[#allocation19 + $0x338] sm:$0xff]
    %v6421 = vld [vmem:[#allocation19 + $0x340] sm:$0xff]
    %v6422 = vld [vmem:[#allocation19 + $0x348] sm:$0xff]
    %v6423 = vld [vmem:[#allocation19 + $0x350] sm:$0xff]
    %v6424 = vld [vmem:[#allocation19 + $0x358] sm:$0xff]
    %v6425 = vld [vmem:[#allocation19 + $0x360] sm:$0xff]
    %v6426 = vld [vmem:[#allocation19 + $0x368] sm:$0xff]
    %v6427 = vld [vmem:[#allocation19 + $0x370] sm:$0xff]
    %v6428 = vld [vmem:[#allocation19 + $0x378] sm:$0xff]
    %v6429 = vld [vmem:[#allocation19 + $0x380] sm:$0xff]
    %v6430 = vld [vmem:[#allocation19 + $0x388] sm:$0xff]
    %v6431 = vld [vmem:[#allocation19 + $0x390] sm:$0xff]
    %v6432 = vld [vmem:[#allocation19 + $0x398] sm:$0xff]
    %v6433 = vld [vmem:[#allocation19 + $0x3a0] sm:$0xff]
    %v6434 = vld [vmem:[#allocation19 + $0x3a8] sm:$0xff]
    %v6435 = vld [vmem:[#allocation19 + $0x3b0] sm:$0xff]
    %v6436 = vld [vmem:[#allocation19 + $0x3b8] sm:$0xff]
    %v6437 = vld [vmem:[#allocation19 + $0x3c0] sm:$0xff]
    %v6438 = vld [vmem:[#allocation19 + $0x3c8] sm:$0xff]
    %v6439 = vld [vmem:[#allocation19 + $0x3d0] sm:$0xff]
    %v6440 = vld [vmem:[#allocation19 + $0x3d8] sm:$0xff]
    %v6441 = vld [vmem:[#allocation19 + $0x3e0] sm:$0xff]
    %v6442 = vld [vmem:[#allocation19 + $0x3e8] sm:$0xff]
    %v6443 = vld [vmem:[#allocation19 + $0x3f0] sm:$0xff]
    %v6444 = vld [vmem:[#allocation19 + $0x3f8] sm:$0xff]
    %v6445 = vld [vmem:[#allocation19 + $0x400] sm:$0xff]
    %v6446 = vld [vmem:[#allocation19 + $0x408] sm:$0xff]
    %v6447 = vld [vmem:[#allocation19 + $0x410] sm:$0xff]
    %v6448 = vld [vmem:[#allocation19 + $0x418] sm:$0xff]
    %v6449 = vld [vmem:[#allocation19 + $0x420] sm:$0xff]
    %v6450 = vld [vmem:[#allocation19 + $0x428] sm:$0xff]
    %v6451 = vld [vmem:[#allocation19 + $0x430] sm:$0xff]
    %v6452 = vld [vmem:[#allocation19 + $0x438] sm:$0xff]
    %v6453 = vld [vmem:[#allocation19 + $0x440] sm:$0xff]
    %v6454 = vld [vmem:[#allocation19 + $0x448] sm:$0xff]
    %v6455 = vld [vmem:[#allocation19 + $0x450] sm:$0xff]
    %v6456 = vld [vmem:[#allocation19 + $0x458] sm:$0xff]
    %v6457 = vld [vmem:[#allocation19 + $0x460] sm:$0xff]
    %v6458 = vld [vmem:[#allocation19 + $0x468] sm:$0xff]
    %v6459 = vld [vmem:[#allocation19 + $0x470] sm:$0xff]
    %v6460 = vld [vmem:[#allocation19 + $0x478] sm:$0xff]
    %v6461 = vld [vmem:[#allocation19 + $0x480] sm:$0xff]
    %v6462 = vld [vmem:[#allocation19 + $0x488] sm:$0xff]
    %v6463 = vld [vmem:[#allocation19 + $0x490] sm:$0xff]
    %v6464 = vld [vmem:[#allocation19 + $0x498] sm:$0xff]
    %v6465 = vld [vmem:[#allocation19 + $0x4a0] sm:$0xff]
    %v6466 = vld [vmem:[#allocation19 + $0x4a8] sm:$0xff]
    %v6467 = vld [vmem:[#allocation19 + $0x4b0] sm:$0xff]
    %v6468 = vld [vmem:[#allocation19 + $0x4b8] sm:$0xff]
    %v6469 = vld [vmem:[#allocation19 + $0x4c0] sm:$0xff]
    %v6470 = vld [vmem:[#allocation19 + $0x4c8] sm:$0xff]
    %v6471 = vld [vmem:[#allocation19 + $0x4d0] sm:$0xff]
    %v6472 = vld [vmem:[#allocation19 + $0x4d8] sm:$0xff]
    %v6473 = vld [vmem:[#allocation19 + $0x4e0] sm:$0xff]
    %v6474 = vld [vmem:[#allocation19 + $0x4e8] sm:$0xff]
    %v6475 = vld [vmem:[#allocation19 + $0x4f0] sm:$0xff]
    %v6476 = vld [vmem:[#allocation19 + $0x4f8] sm:$0xff]
    %v6477 = vld [vmem:[#allocation19 + $0x500] sm:$0xff]
    %v6478 = vld [vmem:[#allocation19 + $0x508] sm:$0xff]
    %v6479 = vld [vmem:[#allocation19 + $0x510] sm:$0xff]
    %v6480 = vld [vmem:[#allocation19 + $0x518] sm:$0xff]
    %v6481 = vld [vmem:[#allocation19 + $0x520] sm:$0xff]
    %v6482 = vld [vmem:[#allocation19 + $0x528] sm:$0xff]
    %v6483 = vld [vmem:[#allocation19 + $0x530] sm:$0xff]
    %v6484 = vld [vmem:[#allocation19 + $0x538] sm:$0xff]
    %v6485 = vld [vmem:[#allocation19 + $0x540] sm:$0xff]
    %v6486 = vld [vmem:[#allocation19 + $0x548] sm:$0xff]
    %v6487 = vld [vmem:[#allocation19 + $0x550] sm:$0xff]
    %v6488 = vld [vmem:[#allocation19 + $0x558] sm:$0xff]
    %v6489 = vld [vmem:[#allocation19 + $0x560] sm:$0xff]
    %v6490 = vld [vmem:[#allocation19 + $0x568] sm:$0xff]
    %v6491 = vld [vmem:[#allocation19 + $0x570] sm:$0xff]
    %v6492 = vld [vmem:[#allocation19 + $0x578] sm:$0xff]
    %v6493 = vld [vmem:[#allocation19 + $0x580] sm:$0xff]
    %v6494 = vld [vmem:[#allocation19 + $0x588] sm:$0xff]
    %v6495 = vld [vmem:[#allocation19 + $0x590] sm:$0xff]
    %v6496 = vld [vmem:[#allocation19 + $0x598] sm:$0xff]
    %v6497 = vld [vmem:[#allocation19 + $0x5a0] sm:$0xff]
    %v6498 = vld [vmem:[#allocation19 + $0x5a8] sm:$0xff]
    %v6499 = vld [vmem:[#allocation19 + $0x5b0] sm:$0xff]
    %v6500 = vld [vmem:[#allocation19 + $0x5b8] sm:$0xff]
    %v6501 = vld [vmem:[#allocation19 + $0x5c0] sm:$0xff]
    %v6502 = vld [vmem:[#allocation19 + $0x5c8] sm:$0xff]
    %v6503 = vld [vmem:[#allocation19 + $0x5d0] sm:$0xff]
    %v6504 = vld [vmem:[#allocation19 + $0x5d8] sm:$0xff]
    %v6505 = vld [vmem:[#allocation19 + $0x5e0] sm:$0xff]
    %v6506 = vld [vmem:[#allocation19 + $0x5e8] sm:$0xff]
    %v6507 = vld [vmem:[#allocation19 + $0x5f0] sm:$0xff]
    %v6508 = vld [vmem:[#allocation19 + $0x5f8] sm:$0xff]
    %v6509 = vld [vmem:[#allocation19 + $0x600] sm:$0xff]
    %v6510 = vld [vmem:[#allocation19 + $0x608] sm:$0xff]
    %v6511 = vld [vmem:[#allocation19 + $0x610] sm:$0xff]
    %v6512 = vld [vmem:[#allocation19 + $0x618] sm:$0xff]
    %v6513 = vld [vmem:[#allocation19 + $0x620] sm:$0xff]
    %v6514 = vld [vmem:[#allocation19 + $0x628] sm:$0xff]
    %v6515 = vld [vmem:[#allocation19 + $0x630] sm:$0xff]
    %v6516 = vld [vmem:[#allocation19 + $0x638] sm:$0xff]
    %v6517 = vld [vmem:[#allocation19 + $0x640] sm:$0xff]
    %v6518 = vld [vmem:[#allocation19 + $0x648] sm:$0xff]
    %v6519 = vld [vmem:[#allocation19 + $0x650] sm:$0xff]
    %v6520 = vld [vmem:[#allocation19 + $0x658] sm:$0xff]
    %v6521 = vld [vmem:[#allocation19 + $0x660] sm:$0xff]
    %v6522 = vld [vmem:[#allocation19 + $0x668] sm:$0xff]
    %v6523 = vld [vmem:[#allocation19 + $0x670] sm:$0xff]
    %v6524 = vld [vmem:[#allocation19 + $0x678] sm:$0xff]
    %v6525 = vld [vmem:[#allocation19 + $0x680] sm:$0xff]
    %v6526 = vld [vmem:[#allocation19 + $0x688] sm:$0xff]
    %v6527 = vld [vmem:[#allocation19 + $0x690] sm:$0xff]
    %v6528 = vld [vmem:[#allocation19 + $0x698] sm:$0xff]
    %v6529 = vld [vmem:[#allocation19 + $0x6a0] sm:$0xff]
    %v6530 = vld [vmem:[#allocation19 + $0x6a8] sm:$0xff]
    %v6531 = vld [vmem:[#allocation19 + $0x6b0] sm:$0xff]
    %v6532 = vld [vmem:[#allocation19 + $0x6b8] sm:$0xff]
    %v6533 = vld [vmem:[#allocation19 + $0x6c0] sm:$0xff]
    %v6534 = vld [vmem:[#allocation19 + $0x6c8] sm:$0xff]
    %v6535 = vld [vmem:[#allocation19 + $0x6d0] sm:$0xff]
    %v6536 = vld [vmem:[#allocation19 + $0x6d8] sm:$0xff]
    %v6537 = vld [vmem:[#allocation19 + $0x6e0] sm:$0xff]
    %v6538 = vld [vmem:[#allocation19 + $0x6e8] sm:$0xff]
    %v6539 = vld [vmem:[#allocation19 + $0x6f0] sm:$0xff]
    %v6540 = vld [vmem:[#allocation19 + $0x6f8] sm:$0xff]
    %v6541 = vld [vmem:[#allocation19 + $0x700] sm:$0xff]
    %v6542 = vld [vmem:[#allocation19 + $0x708] sm:$0xff]
    %v6543 = vld [vmem:[#allocation19 + $0x710] sm:$0xff]
    %v6544 = vld [vmem:[#allocation19 + $0x718] sm:$0xff]
    %v6545 = vld [vmem:[#allocation19 + $0x720] sm:$0xff]
    %v6546 = vld [vmem:[#allocation19 + $0x728] sm:$0xff]
    %v6547 = vld [vmem:[#allocation19 + $0x730] sm:$0xff]
    %v6548 = vld [vmem:[#allocation19 + $0x738] sm:$0xff]
    %v6549 = vld [vmem:[#allocation19 + $0x740] sm:$0xff]
    %v6550 = vld [vmem:[#allocation19 + $0x748] sm:$0xff]
    %v6551 = vld [vmem:[#allocation19 + $0x750] sm:$0xff]
    %v6552 = vld [vmem:[#allocation19 + $0x758] sm:$0xff]
    %v6553 = vld [vmem:[#allocation19 + $0x760] sm:$0xff]
    %v6554 = vld [vmem:[#allocation19 + $0x768] sm:$0xff]
    %v6555 = vld [vmem:[#allocation19 + $0x770] sm:$0xff]
    %v6556 = vld [vmem:[#allocation19 + $0x778] sm:$0xff]
    %v6557 = vld [vmem:[#allocation19 + $0x780] sm:$0xff]
    %v6558 = vld [vmem:[#allocation19 + $0x788] sm:$0xff]
    %v6559 = vld [vmem:[#allocation19 + $0x790] sm:$0xff]
    %v6560 = vld [vmem:[#allocation19 + $0x798] sm:$0xff]
    %v6561 = vld [vmem:[#allocation19 + $0x7a0] sm:$0xff]
    %v6562 = vld [vmem:[#allocation19 + $0x7a8] sm:$0xff]
    %v6563 = vld [vmem:[#allocation19 + $0x7b0] sm:$0xff]
    %v6564 = vld [vmem:[#allocation19 + $0x7b8] sm:$0xff]
    %v6565 = vld [vmem:[#allocation19 + $0x7c0] sm:$0xff]
    %v6566 = vld [vmem:[#allocation19 + $0x7c8] sm:$0xff]
    %v6567 = vld [vmem:[#allocation19 + $0x7d0] sm:$0xff]
    %v6568 = vld [vmem:[#allocation19 + $0x7d8] sm:$0xff]
    %v6569 = vld [vmem:[#allocation19 + $0x7e0] sm:$0xff]
    %v6570 = vld [vmem:[#allocation19 + $0x7e8] sm:$0xff]
    %v6571 = vld [vmem:[#allocation19 + $0x7f0] sm:$0xff]
    %v6572 = vld [vmem:[#allocation19 + $0x7f8] sm:$0xff]
    %v6573 = vld [vmem:[%s55] sm:$0x3]
    %6574 = vmatprep.subr.mxu0 %v6348
    %6575 = vmatpush1.msra.mxu0 %v6347
    %6576 = vmatprep.subr.mxu0 %v6346
    %6577 = vmatpush1.msra.mxu0 %v6345
    %6578 = vmatprep.subr.mxu0 %v6344
    %6579 = vmatpush1.msra.mxu0 %v6343
    %6580 = vmatprep.subr.mxu0 %v6342
    %6581 = vmatpush1.msra.mxu0 %v6341
    %6582 = vmatprep.subr.mxu0 %v6340
    %6583 = vmatpush1.msra.mxu0 %v6339
    %6584 = vmatprep.subr.mxu0 %v6338
    %6585 = vmatpush1.msra.mxu0 %v6337
    %6586 = vmatprep.subr.mxu0 %v6336
    %6587 = vmatpush1.msra.mxu0 %v6335
    %6588 = vmatprep.subr.mxu0 %v6334
    %6589 = vmatpush1.msra.mxu0 %v6333
    %6590 = vmatprep.subr.mxu0 %v6332
    %6591 = vmatpush1.msra.mxu0 %v6331
    %6592 = vmatprep.subr.mxu0 %v6330
    %6593 = vmatpush1.msra.mxu0 %v6329
    %6594 = vmatprep.subr.mxu0 %v6328
    %6595 = vmatpush1.msra.mxu0 %v6327
    %6596 = vmatprep.subr.mxu0 %v6326
    %6597 = vmatpush1.msra.mxu0 %v6325
    %6598 = vmatprep.subr.mxu0 %v6324
    %6599 = vmatpush1.msra.mxu0 %v6323
    %6600 = vmatprep.subr.mxu0 %v6322
    %6601 = vmatpush1.msra.mxu0 %v6321
    %6602 = vmatprep.subr.mxu0 %v6320
    %6603 = vmatpush1.msra.mxu0 %v6319
    %6604 = vmatprep.subr.mxu0 %v6318
    %6605 = vmatpush1.msra.mxu0 %v6317
    %6606 = vmatprep.subr.mxu0 %v6380
    %6607 = vmatpush2.msra.mxu0 %v6379
    %6608 = vmatprep.subr.mxu0 %v6378
    %6609 = vmatpush2.msra.mxu0 %v6377
    %6610 = vmatprep.subr.mxu0 %v6376
    %6611 = vmatpush2.msra.mxu0 %v6375
    %6612 = vmatprep.subr.mxu0 %v6374
    %6613 = vmatpush2.msra.mxu0 %v6373
    %6614 = vmatprep.subr.mxu0 %v6372
    %6615 = vmatpush2.msra.mxu0 %v6371
    %6616 = vmatprep.subr.mxu0 %v6370
    %6617 = vmatpush2.msra.mxu0 %v6369
    %6618 = vmatprep.subr.mxu0 %v6368
    %6619 = vmatpush2.msra.mxu0 %v6367
    %6620 = vmatprep.subr.mxu0 %v6366
    %6621 = vmatpush2.msra.mxu0 %v6365
    %6622 = vmatprep.subr.mxu0 %v6364
    %6623 = vmatpush2.msra.mxu0 %v6363
    %6624 = vmatprep.subr.mxu0 %v6362
    %6625 = vmatpush2.msra.mxu0 %v6361
    %6626 = vmatprep.subr.mxu0 %v6360
    %6627 = vmatpush2.msra.mxu0 %v6359
    %6628 = vmatprep.subr.mxu0 %v6358
    %6629 = vmatpush2.msra.mxu0 %v6357
    %6630 = vmatprep.subr.mxu0 %v6356
    %6631 = vmatpush2.msra.mxu0 %v6355
    %6632 = vmatprep.subr.mxu0 %v6354
    %6633 = vmatpush2.msra.mxu0 %v6353
    %6634 = vmatprep.subr.mxu0 %v6352
    %6635 = vmatpush2.msra.mxu0 %v6351
    %6636 = vmatprep.subr.mxu0 %v6350
    %6637 = vmatpush2.msra.mxu0 %v6349
    %6638 = vmatprep.mubr.f32.mxu0 %v6302
    %6639 = vmatmul.mubr.f32.gmra.mxu0 %v6301
    %v6640 = vpop.f32.mrf.mxu0
    %v6641 = vadd.f32 0.0, %v6640
    %v6642 = vpop.f32.mrf.mxu0
    %v6643 = vadd.f32 0.0, %v6642
    %6644 = vmatprep.mubr.f32.mxu0 %v6310
    %6645 = vmatmul.mubr.f32.gmra.mxu0 %v6309
    %v6646 = vpop.f32.mrf.mxu0
    %v6647 = vadd.f32 0.0, %v6646
    %v6648 = vpop.f32.mrf.mxu0
    %v6649 = vadd.f32 0.0, %v6648
    %6650 = vdwg.mxu0
    %6651 = vmatprep.subr.mxu0 %v6412
    %6652 = vmatpush1.msra.mxu0 %v6411
    %6653 = vmatprep.subr.mxu0 %v6410
    %6654 = vmatpush1.msra.mxu0 %v6409
    %6655 = vmatprep.subr.mxu0 %v6408
    %6656 = vmatpush1.msra.mxu0 %v6407
    %6657 = vmatprep.subr.mxu0 %v6406
    %6658 = vmatpush1.msra.mxu0 %v6405
    %6659 = vmatprep.subr.mxu0 %v6404
    %6660 = vmatpush1.msra.mxu0 %v6403
    %6661 = vmatprep.subr.mxu0 %v6402
    %6662 = vmatpush1.msra.mxu0 %v6401
    %6663 = vmatprep.subr.mxu0 %v6400
    %6664 = vmatpush1.msra.mxu0 %v6399
    %6665 = vmatprep.subr.mxu0 %v6398
    %6666 = vmatpush1.msra.mxu0 %v6397
    %6667 = vmatprep.subr.mxu0 %v6396
    %6668 = vmatpush1.msra.mxu0 %v6395
    %6669 = vmatprep.subr.mxu0 %v6394
    %6670 = vmatpush1.msra.mxu0 %v6393
    %6671 = vmatprep.subr.mxu0 %v6392
    %6672 = vmatpush1.msra.mxu0 %v6391
    %6673 = vmatprep.subr.mxu0 %v6390
    %6674 = vmatpush1.msra.mxu0 %v6389
    %6675 = vmatprep.subr.mxu0 %v6388
    %6676 = vmatpush1.msra.mxu0 %v6387
    %6677 = vmatprep.subr.mxu0 %v6386
    %6678 = vmatpush1.msra.mxu0 %v6385
    %6679 = vmatprep.subr.mxu0 %v6384
    %6680 = vmatpush1.msra.mxu0 %v6383
    %6681 = vmatprep.subr.mxu0 %v6382
    %6682 = vmatpush1.msra.mxu0 %v6381
    %6683 = vmatprep.subr.mxu0 %v6444
    %6684 = vmatpush2.msra.mxu0 %v6443
    %6685 = vmatprep.subr.mxu0 %v6442
    %6686 = vmatpush2.msra.mxu0 %v6441
    %6687 = vmatprep.subr.mxu0 %v6440
    %6688 = vmatpush2.msra.mxu0 %v6439
    %6689 = vmatprep.subr.mxu0 %v6438
    %6690 = vmatpush2.msra.mxu0 %v6437
    %6691 = vmatprep.subr.mxu0 %v6436
    %6692 = vmatpush2.msra.mxu0 %v6435
    %6693 = vmatprep.subr.mxu0 %v6434
    %6694 = vmatpush2.msra.mxu0 %v6433
    %6695 = vmatprep.subr.mxu0 %v6432
    %6696 = vmatpush2.msra.mxu0 %v6431
    %6697 = vmatprep.subr.mxu0 %v6430
    %6698 = vmatpush2.msra.mxu0 %v6429
    %6699 = vmatprep.subr.mxu0 %v6428
    %6700 = vmatpush2.msra.mxu0 %v6427
    %6701 = vmatprep.subr.mxu0 %v6426
    %6702 = vmatpush2.msra.mxu0 %v6425
    %6703 = vmatprep.subr.mxu0 %v6424
    %6704 = vmatpush2.msra.mxu0 %v6423
    %6705 = vmatprep.subr.mxu0 %v6422
    %6706 = vmatpush2.msra.mxu0 %v6421
    %6707 = vmatprep.subr.mxu0 %v6420
    %6708 = vmatpush2.msra.mxu0 %v6419
    %6709 = vmatprep.subr.mxu0 %v6418
    %6710 = vmatpush2.msra.mxu0 %v6417
    %6711 = vmatprep.subr.mxu0 %v6416
    %6712 = vmatpush2.msra.mxu0 %v6415
    %6713 = vmatprep.subr.mxu0 %v6414
    %6714 = vmatpush2.msra.mxu0 %v6413
    %6715 = vmatprep.mubr.f32.mxu0 %v6304
    %6716 = vmatmul.mubr.f32.gmra.mxu0 %v6303
    %v6717 = vpop.f32.mrf.mxu0
    %v6718 = vadd.f32 %v6641, %v6717
    %v6719 = vpop.f32.mrf.mxu0
    %v6720 = vadd.f32 %v6643, %v6719
    %6721 = vmatprep.mubr.f32.mxu0 %v6312
    %6722 = vmatmul.mubr.f32.gmra.mxu0 %v6311
    %v6723 = vpop.f32.mrf.mxu0
    %v6724 = vadd.f32 %v6647, %v6723
    %v6725 = vpop.f32.mrf.mxu0
    %v6726 = vadd.f32 %v6649, %v6725
    %6727 = vdwg.mxu0
    %6728 = vmatprep.subr.mxu0 %v6476
    %6729 = vmatpush1.msra.mxu0 %v6475
    %6730 = vmatprep.subr.mxu0 %v6474
    %6731 = vmatpush1.msra.mxu0 %v6473
    %6732 = vmatprep.subr.mxu0 %v6472
    %6733 = vmatpush1.msra.mxu0 %v6471
    %6734 = vmatprep.subr.mxu0 %v6470
    %6735 = vmatpush1.msra.mxu0 %v6469
    %6736 = vmatprep.subr.mxu0 %v6468
    %6737 = vmatpush1.msra.mxu0 %v6467
    %6738 = vmatprep.subr.mxu0 %v6466
    %6739 = vmatpush1.msra.mxu0 %v6465
    %6740 = vmatprep.subr.mxu0 %v6464
    %6741 = vmatpush1.msra.mxu0 %v6463
    %6742 = vmatprep.subr.mxu0 %v6462
    %6743 = vmatpush1.msra.mxu0 %v6461
    %6744 = vmatprep.subr.mxu0 %v6460
    %6745 = vmatpush1.msra.mxu0 %v6459
    %6746 = vmatprep.subr.mxu0 %v6458
    %6747 = vmatpush1.msra.mxu0 %v6457
    %6748 = vmatprep.subr.mxu0 %v6456
    %6749 = vmatpush1.msra.mxu0 %v6455
    %6750 = vmatprep.subr.mxu0 %v6454
    %6751 = vmatpush1.msra.mxu0 %v6453
    %6752 = vmatprep.subr.mxu0 %v6452
    %6753 = vmatpush1.msra.mxu0 %v6451
    %6754 = vmatprep.subr.mxu0 %v6450
    %6755 = vmatpush1.msra.mxu0 %v6449
    %6756 = vmatprep.subr.mxu0 %v6448
    %6757 = vmatpush1.msra.mxu0 %v6447
    %6758 = vmatprep.subr.mxu0 %v6446
    %6759 = vmatpush1.msra.mxu0 %v6445
    %6760 = vmatprep.subr.mxu0 %v6508
    %6761 = vmatpush2.msra.mxu0 %v6507
    %6762 = vmatprep.subr.mxu0 %v6506
    %6763 = vmatpush2.msra.mxu0 %v6505
    %6764 = vmatprep.subr.mxu0 %v6504
    %6765 = vmatpush2.msra.mxu0 %v6503
    %6766 = vmatprep.subr.mxu0 %v6502
    %6767 = vmatpush2.msra.mxu0 %v6501
    %6768 = vmatprep.subr.mxu0 %v6500
    %6769 = vmatpush2.msra.mxu0 %v6499
    %6770 = vmatprep.subr.mxu0 %v6498
    %6771 = vmatpush2.msra.mxu0 %v6497
    %6772 = vmatprep.subr.mxu0 %v6496
    %6773 = vmatpush2.msra.mxu0 %v6495
    %6774 = vmatprep.subr.mxu0 %v6494
    %6775 = vmatpush2.msra.mxu0 %v6493
    %6776 = vmatprep.subr.mxu0 %v6492
    %6777 = vmatpush2.msra.mxu0 %v6491
    %6778 = vmatprep.subr.mxu0 %v6490
    %6779 = vmatpush2.msra.mxu0 %v6489
    %6780 = vmatprep.subr.mxu0 %v6488
    %6781 = vmatpush2.msra.mxu0 %v6487
    %6782 = vmatprep.subr.mxu0 %v6486
    %6783 = vmatpush2.msra.mxu0 %v6485
    %6784 = vmatprep.subr.mxu0 %v6484
    %6785 = vmatpush2.msra.mxu0 %v6483
    %6786 = vmatprep.subr.mxu0 %v6482
    %6787 = vmatpush2.msra.mxu0 %v6481
    %6788 = vmatprep.subr.mxu0 %v6480
    %6789 = vmatpush2.msra.mxu0 %v6479
    %6790 = vmatprep.subr.mxu0 %v6478
    %6791 = vmatpush2.msra.mxu0 %v6477
    %6792 = vmatprep.mubr.f32.mxu0 %v6306
    %6793 = vmatmul.mubr.f32.gmra.mxu0 %v6305
    %v6794 = vpop.f32.mrf.mxu0
    %v6795 = vadd.f32 %v6718, %v6794
    %v6796 = vpop.f32.mrf.mxu0
    %v6797 = vadd.f32 %v6720, %v6796
    %6798 = vmatprep.mubr.f32.mxu0 %v6314
    %6799 = vmatmul.mubr.f32.gmra.mxu0 %v6313
    %v6800 = vpop.f32.mrf.mxu0
    %v6801 = vadd.f32 %v6724, %v6800
    %v6802 = vpop.f32.mrf.mxu0
    %v6803 = vadd.f32 %v6726, %v6802
    %6804 = vdwg.mxu0
    %6805 = vmatprep.subr.mxu0 %v6540
    %6806 = vmatpush1.msra.mxu0 %v6539
    %6807 = vmatprep.subr.mxu0 %v6538
    %6808 = vmatpush1.msra.mxu0 %v6537
    %6809 = vmatprep.subr.mxu0 %v6536
    %6810 = vmatpush1.msra.mxu0 %v6535
    %6811 = vmatprep.subr.mxu0 %v6534
    %6812 = vmatpush1.msra.mxu0 %v6533
    %6813 = vmatprep.subr.mxu0 %v6532
    %6814 = vmatpush1.msra.mxu0 %v6531
    %6815 = vmatprep.subr.mxu0 %v6530
    %6816 = vmatpush1.msra.mxu0 %v6529
    %6817 = vmatprep.subr.mxu0 %v6528
    %6818 = vmatpush1.msra.mxu0 %v6527
    %6819 = vmatprep.subr.mxu0 %v6526
    %6820 = vmatpush1.msra.mxu0 %v6525
    %6821 = vmatprep.subr.mxu0 %v6524
    %6822 = vmatpush1.msra.mxu0 %v6523
    %6823 = vmatprep.subr.mxu0 %v6522
    %6824 = vmatpush1.msra.mxu0 %v6521
    %6825 = vmatprep.subr.mxu0 %v6520
    %6826 = vmatpush1.msra.mxu0 %v6519
    %6827 = vmatprep.subr.mxu0 %v6518
    %6828 = vmatpush1.msra.mxu0 %v6517
    %6829 = vmatprep.subr.mxu0 %v6516
    %6830 = vmatpush1.msra.mxu0 %v6515
    %6831 = vmatprep.subr.mxu0 %v6514
    %6832 = vmatpush1.msra.mxu0 %v6513
    %6833 = vmatprep.subr.mxu0 %v6512
    %6834 = vmatpush1.msra.mxu0 %v6511
    %6835 = vmatprep.subr.mxu0 %v6510
    %6836 = vmatpush1.msra.mxu0 %v6509
    %6837 = vmatprep.subr.mxu0 %v6572
    %6838 = vmatpush2.msra.mxu0 %v6571
    %6839 = vmatprep.subr.mxu0 %v6570
    %6840 = vmatpush2.msra.mxu0 %v6569
    %6841 = vmatprep.subr.mxu0 %v6568
    %6842 = vmatpush2.msra.mxu0 %v6567
    %6843 = vmatprep.subr.mxu0 %v6566
    %6844 = vmatpush2.msra.mxu0 %v6565
    %6845 = vmatprep.subr.mxu0 %v6564
    %6846 = vmatpush2.msra.mxu0 %v6563
    %6847 = vmatprep.subr.mxu0 %v6562
    %6848 = vmatpush2.msra.mxu0 %v6561
    %6849 = vmatprep.subr.mxu0 %v6560
    %6850 = vmatpush2.msra.mxu0 %v6559
    %6851 = vmatprep.subr.mxu0 %v6558
    %6852 = vmatpush2.msra.mxu0 %v6557
    %6853 = vmatprep.subr.mxu0 %v6556
    %6854 = vmatpush2.msra.mxu0 %v6555
    %6855 = vmatprep.subr.mxu0 %v6554
    %6856 = vmatpush2.msra.mxu0 %v6553
    %6857 = vmatprep.subr.mxu0 %v6552
    %6858 = vmatpush2.msra.mxu0 %v6551
    %6859 = vmatprep.subr.mxu0 %v6550
    %6860 = vmatpush2.msra.mxu0 %v6549
    %6861 = vmatprep.subr.mxu0 %v6548
    %6862 = vmatpush2.msra.mxu0 %v6547
    %6863 = vmatprep.subr.mxu0 %v6546
    %6864 = vmatpush2.msra.mxu0 %v6545
    %6865 = vmatprep.subr.mxu0 %v6544
    %6866 = vmatpush2.msra.mxu0 %v6543
    %6867 = vmatprep.subr.mxu0 %v6542
    %6868 = vmatpush2.msra.mxu0 %v6541
    %6869 = vmatprep.mubr.f32.mxu0 %v6308
    %6870 = vmatmul.mubr.f32.gmra.mxu0 %v6307
    %v6871 = vpop.f32.mrf.mxu0
    %v6872 = vadd.f32 %v6795, %v6871
    %v6873 = vpop.f32.mrf.mxu0
    %v6874 = vadd.f32 %v6797, %v6873
    %6875 = vmatprep.mubr.f32.mxu0 %v6316
    %6876 = vmatmul.mubr.f32.gmra.mxu0 %v6315
    %v6877 = vpop.f32.mrf.mxu0
    %v6878 = vadd.f32 %v6801, %v6877
    %v6879 = vpop.f32.mrf.mxu0
    %v6880 = vadd.f32 %v6803, %v6879
    %6881 = vdwg.mxu0
    %v6883 = vlaneseq
    %v6884 = vshrl.u32 %v6883, 7
    %v6885 = vsub.s32 0, %v6884
    %v6886 = vrot.slane %v6573, %v6885
    %v6887 = vlaneseq
    %v6888 = vshrl.u32 %v6887, 7
    %v6889 = vsub.s32 1, %v6888
    %v6890 = vrot.slane %v6573, %v6889
    %v6893 = vadd.f32 %v6872, %v6886
    %v6894 = vadd.f32 %v6874, %v6890
    %v6895 = vadd.f32 %v6878, %v6886
    %v6896 = vadd.f32 %v6880, %v6890
    %v6897 = vadd.f32 %v5547, %v6893
    %v6898 = vadd.f32 %v5548, %v6894
    %v6899 = vadd.f32 %v5549, %v6895
    %v6900 = vadd.f32 %v5550, %v6896
    %v6901 = vld [vmem:[%s57] sm:$0x3]
    %v6902 = vld [vmem:[%s59] sm:$0x3]
    %v6903 = vadd.f32 %v6897, %v6898
    %6904 = vadd.xlane.f32.xlu0 %v6903
    %v6905 = vpop.xlane.xlu0 %6904
    %v6906 = vadd.f32 %v6899, %v6900
    %6907 = vadd.xlane.f32.xlu0 %v6906
    %v6908 = vpop.xlane.xlu0 %6907
    %v6909 = vmul.f32 %v6905, %v941
    %v6910 = vmul.f32 %v6908, %v941
    %v6911 = vsub.f32 %v6897, %v6909
    %v6912 = vsub.f32 %v6898, %v6909
    %v6913 = vsub.f32 %v6899, %v6910
    %v6914 = vsub.f32 %v6900, %v6910
    %v6915 = vmul.f32 %v6911, %v6911
    %v6916 = vmul.f32 %v6912, %v6912
    %v6917 = vmul.f32 %v6913, %v6913
    %v6918 = vmul.f32 %v6914, %v6914
    %v6919 = vadd.f32 %v6915, %v6916
    %6920 = vadd.xlane.f32.xlu0 %v6919
    %v6921 = vpop.xlane.xlu0 %6920
    %v6922 = vadd.f32 %v6917, %v6918
    %6923 = vadd.xlane.f32.xlu0 %v6922
    %v6924 = vpop.xlane.xlu0 %6923
    %v6925 = vmul.f32 %v6921, %v1240
    %v6926 = vmul.f32 %v6924, %v1240
    %v6928 = vlaneseq
    %v6929 = vshrl.u32 %v6928, 7
    %v6930 = vsub.s32 0, %v6929
    %v6931 = vrot.slane %v6901, %v6930
    %v6932 = vlaneseq
    %v6933 = vshrl.u32 %v6932, 7
    %v6934 = vsub.s32 1, %v6933
    %v6935 = vrot.slane %v6901, %v6934
    %v6938 = vmul.f32 %v6931, %v6911
    %v6939 = vmul.f32 %v6935, %v6912
    %v6940 = vmul.f32 %v6931, %v6913
    %v6941 = vmul.f32 %v6935, %v6914
    %v6942 = vrsqrt.pop %v6925
    %v6943 = vmul.f32 %v6925, %v6942
    %vm6944 = vcmp.eq.f32.partialorder %v6925, inf
    %v6945 = vsel %vm6944, %v6925, %v6943
    %vm6946 = vcmp.eq.f32.partialorder %v6925, 0.0
    %v6947 = vand.u32 %v6925, 2147483648
    %v6948 = vsel %vm6946, %v6947, %v6945
    %v6949 = vrsqrt.pop %v6926
    %v6950 = vmul.f32 %v6926, %v6949
    %vm6951 = vcmp.eq.f32.partialorder %v6926, inf
    %v6952 = vsel %vm6951, %v6926, %v6950
    %vm6953 = vcmp.eq.f32.partialorder %v6926, 0.0
    %v6954 = vand.u32 %v6926, 2147483648
    %v6955 = vsel %vm6953, %v6954, %v6952
    %v6956 = vadd.f32 %v6948, 1e-09
    %v6957 = vadd.f32 %v6955, 1e-09
    %v6958 = vrcp.pop %v6956
    %v6959 = vmul.f32 %v6938, %v6958
    %v6960 = vmul.f32 %v6939, %v6958
    %v6961 = vrcp.pop %v6957
    %v6962 = vmul.f32 %v6940, %v6961
    %v6963 = vmul.f32 %v6941, %v6961
    %v6965 = vlaneseq
    %v6966 = vshrl.u32 %v6965, 7
    %v6967 = vsub.s32 0, %v6966
    %v6968 = vrot.slane %v6902, %v6967
    %v6969 = vlaneseq
    %v6970 = vshrl.u32 %v6969, 7
    %v6971 = vsub.s32 1, %v6970
    %v6972 = vrot.slane %v6902, %v6971
    %v6975 = vadd.f32 %v6959, %v6968
    %v6976 = vadd.f32 %v6960, %v6972
    %v6977 = vadd.f32 %v6962, %v6968
    %v6978 = vadd.f32 %v6963, %v6972
    %v6979 = vld [vmem:[#allocation20] sm:$0xff]
    %v6980 = vld [vmem:[#allocation20 + $0x8] sm:$0xff]
    %v6981 = vld [vmem:[#allocation20 + $0x10] sm:$0xff]
    %v6982 = vld [vmem:[#allocation20 + $0x18] sm:$0xff]
    %v6983 = vld [vmem:[#allocation20 + $0x20] sm:$0xff]
    %v6984 = vld [vmem:[#allocation20 + $0x28] sm:$0xff]
    %v6985 = vld [vmem:[#allocation20 + $0x30] sm:$0xff]
    %v6986 = vld [vmem:[#allocation20 + $0x38] sm:$0xff]
    %v6987 = vld [vmem:[#allocation20 + $0x40] sm:$0xff]
    %v6988 = vld [vmem:[#allocation20 + $0x48] sm:$0xff]
    %v6989 = vld [vmem:[#allocation20 + $0x50] sm:$0xff]
    %v6990 = vld [vmem:[#allocation20 + $0x58] sm:$0xff]
    %v6991 = vld [vmem:[#allocation20 + $0x60] sm:$0xff]
    %v6992 = vld [vmem:[#allocation20 + $0x68] sm:$0xff]
    %v6993 = vld [vmem:[#allocation20 + $0x70] sm:$0xff]
    %v6994 = vld [vmem:[#allocation20 + $0x78] sm:$0xff]
    %v6995 = vld [vmem:[#allocation20 + $0x80] sm:$0xff]
    %v6996 = vld [vmem:[#allocation20 + $0x88] sm:$0xff]
    %v6997 = vld [vmem:[#allocation20 + $0x90] sm:$0xff]
    %v6998 = vld [vmem:[#allocation20 + $0x98] sm:$0xff]
    %v6999 = vld [vmem:[#allocation20 + $0xa0] sm:$0xff]
    %v7000 = vld [vmem:[#allocation20 + $0xa8] sm:$0xff]
    %v7001 = vld [vmem:[#allocation20 + $0xb0] sm:$0xff]
    %v7002 = vld [vmem:[#allocation20 + $0xb8] sm:$0xff]
    %v7003 = vld [vmem:[#allocation20 + $0xc0] sm:$0xff]
    %v7004 = vld [vmem:[#allocation20 + $0xc8] sm:$0xff]
    %v7005 = vld [vmem:[#allocation20 + $0xd0] sm:$0xff]
    %v7006 = vld [vmem:[#allocation20 + $0xd8] sm:$0xff]
    %v7007 = vld [vmem:[#allocation20 + $0xe0] sm:$0xff]
    %v7008 = vld [vmem:[#allocation20 + $0xe8] sm:$0xff]
    %v7009 = vld [vmem:[#allocation20 + $0xf0] sm:$0xff]
    %v7010 = vld [vmem:[#allocation20 + $0xf8] sm:$0xff]
    %v7011 = vld [vmem:[#allocation20 + $0x100] sm:$0xff]
    %v7012 = vld [vmem:[#allocation20 + $0x108] sm:$0xff]
    %v7013 = vld [vmem:[#allocation20 + $0x110] sm:$0xff]
    %v7014 = vld [vmem:[#allocation20 + $0x118] sm:$0xff]
    %v7015 = vld [vmem:[#allocation20 + $0x120] sm:$0xff]
    %v7016 = vld [vmem:[#allocation20 + $0x128] sm:$0xff]
    %v7017 = vld [vmem:[#allocation20 + $0x130] sm:$0xff]
    %v7018 = vld [vmem:[#allocation20 + $0x138] sm:$0xff]
    %v7019 = vld [vmem:[#allocation20 + $0x140] sm:$0xff]
    %v7020 = vld [vmem:[#allocation20 + $0x148] sm:$0xff]
    %v7021 = vld [vmem:[#allocation20 + $0x150] sm:$0xff]
    %v7022 = vld [vmem:[#allocation20 + $0x158] sm:$0xff]
    %v7023 = vld [vmem:[#allocation20 + $0x160] sm:$0xff]
    %v7024 = vld [vmem:[#allocation20 + $0x168] sm:$0xff]
    %v7025 = vld [vmem:[#allocation20 + $0x170] sm:$0xff]
    %v7026 = vld [vmem:[#allocation20 + $0x178] sm:$0xff]
    %v7027 = vld [vmem:[#allocation20 + $0x180] sm:$0xff]
    %v7028 = vld [vmem:[#allocation20 + $0x188] sm:$0xff]
    %v7029 = vld [vmem:[#allocation20 + $0x190] sm:$0xff]
    %v7030 = vld [vmem:[#allocation20 + $0x198] sm:$0xff]
    %v7031 = vld [vmem:[#allocation20 + $0x1a0] sm:$0xff]
    %v7032 = vld [vmem:[#allocation20 + $0x1a8] sm:$0xff]
    %v7033 = vld [vmem:[#allocation20 + $0x1b0] sm:$0xff]
    %v7034 = vld [vmem:[#allocation20 + $0x1b8] sm:$0xff]
    %v7035 = vld [vmem:[#allocation20 + $0x1c0] sm:$0xff]
    %v7036 = vld [vmem:[#allocation20 + $0x1c8] sm:$0xff]
    %v7037 = vld [vmem:[#allocation20 + $0x1d0] sm:$0xff]
    %v7038 = vld [vmem:[#allocation20 + $0x1d8] sm:$0xff]
    %v7039 = vld [vmem:[#allocation20 + $0x1e0] sm:$0xff]
    %v7040 = vld [vmem:[#allocation20 + $0x1e8] sm:$0xff]
    %v7041 = vld [vmem:[#allocation20 + $0x1f0] sm:$0xff]
    %v7042 = vld [vmem:[#allocation20 + $0x1f8] sm:$0xff]
    %7043 = vmatprep.subr.mxu0 %v7010
    %7044 = vmatpush1.msra.mxu0 %v7009
    %7045 = vmatprep.subr.mxu0 %v7008
    %7046 = vmatpush1.msra.mxu0 %v7007
    %7047 = vmatprep.subr.mxu0 %v7006
    %7048 = vmatpush1.msra.mxu0 %v7005
    %7049 = vmatprep.subr.mxu0 %v7004
    %7050 = vmatpush1.msra.mxu0 %v7003
    %7051 = vmatprep.subr.mxu0 %v7002
    %7052 = vmatpush1.msra.mxu0 %v7001
    %7053 = vmatprep.subr.mxu0 %v7000
    %7054 = vmatpush1.msra.mxu0 %v6999
    %7055 = vmatprep.subr.mxu0 %v6998
    %7056 = vmatpush1.msra.mxu0 %v6997
    %7057 = vmatprep.subr.mxu0 %v6996
    %7058 = vmatpush1.msra.mxu0 %v6995
    %7059 = vmatprep.subr.mxu0 %v6994
    %7060 = vmatpush1.msra.mxu0 %v6993
    %7061 = vmatprep.subr.mxu0 %v6992
    %7062 = vmatpush1.msra.mxu0 %v6991
    %7063 = vmatprep.subr.mxu0 %v6990
    %7064 = vmatpush1.msra.mxu0 %v6989
    %7065 = vmatprep.subr.mxu0 %v6988
    %7066 = vmatpush1.msra.mxu0 %v6987
    %7067 = vmatprep.subr.mxu0 %v6986
    %7068 = vmatpush1.msra.mxu0 %v6985
    %7069 = vmatprep.subr.mxu0 %v6984
    %7070 = vmatpush1.msra.mxu0 %v6983
    %7071 = vmatprep.subr.mxu0 %v6982
    %7072 = vmatpush1.msra.mxu0 %v6981
    %7073 = vmatprep.subr.mxu0 %v6980
    %7074 = vmatpush1.msra.mxu0 %v6979
    %7075 = vmatprep.subr.mxu0 %v7042
    %7076 = vmatpush2.msra.mxu0 %v7041
    %7077 = vmatprep.subr.mxu0 %v7040
    %7078 = vmatpush2.msra.mxu0 %v7039
    %7079 = vmatprep.subr.mxu0 %v7038
    %7080 = vmatpush2.msra.mxu0 %v7037
    %7081 = vmatprep.subr.mxu0 %v7036
    %7082 = vmatpush2.msra.mxu0 %v7035
    %7083 = vmatprep.subr.mxu0 %v7034
    %7084 = vmatpush2.msra.mxu0 %v7033
    %7085 = vmatprep.subr.mxu0 %v7032
    %7086 = vmatpush2.msra.mxu0 %v7031
    %7087 = vmatprep.subr.mxu0 %v7030
    %7088 = vmatpush2.msra.mxu0 %v7029
    %7089 = vmatprep.subr.mxu0 %v7028
    %7090 = vmatpush2.msra.mxu0 %v7027
    %7091 = vmatprep.subr.mxu0 %v7026
    %7092 = vmatpush2.msra.mxu0 %v7025
    %7093 = vmatprep.subr.mxu0 %v7024
    %7094 = vmatpush2.msra.mxu0 %v7023
    %7095 = vmatprep.subr.mxu0 %v7022
    %7096 = vmatpush2.msra.mxu0 %v7021
    %7097 = vmatprep.subr.mxu0 %v7020
    %7098 = vmatpush2.msra.mxu0 %v7019
    %7099 = vmatprep.subr.mxu0 %v7018
    %7100 = vmatpush2.msra.mxu0 %v7017
    %7101 = vmatprep.subr.mxu0 %v7016
    %7102 = vmatpush2.msra.mxu0 %v7015
    %7103 = vmatprep.subr.mxu0 %v7014
    %7104 = vmatpush2.msra.mxu0 %v7013
    %7105 = vmatprep.subr.mxu0 %v7012
    %7106 = vmatpush2.msra.mxu0 %v7011
    %7107 = vmatprep.mubr.f32.mxu0 %v6976
    %7108 = vmatmul.mubr.f32.gmra.mxu0 %v6975
    %v7109 = vpop.f32.mrf.mxu0
    %v7110 = vadd.f32 0.0, %v7109
    %v7111 = vpop.f32.mrf.mxu0
    %v7112 = vadd.f32 0.0, %v7111
    %7113 = vmatprep.mubr.f32.mxu0 %v6978
    %7114 = vmatmul.mubr.f32.gmra.mxu0 %v6977
    %v7115 = vpop.f32.mrf.mxu0
    %v7116 = vadd.f32 0.0, %v7115
    %v7117 = vpop.f32.mrf.mxu0
    %v7118 = vadd.f32 0.0, %v7117
    %7119 = vdwg.mxu0
    %s7120 = scalar_lea.vmem [#allocation20], 512
    %v7121 = vld [vmem:[%s7120] sm:$0xff]
    %v7122 = vld [vmem:[%s7120 + $0x8] sm:$0xff]
    %v7123 = vld [vmem:[%s7120 + $0x10] sm:$0xff]
    %v7124 = vld [vmem:[%s7120 + $0x18] sm:$0xff]
    %v7125 = vld [vmem:[%s7120 + $0x20] sm:$0xff]
    %v7126 = vld [vmem:[%s7120 + $0x28] sm:$0xff]
    %v7127 = vld [vmem:[%s7120 + $0x30] sm:$0xff]
    %v7128 = vld [vmem:[%s7120 + $0x38] sm:$0xff]
    %v7129 = vld [vmem:[%s7120 + $0x40] sm:$0xff]
    %v7130 = vld [vmem:[%s7120 + $0x48] sm:$0xff]
    %v7131 = vld [vmem:[%s7120 + $0x50] sm:$0xff]
    %v7132 = vld [vmem:[%s7120 + $0x58] sm:$0xff]
    %v7133 = vld [vmem:[%s7120 + $0x60] sm:$0xff]
    %v7134 = vld [vmem:[%s7120 + $0x68] sm:$0xff]
    %v7135 = vld [vmem:[%s7120 + $0x70] sm:$0xff]
    %v7136 = vld [vmem:[%s7120 + $0x78] sm:$0xff]
    %v7137 = vld [vmem:[%s7120 + $0x80] sm:$0xff]
    %v7138 = vld [vmem:[%s7120 + $0x88] sm:$0xff]
    %v7139 = vld [vmem:[%s7120 + $0x90] sm:$0xff]
    %v7140 = vld [vmem:[%s7120 + $0x98] sm:$0xff]
    %v7141 = vld [vmem:[%s7120 + $0xa0] sm:$0xff]
    %v7142 = vld [vmem:[%s7120 + $0xa8] sm:$0xff]
    %v7143 = vld [vmem:[%s7120 + $0xb0] sm:$0xff]
    %v7144 = vld [vmem:[%s7120 + $0xb8] sm:$0xff]
    %v7145 = vld [vmem:[%s7120 + $0xc0] sm:$0xff]
    %v7146 = vld [vmem:[%s7120 + $0xc8] sm:$0xff]
    %v7147 = vld [vmem:[%s7120 + $0xd0] sm:$0xff]
    %v7148 = vld [vmem:[%s7120 + $0xd8] sm:$0xff]
    %v7149 = vld [vmem:[%s7120 + $0xe0] sm:$0xff]
    %v7150 = vld [vmem:[%s7120 + $0xe8] sm:$0xff]
    %v7151 = vld [vmem:[%s7120 + $0xf0] sm:$0xff]
    %v7152 = vld [vmem:[%s7120 + $0xf8] sm:$0xff]
    %v7153 = vld [vmem:[%s7120 + $0x100] sm:$0xff]
    %v7154 = vld [vmem:[%s7120 + $0x108] sm:$0xff]
    %v7155 = vld [vmem:[%s7120 + $0x110] sm:$0xff]
    %v7156 = vld [vmem:[%s7120 + $0x118] sm:$0xff]
    %v7157 = vld [vmem:[%s7120 + $0x120] sm:$0xff]
    %v7158 = vld [vmem:[%s7120 + $0x128] sm:$0xff]
    %v7159 = vld [vmem:[%s7120 + $0x130] sm:$0xff]
    %v7160 = vld [vmem:[%s7120 + $0x138] sm:$0xff]
    %v7161 = vld [vmem:[%s7120 + $0x140] sm:$0xff]
    %v7162 = vld [vmem:[%s7120 + $0x148] sm:$0xff]
    %v7163 = vld [vmem:[%s7120 + $0x150] sm:$0xff]
    %v7164 = vld [vmem:[%s7120 + $0x158] sm:$0xff]
    %v7165 = vld [vmem:[%s7120 + $0x160] sm:$0xff]
    %v7166 = vld [vmem:[%s7120 + $0x168] sm:$0xff]
    %v7167 = vld [vmem:[%s7120 + $0x170] sm:$0xff]
    %v7168 = vld [vmem:[%s7120 + $0x178] sm:$0xff]
    %v7169 = vld [vmem:[%s7120 + $0x180] sm:$0xff]
    %v7170 = vld [vmem:[%s7120 + $0x188] sm:$0xff]
    %v7171 = vld [vmem:[%s7120 + $0x190] sm:$0xff]
    %v7172 = vld [vmem:[%s7120 + $0x198] sm:$0xff]
    %v7173 = vld [vmem:[%s7120 + $0x1a0] sm:$0xff]
    %v7174 = vld [vmem:[%s7120 + $0x1a8] sm:$0xff]
    %v7175 = vld [vmem:[%s7120 + $0x1b0] sm:$0xff]
    %v7176 = vld [vmem:[%s7120 + $0x1b8] sm:$0xff]
    %v7177 = vld [vmem:[%s7120 + $0x1c0] sm:$0xff]
    %v7178 = vld [vmem:[%s7120 + $0x1c8] sm:$0xff]
    %v7179 = vld [vmem:[%s7120 + $0x1d0] sm:$0xff]
    %v7180 = vld [vmem:[%s7120 + $0x1d8] sm:$0xff]
    %v7181 = vld [vmem:[%s7120 + $0x1e0] sm:$0xff]
    %v7182 = vld [vmem:[%s7120 + $0x1e8] sm:$0xff]
    %v7183 = vld [vmem:[%s7120 + $0x1f0] sm:$0xff]
    %v7184 = vld [vmem:[%s7120 + $0x1f8] sm:$0xff]
    %7185 = vmatprep.subr.mxu0 %v7152
    %7186 = vmatpush1.msra.mxu0 %v7151
    %7187 = vmatprep.subr.mxu0 %v7150
    %7188 = vmatpush1.msra.mxu0 %v7149
    %7189 = vmatprep.subr.mxu0 %v7148
    %7190 = vmatpush1.msra.mxu0 %v7147
    %7191 = vmatprep.subr.mxu0 %v7146
    %7192 = vmatpush1.msra.mxu0 %v7145
    %7193 = vmatprep.subr.mxu0 %v7144
    %7194 = vmatpush1.msra.mxu0 %v7143
    %7195 = vmatprep.subr.mxu0 %v7142
    %7196 = vmatpush1.msra.mxu0 %v7141
    %7197 = vmatprep.subr.mxu0 %v7140
    %7198 = vmatpush1.msra.mxu0 %v7139
    %7199 = vmatprep.subr.mxu0 %v7138
    %7200 = vmatpush1.msra.mxu0 %v7137
    %7201 = vmatprep.subr.mxu0 %v7136
    %7202 = vmatpush1.msra.mxu0 %v7135
    %7203 = vmatprep.subr.mxu0 %v7134
    %7204 = vmatpush1.msra.mxu0 %v7133
    %7205 = vmatprep.subr.mxu0 %v7132
    %7206 = vmatpush1.msra.mxu0 %v7131
    %7207 = vmatprep.subr.mxu0 %v7130
    %7208 = vmatpush1.msra.mxu0 %v7129
    %7209 = vmatprep.subr.mxu0 %v7128
    %7210 = vmatpush1.msra.mxu0 %v7127
    %7211 = vmatprep.subr.mxu0 %v7126
    %7212 = vmatpush1.msra.mxu0 %v7125
    %7213 = vmatprep.subr.mxu0 %v7124
    %7214 = vmatpush1.msra.mxu0 %v7123
    %7215 = vmatprep.subr.mxu0 %v7122
    %7216 = vmatpush1.msra.mxu0 %v7121
    %7217 = vmatprep.subr.mxu0 %v7184
    %7218 = vmatpush2.msra.mxu0 %v7183
    %7219 = vmatprep.subr.mxu0 %v7182
    %7220 = vmatpush2.msra.mxu0 %v7181
    %7221 = vmatprep.subr.mxu0 %v7180
    %7222 = vmatpush2.msra.mxu0 %v7179
    %7223 = vmatprep.subr.mxu0 %v7178
    %7224 = vmatpush2.msra.mxu0 %v7177
    %7225 = vmatprep.subr.mxu0 %v7176
    %7226 = vmatpush2.msra.mxu0 %v7175
    %7227 = vmatprep.subr.mxu0 %v7174
    %7228 = vmatpush2.msra.mxu0 %v7173
    %7229 = vmatprep.subr.mxu0 %v7172
    %7230 = vmatpush2.msra.mxu0 %v7171
    %7231 = vmatprep.subr.mxu0 %v7170
    %7232 = vmatpush2.msra.mxu0 %v7169
    %7233 = vmatprep.subr.mxu0 %v7168
    %7234 = vmatpush2.msra.mxu0 %v7167
    %7235 = vmatprep.subr.mxu0 %v7166
    %7236 = vmatpush2.msra.mxu0 %v7165
    %7237 = vmatprep.subr.mxu0 %v7164
    %7238 = vmatpush2.msra.mxu0 %v7163
    %7239 = vmatprep.subr.mxu0 %v7162
    %7240 = vmatpush2.msra.mxu0 %v7161
    %7241 = vmatprep.subr.mxu0 %v7160
    %7242 = vmatpush2.msra.mxu0 %v7159
    %7243 = vmatprep.subr.mxu0 %v7158
    %7244 = vmatpush2.msra.mxu0 %v7157
    %7245 = vmatprep.subr.mxu0 %v7156
    %7246 = vmatpush2.msra.mxu0 %v7155
    %7247 = vmatprep.subr.mxu0 %v7154
    %7248 = vmatpush2.msra.mxu0 %v7153
    %7249 = vmatprep.mubr.f32.mxu0 %v6976
    %7250 = vmatmul.mubr.f32.gmra.mxu0 %v6975
    %v7251 = vpop.f32.mrf.mxu0
    %v7252 = vadd.f32 0.0, %v7251
    %v7253 = vpop.f32.mrf.mxu0
    %v7254 = vadd.f32 0.0, %v7253
    %7255 = vmatprep.mubr.f32.mxu0 %v6978
    %7256 = vmatmul.mubr.f32.gmra.mxu0 %v6977
    %v7257 = vpop.f32.mrf.mxu0
    %v7258 = vadd.f32 0.0, %v7257
    %v7259 = vpop.f32.mrf.mxu0
    %v7260 = vadd.f32 0.0, %v7259
    %7261 = vdwg.mxu0
    %s7262 = scalar_lea.vmem [#allocation20], 1024
    %v7263 = vld [vmem:[%s7262] sm:$0xff]
    %v7264 = vld [vmem:[%s7262 + $0x8] sm:$0xff]
    %v7265 = vld [vmem:[%s7262 + $0x10] sm:$0xff]
    %v7266 = vld [vmem:[%s7262 + $0x18] sm:$0xff]
    %v7267 = vld [vmem:[%s7262 + $0x20] sm:$0xff]
    %v7268 = vld [vmem:[%s7262 + $0x28] sm:$0xff]
    %v7269 = vld [vmem:[%s7262 + $0x30] sm:$0xff]
    %v7270 = vld [vmem:[%s7262 + $0x38] sm:$0xff]
    %v7271 = vld [vmem:[%s7262 + $0x40] sm:$0xff]
    %v7272 = vld [vmem:[%s7262 + $0x48] sm:$0xff]
    %v7273 = vld [vmem:[%s7262 + $0x50] sm:$0xff]
    %v7274 = vld [vmem:[%s7262 + $0x58] sm:$0xff]
    %v7275 = vld [vmem:[%s7262 + $0x60] sm:$0xff]
    %v7276 = vld [vmem:[%s7262 + $0x68] sm:$0xff]
    %v7277 = vld [vmem:[%s7262 + $0x70] sm:$0xff]
    %v7278 = vld [vmem:[%s7262 + $0x78] sm:$0xff]
    %v7279 = vld [vmem:[%s7262 + $0x80] sm:$0xff]
    %v7280 = vld [vmem:[%s7262 + $0x88] sm:$0xff]
    %v7281 = vld [vmem:[%s7262 + $0x90] sm:$0xff]
    %v7282 = vld [vmem:[%s7262 + $0x98] sm:$0xff]
    %v7283 = vld [vmem:[%s7262 + $0xa0] sm:$0xff]
    %v7284 = vld [vmem:[%s7262 + $0xa8] sm:$0xff]
    %v7285 = vld [vmem:[%s7262 + $0xb0] sm:$0xff]
    %v7286 = vld [vmem:[%s7262 + $0xb8] sm:$0xff]
    %v7287 = vld [vmem:[%s7262 + $0xc0] sm:$0xff]
    %v7288 = vld [vmem:[%s7262 + $0xc8] sm:$0xff]
    %v7289 = vld [vmem:[%s7262 + $0xd0] sm:$0xff]
    %v7290 = vld [vmem:[%s7262 + $0xd8] sm:$0xff]
    %v7291 = vld [vmem:[%s7262 + $0xe0] sm:$0xff]
    %v7292 = vld [vmem:[%s7262 + $0xe8] sm:$0xff]
    %v7293 = vld [vmem:[%s7262 + $0xf0] sm:$0xff]
    %v7294 = vld [vmem:[%s7262 + $0xf8] sm:$0xff]
    %v7295 = vld [vmem:[%s7262 + $0x100] sm:$0xff]
    %v7296 = vld [vmem:[%s7262 + $0x108] sm:$0xff]
    %v7297 = vld [vmem:[%s7262 + $0x110] sm:$0xff]
    %v7298 = vld [vmem:[%s7262 + $0x118] sm:$0xff]
    %v7299 = vld [vmem:[%s7262 + $0x120] sm:$0xff]
    %v7300 = vld [vmem:[%s7262 + $0x128] sm:$0xff]
    %v7301 = vld [vmem:[%s7262 + $0x130] sm:$0xff]
    %v7302 = vld [vmem:[%s7262 + $0x138] sm:$0xff]
    %v7303 = vld [vmem:[%s7262 + $0x140] sm:$0xff]
    %v7304 = vld [vmem:[%s7262 + $0x148] sm:$0xff]
    %v7305 = vld [vmem:[%s7262 + $0x150] sm:$0xff]
    %v7306 = vld [vmem:[%s7262 + $0x158] sm:$0xff]
    %v7307 = vld [vmem:[%s7262 + $0x160] sm:$0xff]
    %v7308 = vld [vmem:[%s7262 + $0x168] sm:$0xff]
    %v7309 = vld [vmem:[%s7262 + $0x170] sm:$0xff]
    %v7310 = vld [vmem:[%s7262 + $0x178] sm:$0xff]
    %v7311 = vld [vmem:[%s7262 + $0x180] sm:$0xff]
    %v7312 = vld [vmem:[%s7262 + $0x188] sm:$0xff]
    %v7313 = vld [vmem:[%s7262 + $0x190] sm:$0xff]
    %v7314 = vld [vmem:[%s7262 + $0x198] sm:$0xff]
    %v7315 = vld [vmem:[%s7262 + $0x1a0] sm:$0xff]
    %v7316 = vld [vmem:[%s7262 + $0x1a8] sm:$0xff]
    %v7317 = vld [vmem:[%s7262 + $0x1b0] sm:$0xff]
    %v7318 = vld [vmem:[%s7262 + $0x1b8] sm:$0xff]
    %v7319 = vld [vmem:[%s7262 + $0x1c0] sm:$0xff]
    %v7320 = vld [vmem:[%s7262 + $0x1c8] sm:$0xff]
    %v7321 = vld [vmem:[%s7262 + $0x1d0] sm:$0xff]
    %v7322 = vld [vmem:[%s7262 + $0x1d8] sm:$0xff]
    %v7323 = vld [vmem:[%s7262 + $0x1e0] sm:$0xff]
    %v7324 = vld [vmem:[%s7262 + $0x1e8] sm:$0xff]
    %v7325 = vld [vmem:[%s7262 + $0x1f0] sm:$0xff]
    %v7326 = vld [vmem:[%s7262 + $0x1f8] sm:$0xff]
    %7327 = vmatprep.subr.mxu0 %v7294
    %7328 = vmatpush1.msra.mxu0 %v7293
    %7329 = vmatprep.subr.mxu0 %v7292
    %7330 = vmatpush1.msra.mxu0 %v7291
    %7331 = vmatprep.subr.mxu0 %v7290
    %7332 = vmatpush1.msra.mxu0 %v7289
    %7333 = vmatprep.subr.mxu0 %v7288
    %7334 = vmatpush1.msra.mxu0 %v7287
    %7335 = vmatprep.subr.mxu0 %v7286
    %7336 = vmatpush1.msra.mxu0 %v7285
    %7337 = vmatprep.subr.mxu0 %v7284
    %7338 = vmatpush1.msra.mxu0 %v7283
    %7339 = vmatprep.subr.mxu0 %v7282
    %7340 = vmatpush1.msra.mxu0 %v7281
    %7341 = vmatprep.subr.mxu0 %v7280
    %7342 = vmatpush1.msra.mxu0 %v7279
    %7343 = vmatprep.subr.mxu0 %v7278
    %7344 = vmatpush1.msra.mxu0 %v7277
    %7345 = vmatprep.subr.mxu0 %v7276
    %7346 = vmatpush1.msra.mxu0 %v7275
    %7347 = vmatprep.subr.mxu0 %v7274
    %7348 = vmatpush1.msra.mxu0 %v7273
    %7349 = vmatprep.subr.mxu0 %v7272
    %7350 = vmatpush1.msra.mxu0 %v7271
    %7351 = vmatprep.subr.mxu0 %v7270
    %7352 = vmatpush1.msra.mxu0 %v7269
    %7353 = vmatprep.subr.mxu0 %v7268
    %7354 = vmatpush1.msra.mxu0 %v7267
    %7355 = vmatprep.subr.mxu0 %v7266
    %7356 = vmatpush1.msra.mxu0 %v7265
    %7357 = vmatprep.subr.mxu0 %v7264
    %7358 = vmatpush1.msra.mxu0 %v7263
    %7359 = vmatprep.subr.mxu0 %v7326
    %7360 = vmatpush2.msra.mxu0 %v7325
    %7361 = vmatprep.subr.mxu0 %v7324
    %7362 = vmatpush2.msra.mxu0 %v7323
    %7363 = vmatprep.subr.mxu0 %v7322
    %7364 = vmatpush2.msra.mxu0 %v7321
    %7365 = vmatprep.subr.mxu0 %v7320
    %7366 = vmatpush2.msra.mxu0 %v7319
    %7367 = vmatprep.subr.mxu0 %v7318
    %7368 = vmatpush2.msra.mxu0 %v7317
    %7369 = vmatprep.subr.mxu0 %v7316
    %7370 = vmatpush2.msra.mxu0 %v7315
    %7371 = vmatprep.subr.mxu0 %v7314
    %7372 = vmatpush2.msra.mxu0 %v7313
    %7373 = vmatprep.subr.mxu0 %v7312
    %7374 = vmatpush2.msra.mxu0 %v7311
    %7375 = vmatprep.subr.mxu0 %v7310
    %7376 = vmatpush2.msra.mxu0 %v7309
    %7377 = vmatprep.subr.mxu0 %v7308
    %7378 = vmatpush2.msra.mxu0 %v7307
    %7379 = vmatprep.subr.mxu0 %v7306
    %7380 = vmatpush2.msra.mxu0 %v7305
    %7381 = vmatprep.subr.mxu0 %v7304
    %7382 = vmatpush2.msra.mxu0 %v7303
    %7383 = vmatprep.subr.mxu0 %v7302
    %7384 = vmatpush2.msra.mxu0 %v7301
    %7385 = vmatprep.subr.mxu0 %v7300
    %7386 = vmatpush2.msra.mxu0 %v7299
    %7387 = vmatprep.subr.mxu0 %v7298
    %7388 = vmatpush2.msra.mxu0 %v7297
    %7389 = vmatprep.subr.mxu0 %v7296
    %7390 = vmatpush2.msra.mxu0 %v7295
    %7391 = vmatprep.mubr.f32.mxu0 %v6976
    %7392 = vmatmul.mubr.f32.gmra.mxu0 %v6975
    %v7393 = vpop.f32.mrf.mxu0
    %v7394 = vadd.f32 0.0, %v7393
    %v7395 = vpop.f32.mrf.mxu0
    %v7396 = vadd.f32 0.0, %v7395
    %7397 = vmatprep.mubr.f32.mxu0 %v6978
    %7398 = vmatmul.mubr.f32.gmra.mxu0 %v6977
    %v7399 = vpop.f32.mrf.mxu0
    %v7400 = vadd.f32 0.0, %v7399
    %v7401 = vpop.f32.mrf.mxu0
    %v7402 = vadd.f32 0.0, %v7401
    %7403 = vdwg.mxu0
    %s7404 = scalar_lea.vmem [#allocation20], 1536
    %v7405 = vld [vmem:[%s7404] sm:$0xff]
    %v7406 = vld [vmem:[%s7404 + $0x8] sm:$0xff]
    %v7407 = vld [vmem:[%s7404 + $0x10] sm:$0xff]
    %v7408 = vld [vmem:[%s7404 + $0x18] sm:$0xff]
    %v7409 = vld [vmem:[%s7404 + $0x20] sm:$0xff]
    %v7410 = vld [vmem:[%s7404 + $0x28] sm:$0xff]
    %v7411 = vld [vmem:[%s7404 + $0x30] sm:$0xff]
    %v7412 = vld [vmem:[%s7404 + $0x38] sm:$0xff]
    %v7413 = vld [vmem:[%s7404 + $0x40] sm:$0xff]
    %v7414 = vld [vmem:[%s7404 + $0x48] sm:$0xff]
    %v7415 = vld [vmem:[%s7404 + $0x50] sm:$0xff]
    %v7416 = vld [vmem:[%s7404 + $0x58] sm:$0xff]
    %v7417 = vld [vmem:[%s7404 + $0x60] sm:$0xff]
    %v7418 = vld [vmem:[%s7404 + $0x68] sm:$0xff]
    %v7419 = vld [vmem:[%s7404 + $0x70] sm:$0xff]
    %v7420 = vld [vmem:[%s7404 + $0x78] sm:$0xff]
    %v7421 = vld [vmem:[%s7404 + $0x80] sm:$0xff]
    %v7422 = vld [vmem:[%s7404 + $0x88] sm:$0xff]
    %v7423 = vld [vmem:[%s7404 + $0x90] sm:$0xff]
    %v7424 = vld [vmem:[%s7404 + $0x98] sm:$0xff]
    %v7425 = vld [vmem:[%s7404 + $0xa0] sm:$0xff]
    %v7426 = vld [vmem:[%s7404 + $0xa8] sm:$0xff]
    %v7427 = vld [vmem:[%s7404 + $0xb0] sm:$0xff]
    %v7428 = vld [vmem:[%s7404 + $0xb8] sm:$0xff]
    %v7429 = vld [vmem:[%s7404 + $0xc0] sm:$0xff]
    %v7430 = vld [vmem:[%s7404 + $0xc8] sm:$0xff]
    %v7431 = vld [vmem:[%s7404 + $0xd0] sm:$0xff]
    %v7432 = vld [vmem:[%s7404 + $0xd8] sm:$0xff]
    %v7433 = vld [vmem:[%s7404 + $0xe0] sm:$0xff]
    %v7434 = vld [vmem:[%s7404 + $0xe8] sm:$0xff]
    %v7435 = vld [vmem:[%s7404 + $0xf0] sm:$0xff]
    %v7436 = vld [vmem:[%s7404 + $0xf8] sm:$0xff]
    %v7437 = vld [vmem:[%s7404 + $0x100] sm:$0xff]
    %v7438 = vld [vmem:[%s7404 + $0x108] sm:$0xff]
    %v7439 = vld [vmem:[%s7404 + $0x110] sm:$0xff]
    %v7440 = vld [vmem:[%s7404 + $0x118] sm:$0xff]
    %v7441 = vld [vmem:[%s7404 + $0x120] sm:$0xff]
    %v7442 = vld [vmem:[%s7404 + $0x128] sm:$0xff]
    %v7443 = vld [vmem:[%s7404 + $0x130] sm:$0xff]
    %v7444 = vld [vmem:[%s7404 + $0x138] sm:$0xff]
    %v7445 = vld [vmem:[%s7404 + $0x140] sm:$0xff]
    %v7446 = vld [vmem:[%s7404 + $0x148] sm:$0xff]
    %v7447 = vld [vmem:[%s7404 + $0x150] sm:$0xff]
    %v7448 = vld [vmem:[%s7404 + $0x158] sm:$0xff]
    %v7449 = vld [vmem:[%s7404 + $0x160] sm:$0xff]
    %v7450 = vld [vmem:[%s7404 + $0x168] sm:$0xff]
    %v7451 = vld [vmem:[%s7404 + $0x170] sm:$0xff]
    %v7452 = vld [vmem:[%s7404 + $0x178] sm:$0xff]
    %v7453 = vld [vmem:[%s7404 + $0x180] sm:$0xff]
    %v7454 = vld [vmem:[%s7404 + $0x188] sm:$0xff]
    %v7455 = vld [vmem:[%s7404 + $0x190] sm:$0xff]
    %v7456 = vld [vmem:[%s7404 + $0x198] sm:$0xff]
    %v7457 = vld [vmem:[%s7404 + $0x1a0] sm:$0xff]
    %v7458 = vld [vmem:[%s7404 + $0x1a8] sm:$0xff]
    %v7459 = vld [vmem:[%s7404 + $0x1b0] sm:$0xff]
    %v7460 = vld [vmem:[%s7404 + $0x1b8] sm:$0xff]
    %v7461 = vld [vmem:[%s7404 + $0x1c0] sm:$0xff]
    %v7462 = vld [vmem:[%s7404 + $0x1c8] sm:$0xff]
    %v7463 = vld [vmem:[%s7404 + $0x1d0] sm:$0xff]
    %v7464 = vld [vmem:[%s7404 + $0x1d8] sm:$0xff]
    %v7465 = vld [vmem:[%s7404 + $0x1e0] sm:$0xff]
    %v7466 = vld [vmem:[%s7404 + $0x1e8] sm:$0xff]
    %v7467 = vld [vmem:[%s7404 + $0x1f0] sm:$0xff]
    %v7468 = vld [vmem:[%s7404 + $0x1f8] sm:$0xff]
    %7469 = vmatprep.subr.mxu0 %v7436
    %7470 = vmatpush1.msra.mxu0 %v7435
    %7471 = vmatprep.subr.mxu0 %v7434
    %7472 = vmatpush1.msra.mxu0 %v7433
    %7473 = vmatprep.subr.mxu0 %v7432
    %7474 = vmatpush1.msra.mxu0 %v7431
    %7475 = vmatprep.subr.mxu0 %v7430
    %7476 = vmatpush1.msra.mxu0 %v7429
    %7477 = vmatprep.subr.mxu0 %v7428
    %7478 = vmatpush1.msra.mxu0 %v7427
    %7479 = vmatprep.subr.mxu0 %v7426
    %7480 = vmatpush1.msra.mxu0 %v7425
    %7481 = vmatprep.subr.mxu0 %v7424
    %7482 = vmatpush1.msra.mxu0 %v7423
    %7483 = vmatprep.subr.mxu0 %v7422
    %7484 = vmatpush1.msra.mxu0 %v7421
    %7485 = vmatprep.subr.mxu0 %v7420
    %7486 = vmatpush1.msra.mxu0 %v7419
    %7487 = vmatprep.subr.mxu0 %v7418
    %7488 = vmatpush1.msra.mxu0 %v7417
    %7489 = vmatprep.subr.mxu0 %v7416
    %7490 = vmatpush1.msra.mxu0 %v7415
    %7491 = vmatprep.subr.mxu0 %v7414
    %7492 = vmatpush1.msra.mxu0 %v7413
    %7493 = vmatprep.subr.mxu0 %v7412
    %7494 = vmatpush1.msra.mxu0 %v7411
    %7495 = vmatprep.subr.mxu0 %v7410
    %7496 = vmatpush1.msra.mxu0 %v7409
    %7497 = vmatprep.subr.mxu0 %v7408
    %7498 = vmatpush1.msra.mxu0 %v7407
    %7499 = vmatprep.subr.mxu0 %v7406
    %7500 = vmatpush1.msra.mxu0 %v7405
    %7501 = vmatprep.subr.mxu0 %v7468
    %7502 = vmatpush2.msra.mxu0 %v7467
    %7503 = vmatprep.subr.mxu0 %v7466
    %7504 = vmatpush2.msra.mxu0 %v7465
    %7505 = vmatprep.subr.mxu0 %v7464
    %7506 = vmatpush2.msra.mxu0 %v7463
    %7507 = vmatprep.subr.mxu0 %v7462
    %7508 = vmatpush2.msra.mxu0 %v7461
    %7509 = vmatprep.subr.mxu0 %v7460
    %7510 = vmatpush2.msra.mxu0 %v7459
    %7511 = vmatprep.subr.mxu0 %v7458
    %7512 = vmatpush2.msra.mxu0 %v7457
    %7513 = vmatprep.subr.mxu0 %v7456
    %7514 = vmatpush2.msra.mxu0 %v7455
    %7515 = vmatprep.subr.mxu0 %v7454
    %7516 = vmatpush2.msra.mxu0 %v7453
    %7517 = vmatprep.subr.mxu0 %v7452
    %7518 = vmatpush2.msra.mxu0 %v7451
    %7519 = vmatprep.subr.mxu0 %v7450
    %7520 = vmatpush2.msra.mxu0 %v7449
    %7521 = vmatprep.subr.mxu0 %v7448
    %7522 = vmatpush2.msra.mxu0 %v7447
    %7523 = vmatprep.subr.mxu0 %v7446
    %7524 = vmatpush2.msra.mxu0 %v7445
    %7525 = vmatprep.subr.mxu0 %v7444
    %7526 = vmatpush2.msra.mxu0 %v7443
    %7527 = vmatprep.subr.mxu0 %v7442
    %7528 = vmatpush2.msra.mxu0 %v7441
    %7529 = vmatprep.subr.mxu0 %v7440
    %7530 = vmatpush2.msra.mxu0 %v7439
    %7531 = vmatprep.subr.mxu0 %v7438
    %7532 = vmatpush2.msra.mxu0 %v7437
    %7533 = vmatprep.mubr.f32.mxu0 %v6976
    %7534 = vmatmul.mubr.f32.gmra.mxu0 %v6975
    %v7535 = vpop.f32.mrf.mxu0
    %v7536 = vadd.f32 0.0, %v7535
    %v7537 = vpop.f32.mrf.mxu0
    %v7538 = vadd.f32 0.0, %v7537
    %7539 = vmatprep.mubr.f32.mxu0 %v6978
    %7540 = vmatmul.mubr.f32.gmra.mxu0 %v6977
    %v7541 = vpop.f32.mrf.mxu0
    %v7542 = vadd.f32 0.0, %v7541
    %v7543 = vpop.f32.mrf.mxu0
    %v7544 = vadd.f32 0.0, %v7543
    %7545 = vdwg.mxu0
    %v7550 = vrot.slane %v7536, 7
    %v7551 = vrot.slane %v7538, 7
    %v7552 = vrot.slane %v7542, 7
    %v7553 = vrot.slane %v7544, 7
    %vm7558 = vcmask 1040384
    %v7559 = vsel %vm7558, 0.0, %v7550
    %v7560 = vsel %vm7558, 0.0, %v7551
    %v7561 = vsel %vm7558, 0.0, %v7552
    %v7562 = vsel %vm7558, 0.0, %v7553
    %v7567 = vrot.slane %v7110, 1
    %v7568 = vrot.slane %v7112, 1
    %v7569 = vrot.slane %v7116, 1
    %v7570 = vrot.slane %v7118, 1
    %vm7575 = vcmask 1046528
    %v7576 = vsel %vm7575, %v7567, 0.0
    %v7577 = vsel %vm7575, %v7568, 0.0
    %v7578 = vsel %vm7575, %v7569, 0.0
    %v7579 = vsel %vm7575, %v7570, 0.0
    %v7580 = vld [vmem:[%s63] sm:$0x3]
    %v7581 = vadd.f32 %v7252, %v7559
    %v7582 = vadd.f32 %v7254, %v7560
    %v7583 = vadd.f32 %v7258, %v7561
    %v7584 = vadd.f32 %v7260, %v7562
    %v7586 = vlaneseq
    %v7587 = vshrl.u32 %v7586, 7
    %v7588 = vsub.s32 0, %v7587
    %v7589 = vrot.slane %v7580, %v7588
    %v7590 = vlaneseq
    %v7591 = vshrl.u32 %v7590, 7
    %v7592 = vsub.s32 1, %v7591
    %v7593 = vrot.slane %v7580, %v7592
    %v7596 = vadd.f32 %v7581, %v7589
    %v7597 = vadd.f32 %v7582, %v7593
    %v7598 = vadd.f32 %v7583, %v7589
    %v7599 = vadd.f32 %v7584, %v7593
    %v7600 = vadd.f32 %v7394, %v7576
    %v7601 = vadd.f32 %v7396, %v7577
    %v7602 = vadd.f32 %v7400, %v7578
    %v7603 = vadd.f32 %v7402, %v7579
    %v7604 = vadd.f32 %v7600, %v7589
    %v7605 = vadd.f32 %v7601, %v7593
    %v7606 = vadd.f32 %v7602, %v7589
    %v7607 = vadd.f32 %v7603, %v7593
    %7608 = vst [vmem:[#allocation22] sm:$0xff] %v7596
    %7609 = vst [vmem:[#allocation22 + $0x8] sm:$0xff] %v7597
    %7610 = vst [vmem:[#allocation22 + $0x20] sm:$0xff] %v7598
    %7611 = vst [vmem:[#allocation22 + $0x28] sm:$0xff] %v7599
    %s7612 = scalar_lea.vmem [#allocation22], 16
    %7613 = vst [vmem:[%s7612] sm:$0xff] %v7604
    %7614 = vst [vmem:[%s7612 + $0x8] sm:$0xff] %v7605
    %7615 = vst [vmem:[%s7612 + $0x20] sm:$0xff] %v7606
    %7616 = vst [vmem:[%s7612 + $0x28] sm:$0xff] %v7607
    // Predicated region
    $region178: #{tpu_custom_call.1} parent=1 // pred_check
      _
    $region179: #{tpu_custom_call.1} parent=1 // pred_check_branch
      %7618 = sbr.rel (0) target = $region181
    $region180: #{tpu_custom_call.1} parent=1 // pred_region
      %s7620 = ssub.s32 1024, 1024
      %7621 = vsyncadd [#allocation4], %s7620
      %s7622 = sshll.u32 [#allocation22], 4
      %s7623 = int_to_ptr.vmem [resolvable:$true] %s7622
      %7628 = dma.vmem_to_hbm [thread:$0]  %s7623, 1024, %s65, [#allocation4], 256, 256, 16
    $region181: #{tpu_custom_call.1} parent=1 // pred_fallthru
      _
    // Predicated region
    $region182: #{tpu_custom_call.1} parent=1 // pred_check
      _
    $region183: #{tpu_custom_call.1} parent=1 // pred_check_branch
      %7630 = sbr.rel (0) target = $region185
    $region184: #{tpu_custom_call.1} parent=1 // pred_region
      %7631 = dma.done [#allocation4], 1024
    $region185: #{tpu_custom_call.1} parent=1 // pred_fallthru
      _
    %7632 = vsyncpa [#allocation3], 1
    %7633 = vsyncpa [#allocation6], 1
    %7634 = vsyncpa [#allocation9], 1
    %7635 = vsyncpa [#allocation12], 1
    %7636 = vsyncpa [#allocation15], 1
    %7637 = vsyncpa [#allocation18], 1
    %7638 = vsyncpa [#allocation21], 1
    %7639 = vsyncpa [#allocation4], 1

</llo_original>
